<compile_context>
chip_gen: v6e
topology: v6e:2x2x1
jax: 0.10.0
libtpu: 0.0.40
codegen_flags: <defaults>
</compile_context>

<pallas_src>
import math

import jax
import jax.numpy as jnp
from jax import lax
from jax.experimental import pallas as pl
from jax.experimental.pallas import tpu as pltpu


def base_encoder_kernel(
    x_ref,        # [L, Bt, Din] bf16, time-major input tile
    len_ref,      # [Bt, 1] int32, unpadded sequence lengths (trailing padding only)
    wih_ref,      # [Din, 8H] bf16, fused fwd|bwd input->gate weights
    bih_ref,      # [1, 8H]   f32,  fused fwd|bwd gate biases (b_ih + b_hh)
    whh_f_ref,    # [H, 4H]   f32,  fwd recurrent weights
    whh_b_ref,    # [H, 4H]   f32,  bwd recurrent weights
    wqkv_ref,     # [H, 3H]   bf16, fused Q|K|V projection (Q pre-scaled by 1/sqrt(H))
    wclf_ref,     # [H, C]    bf16, classifier weights
    bclf_ref,     # [1, C]    f32,  classifier bias
    out_ref,      # [Bt, C]   f32,  logits
    gin_scr,      # VMEM [L, Bt, 8H] f32, hoisted fused input projection
    of_scr,       # VMEM [L, Bt, H]  f32, forward hidden states (time-major, masked)
    ob_scr,       # VMEM [L, Bt, H]  f32, backward hidden states (time-major)
):
    L, Bt, _ = x_ref.shape
    H = whh_f_ref.shape[0]
    H4 = 4 * H

    # ---- hoisted, fused input projection: one bf16 MXU pass over x for both directions ----
    gin_scr[...] = (jnp.einsum('lbd,dg->lbg', x_ref[...], wih_ref[...],
                               preferred_element_type=jnp.float32) + bih_ref[...])

    # Loop-invariant loads hoisted out of the recurrence.
    whh_f = whh_f_ref[...]
    whh_b = whh_b_ref[...]
    len_col = len_ref[...]                                    # [Bt, 1] int32

    def sigm(x):
        # sigmoid as a single tanh EUP push (exact identity) instead of exp + reciprocal.
        return 0.5 * jnp.tanh(0.5 * x) + 0.5

    def gates_to_hc(g, c):
        # PyTorch LSTM gate order: i, f, g, o.
        # NOTE: these lane slices are free vreg views when H % 128 == 0; pad H in production.
        i_g = sigm(g[:, 0:H])
        f_g = sigm(g[:, H:2 * H])
        g_g = jnp.tanh(g[:, 2 * H:3 * H])
        o_g = sigm(g[:, 3 * H:4 * H])
        c_new = f_g * c + i_g * g_g
        return o_g * jnp.tanh(c_new), c_new

    # ---- fused fwd + bwd recurrence; state lives in loop carries (vregs) ----
    def step(t, carry):
        h_f, c_f, h_b, c_b = carry
        tb = L - 1 - t

        gin_t = gin_scr[t]                                     # [Bt, 8H] contiguous load
        gin_tb = gin_scr[tb]

        # forward direction at t (only the recurrent matmul is on the serial path)
        g_f = gin_t[:, :H4] + jnp.dot(h_f, whh_f, preferred_element_type=jnp.float32)
        h_f, c_f = gates_to_hc(g_f, c_f)
        m_f = (len_col > t).astype(jnp.float32)                # [Bt, 1] VPU compare
        of_scr[t] = h_f * m_f                                  # lane-dense contiguous store

        # backward direction at tb (state frozen on padded positions via lerp, no select)
        g_b = gin_tb[:, H4:] + jnp.dot(h_b, whh_b, preferred_element_type=jnp.float32)
        h_bn, c_bn = gates_to_hc(g_b, c_b)
        m_b = (len_col > tb).astype(jnp.float32)
        h_b = h_b + m_b * (h_bn - h_b)
        c_b = c_b + m_b * (c_bn - c_b)
        # padded positions (seen first in bwd order) keep the zero initial state -> stores 0
        ob_scr[tb] = h_b

        return h_f, c_f, h_b, c_b

    z = jnp.zeros((Bt, H), jnp.float32)
    # Fully unroll only for small L (vreg pressure of the 4 carries); partial unroll otherwise.
    lax.fori_loop(0, L, step, (z, z, z, z), unroll=True if L <= 16 else 4)

    # ---- merge_bi == "sum"; one relayout to batch-major for the attention stage ----
    o = jnp.transpose(of_scr[...] + ob_scr[...], (1, 0, 2))    # [Bt, L, H]

    # Fused Q/K/V projection (bf16 operands, f32 accumulation); wq already holds 1/sqrt(H).
    o16 = o.astype(wqkv_ref.dtype)
    qkv = jnp.einsum('blh,hg->blg', o16, wqkv_ref[...],
                     preferred_element_type=jnp.float32)        # [Bt, L, 3H]
    q = qkv[:, :, 0:H].astype(o16.dtype)
    k = qkv[:, :, H:2 * H].astype(o16.dtype)
    v = qkv[:, :, 2 * H:3 * H].astype(o16.dtype)

    # Additive key mask built in-kernel from lengths (no [Bt,1,L] HBM input).
    key_pos = lax.broadcasted_iota(jnp.int32, (Bt, 1, L), 2)
    addmask = jnp.where(key_pos < len_col[:, :, None], 0.0, -1e9).astype(jnp.float32)

    scores = jnp.einsum('bqh,bkh->bqk', q, k,
                        preferred_element_type=jnp.float32) + addmask     # [Bt, L, L]
    # TODO(synk): for L beyond ~256, tile this softmax over the key axis (flash-style running
    # max / sum) to keep the [Bt, L, L] live value under v7x's 64 MiB VMEM.
    s_max = jnp.max(scores, axis=-1, keepdims=True)
    e = jnp.exp(scores - s_max)
    denom = jnp.sum(e, axis=-1, keepdims=True)
    p = e * pl.reciprocal(denom, approx=True)                   # softmax, EUP reciprocal

    # sum over the query axis BEFORE the PV matmul: sum_q P V == (sum_q P) V
    w = jnp.sum(p, axis=1, keepdims=True).astype(o16.dtype)     # [Bt, 1, L]
    fused = jnp.einsum('bqk,bkh->bqh', w, v,
                       preferred_element_type=jnp.float32)[:, 0, :]       # [Bt, H]

    # TODO(synk): nn.Dropout(p=0.2) is identity at inference; training-mode dropout not implemented.
    out_ref[...] = (jnp.dot(fused.astype(wclf_ref.dtype), wclf_ref[...],
                            preferred_element_type=jnp.float32) + bclf_ref[...])


def _vmem_capacity_bytes():
    try:
        return int(pltpu.get_tpu_info().vmem_capacity_bytes)
    except Exception:
        return 64 << 20          # conservative default (v7x per-TensorCore VMEM)


def _auto_batch_tile(B, L, Din, H, C, vmem_limit_bytes):
    """Largest batch tile that (a) fits the per-tile VMEM working set under the limit,
    (b) keeps the four [Bt, H] f32 recurrence carries within ~half the 256 KiB vreg file,
    and (c) leaves >= 2 grid tiles for large B so ("parallel",) can shard across both
    v7x TensorCores."""
    lane = 128
    weight_bytes = (2 * Din * 8 * H            # wih (bf16)
                    + 4 * 2 * H * 4 * H        # whh_f / whh_b (f32)
                    + 2 * H * 3 * H            # wqkv (bf16)
                    + 2 * H * max(C, lane)     # wclf (bf16, lane-padded)
                    + 4 * (8 * H + max(C, lane)))  # biases
    fixed = 2 * weight_bytes                   # worst case: double-buffered weights

    per_row = (4 * L * 8 * H                   # fused gate scratch (f32)
               + 4 * 2 * L * max(H, lane)      # fwd/bwd hidden scratch (f32, lane-padded)
               + 2 * 2 * L * Din               # double-buffered bf16 x tile
               + 4 * 3 * L * max(L, lane))     # softmax intermediates [Bt, L, L]

    budget = int(vmem_limit_bytes * 0.8) - fixed
    bt = max(8, budget // max(per_row, 1))
    bt = min(bt, (128 * 1024) // (16 * H))     # vreg cap: 4x [Bt,H] f32 carries <= ~128 KiB
    bt = min(bt, 128)
    bt = min(bt, max(B, 8))
    bt = max(8, (bt // 8) * 8)
    if B >= 16 and pl.cdiv(B, bt) < 2:         # v7x megacore: prefer >= 2 parallel tiles
        bt = max(8, 8 * ((pl.cdiv(B, 2) + 7) // 8))
    return int(bt)


def base_encoder_forward(x, lengths, params, *, batch_tile=None, matmul_dtype=jnp.bfloat16):
    """x: [B, L, Din] float32, lengths: [B] int32 (trailing padding only). Returns logits [B, C]."""
    B, L, Din = x.shape
    H = params['whh_f'].shape[0]
    C = params['wclf'].shape[1]

    vmem_cap = _vmem_capacity_bytes()
    # ~54 MiB on v7x (64 MiB physical), capped at 100 MiB on v5e/v6e (128 MiB physical).
    vmem_limit = max(32 << 20, min(int(vmem_cap * 0.85), 100 << 20))

    if batch_tile is None:
        batch_tile = _auto_batch_tile(B, L, Din, H, C, vmem_limit)
    n_tiles = pl.cdiv(B, batch_tile)
    Bp = n_tiles * batch_tile
    if Bp != B:
        x = jnp.pad(x, ((0, Bp - B), (0, 0), (0, 0)))
        lengths = jnp.pad(lengths, (0, Bp - B))            # padded rows -> length 0

    # Host-side prep: time-major bf16 activations, fused weights, query scale folded into wq.
    x_tm = jnp.transpose(x, (1, 0, 2)).astype(matmul_dtype)                          # [L, Bp, Din]
    len_col = lengths.astype(jnp.int32).reshape(Bp, 1)
    scale = jnp.float32(1.0 / math.sqrt(H))
    wih = jnp.concatenate([params['wih_f'], params['wih_b']], axis=1).astype(matmul_dtype)  # [Din,8H]
    bih = jnp.concatenate([params['b_f'], params['b_b']], axis=1).astype(jnp.float32)       # [1,8H]
    whh_f = params['whh_f'].astype(jnp.float32)
    whh_b = params['whh_b'].astype(jnp.float32)
    wqkv = jnp.concatenate([params['wq'] * scale, params['wk'], params['wv']],
                           axis=1).astype(matmul_dtype)                                     # [H,3H]
    wclf = params['wclf'].astype(matmul_dtype)
    bclf = params['bclf'].astype(jnp.float32)

    args = (x_tm, len_col, wih, bih, whh_f, whh_b, wqkv, wclf, bclf)

    def build(single_buffer_weights):
        def weight_spec(a):
            idx = lambda b, _n=a.ndim: (0,) * _n
            if single_buffer_weights:
                # Weight block index is constant across the grid -> one VMEM buffer is enough.
                return pl.BlockSpec(a.shape, idx, pipeline_mode=pl.Buffered(1))
            return pl.BlockSpec(a.shape, idx)

        in_specs = [
            pl.BlockSpec((L, batch_tile, Din), lambda b: (0, b, 0)),   # x tile (batch-tiled)
            pl.BlockSpec((batch_tile, 1), lambda b: (b, 0)),           # per-row lengths
        ] + [weight_spec(a) for a in args[2:]]

        return pl.pallas_call(
            base_encoder_kernel,
            out_shape=jax.ShapeDtypeStruct((Bp, C), jnp.float32),
            grid=(n_tiles,),
            in_specs=in_specs,
            out_specs=pl.BlockSpec((batch_tile, C), lambda b: (b, 0)),
            scratch_shapes=[
                pltpu.VMEM((L, batch_tile, 8 * H), jnp.float32),   # fused fwd|bwd input projection
                pltpu.VMEM((L, batch_tile, H), jnp.float32),       # fwd hidden states (time-major)
                pltpu.VMEM((L, batch_tile, H), jnp.float32),       # bwd hidden states (time-major)
            ],
            compiler_params=pltpu.CompilerParams(
                dimension_semantics=("parallel",),
                vmem_limit_bytes=vmem_limit),
        )

    try:
        out = build(True)(*args)
    except Exception:
        # pipeline_mode=pl.Buffered(1) not supported on this jax/libtpu combination:
        # fall back to default double-buffered weights (costs VMEM, identical semantics).
        out = build(False)(*args)
    return out[:B]


def init_params(key, input_size, hidden_size, num_classes):
    """Deterministic synthetic parameters matching the PyTorch module shapes."""
    H = hidden_size
    ks = jax.random.split(key, 13)
    s = 1.0 / math.sqrt(H)
    u = lambda k, shape: jax.random.uniform(k, shape, jnp.float32, -s, s)
    return dict(
        wih_f=u(ks[0], (input_size, 4 * H)),
        whh_f=u(ks[1], (H, 4 * H)),
        b_f=u(ks[2], (1, 4 * H)) + u(ks[3], (1, 4 * H)),   # b_ih + b_hh folded together
        wih_b=u(ks[4], (input_size, 4 * H)),
        whh_b=u(ks[5], (H, 4 * H)),
        b_b=u(ks[6], (1, 4 * H)) + u(ks[7], (1, 4 * H)),
        wk=u(ks[8], (H, H)),
        wq=u(ks[9], (H, H)),
        wv=u(ks[10], (H, H)),
        wclf=u(ks[11], (H, num_classes)),
        bclf=u(ks[12], (1, num_classes)),
    )


def reference_forward(x, lengths, params):
    """Pure-JAX f32 reference with identical semantics (sanity check for the kernel)."""
    B, L, Din = x.shape
    H = params['wk'].shape[0]
    mask = (jnp.arange(L)[None, :] < lengths[:, None]).astype(jnp.float32)  # [B, L]

    def cell(xt, h, c, wih, whh, b):
        gates = xt @ wih + h @ whh + b
        i, f, g, o = jnp.split(gates, 4, axis=-1)
        c = jax.nn.sigmoid(f) * c + jax.nn.sigmoid(i) * jnp.tanh(g)
        h = jax.nn.sigmoid(o) * jnp.tanh(c)
        return h, c

    h = jnp.zeros((B, H)); c = jnp.zeros((B, H))
    outs_f = []
    for t in range(L):
        h, c = cell(x[:, t], h, c, params['wih_f'], params['whh_f'], params['b_f'])
        outs_f.append(h * mask[:, t:t + 1])
    of = jnp.stack(outs_f, axis=1)

    h = jnp.zeros((B, H)); c = jnp.zeros((B, H))
    outs_b = [None] * L
    for t in range(L - 1, -1, -1):
        hn, cn = cell(x[:, t], h, c, params['wih_b'], params['whh_b'], params['b_b'])
        m = mask[:, t:t + 1]
        h = jnp.where(m > 0, hn, h)
        c = jnp.where(m > 0, cn, c)
        outs_b[t] = h * m
    ob = jnp.stack(outs_b, axis=1)

    o = of + ob                                   # merge_bi == "sum"
    k = o @ params['wk']; q = o @ params['wq']; v = o @ params['wv']
    scores = jnp.einsum('bqh,bkh->bqk', q, k) / math.sqrt(H)
    scores = jnp.where(mask[:, None, :] > 0, scores, -1e9)
    scores = jax.nn.softmax(scores, axis=-1)
    attn = jnp.einsum('bqk,bkh->bqh', scores, v)
    fused = attn.sum(axis=1)
    return fused @ params['wclf'] + params['bclf']


if __name__ == "__main__":
    B, L, Din, H, C = 2, 8, 16, 32, 4
    key = jax.random.PRNGKey(0)
    kx, kp = jax.random.split(key)

    x = jax.random.normal(kx, (B, L, Din), jnp.float32)
    lengths = jnp.array([L, 5], dtype=jnp.int32)      # unpadded sequence lengths (trailing padding)
    params = init_params(kp, Din, H, C)

    out = base_encoder_forward(x, lengths, params)
    out = jax.block_until_ready(out)

    ref = reference_forward(x, lengths, params)
    assert out.shape == (B, C), f"bad output shape {out.shape}"
    # Tolerance covers the bf16 operands on the non-recurrent matmuls (recurrence stays f32)
    # and the approximate EUP reciprocal in the softmax; far looser than any real bug.
    if not jnp.allclose(out, ref, atol=2e-2, rtol=2e-2):
        raise AssertionError(f"kernel/reference mismatch:\n{out}\nvs\n{ref}")

    print("KERNEL_OK")
</pallas_src>

<mosaic_0001>
module attributes {stable_mosaic.version = 11 : i64} {
  func.func @base_encoder_kernel(%arg0: i32, %arg1: memref<8x8x16xbf16, #tpu.memory_space<vmem>>, %arg2: memref<8x1xi32, #tpu.memory_space<vmem>>, %arg3: memref<16x256xbf16, #tpu.memory_space<vmem>>, %arg4: memref<1x256xf32, #tpu.memory_space<vmem>>, %arg5: memref<32x128xf32, #tpu.memory_space<vmem>>, %arg6: memref<32x128xf32, #tpu.memory_space<vmem>>, %arg7: memref<32x96xbf16, #tpu.memory_space<vmem>>, %arg8: memref<32x4xbf16, #tpu.memory_space<vmem>>, %arg9: memref<1x4xf32, #tpu.memory_space<vmem>>, %arg10: memref<8x4xf32, #tpu.memory_space<vmem>>, %arg11: memref<8x8x256xf32, #tpu.memory_space<vmem>>, %arg12: memref<8x8x32xf32, #tpu.memory_space<vmem>>, %arg13: memref<8x8x32xf32, #tpu.memory_space<vmem>>) attributes {dimension_semantics = [#tpu.dimension_semantics<parallel>], iteration_bounds = array<i64: 1>, scalar_prefetch = 0 : i64, scratch_operands = 3 : i64, tpu.core_type = #tpu.core_type<tc>, window_params = [{transform_indices = @transform_0, window_bounds = array<i64: 8, 8, 16>}, {transform_indices = @transform_1, window_bounds = array<i64: 8, 1>}, {pipeline_mode = #tpu.pipeline_mode<synchronous>, transform_indices = @transform_2, window_bounds = array<i64: 16, 256>}, {pipeline_mode = #tpu.pipeline_mode<synchronous>, transform_indices = @transform_3, window_bounds = array<i64: 1, 256>}, {pipeline_mode = #tpu.pipeline_mode<synchronous>, transform_indices = @transform_4, window_bounds = array<i64: 32, 128>}, {pipeline_mode = #tpu.pipeline_mode<synchronous>, transform_indices = @transform_5, window_bounds = array<i64: 32, 128>}, {pipeline_mode = #tpu.pipeline_mode<synchronous>, transform_indices = @transform_6, window_bounds = array<i64: 32, 96>}, {pipeline_mode = #tpu.pipeline_mode<synchronous>, transform_indices = @transform_7, window_bounds = array<i64: 32, 4>}, {pipeline_mode = #tpu.pipeline_mode<synchronous>, transform_indices = @transform_8, window_bounds = array<i64: 1, 4>}, {transform_indices = @transform_9, window_bounds = array<i64: 8, 4>}]} {
    %c0 = arith.constant 0 : index
    %c0_0 = arith.constant 0 : index
    %c0_1 = arith.constant 0 : index
    %0 = vector.load %arg1[%c0, %c0_0, %c0_1] : memref<8x8x16xbf16, #tpu.memory_space<vmem>>, vector<8x8x16xbf16>
    %c0_2 = arith.constant 0 : index
    %c0_3 = arith.constant 0 : index
    %1 = vector.load %arg3[%c0_2, %c0_3] : memref<16x256xbf16, #tpu.memory_space<vmem>>, vector<16x256xbf16>
    "tpu.trace_start"() <{level = 10 : i32, message = "lbd,dg->lbg"}> : () -> ()
    %cst = arith.constant dense<0.000000e+00> : vector<8x8x256xf32>
    %2 = tpu.matmul %0, %1, %cst {dimension_numbers = #tpu.dot_dimension_numbers<[2], [0], [0, 1], [1], [0, 0, 0, 1, 1, 1], [], []>} : vector<8x8x16xbf16>, vector<16x256xbf16>, vector<8x8x256xf32> -> vector<8x8x256xf32>
    "tpu.trace_stop"() : () -> ()
    %c0_4 = arith.constant 0 : index
    %c0_5 = arith.constant 0 : index
    %3 = vector.load %arg4[%c0_4, %c0_5] : memref<1x256xf32, #tpu.memory_space<vmem>>, vector<1x256xf32>
    %4 = vector.shape_cast %3 : vector<1x256xf32> to vector<1x1x256xf32>
    %5 = vector.broadcast %4 : vector<1x1x256xf32> to vector<8x8x256xf32>
    %6 = arith.addf %2, %5 : vector<8x8x256xf32>
    %c0_6 = arith.constant 0 : index
    %c0_7 = arith.constant 0 : index
    %c0_8 = arith.constant 0 : index
    %7 = vector.load %arg11[%c0_6, %c0_7, %c0_8] : memref<8x8x256xf32, #tpu.memory_space<vmem>>, vector<8x8x256xf32>
    tpu.vector_store %arg11[%c0_6, %c0_7, %c0_8], %6 {strides = array<i32>} : memref<8x8x256xf32, #tpu.memory_space<vmem>>, vector<8x8x256xf32>,
    %c0_9 = arith.constant 0 : index
    %c0_10 = arith.constant 0 : index
    %8 = vector.load %arg5[%c0_9, %c0_10] : memref<32x128xf32, #tpu.memory_space<vmem>>, vector<32x128xf32>
    %c0_11 = arith.constant 0 : index
    %c0_12 = arith.constant 0 : index
    %9 = vector.load %arg6[%c0_11, %c0_12] : memref<32x128xf32, #tpu.memory_space<vmem>>, vector<32x128xf32>
    %c0_13 = arith.constant 0 : index
    %c0_14 = arith.constant 0 : index
    %10 = vector.load %arg2[%c0_13, %c0_14] : memref<8x1xi32, #tpu.memory_space<vmem>>, vector<8x1xi32>
    %cst_15 = arith.constant 0.000000e+00 : f32
    %11 = vector.broadcast %cst_15 : f32 to vector<8x32xf32>
    %c0_i32 = arith.constant 0 : i32
    %c7_i32 = arith.constant 7 : i32
    %12 = arith.subi %c7_i32, %c0_i32 : i32
    %13 = arith.index_cast %c0_i32 : i32 to index
    %c0_16 = arith.constant 0 : index
    %c0_17 = arith.constant 0 : index
    %14 = vector.load %arg11[%13, %c0_16, %c0_17] : memref<8x8x256xf32, #tpu.memory_space<vmem>>, vector<1x8x256xf32>
    %15 = vector.shape_cast %14 : vector<1x8x256xf32> to vector<8x256xf32>
    %16 = arith.index_cast %12 : i32 to index
    %c0_18 = arith.constant 0 : index
    %c0_19 = arith.constant 0 : index
    %17 = vector.load %arg11[%16, %c0_18, %c0_19] : memref<8x8x256xf32, #tpu.memory_space<vmem>>, vector<1x8x256xf32>
    %18 = vector.shape_cast %17 : vector<1x8x256xf32> to vector<8x256xf32>
    %19 = vector.extract_strided_slice %15 {offsets = [0, 0], sizes = [8, 128], strides = [1, 1]} : vector<8x256xf32> to vector<8x128xf32>
    %cst_20 = arith.constant dense<0.000000e+00> : vector<8x128xf32>
    %20 = tpu.matmul %11, %8, %cst_20 {dimension_numbers = #tpu.dot_dimension_numbers<[1], [0], [0], [1], [0, 0, 1, 1], [], []>} : vector<8x32xf32>, vector<32x128xf32>, vector<8x128xf32> -> vector<8x128xf32>
    %21 = arith.addf %19, %20 : vector<8x128xf32>
    %22 = vector.extract_strided_slice %21 {offsets = [0, 0], sizes = [8, 32], strides = [1, 1]} : vector<8x128xf32> to vector<8x32xf32>
    %cst_21 = arith.constant 5.000000e-01 : f32
    %23 = vector.broadcast %cst_21 : f32 to vector<8x32xf32>
    %24 = arith.mulf %23, %22 : vector<8x32xf32>
    %25 = math.tanh %24 : vector<8x32xf32>
    %cst_22 = arith.constant 5.000000e-01 : f32
    %26 = vector.broadcast %cst_22 : f32 to vector<8x32xf32>
    %27 = arith.mulf %26, %25 : vector<8x32xf32>
    %cst_23 = arith.constant 5.000000e-01 : f32
    %28 = vector.broadcast %cst_23 : f32 to vector<8x32xf32>
    %29 = arith.addf %27, %28 : vector<8x32xf32>
    %30 = vector.extract_strided_slice %21 {offsets = [0, 32], sizes = [8, 32], strides = [1, 1]} : vector<8x128xf32> to vector<8x32xf32>
    %cst_24 = arith.constant 5.000000e-01 : f32
    %31 = vector.broadcast %cst_24 : f32 to vector<8x32xf32>
    %32 = arith.mulf %31, %30 : vector<8x32xf32>
    %33 = math.tanh %32 : vector<8x32xf32>
    %cst_25 = arith.constant 5.000000e-01 : f32
    %34 = vector.broadcast %cst_25 : f32 to vector<8x32xf32>
    %35 = arith.mulf %34, %33 : vector<8x32xf32>
    %cst_26 = arith.constant 5.000000e-01 : f32
    %36 = vector.broadcast %cst_26 : f32 to vector<8x32xf32>
    %37 = arith.addf %35, %36 : vector<8x32xf32>
    %38 = vector.extract_strided_slice %21 {offsets = [0, 64], sizes = [8, 32], strides = [1, 1]} : vector<8x128xf32> to vector<8x32xf32>
    %39 = math.tanh %38 : vector<8x32xf32>
    %40 = vector.extract_strided_slice %21 {offsets = [0, 96], sizes = [8, 32], strides = [1, 1]} : vector<8x128xf32> to vector<8x32xf32>
    %cst_27 = arith.constant 5.000000e-01 : f32
    %41 = vector.broadcast %cst_27 : f32 to vector<8x32xf32>
    %42 = arith.mulf %41, %40 : vector<8x32xf32>
    %43 = math.tanh %42 : vector<8x32xf32>
    %cst_28 = arith.constant 5.000000e-01 : f32
    %44 = vector.broadcast %cst_28 : f32 to vector<8x32xf32>
    %45 = arith.mulf %44, %43 : vector<8x32xf32>
    %cst_29 = arith.constant 5.000000e-01 : f32
    %46 = vector.broadcast %cst_29 : f32 to vector<8x32xf32>
    %47 = arith.addf %45, %46 : vector<8x32xf32>
    %48 = arith.mulf %37, %11 : vector<8x32xf32>
    %49 = arith.mulf %29, %39 : vector<8x32xf32>
    %50 = arith.addf %48, %49 : vector<8x32xf32>
    %51 = math.tanh %50 : vector<8x32xf32>
    %52 = arith.mulf %47, %51 : vector<8x32xf32>
    %53 = vector.broadcast %c0_i32 : i32 to vector<8x1xi32>
    %54 = arith.cmpi sgt, %10, %53 : vector<8x1xi32>
    %55 = arith.extui %54 : vector<8x1xi1> to vector<8x1xi32>
    %56 = arith.sitofp %55 : vector<8x1xi32> to vector<8x1xf32>
    %57 = vector.broadcast %56 : vector<8x1xf32> to vector<8x32xf32>
    %58 = arith.mulf %52, %57 : vector<8x32xf32>
    %59 = arith.index_cast %c0_i32 : i32 to index
    %c0_30 = arith.constant 0 : index
    %c0_31 = arith.constant 0 : index
    %60 = vector.load %arg12[%59, %c0_30, %c0_31] : memref<8x8x32xf32, #tpu.memory_space<vmem>>, vector<1x8x32xf32>
    %61 = vector.shape_cast %60 : vector<1x8x32xf32> to vector<8x32xf32>
    %62 = vector.shape_cast %58 : vector<8x32xf32> to vector<1x8x32xf32>
    tpu.vector_store %arg12[%59, %c0_30, %c0_31], %62 {strides = array<i32>} : memref<8x8x32xf32, #tpu.memory_space<vmem>>, vector<1x8x32xf32>,
    %63 = vector.extract_strided_slice %18 {offsets = [0, 128], sizes = [8, 128], strides = [1, 1]} : vector<8x256xf32> to vector<8x128xf32>
    %cst_32 = arith.constant dense<0.000000e+00> : vector<8x128xf32>
    %64 = tpu.matmul %11, %9, %cst_32 {dimension_numbers = #tpu.dot_dimension_numbers<[1], [0], [0], [1], [0, 0, 1, 1], [], []>} : vector<8x32xf32>, vector<32x128xf32>, vector<8x128xf32> -> vector<8x128xf32>
    %65 = arith.addf %63, %64 : vector<8x128xf32>
    %66 = vector.extract_strided_slice %65 {offsets = [0, 0], sizes = [8, 32], strides = [1, 1]} : vector<8x128xf32> to vector<8x32xf32>
    %cst_33 = arith.constant 5.000000e-01 : f32
    %67 = vector.broadcast %cst_33 : f32 to vector<8x32xf32>
    %68 = arith.mulf %67, %66 : vector<8x32xf32>
    %69 = math.tanh %68 : vector<8x32xf32>
    %cst_34 = arith.constant 5.000000e-01 : f32
    %70 = vector.broadcast %cst_34 : f32 to vector<8x32xf32>
    %71 = arith.mulf %70, %69 : vector<8x32xf32>
    %cst_35 = arith.constant 5.000000e-01 : f32
    %72 = vector.broadcast %cst_35 : f32 to vector<8x32xf32>
    %73 = arith.addf %71, %72 : vector<8x32xf32>
    %74 = vector.extract_strided_slice %65 {offsets = [0, 32], sizes = [8, 32], strides = [1, 1]} : vector<8x128xf32> to vector<8x32xf32>
    %cst_36 = arith.constant 5.000000e-01 : f32
    %75 = vector.broadcast %cst_36 : f32 to vector<8x32xf32>
    %76 = arith.mulf %75, %74 : vector<8x32xf32>
    %77 = math.tanh %76 : vector<8x32xf32>
    %cst_37 = arith.constant 5.000000e-01 : f32
    %78 = vector.broadcast %cst_37 : f32 to vector<8x32xf32>
    %79 = arith.mulf %78, %77 : vector<8x32xf32>
    %cst_38 = arith.constant 5.000000e-01 : f32
    %80 = vector.broadcast %cst_38 : f32 to vector<8x32xf32>
    %81 = arith.addf %79, %80 : vector<8x32xf32>
    %82 = vector.extract_strided_slice %65 {offsets = [0, 64], sizes = [8, 32], strides = [1, 1]} : vector<8x128xf32> to vector<8x32xf32>
    %83 = math.tanh %82 : vector<8x32xf32>
    %84 = vector.extract_strided_slice %65 {offsets = [0, 96], sizes = [8, 32], strides = [1, 1]} : vector<8x128xf32> to vector<8x32xf32>
    %cst_39 = arith.constant 5.000000e-01 : f32
    %85 = vector.broadcast %cst_39 : f32 to vector<8x32xf32>
    %86 = arith.mulf %85, %84 : vector<8x32xf32>
    %87 = math.tanh %86 : vector<8x32xf32>
    %cst_40 = arith.constant 5.000000e-01 : f32
    %88 = vector.broadcast %cst_40 : f32 to vector<8x32xf32>
    %89 = arith.mulf %88, %87 : vector<8x32xf32>
    %cst_41 = arith.constant 5.000000e-01 : f32
    %90 = vector.broadcast %cst_41 : f32 to vector<8x32xf32>
    %91 = arith.addf %89, %90 : vector<8x32xf32>
    %92 = arith.mulf %81, %11 : vector<8x32xf32>
    %93 = arith.mulf %73, %83 : vector<8x32xf32>
    %94 = arith.addf %92, %93 : vector<8x32xf32>
    %95 = math.tanh %94 : vector<8x32xf32>
    %96 = arith.mulf %91, %95 : vector<8x32xf32>
    %97 = vector.broadcast %12 : i32 to vector<8x1xi32>
    %98 = arith.cmpi sgt, %10, %97 : vector<8x1xi32>
    %99 = arith.extui %98 : vector<8x1xi1> to vector<8x1xi32>
    %100 = arith.sitofp %99 : vector<8x1xi32> to vector<8x1xf32>
    %101 = arith.subf %96, %11 : vector<8x32xf32>
    %102 = vector.broadcast %100 : vector<8x1xf32> to vector<8x32xf32>
    %103 = arith.mulf %102, %101 : vector<8x32xf32>
    %104 = arith.addf %11, %103 : vector<8x32xf32>
    %105 = arith.subf %94, %11 : vector<8x32xf32>
    %106 = vector.broadcast %100 : vector<8x1xf32> to vector<8x32xf32>
    %107 = arith.mulf %106, %105 : vector<8x32xf32>
    %108 = arith.addf %11, %107 : vector<8x32xf32>
    %109 = arith.index_cast %12 : i32 to index
    %c0_42 = arith.constant 0 : index
    %c0_43 = arith.constant 0 : index
    %110 = vector.load %arg13[%109, %c0_42, %c0_43] : memref<8x8x32xf32, #tpu.memory_space<vmem>>, vector<1x8x32xf32>
    %111 = vector.shape_cast %110 : vector<1x8x32xf32> to vector<8x32xf32>
    %112 = vector.shape_cast %104 : vector<8x32xf32> to vector<1x8x32xf32>
    tpu.vector_store %arg13[%109, %c0_42, %c0_43], %112 {strides = array<i32>} : memref<8x8x32xf32, #tpu.memory_space<vmem>>, vector<1x8x32xf32>,
    %c1_i32 = arith.constant 1 : i32
    %c7_i32_44 = arith.constant 7 : i32
    %113 = arith.subi %c7_i32_44, %c1_i32 : i32
    %114 = arith.index_cast %c1_i32 : i32 to index
    %c0_45 = arith.constant 0 : index
    %c0_46 = arith.constant 0 : index
    %115 = vector.load %arg11[%114, %c0_45, %c0_46] : memref<8x8x256xf32, #tpu.memory_space<vmem>>, vector<1x8x256xf32>
    %116 = vector.shape_cast %115 : vector<1x8x256xf32> to vector<8x256xf32>
    %117 = arith.index_cast %113 : i32 to index
    %c0_47 = arith.constant 0 : index
    %c0_48 = arith.constant 0 : index
    %118 = vector.load %arg11[%117, %c0_47, %c0_48] : memref<8x8x256xf32, #tpu.memory_space<vmem>>, vector<1x8x256xf32>
    %119 = vector.shape_cast %118 : vector<1x8x256xf32> to vector<8x256xf32>
    %120 = vector.extract_strided_slice %116 {offsets = [0, 0], sizes = [8, 128], strides = [1, 1]} : vector<8x256xf32> to vector<8x128xf32>
    %cst_49 = arith.constant dense<0.000000e+00> : vector<8x128xf32>
    %121 = tpu.matmul %52, %8, %cst_49 {dimension_numbers = #tpu.dot_dimension_numbers<[1], [0], [0], [1], [0, 0, 1, 1], [], []>} : vector<8x32xf32>, vector<32x128xf32>, vector<8x128xf32> -> vector<8x128xf32>
    %122 = arith.addf %120, %121 : vector<8x128xf32>
    %123 = vector.extract_strided_slice %122 {offsets = [0, 0], sizes = [8, 32], strides = [1, 1]} : vector<8x128xf32> to vector<8x32xf32>
    %cst_50 = arith.constant 5.000000e-01 : f32
    %124 = vector.broadcast %cst_50 : f32 to vector<8x32xf32>
    %125 = arith.mulf %124, %123 : vector<8x32xf32>
    %126 = math.tanh %125 : vector<8x32xf32>
    %cst_51 = arith.constant 5.000000e-01 : f32
    %127 = vector.broadcast %cst_51 : f32 to vector<8x32xf32>
    %128 = arith.mulf %127, %126 : vector<8x32xf32>
    %cst_52 = arith.constant 5.000000e-01 : f32
    %129 = vector.broadcast %cst_52 : f32 to vector<8x32xf32>
    %130 = arith.addf %128, %129 : vector<8x32xf32>
    %131 = vector.extract_strided_slice %122 {offsets = [0, 32], sizes = [8, 32], strides = [1, 1]} : vector<8x128xf32> to vector<8x32xf32>
    %cst_53 = arith.constant 5.000000e-01 : f32
    %132 = vector.broadcast %cst_53 : f32 to vector<8x32xf32>
    %133 = arith.mulf %132, %131 : vector<8x32xf32>
    %134 = math.tanh %133 : vector<8x32xf32>
    %cst_54 = arith.constant 5.000000e-01 : f32
    %135 = vector.broadcast %cst_54 : f32 to vector<8x32xf32>
    %136 = arith.mulf %135, %134 : vector<8x32xf32>
    %cst_55 = arith.constant 5.000000e-01 : f32
    %137 = vector.broadcast %cst_55 : f32 to vector<8x32xf32>
    %138 = arith.addf %136, %137 : vector<8x32xf32>
    %139 = vector.extract_strided_slice %122 {offsets = [0, 64], sizes = [8, 32], strides = [1, 1]} : vector<8x128xf32> to vector<8x32xf32>
    %140 = math.tanh %139 : vector<8x32xf32>
    %141 = vector.extract_strided_slice %122 {offsets = [0, 96], sizes = [8, 32], strides = [1, 1]} : vector<8x128xf32> to vector<8x32xf32>
    %cst_56 = arith.constant 5.000000e-01 : f32
    %142 = vector.broadcast %cst_56 : f32 to vector<8x32xf32>
    %143 = arith.mulf %142, %141 : vector<8x32xf32>
    %144 = math.tanh %143 : vector<8x32xf32>
    %cst_57 = arith.constant 5.000000e-01 : f32
    %145 = vector.broadcast %cst_57 : f32 to vector<8x32xf32>
    %146 = arith.mulf %145, %144 : vector<8x32xf32>
    %cst_58 = arith.constant 5.000000e-01 : f32
    %147 = vector.broadcast %cst_58 : f32 to vector<8x32xf32>
    %148 = arith.addf %146, %147 : vector<8x32xf32>
    %149 = arith.mulf %138, %50 : vector<8x32xf32>
    %150 = arith.mulf %130, %140 : vector<8x32xf32>
    %151 = arith.addf %149, %150 : vector<8x32xf32>
    %152 = math.tanh %151 : vector<8x32xf32>
    %153 = arith.mulf %148, %152 : vector<8x32xf32>
    %154 = vector.broadcast %c1_i32 : i32 to vector<8x1xi32>
    %155 = arith.cmpi sgt, %10, %154 : vector<8x1xi32>
    %156 = arith.extui %155 : vector<8x1xi1> to vector<8x1xi32>
    %157 = arith.sitofp %156 : vector<8x1xi32> to vector<8x1xf32>
    %158 = vector.broadcast %157 : vector<8x1xf32> to vector<8x32xf32>
    %159 = arith.mulf %153, %158 : vector<8x32xf32>
    %160 = arith.index_cast %c1_i32 : i32 to index
    %c0_59 = arith.constant 0 : index
    %c0_60 = arith.constant 0 : index
    %161 = vector.load %arg12[%160, %c0_59, %c0_60] : memref<8x8x32xf32, #tpu.memory_space<vmem>>, vector<1x8x32xf32>
    %162 = vector.shape_cast %161 : vector<1x8x32xf32> to vector<8x32xf32>
    %163 = vector.shape_cast %159 : vector<8x32xf32> to vector<1x8x32xf32>
    tpu.vector_store %arg12[%160, %c0_59, %c0_60], %163 {strides = array<i32>} : memref<8x8x32xf32, #tpu.memory_space<vmem>>, vector<1x8x32xf32>,
    %164 = vector.extract_strided_slice %119 {offsets = [0, 128], sizes = [8, 128], strides = [1, 1]} : vector<8x256xf32> to vector<8x128xf32>
    %cst_61 = arith.constant dense<0.000000e+00> : vector<8x128xf32>
    %165 = tpu.matmul %104, %9, %cst_61 {dimension_numbers = #tpu.dot_dimension_numbers<[1], [0], [0], [1], [0, 0, 1, 1], [], []>} : vector<8x32xf32>, vector<32x128xf32>, vector<8x128xf32> -> vector<8x128xf32>
    %166 = arith.addf %164, %165 : vector<8x128xf32>
    %167 = vector.extract_strided_slice %166 {offsets = [0, 0], sizes = [8, 32], strides = [1, 1]} : vector<8x128xf32> to vector<8x32xf32>
    %cst_62 = arith.constant 5.000000e-01 : f32
    %168 = vector.broadcast %cst_62 : f32 to vector<8x32xf32>
    %169 = arith.mulf %168, %167 : vector<8x32xf32>
    %170 = math.tanh %169 : vector<8x32xf32>
    %cst_63 = arith.constant 5.000000e-01 : f32
    %171 = vector.broadcast %cst_63 : f32 to vector<8x32xf32>
    %172 = arith.mulf %171, %170 : vector<8x32xf32>
    %cst_64 = arith.constant 5.000000e-01 : f32
    %173 = vector.broadcast %cst_64 : f32 to vector<8x32xf32>
    %174 = arith.addf %172, %173 : vector<8x32xf32>
    %175 = vector.extract_strided_slice %166 {offsets = [0, 32], sizes = [8, 32], strides = [1, 1]} : vector<8x128xf32> to vector<8x32xf32>
    %cst_65 = arith.constant 5.000000e-01 : f32
    %176 = vector.broadcast %cst_65 : f32 to vector<8x32xf32>
    %177 = arith.mulf %176, %175 : vector<8x32xf32>
    %178 = math.tanh %177 : vector<8x32xf32>
    %cst_66 = arith.constant 5.000000e-01 : f32
    %179 = vector.broadcast %cst_66 : f32 to vector<8x32xf32>
    %180 = arith.mulf %179, %178 : vector<8x32xf32>
    %cst_67 = arith.constant 5.000000e-01 : f32
    %181 = vector.broadcast %cst_67 : f32 to vector<8x32xf32>
    %182 = arith.addf %180, %181 : vector<8x32xf32>
    %183 = vector.extract_strided_slice %166 {offsets = [0, 64], sizes = [8, 32], strides = [1, 1]} : vector<8x128xf32> to vector<8x32xf32>
    %184 = math.tanh %183 : vector<8x32xf32>
    %185 = vector.extract_strided_slice %166 {offsets = [0, 96], sizes = [8, 32], strides = [1, 1]} : vector<8x128xf32> to vector<8x32xf32>
    %cst_68 = arith.constant 5.000000e-01 : f32
    %186 = vector.broadcast %cst_68 : f32 to vector<8x32xf32>
    %187 = arith.mulf %186, %185 : vector<8x32xf32>
    %188 = math.tanh %187 : vector<8x32xf32>
    %cst_69 = arith.constant 5.000000e-01 : f32
    %189 = vector.broadcast %cst_69 : f32 to vector<8x32xf32>
    %190 = arith.mulf %189, %188 : vector<8x32xf32>
    %cst_70 = arith.constant 5.000000e-01 : f32
    %191 = vector.broadcast %cst_70 : f32 to vector<8x32xf32>
    %192 = arith.addf %190, %191 : vector<8x32xf32>
    %193 = arith.mulf %182, %108 : vector<8x32xf32>
    %194 = arith.mulf %174, %184 : vector<8x32xf32>
    %195 = arith.addf %193, %194 : vector<8x32xf32>
    %196 = math.tanh %195 : vector<8x32xf32>
    %197 = arith.mulf %192, %196 : vector<8x32xf32>
    %198 = vector.broadcast %113 : i32 to vector<8x1xi32>
    %199 = arith.cmpi sgt, %10, %198 : vector<8x1xi32>
    %200 = arith.extui %199 : vector<8x1xi1> to vector<8x1xi32>
    %201 = arith.sitofp %200 : vector<8x1xi32> to vector<8x1xf32>
    %202 = arith.subf %197, %104 : vector<8x32xf32>
    %203 = vector.broadcast %201 : vector<8x1xf32> to vector<8x32xf32>
    %204 = arith.mulf %203, %202 : vector<8x32xf32>
    %205 = arith.addf %104, %204 : vector<8x32xf32>
    %206 = arith.subf %195, %108 : vector<8x32xf32>
    %207 = vector.broadcast %201 : vector<8x1xf32> to vector<8x32xf32>
    %208 = arith.mulf %207, %206 : vector<8x32xf32>
    %209 = arith.addf %108, %208 : vector<8x32xf32>
    %210 = arith.index_cast %113 : i32 to index
    %c0_71 = arith.constant 0 : index
    %c0_72 = arith.constant 0 : index
    %211 = vector.load %arg13[%210, %c0_71, %c0_72] : memref<8x8x32xf32, #tpu.memory_space<vmem>>, vector<1x8x32xf32>
    %212 = vector.shape_cast %211 : vector<1x8x32xf32> to vector<8x32xf32>
    %213 = vector.shape_cast %205 : vector<8x32xf32> to vector<1x8x32xf32>
    tpu.vector_store %arg13[%210, %c0_71, %c0_72], %213 {strides = array<i32>} : memref<8x8x32xf32, #tpu.memory_space<vmem>>, vector<1x8x32xf32>,
    %c2_i32 = arith.constant 2 : i32
    %c7_i32_73 = arith.constant 7 : i32
    %214 = arith.subi %c7_i32_73, %c2_i32 : i32
    %215 = arith.index_cast %c2_i32 : i32 to index
    %c0_74 = arith.constant 0 : index
    %c0_75 = arith.constant 0 : index
    %216 = vector.load %arg11[%215, %c0_74, %c0_75] : memref<8x8x256xf32, #tpu.memory_space<vmem>>, vector<1x8x256xf32>
    %217 = vector.shape_cast %216 : vector<1x8x256xf32> to vector<8x256xf32>
    %218 = arith.index_cast %214 : i32 to index
    %c0_76 = arith.constant 0 : index
    %c0_77 = arith.constant 0 : index
    %219 = vector.load %arg11[%218, %c0_76, %c0_77] : memref<8x8x256xf32, #tpu.memory_space<vmem>>, vector<1x8x256xf32>
    %220 = vector.shape_cast %219 : vector<1x8x256xf32> to vector<8x256xf32>
    %221 = vector.extract_strided_slice %217 {offsets = [0, 0], sizes = [8, 128], strides = [1, 1]} : vector<8x256xf32> to vector<8x128xf32>
    %cst_78 = arith.constant dense<0.000000e+00> : vector<8x128xf32>
    %222 = tpu.matmul %153, %8, %cst_78 {dimension_numbers = #tpu.dot_dimension_numbers<[1], [0], [0], [1], [0, 0, 1, 1], [], []>} : vector<8x32xf32>, vector<32x128xf32>, vector<8x128xf32> -> vector<8x128xf32>
    %223 = arith.addf %221, %222 : vector<8x128xf32>
    %224 = vector.extract_strided_slice %223 {offsets = [0, 0], sizes = [8, 32], strides = [1, 1]} : vector<8x128xf32> to vector<8x32xf32>
    %cst_79 = arith.constant 5.000000e-01 : f32
    %225 = vector.broadcast %cst_79 : f32 to vector<8x32xf32>
    %226 = arith.mulf %225, %224 : vector<8x32xf32>
    %227 = math.tanh %226 : vector<8x32xf32>
    %cst_80 = arith.constant 5.000000e-01 : f32
    %228 = vector.broadcast %cst_80 : f32 to vector<8x32xf32>
    %229 = arith.mulf %228, %227 : vector<8x32xf32>
    %cst_81 = arith.constant 5.000000e-01 : f32
    %230 = vector.broadcast %cst_81 : f32 to vector<8x32xf32>
    %231 = arith.addf %229, %230 : vector<8x32xf32>
    %232 = vector.extract_strided_slice %223 {offsets = [0, 32], sizes = [8, 32], strides = [1, 1]} : vector<8x128xf32> to vector<8x32xf32>
    %cst_82 = arith.constant 5.000000e-01 : f32
    %233 = vector.broadcast %cst_82 : f32 to vector<8x32xf32>
    %234 = arith.mulf %233, %232 : vector<8x32xf32>
    %235 = math.tanh %234 : vector<8x32xf32>
    %cst_83 = arith.constant 5.000000e-01 : f32
    %236 = vector.broadcast %cst_83 : f32 to vector<8x32xf32>
    %237 = arith.mulf %236, %235 : vector<8x32xf32>
    %cst_84 = arith.constant 5.000000e-01 : f32
    %238 = vector.broadcast %cst_84 : f32 to vector<8x32xf32>
    %239 = arith.addf %237, %238 : vector<8x32xf32>
    %240 = vector.extract_strided_slice %223 {offsets = [0, 64], sizes = [8, 32], strides = [1, 1]} : vector<8x128xf32> to vector<8x32xf32>
    %241 = math.tanh %240 : vector<8x32xf32>
    %242 = vector.extract_strided_slice %223 {offsets = [0, 96], sizes = [8, 32], strides = [1, 1]} : vector<8x128xf32> to vector<8x32xf32>
    %cst_85 = arith.constant 5.000000e-01 : f32
    %243 = vector.broadcast %cst_85 : f32 to vector<8x32xf32>
    %244 = arith.mulf %243, %242 : vector<8x32xf32>
    %245 = math.tanh %244 : vector<8x32xf32>
    %cst_86 = arith.constant 5.000000e-01 : f32
    %246 = vector.broadcast %cst_86 : f32 to vector<8x32xf32>
    %247 = arith.mulf %246, %245 : vector<8x32xf32>
    %cst_87 = arith.constant 5.000000e-01 : f32
    %248 = vector.broadcast %cst_87 : f32 to vector<8x32xf32>
    %249 = arith.addf %247, %248 : vector<8x32xf32>
    %250 = arith.mulf %239, %151 : vector<8x32xf32>
    %251 = arith.mulf %231, %241 : vector<8x32xf32>
    %252 = arith.addf %250, %251 : vector<8x32xf32>
    %253 = math.tanh %252 : vector<8x32xf32>
    %254 = arith.mulf %249, %253 : vector<8x32xf32>
    %255 = vector.broadcast %c2_i32 : i32 to vector<8x1xi32>
    %256 = arith.cmpi sgt, %10, %255 : vector<8x1xi32>
    %257 = arith.extui %256 : vector<8x1xi1> to vector<8x1xi32>
    %258 = arith.sitofp %257 : vector<8x1xi32> to vector<8x1xf32>
    %259 = vector.broadcast %258 : vector<8x1xf32> to vector<8x32xf32>
    %260 = arith.mulf %254, %259 : vector<8x32xf32>
    %261 = arith.index_cast %c2_i32 : i32 to index
    %c0_88 = arith.constant 0 : index
    %c0_89 = arith.constant 0 : index
    %262 = vector.load %arg12[%261, %c0_88, %c0_89] : memref<8x8x32xf32, #tpu.memory_space<vmem>>, vector<1x8x32xf32>
    %263 = vector.shape_cast %262 : vector<1x8x32xf32> to vector<8x32xf32>
    %264 = vector.shape_cast %260 : vector<8x32xf32> to vector<1x8x32xf32>
    tpu.vector_store %arg12[%261, %c0_88, %c0_89], %264 {strides = array<i32>} : memref<8x8x32xf32, #tpu.memory_space<vmem>>, vector<1x8x32xf32>,
    %265 = vector.extract_strided_slice %220 {offsets = [0, 128], sizes = [8, 128], strides = [1, 1]} : vector<8x256xf32> to vector<8x128xf32>
    %cst_90 = arith.constant dense<0.000000e+00> : vector<8x128xf32>
    %266 = tpu.matmul %205, %9, %cst_90 {dimension_numbers = #tpu.dot_dimension_numbers<[1], [0], [0], [1], [0, 0, 1, 1], [], []>} : vector<8x32xf32>, vector<32x128xf32>, vector<8x128xf32> -> vector<8x128xf32>
    %267 = arith.addf %265, %266 : vector<8x128xf32>
    %268 = vector.extract_strided_slice %267 {offsets = [0, 0], sizes = [8, 32], strides = [1, 1]} : vector<8x128xf32> to vector<8x32xf32>
    %cst_91 = arith.constant 5.000000e-01 : f32
    %269 = vector.broadcast %cst_91 : f32 to vector<8x32xf32>
    %270 = arith.mulf %269, %268 : vector<8x32xf32>
    %271 = math.tanh %270 : vector<8x32xf32>
    %cst_92 = arith.constant 5.000000e-01 : f32
    %272 = vector.broadcast %cst_92 : f32 to vector<8x32xf32>
    %273 = arith.mulf %272, %271 : vector<8x32xf32>
    %cst_93 = arith.constant 5.000000e-01 : f32
    %274 = vector.broadcast %cst_93 : f32 to vector<8x32xf32>
    %275 = arith.addf %273, %274 : vector<8x32xf32>
    %276 = vector.extract_strided_slice %267 {offsets = [0, 32], sizes = [8, 32], strides = [1, 1]} : vector<8x128xf32> to vector<8x32xf32>
    %cst_94 = arith.constant 5.000000e-01 : f32
    %277 = vector.broadcast %cst_94 : f32 to vector<8x32xf32>
    %278 = arith.mulf %277, %276 : vector<8x32xf32>
    %279 = math.tanh %278 : vector<8x32xf32>
    %cst_95 = arith.constant 5.000000e-01 : f32
    %280 = vector.broadcast %cst_95 : f32 to vector<8x32xf32>
    %281 = arith.mulf %280, %279 : vector<8x32xf32>
    %cst_96 = arith.constant 5.000000e-01 : f32
    %282 = vector.broadcast %cst_96 : f32 to vector<8x32xf32>
    %283 = arith.addf %281, %282 : vector<8x32xf32>
    %284 = vector.extract_strided_slice %267 {offsets = [0, 64], sizes = [8, 32], strides = [1, 1]} : vector<8x128xf32> to vector<8x32xf32>
    %285 = math.tanh %284 : vector<8x32xf32>
    %286 = vector.extract_strided_slice %267 {offsets = [0, 96], sizes = [8, 32], strides = [1, 1]} : vector<8x128xf32> to vector<8x32xf32>
    %cst_97 = arith.constant 5.000000e-01 : f32
    %287 = vector.broadcast %cst_97 : f32 to vector<8x32xf32>
    %288 = arith.mulf %287, %286 : vector<8x32xf32>
    %289 = math.tanh %288 : vector<8x32xf32>
    %cst_98 = arith.constant 5.000000e-01 : f32
    %290 = vector.broadcast %cst_98 : f32 to vector<8x32xf32>
    %291 = arith.mulf %290, %289 : vector<8x32xf32>
    %cst_99 = arith.constant 5.000000e-01 : f32
    %292 = vector.broadcast %cst_99 : f32 to vector<8x32xf32>
    %293 = arith.addf %291, %292 : vector<8x32xf32>
    %294 = arith.mulf %283, %209 : vector<8x32xf32>
    %295 = arith.mulf %275, %285 : vector<8x32xf32>
    %296 = arith.addf %294, %295 : vector<8x32xf32>
    %297 = math.tanh %296 : vector<8x32xf32>
    %298 = arith.mulf %293, %297 : vector<8x32xf32>
    %299 = vector.broadcast %214 : i32 to vector<8x1xi32>
    %300 = arith.cmpi sgt, %10, %299 : vector<8x1xi32>
    %301 = arith.extui %300 : vector<8x1xi1> to vector<8x1xi32>
    %302 = arith.sitofp %301 : vector<8x1xi32> to vector<8x1xf32>
    %303 = arith.subf %298, %205 : vector<8x32xf32>
    %304 = vector.broadcast %302 : vector<8x1xf32> to vector<8x32xf32>
    %305 = arith.mulf %304, %303 : vector<8x32xf32>
    %306 = arith.addf %205, %305 : vector<8x32xf32>
    %307 = arith.subf %296, %209 : vector<8x32xf32>
    %308 = vector.broadcast %302 : vector<8x1xf32> to vector<8x32xf32>
    %309 = arith.mulf %308, %307 : vector<8x32xf32>
    %310 = arith.addf %209, %309 : vector<8x32xf32>
    %311 = arith.index_cast %214 : i32 to index
    %c0_100 = arith.constant 0 : index
    %c0_101 = arith.constant 0 : index
    %312 = vector.load %arg13[%311, %c0_100, %c0_101] : memref<8x8x32xf32, #tpu.memory_space<vmem>>, vector<1x8x32xf32>
    %313 = vector.shape_cast %312 : vector<1x8x32xf32> to vector<8x32xf32>
    %314 = vector.shape_cast %306 : vector<8x32xf32> to vector<1x8x32xf32>
    tpu.vector_store %arg13[%311, %c0_100, %c0_101], %314 {strides = array<i32>} : memref<8x8x32xf32, #tpu.memory_space<vmem>>, vector<1x8x32xf32>,
    %c3_i32 = arith.constant 3 : i32
    %c7_i32_102 = arith.constant 7 : i32
    %315 = arith.subi %c7_i32_102, %c3_i32 : i32
    %316 = arith.index_cast %c3_i32 : i32 to index
    %c0_103 = arith.constant 0 : index
    %c0_104 = arith.constant 0 : index
    %317 = vector.load %arg11[%316, %c0_103, %c0_104] : memref<8x8x256xf32, #tpu.memory_space<vmem>>, vector<1x8x256xf32>
    %318 = vector.shape_cast %317 : vector<1x8x256xf32> to vector<8x256xf32>
    %319 = arith.index_cast %315 : i32 to index
    %c0_105 = arith.constant 0 : index
    %c0_106 = arith.constant 0 : index
    %320 = vector.load %arg11[%319, %c0_105, %c0_106] : memref<8x8x256xf32, #tpu.memory_space<vmem>>, vector<1x8x256xf32>
    %321 = vector.shape_cast %320 : vector<1x8x256xf32> to vector<8x256xf32>
    %322 = vector.extract_strided_slice %318 {offsets = [0, 0], sizes = [8, 128], strides = [1, 1]} : vector<8x256xf32> to vector<8x128xf32>
    %cst_107 = arith.constant dense<0.000000e+00> : vector<8x128xf32>
    %323 = tpu.matmul %254, %8, %cst_107 {dimension_numbers = #tpu.dot_dimension_numbers<[1], [0], [0], [1], [0, 0, 1, 1], [], []>} : vector<8x32xf32>, vector<32x128xf32>, vector<8x128xf32> -> vector<8x128xf32>
    %324 = arith.addf %322, %323 : vector<8x128xf32>
    %325 = vector.extract_strided_slice %324 {offsets = [0, 0], sizes = [8, 32], strides = [1, 1]} : vector<8x128xf32> to vector<8x32xf32>
    %cst_108 = arith.constant 5.000000e-01 : f32
    %326 = vector.broadcast %cst_108 : f32 to vector<8x32xf32>
    %327 = arith.mulf %326, %325 : vector<8x32xf32>
    %328 = math.tanh %327 : vector<8x32xf32>
    %cst_109 = arith.constant 5.000000e-01 : f32
    %329 = vector.broadcast %cst_109 : f32 to vector<8x32xf32>
    %330 = arith.mulf %329, %328 : vector<8x32xf32>
    %cst_110 = arith.constant 5.000000e-01 : f32
    %331 = vector.broadcast %cst_110 : f32 to vector<8x32xf32>
    %332 = arith.addf %330, %331 : vector<8x32xf32>
    %333 = vector.extract_strided_slice %324 {offsets = [0, 32], sizes = [8, 32], strides = [1, 1]} : vector<8x128xf32> to vector<8x32xf32>
    %cst_111 = arith.constant 5.000000e-01 : f32
    %334 = vector.broadcast %cst_111 : f32 to vector<8x32xf32>
    %335 = arith.mulf %334, %333 : vector<8x32xf32>
    %336 = math.tanh %335 : vector<8x32xf32>
    %cst_112 = arith.constant 5.000000e-01 : f32
    %337 = vector.broadcast %cst_112 : f32 to vector<8x32xf32>
    %338 = arith.mulf %337, %336 : vector<8x32xf32>
    %cst_113 = arith.constant 5.000000e-01 : f32
    %339 = vector.broadcast %cst_113 : f32 to vector<8x32xf32>
    %340 = arith.addf %338, %339 : vector<8x32xf32>
    %341 = vector.extract_strided_slice %324 {offsets = [0, 64], sizes = [8, 32], strides = [1, 1]} : vector<8x128xf32> to vector<8x32xf32>
    %342 = math.tanh %341 : vector<8x32xf32>
    %343 = vector.extract_strided_slice %324 {offsets = [0, 96], sizes = [8, 32], strides = [1, 1]} : vector<8x128xf32> to vector<8x32xf32>
    %cst_114 = arith.constant 5.000000e-01 : f32
    %344 = vector.broadcast %cst_114 : f32 to vector<8x32xf32>
    %345 = arith.mulf %344, %343 : vector<8x32xf32>
    %346 = math.tanh %345 : vector<8x32xf32>
    %cst_115 = arith.constant 5.000000e-01 : f32
    %347 = vector.broadcast %cst_115 : f32 to vector<8x32xf32>
    %348 = arith.mulf %347, %346 : vector<8x32xf32>
    %cst_116 = arith.constant 5.000000e-01 : f32
    %349 = vector.broadcast %cst_116 : f32 to vector<8x32xf32>
    %350 = arith.addf %348, %349 : vector<8x32xf32>
    %351 = arith.mulf %340, %252 : vector<8x32xf32>
    %352 = arith.mulf %332, %342 : vector<8x32xf32>
    %353 = arith.addf %351, %352 : vector<8x32xf32>
    %354 = math.tanh %353 : vector<8x32xf32>
    %355 = arith.mulf %350, %354 : vector<8x32xf32>
    %356 = vector.broadcast %c3_i32 : i32 to vector<8x1xi32>
    %357 = arith.cmpi sgt, %10, %356 : vector<8x1xi32>
    %358 = arith.extui %357 : vector<8x1xi1> to vector<8x1xi32>
    %359 = arith.sitofp %358 : vector<8x1xi32> to vector<8x1xf32>
    %360 = vector.broadcast %359 : vector<8x1xf32> to vector<8x32xf32>
    %361 = arith.mulf %355, %360 : vector<8x32xf32>
    %362 = arith.index_cast %c3_i32 : i32 to index
    %c0_117 = arith.constant 0 : index
    %c0_118 = arith.constant 0 : index
    %363 = vector.load %arg12[%362, %c0_117, %c0_118] : memref<8x8x32xf32, #tpu.memory_space<vmem>>, vector<1x8x32xf32>
    %364 = vector.shape_cast %363 : vector<1x8x32xf32> to vector<8x32xf32>
    %365 = vector.shape_cast %361 : vector<8x32xf32> to vector<1x8x32xf32>
    tpu.vector_store %arg12[%362, %c0_117, %c0_118], %365 {strides = array<i32>} : memref<8x8x32xf32, #tpu.memory_space<vmem>>, vector<1x8x32xf32>,
    %366 = vector.extract_strided_slice %321 {offsets = [0, 128], sizes = [8, 128], strides = [1, 1]} : vector<8x256xf32> to vector<8x128xf32>
    %cst_119 = arith.constant dense<0.000000e+00> : vector<8x128xf32>
    %367 = tpu.matmul %306, %9, %cst_119 {dimension_numbers = #tpu.dot_dimension_numbers<[1], [0], [0], [1], [0, 0, 1, 1], [], []>} : vector<8x32xf32>, vector<32x128xf32>, vector<8x128xf32> -> vector<8x128xf32>
    %368 = arith.addf %366, %367 : vector<8x128xf32>
    %369 = vector.extract_strided_slice %368 {offsets = [0, 0], sizes = [8, 32], strides = [1, 1]} : vector<8x128xf32> to vector<8x32xf32>
    %cst_120 = arith.constant 5.000000e-01 : f32
    %370 = vector.broadcast %cst_120 : f32 to vector<8x32xf32>
    %371 = arith.mulf %370, %369 : vector<8x32xf32>
    %372 = math.tanh %371 : vector<8x32xf32>
    %cst_121 = arith.constant 5.000000e-01 : f32
    %373 = vector.broadcast %cst_121 : f32 to vector<8x32xf32>
    %374 = arith.mulf %373, %372 : vector<8x32xf32>
    %cst_122 = arith.constant 5.000000e-01 : f32
    %375 = vector.broadcast %cst_122 : f32 to vector<8x32xf32>
    %376 = arith.addf %374, %375 : vector<8x32xf32>
    %377 = vector.extract_strided_slice %368 {offsets = [0, 32], sizes = [8, 32], strides = [1, 1]} : vector<8x128xf32> to vector<8x32xf32>
    %cst_123 = arith.constant 5.000000e-01 : f32
    %378 = vector.broadcast %cst_123 : f32 to vector<8x32xf32>
    %379 = arith.mulf %378, %377 : vector<8x32xf32>
    %380 = math.tanh %379 : vector<8x32xf32>
    %cst_124 = arith.constant 5.000000e-01 : f32
    %381 = vector.broadcast %cst_124 : f32 to vector<8x32xf32>
    %382 = arith.mulf %381, %380 : vector<8x32xf32>
    %cst_125 = arith.constant 5.000000e-01 : f32
    %383 = vector.broadcast %cst_125 : f32 to vector<8x32xf32>
    %384 = arith.addf %382, %383 : vector<8x32xf32>
    %385 = vector.extract_strided_slice %368 {offsets = [0, 64], sizes = [8, 32], strides = [1, 1]} : vector<8x128xf32> to vector<8x32xf32>
    %386 = math.tanh %385 : vector<8x32xf32>
    %387 = vector.extract_strided_slice %368 {offsets = [0, 96], sizes = [8, 32], strides = [1, 1]} : vector<8x128xf32> to vector<8x32xf32>
    %cst_126 = arith.constant 5.000000e-01 : f32
    %388 = vector.broadcast %cst_126 : f32 to vector<8x32xf32>
    %389 = arith.mulf %388, %387 : vector<8x32xf32>
    %390 = math.tanh %389 : vector<8x32xf32>
    %cst_127 = arith.constant 5.000000e-01 : f32
    %391 = vector.broadcast %cst_127 : f32 to vector<8x32xf32>
    %392 = arith.mulf %391, %390 : vector<8x32xf32>
    %cst_128 = arith.constant 5.000000e-01 : f32
    %393 = vector.broadcast %cst_128 : f32 to vector<8x32xf32>
    %394 = arith.addf %392, %393 : vector<8x32xf32>
    %395 = arith.mulf %384, %310 : vector<8x32xf32>
    %396 = arith.mulf %376, %386 : vector<8x32xf32>
    %397 = arith.addf %395, %396 : vector<8x32xf32>
    %398 = math.tanh %397 : vector<8x32xf32>
    %399 = arith.mulf %394, %398 : vector<8x32xf32>
    %400 = vector.broadcast %315 : i32 to vector<8x1xi32>
    %401 = arith.cmpi sgt, %10, %400 : vector<8x1xi32>
    %402 = arith.extui %401 : vector<8x1xi1> to vector<8x1xi32>
    %403 = arith.sitofp %402 : vector<8x1xi32> to vector<8x1xf32>
    %404 = arith.subf %399, %306 : vector<8x32xf32>
    %405 = vector.broadcast %403 : vector<8x1xf32> to vector<8x32xf32>
    %406 = arith.mulf %405, %404 : vector<8x32xf32>
    %407 = arith.addf %306, %406 : vector<8x32xf32>
    %408 = arith.subf %397, %310 : vector<8x32xf32>
    %409 = vector.broadcast %403 : vector<8x1xf32> to vector<8x32xf32>
    %410 = arith.mulf %409, %408 : vector<8x32xf32>
    %411 = arith.addf %310, %410 : vector<8x32xf32>
    %412 = arith.index_cast %315 : i32 to index
    %c0_129 = arith.constant 0 : index
    %c0_130 = arith.constant 0 : index
    %413 = vector.load %arg13[%412, %c0_129, %c0_130] : memref<8x8x32xf32, #tpu.memory_space<vmem>>, vector<1x8x32xf32>
    %414 = vector.shape_cast %413 : vector<1x8x32xf32> to vector<8x32xf32>
    %415 = vector.shape_cast %407 : vector<8x32xf32> to vector<1x8x32xf32>
    tpu.vector_store %arg13[%412, %c0_129, %c0_130], %415 {strides = array<i32>} : memref<8x8x32xf32, #tpu.memory_space<vmem>>, vector<1x8x32xf32>,
    %c4_i32 = arith.constant 4 : i32
    %c7_i32_131 = arith.constant 7 : i32
    %416 = arith.subi %c7_i32_131, %c4_i32 : i32
    %417 = arith.index_cast %c4_i32 : i32 to index
    %c0_132 = arith.constant 0 : index
    %c0_133 = arith.constant 0 : index
    %418 = vector.load %arg11[%417, %c0_132, %c0_133] : memref<8x8x256xf32, #tpu.memory_space<vmem>>, vector<1x8x256xf32>
    %419 = vector.shape_cast %418 : vector<1x8x256xf32> to vector<8x256xf32>
    %420 = arith.index_cast %416 : i32 to index
    %c0_134 = arith.constant 0 : index
    %c0_135 = arith.constant 0 : index
    %421 = vector.load %arg11[%420, %c0_134, %c0_135] : memref<8x8x256xf32, #tpu.memory_space<vmem>>, vector<1x8x256xf32>
    %422 = vector.shape_cast %421 : vector<1x8x256xf32> to vector<8x256xf32>
    %423 = vector.extract_strided_slice %419 {offsets = [0, 0], sizes = [8, 128], strides = [1, 1]} : vector<8x256xf32> to vector<8x128xf32>
    %cst_136 = arith.constant dense<0.000000e+00> : vector<8x128xf32>
    %424 = tpu.matmul %355, %8, %cst_136 {dimension_numbers = #tpu.dot_dimension_numbers<[1], [0], [0], [1], [0, 0, 1, 1], [], []>} : vector<8x32xf32>, vector<32x128xf32>, vector<8x128xf32> -> vector<8x128xf32>
    %425 = arith.addf %423, %424 : vector<8x128xf32>
    %426 = vector.extract_strided_slice %425 {offsets = [0, 0], sizes = [8, 32], strides = [1, 1]} : vector<8x128xf32> to vector<8x32xf32>
    %cst_137 = arith.constant 5.000000e-01 : f32
    %427 = vector.broadcast %cst_137 : f32 to vector<8x32xf32>
    %428 = arith.mulf %427, %426 : vector<8x32xf32>
    %429 = math.tanh %428 : vector<8x32xf32>
    %cst_138 = arith.constant 5.000000e-01 : f32
    %430 = vector.broadcast %cst_138 : f32 to vector<8x32xf32>
    %431 = arith.mulf %430, %429 : vector<8x32xf32>
    %cst_139 = arith.constant 5.000000e-01 : f32
    %432 = vector.broadcast %cst_139 : f32 to vector<8x32xf32>
    %433 = arith.addf %431, %432 : vector<8x32xf32>
    %434 = vector.extract_strided_slice %425 {offsets = [0, 32], sizes = [8, 32], strides = [1, 1]} : vector<8x128xf32> to vector<8x32xf32>
    %cst_140 = arith.constant 5.000000e-01 : f32
    %435 = vector.broadcast %cst_140 : f32 to vector<8x32xf32>
    %436 = arith.mulf %435, %434 : vector<8x32xf32>
    %437 = math.tanh %436 : vector<8x32xf32>
    %cst_141 = arith.constant 5.000000e-01 : f32
    %438 = vector.broadcast %cst_141 : f32 to vector<8x32xf32>
    %439 = arith.mulf %438, %437 : vector<8x32xf32>
    %cst_142 = arith.constant 5.000000e-01 : f32
    %440 = vector.broadcast %cst_142 : f32 to vector<8x32xf32>
    %441 = arith.addf %439, %440 : vector<8x32xf32>
    %442 = vector.extract_strided_slice %425 {offsets = [0, 64], sizes = [8, 32], strides = [1, 1]} : vector<8x128xf32> to vector<8x32xf32>
    %443 = math.tanh %442 : vector<8x32xf32>
    %444 = vector.extract_strided_slice %425 {offsets = [0, 96], sizes = [8, 32], strides = [1, 1]} : vector<8x128xf32> to vector<8x32xf32>
    %cst_143 = arith.constant 5.000000e-01 : f32
    %445 = vector.broadcast %cst_143 : f32 to vector<8x32xf32>
    %446 = arith.mulf %445, %444 : vector<8x32xf32>
    %447 = math.tanh %446 : vector<8x32xf32>
    %cst_144 = arith.constant 5.000000e-01 : f32
    %448 = vector.broadcast %cst_144 : f32 to vector<8x32xf32>
    %449 = arith.mulf %448, %447 : vector<8x32xf32>
    %cst_145 = arith.constant 5.000000e-01 : f32
    %450 = vector.broadcast %cst_145 : f32 to vector<8x32xf32>
    %451 = arith.addf %449, %450 : vector<8x32xf32>
    %452 = arith.mulf %441, %353 : vector<8x32xf32>
    %453 = arith.mulf %433, %443 : vector<8x32xf32>
    %454 = arith.addf %452, %453 : vector<8x32xf32>
    %455 = math.tanh %454 : vector<8x32xf32>
    %456 = arith.mulf %451, %455 : vector<8x32xf32>
    %457 = vector.broadcast %c4_i32 : i32 to vector<8x1xi32>
    %458 = arith.cmpi sgt, %10, %457 : vector<8x1xi32>
    %459 = arith.extui %458 : vector<8x1xi1> to vector<8x1xi32>
    %460 = arith.sitofp %459 : vector<8x1xi32> to vector<8x1xf32>
    %461 = vector.broadcast %460 : vector<8x1xf32> to vector<8x32xf32>
    %462 = arith.mulf %456, %461 : vector<8x32xf32>
    %463 = arith.index_cast %c4_i32 : i32 to index
    %c0_146 = arith.constant 0 : index
    %c0_147 = arith.constant 0 : index
    %464 = vector.load %arg12[%463, %c0_146, %c0_147] : memref<8x8x32xf32, #tpu.memory_space<vmem>>, vector<1x8x32xf32>
    %465 = vector.shape_cast %464 : vector<1x8x32xf32> to vector<8x32xf32>
    %466 = vector.shape_cast %462 : vector<8x32xf32> to vector<1x8x32xf32>
    tpu.vector_store %arg12[%463, %c0_146, %c0_147], %466 {strides = array<i32>} : memref<8x8x32xf32, #tpu.memory_space<vmem>>, vector<1x8x32xf32>,
    %467 = vector.extract_strided_slice %422 {offsets = [0, 128], sizes = [8, 128], strides = [1, 1]} : vector<8x256xf32> to vector<8x128xf32>
    %cst_148 = arith.constant dense<0.000000e+00> : vector<8x128xf32>
    %468 = tpu.matmul %407, %9, %cst_148 {dimension_numbers = #tpu.dot_dimension_numbers<[1], [0], [0], [1], [0, 0, 1, 1], [], []>} : vector<8x32xf32>, vector<32x128xf32>, vector<8x128xf32> -> vector<8x128xf32>
    %469 = arith.addf %467, %468 : vector<8x128xf32>
    %470 = vector.extract_strided_slice %469 {offsets = [0, 0], sizes = [8, 32], strides = [1, 1]} : vector<8x128xf32> to vector<8x32xf32>
    %cst_149 = arith.constant 5.000000e-01 : f32
    %471 = vector.broadcast %cst_149 : f32 to vector<8x32xf32>
    %472 = arith.mulf %471, %470 : vector<8x32xf32>
    %473 = math.tanh %472 : vector<8x32xf32>
    %cst_150 = arith.constant 5.000000e-01 : f32
    %474 = vector.broadcast %cst_150 : f32 to vector<8x32xf32>
    %475 = arith.mulf %474, %473 : vector<8x32xf32>
    %cst_151 = arith.constant 5.000000e-01 : f32
    %476 = vector.broadcast %cst_151 : f32 to vector<8x32xf32>
    %477 = arith.addf %475, %476 : vector<8x32xf32>
    %478 = vector.extract_strided_slice %469 {offsets = [0, 32], sizes = [8, 32], strides = [1, 1]} : vector<8x128xf32> to vector<8x32xf32>
    %cst_152 = arith.constant 5.000000e-01 : f32
    %479 = vector.broadcast %cst_152 : f32 to vector<8x32xf32>
    %480 = arith.mulf %479, %478 : vector<8x32xf32>
    %481 = math.tanh %480 : vector<8x32xf32>
    %cst_153 = arith.constant 5.000000e-01 : f32
    %482 = vector.broadcast %cst_153 : f32 to vector<8x32xf32>
    %483 = arith.mulf %482, %481 : vector<8x32xf32>
    %cst_154 = arith.constant 5.000000e-01 : f32
    %484 = vector.broadcast %cst_154 : f32 to vector<8x32xf32>
    %485 = arith.addf %483, %484 : vector<8x32xf32>
    %486 = vector.extract_strided_slice %469 {offsets = [0, 64], sizes = [8, 32], strides = [1, 1]} : vector<8x128xf32> to vector<8x32xf32>
    %487 = math.tanh %486 : vector<8x32xf32>
    %488 = vector.extract_strided_slice %469 {offsets = [0, 96], sizes = [8, 32], strides = [1, 1]} : vector<8x128xf32> to vector<8x32xf32>
    %cst_155 = arith.constant 5.000000e-01 : f32
    %489 = vector.broadcast %cst_155 : f32 to vector<8x32xf32>
    %490 = arith.mulf %489, %488 : vector<8x32xf32>
    %491 = math.tanh %490 : vector<8x32xf32>
    %cst_156 = arith.constant 5.000000e-01 : f32
    %492 = vector.broadcast %cst_156 : f32 to vector<8x32xf32>
    %493 = arith.mulf %492, %491 : vector<8x32xf32>
    %cst_157 = arith.constant 5.000000e-01 : f32
    %494 = vector.broadcast %cst_157 : f32 to vector<8x32xf32>
    %495 = arith.addf %493, %494 : vector<8x32xf32>
    %496 = arith.mulf %485, %411 : vector<8x32xf32>
    %497 = arith.mulf %477, %487 : vector<8x32xf32>
    %498 = arith.addf %496, %497 : vector<8x32xf32>
    %499 = math.tanh %498 : vector<8x32xf32>
    %500 = arith.mulf %495, %499 : vector<8x32xf32>
    %501 = vector.broadcast %416 : i32 to vector<8x1xi32>
    %502 = arith.cmpi sgt, %10, %501 : vector<8x1xi32>
    %503 = arith.extui %502 : vector<8x1xi1> to vector<8x1xi32>
    %504 = arith.sitofp %503 : vector<8x1xi32> to vector<8x1xf32>
    %505 = arith.subf %500, %407 : vector<8x32xf32>
    %506 = vector.broadcast %504 : vector<8x1xf32> to vector<8x32xf32>
    %507 = arith.mulf %506, %505 : vector<8x32xf32>
    %508 = arith.addf %407, %507 : vector<8x32xf32>
    %509 = arith.subf %498, %411 : vector<8x32xf32>
    %510 = vector.broadcast %504 : vector<8x1xf32> to vector<8x32xf32>
    %511 = arith.mulf %510, %509 : vector<8x32xf32>
    %512 = arith.addf %411, %511 : vector<8x32xf32>
    %513 = arith.index_cast %416 : i32 to index
    %c0_158 = arith.constant 0 : index
    %c0_159 = arith.constant 0 : index
    %514 = vector.load %arg13[%513, %c0_158, %c0_159] : memref<8x8x32xf32, #tpu.memory_space<vmem>>, vector<1x8x32xf32>
    %515 = vector.shape_cast %514 : vector<1x8x32xf32> to vector<8x32xf32>
    %516 = vector.shape_cast %508 : vector<8x32xf32> to vector<1x8x32xf32>
    tpu.vector_store %arg13[%513, %c0_158, %c0_159], %516 {strides = array<i32>} : memref<8x8x32xf32, #tpu.memory_space<vmem>>, vector<1x8x32xf32>,
    %c5_i32 = arith.constant 5 : i32
    %c7_i32_160 = arith.constant 7 : i32
    %517 = arith.subi %c7_i32_160, %c5_i32 : i32
    %518 = arith.index_cast %c5_i32 : i32 to index
    %c0_161 = arith.constant 0 : index
    %c0_162 = arith.constant 0 : index
    %519 = vector.load %arg11[%518, %c0_161, %c0_162] : memref<8x8x256xf32, #tpu.memory_space<vmem>>, vector<1x8x256xf32>
    %520 = vector.shape_cast %519 : vector<1x8x256xf32> to vector<8x256xf32>
    %521 = arith.index_cast %517 : i32 to index
    %c0_163 = arith.constant 0 : index
    %c0_164 = arith.constant 0 : index
    %522 = vector.load %arg11[%521, %c0_163, %c0_164] : memref<8x8x256xf32, #tpu.memory_space<vmem>>, vector<1x8x256xf32>
    %523 = vector.shape_cast %522 : vector<1x8x256xf32> to vector<8x256xf32>
    %524 = vector.extract_strided_slice %520 {offsets = [0, 0], sizes = [8, 128], strides = [1, 1]} : vector<8x256xf32> to vector<8x128xf32>
    %cst_165 = arith.constant dense<0.000000e+00> : vector<8x128xf32>
    %525 = tpu.matmul %456, %8, %cst_165 {dimension_numbers = #tpu.dot_dimension_numbers<[1], [0], [0], [1], [0, 0, 1, 1], [], []>} : vector<8x32xf32>, vector<32x128xf32>, vector<8x128xf32> -> vector<8x128xf32>
    %526 = arith.addf %524, %525 : vector<8x128xf32>
    %527 = vector.extract_strided_slice %526 {offsets = [0, 0], sizes = [8, 32], strides = [1, 1]} : vector<8x128xf32> to vector<8x32xf32>
    %cst_166 = arith.constant 5.000000e-01 : f32
    %528 = vector.broadcast %cst_166 : f32 to vector<8x32xf32>
    %529 = arith.mulf %528, %527 : vector<8x32xf32>
    %530 = math.tanh %529 : vector<8x32xf32>
    %cst_167 = arith.constant 5.000000e-01 : f32
    %531 = vector.broadcast %cst_167 : f32 to vector<8x32xf32>
    %532 = arith.mulf %531, %530 : vector<8x32xf32>
    %cst_168 = arith.constant 5.000000e-01 : f32
    %533 = vector.broadcast %cst_168 : f32 to vector<8x32xf32>
    %534 = arith.addf %532, %533 : vector<8x32xf32>
    %535 = vector.extract_strided_slice %526 {offsets = [0, 32], sizes = [8, 32], strides = [1, 1]} : vector<8x128xf32> to vector<8x32xf32>
    %cst_169 = arith.constant 5.000000e-01 : f32
    %536 = vector.broadcast %cst_169 : f32 to vector<8x32xf32>
    %537 = arith.mulf %536, %535 : vector<8x32xf32>
    %538 = math.tanh %537 : vector<8x32xf32>
    %cst_170 = arith.constant 5.000000e-01 : f32
    %539 = vector.broadcast %cst_170 : f32 to vector<8x32xf32>
    %540 = arith.mulf %539, %538 : vector<8x32xf32>
    %cst_171 = arith.constant 5.000000e-01 : f32
    %541 = vector.broadcast %cst_171 : f32 to vector<8x32xf32>
    %542 = arith.addf %540, %541 : vector<8x32xf32>
    %543 = vector.extract_strided_slice %526 {offsets = [0, 64], sizes = [8, 32], strides = [1, 1]} : vector<8x128xf32> to vector<8x32xf32>
    %544 = math.tanh %543 : vector<8x32xf32>
    %545 = vector.extract_strided_slice %526 {offsets = [0, 96], sizes = [8, 32], strides = [1, 1]} : vector<8x128xf32> to vector<8x32xf32>
    %cst_172 = arith.constant 5.000000e-01 : f32
    %546 = vector.broadcast %cst_172 : f32 to vector<8x32xf32>
    %547 = arith.mulf %546, %545 : vector<8x32xf32>
    %548 = math.tanh %547 : vector<8x32xf32>
    %cst_173 = arith.constant 5.000000e-01 : f32
    %549 = vector.broadcast %cst_173 : f32 to vector<8x32xf32>
    %550 = arith.mulf %549, %548 : vector<8x32xf32>
    %cst_174 = arith.constant 5.000000e-01 : f32
    %551 = vector.broadcast %cst_174 : f32 to vector<8x32xf32>
    %552 = arith.addf %550, %551 : vector<8x32xf32>
    %553 = arith.mulf %542, %454 : vector<8x32xf32>
    %554 = arith.mulf %534, %544 : vector<8x32xf32>
    %555 = arith.addf %553, %554 : vector<8x32xf32>
    %556 = math.tanh %555 : vector<8x32xf32>
    %557 = arith.mulf %552, %556 : vector<8x32xf32>
    %558 = vector.broadcast %c5_i32 : i32 to vector<8x1xi32>
    %559 = arith.cmpi sgt, %10, %558 : vector<8x1xi32>
    %560 = arith.extui %559 : vector<8x1xi1> to vector<8x1xi32>
    %561 = arith.sitofp %560 : vector<8x1xi32> to vector<8x1xf32>
    %562 = vector.broadcast %561 : vector<8x1xf32> to vector<8x32xf32>
    %563 = arith.mulf %557, %562 : vector<8x32xf32>
    %564 = arith.index_cast %c5_i32 : i32 to index
    %c0_175 = arith.constant 0 : index
    %c0_176 = arith.constant 0 : index
    %565 = vector.load %arg12[%564, %c0_175, %c0_176] : memref<8x8x32xf32, #tpu.memory_space<vmem>>, vector<1x8x32xf32>
    %566 = vector.shape_cast %565 : vector<1x8x32xf32> to vector<8x32xf32>
    %567 = vector.shape_cast %563 : vector<8x32xf32> to vector<1x8x32xf32>
    tpu.vector_store %arg12[%564, %c0_175, %c0_176], %567 {strides = array<i32>} : memref<8x8x32xf32, #tpu.memory_space<vmem>>, vector<1x8x32xf32>,
    %568 = vector.extract_strided_slice %523 {offsets = [0, 128], sizes = [8, 128], strides = [1, 1]} : vector<8x256xf32> to vector<8x128xf32>
    %cst_177 = arith.constant dense<0.000000e+00> : vector<8x128xf32>
    %569 = tpu.matmul %508, %9, %cst_177 {dimension_numbers = #tpu.dot_dimension_numbers<[1], [0], [0], [1], [0, 0, 1, 1], [], []>} : vector<8x32xf32>, vector<32x128xf32>, vector<8x128xf32> -> vector<8x128xf32>
    %570 = arith.addf %568, %569 : vector<8x128xf32>
    %571 = vector.extract_strided_slice %570 {offsets = [0, 0], sizes = [8, 32], strides = [1, 1]} : vector<8x128xf32> to vector<8x32xf32>
    %cst_178 = arith.constant 5.000000e-01 : f32
    %572 = vector.broadcast %cst_178 : f32 to vector<8x32xf32>
    %573 = arith.mulf %572, %571 : vector<8x32xf32>
    %574 = math.tanh %573 : vector<8x32xf32>
    %cst_179 = arith.constant 5.000000e-01 : f32
    %575 = vector.broadcast %cst_179 : f32 to vector<8x32xf32>
    %576 = arith.mulf %575, %574 : vector<8x32xf32>
    %cst_180 = arith.constant 5.000000e-01 : f32
    %577 = vector.broadcast %cst_180 : f32 to vector<8x32xf32>
    %578 = arith.addf %576, %577 : vector<8x32xf32>
    %579 = vector.extract_strided_slice %570 {offsets = [0, 32], sizes = [8, 32], strides = [1, 1]} : vector<8x128xf32> to vector<8x32xf32>
    %cst_181 = arith.constant 5.000000e-01 : f32
    %580 = vector.broadcast %cst_181 : f32 to vector<8x32xf32>
    %581 = arith.mulf %580, %579 : vector<8x32xf32>
    %582 = math.tanh %581 : vector<8x32xf32>
    %cst_182 = arith.constant 5.000000e-01 : f32
    %583 = vector.broadcast %cst_182 : f32 to vector<8x32xf32>
    %584 = arith.mulf %583, %582 : vector<8x32xf32>
    %cst_183 = arith.constant 5.000000e-01 : f32
    %585 = vector.broadcast %cst_183 : f32 to vector<8x32xf32>
    %586 = arith.addf %584, %585 : vector<8x32xf32>
    %587 = vector.extract_strided_slice %570 {offsets = [0, 64], sizes = [8, 32], strides = [1, 1]} : vector<8x128xf32> to vector<8x32xf32>
    %588 = math.tanh %587 : vector<8x32xf32>
    %589 = vector.extract_strided_slice %570 {offsets = [0, 96], sizes = [8, 32], strides = [1, 1]} : vector<8x128xf32> to vector<8x32xf32>
    %cst_184 = arith.constant 5.000000e-01 : f32
    %590 = vector.broadcast %cst_184 : f32 to vector<8x32xf32>
    %591 = arith.mulf %590, %589 : vector<8x32xf32>
    %592 = math.tanh %591 : vector<8x32xf32>
    %cst_185 = arith.constant 5.000000e-01 : f32
    %593 = vector.broadcast %cst_185 : f32 to vector<8x32xf32>
    %594 = arith.mulf %593, %592 : vector<8x32xf32>
    %cst_186 = arith.constant 5.000000e-01 : f32
    %595 = vector.broadcast %cst_186 : f32 to vector<8x32xf32>
    %596 = arith.addf %594, %595 : vector<8x32xf32>
    %597 = arith.mulf %586, %512 : vector<8x32xf32>
    %598 = arith.mulf %578, %588 : vector<8x32xf32>
    %599 = arith.addf %597, %598 : vector<8x32xf32>
    %600 = math.tanh %599 : vector<8x32xf32>
    %601 = arith.mulf %596, %600 : vector<8x32xf32>
    %602 = vector.broadcast %517 : i32 to vector<8x1xi32>
    %603 = arith.cmpi sgt, %10, %602 : vector<8x1xi32>
    %604 = arith.extui %603 : vector<8x1xi1> to vector<8x1xi32>
    %605 = arith.sitofp %604 : vector<8x1xi32> to vector<8x1xf32>
    %606 = arith.subf %601, %508 : vector<8x32xf32>
    %607 = vector.broadcast %605 : vector<8x1xf32> to vector<8x32xf32>
    %608 = arith.mulf %607, %606 : vector<8x32xf32>
    %609 = arith.addf %508, %608 : vector<8x32xf32>
    %610 = arith.subf %599, %512 : vector<8x32xf32>
    %611 = vector.broadcast %605 : vector<8x1xf32> to vector<8x32xf32>
    %612 = arith.mulf %611, %610 : vector<8x32xf32>
    %613 = arith.addf %512, %612 : vector<8x32xf32>
    %614 = arith.index_cast %517 : i32 to index
    %c0_187 = arith.constant 0 : index
    %c0_188 = arith.constant 0 : index
    %615 = vector.load %arg13[%614, %c0_187, %c0_188] : memref<8x8x32xf32, #tpu.memory_space<vmem>>, vector<1x8x32xf32>
    %616 = vector.shape_cast %615 : vector<1x8x32xf32> to vector<8x32xf32>
    %617 = vector.shape_cast %609 : vector<8x32xf32> to vector<1x8x32xf32>
    tpu.vector_store %arg13[%614, %c0_187, %c0_188], %617 {strides = array<i32>} : memref<8x8x32xf32, #tpu.memory_space<vmem>>, vector<1x8x32xf32>,
    %c6_i32 = arith.constant 6 : i32
    %c7_i32_189 = arith.constant 7 : i32
    %618 = arith.subi %c7_i32_189, %c6_i32 : i32
    %619 = arith.index_cast %c6_i32 : i32 to index
    %c0_190 = arith.constant 0 : index
    %c0_191 = arith.constant 0 : index
    %620 = vector.load %arg11[%619, %c0_190, %c0_191] : memref<8x8x256xf32, #tpu.memory_space<vmem>>, vector<1x8x256xf32>
    %621 = vector.shape_cast %620 : vector<1x8x256xf32> to vector<8x256xf32>
    %622 = arith.index_cast %618 : i32 to index
    %c0_192 = arith.constant 0 : index
    %c0_193 = arith.constant 0 : index
    %623 = vector.load %arg11[%622, %c0_192, %c0_193] : memref<8x8x256xf32, #tpu.memory_space<vmem>>, vector<1x8x256xf32>
    %624 = vector.shape_cast %623 : vector<1x8x256xf32> to vector<8x256xf32>
    %625 = vector.extract_strided_slice %621 {offsets = [0, 0], sizes = [8, 128], strides = [1, 1]} : vector<8x256xf32> to vector<8x128xf32>
    %cst_194 = arith.constant dense<0.000000e+00> : vector<8x128xf32>
    %626 = tpu.matmul %557, %8, %cst_194 {dimension_numbers = #tpu.dot_dimension_numbers<[1], [0], [0], [1], [0, 0, 1, 1], [], []>} : vector<8x32xf32>, vector<32x128xf32>, vector<8x128xf32> -> vector<8x128xf32>
    %627 = arith.addf %625, %626 : vector<8x128xf32>
    %628 = vector.extract_strided_slice %627 {offsets = [0, 0], sizes = [8, 32], strides = [1, 1]} : vector<8x128xf32> to vector<8x32xf32>
    %cst_195 = arith.constant 5.000000e-01 : f32
    %629 = vector.broadcast %cst_195 : f32 to vector<8x32xf32>
    %630 = arith.mulf %629, %628 : vector<8x32xf32>
    %631 = math.tanh %630 : vector<8x32xf32>
    %cst_196 = arith.constant 5.000000e-01 : f32
    %632 = vector.broadcast %cst_196 : f32 to vector<8x32xf32>
    %633 = arith.mulf %632, %631 : vector<8x32xf32>
    %cst_197 = arith.constant 5.000000e-01 : f32
    %634 = vector.broadcast %cst_197 : f32 to vector<8x32xf32>
    %635 = arith.addf %633, %634 : vector<8x32xf32>
    %636 = vector.extract_strided_slice %627 {offsets = [0, 32], sizes = [8, 32], strides = [1, 1]} : vector<8x128xf32> to vector<8x32xf32>
    %cst_198 = arith.constant 5.000000e-01 : f32
    %637 = vector.broadcast %cst_198 : f32 to vector<8x32xf32>
    %638 = arith.mulf %637, %636 : vector<8x32xf32>
    %639 = math.tanh %638 : vector<8x32xf32>
    %cst_199 = arith.constant 5.000000e-01 : f32
    %640 = vector.broadcast %cst_199 : f32 to vector<8x32xf32>
    %641 = arith.mulf %640, %639 : vector<8x32xf32>
    %cst_200 = arith.constant 5.000000e-01 : f32
    %642 = vector.broadcast %cst_200 : f32 to vector<8x32xf32>
    %643 = arith.addf %641, %642 : vector<8x32xf32>
    %644 = vector.extract_strided_slice %627 {offsets = [0, 64], sizes = [8, 32], strides = [1, 1]} : vector<8x128xf32> to vector<8x32xf32>
    %645 = math.tanh %644 : vector<8x32xf32>
    %646 = vector.extract_strided_slice %627 {offsets = [0, 96], sizes = [8, 32], strides = [1, 1]} : vector<8x128xf32> to vector<8x32xf32>
    %cst_201 = arith.constant 5.000000e-01 : f32
    %647 = vector.broadcast %cst_201 : f32 to vector<8x32xf32>
    %648 = arith.mulf %647, %646 : vector<8x32xf32>
    %649 = math.tanh %648 : vector<8x32xf32>
    %cst_202 = arith.constant 5.000000e-01 : f32
    %650 = vector.broadcast %cst_202 : f32 to vector<8x32xf32>
    %651 = arith.mulf %650, %649 : vector<8x32xf32>
    %cst_203 = arith.constant 5.000000e-01 : f32
    %652 = vector.broadcast %cst_203 : f32 to vector<8x32xf32>
    %653 = arith.addf %651, %652 : vector<8x32xf32>
    %654 = arith.mulf %643, %555 : vector<8x32xf32>
    %655 = arith.mulf %635, %645 : vector<8x32xf32>
    %656 = arith.addf %654, %655 : vector<8x32xf32>
    %657 = math.tanh %656 : vector<8x32xf32>
    %658 = arith.mulf %653, %657 : vector<8x32xf32>
    %659 = vector.broadcast %c6_i32 : i32 to vector<8x1xi32>
    %660 = arith.cmpi sgt, %10, %659 : vector<8x1xi32>
    %661 = arith.extui %660 : vector<8x1xi1> to vector<8x1xi32>
    %662 = arith.sitofp %661 : vector<8x1xi32> to vector<8x1xf32>
    %663 = vector.broadcast %662 : vector<8x1xf32> to vector<8x32xf32>
    %664 = arith.mulf %658, %663 : vector<8x32xf32>
    %665 = arith.index_cast %c6_i32 : i32 to index
    %c0_204 = arith.constant 0 : index
    %c0_205 = arith.constant 0 : index
    %666 = vector.load %arg12[%665, %c0_204, %c0_205] : memref<8x8x32xf32, #tpu.memory_space<vmem>>, vector<1x8x32xf32>
    %667 = vector.shape_cast %666 : vector<1x8x32xf32> to vector<8x32xf32>
    %668 = vector.shape_cast %664 : vector<8x32xf32> to vector<1x8x32xf32>
    tpu.vector_store %arg12[%665, %c0_204, %c0_205], %668 {strides = array<i32>} : memref<8x8x32xf32, #tpu.memory_space<vmem>>, vector<1x8x32xf32>,
    %669 = vector.extract_strided_slice %624 {offsets = [0, 128], sizes = [8, 128], strides = [1, 1]} : vector<8x256xf32> to vector<8x128xf32>
    %cst_206 = arith.constant dense<0.000000e+00> : vector<8x128xf32>
    %670 = tpu.matmul %609, %9, %cst_206 {dimension_numbers = #tpu.dot_dimension_numbers<[1], [0], [0], [1], [0, 0, 1, 1], [], []>} : vector<8x32xf32>, vector<32x128xf32>, vector<8x128xf32> -> vector<8x128xf32>
    %671 = arith.addf %669, %670 : vector<8x128xf32>
    %672 = vector.extract_strided_slice %671 {offsets = [0, 0], sizes = [8, 32], strides = [1, 1]} : vector<8x128xf32> to vector<8x32xf32>
    %cst_207 = arith.constant 5.000000e-01 : f32
    %673 = vector.broadcast %cst_207 : f32 to vector<8x32xf32>
    %674 = arith.mulf %673, %672 : vector<8x32xf32>
    %675 = math.tanh %674 : vector<8x32xf32>
    %cst_208 = arith.constant 5.000000e-01 : f32
    %676 = vector.broadcast %cst_208 : f32 to vector<8x32xf32>
    %677 = arith.mulf %676, %675 : vector<8x32xf32>
    %cst_209 = arith.constant 5.000000e-01 : f32
    %678 = vector.broadcast %cst_209 : f32 to vector<8x32xf32>
    %679 = arith.addf %677, %678 : vector<8x32xf32>
    %680 = vector.extract_strided_slice %671 {offsets = [0, 32], sizes = [8, 32], strides = [1, 1]} : vector<8x128xf32> to vector<8x32xf32>
    %cst_210 = arith.constant 5.000000e-01 : f32
    %681 = vector.broadcast %cst_210 : f32 to vector<8x32xf32>
    %682 = arith.mulf %681, %680 : vector<8x32xf32>
    %683 = math.tanh %682 : vector<8x32xf32>
    %cst_211 = arith.constant 5.000000e-01 : f32
    %684 = vector.broadcast %cst_211 : f32 to vector<8x32xf32>
    %685 = arith.mulf %684, %683 : vector<8x32xf32>
    %cst_212 = arith.constant 5.000000e-01 : f32
    %686 = vector.broadcast %cst_212 : f32 to vector<8x32xf32>
    %687 = arith.addf %685, %686 : vector<8x32xf32>
    %688 = vector.extract_strided_slice %671 {offsets = [0, 64], sizes = [8, 32], strides = [1, 1]} : vector<8x128xf32> to vector<8x32xf32>
    %689 = math.tanh %688 : vector<8x32xf32>
    %690 = vector.extract_strided_slice %671 {offsets = [0, 96], sizes = [8, 32], strides = [1, 1]} : vector<8x128xf32> to vector<8x32xf32>
    %cst_213 = arith.constant 5.000000e-01 : f32
    %691 = vector.broadcast %cst_213 : f32 to vector<8x32xf32>
    %692 = arith.mulf %691, %690 : vector<8x32xf32>
    %693 = math.tanh %692 : vector<8x32xf32>
    %cst_214 = arith.constant 5.000000e-01 : f32
    %694 = vector.broadcast %cst_214 : f32 to vector<8x32xf32>
    %695 = arith.mulf %694, %693 : vector<8x32xf32>
    %cst_215 = arith.constant 5.000000e-01 : f32
    %696 = vector.broadcast %cst_215 : f32 to vector<8x32xf32>
    %697 = arith.addf %695, %696 : vector<8x32xf32>
    %698 = arith.mulf %687, %613 : vector<8x32xf32>
    %699 = arith.mulf %679, %689 : vector<8x32xf32>
    %700 = arith.addf %698, %699 : vector<8x32xf32>
    %701 = math.tanh %700 : vector<8x32xf32>
    %702 = arith.mulf %697, %701 : vector<8x32xf32>
    %703 = vector.broadcast %618 : i32 to vector<8x1xi32>
    %704 = arith.cmpi sgt, %10, %703 : vector<8x1xi32>
    %705 = arith.extui %704 : vector<8x1xi1> to vector<8x1xi32>
    %706 = arith.sitofp %705 : vector<8x1xi32> to vector<8x1xf32>
    %707 = arith.subf %702, %609 : vector<8x32xf32>
    %708 = vector.broadcast %706 : vector<8x1xf32> to vector<8x32xf32>
    %709 = arith.mulf %708, %707 : vector<8x32xf32>
    %710 = arith.addf %609, %709 : vector<8x32xf32>
    %711 = arith.subf %700, %613 : vector<8x32xf32>
    %712 = vector.broadcast %706 : vector<8x1xf32> to vector<8x32xf32>
    %713 = arith.mulf %712, %711 : vector<8x32xf32>
    %714 = arith.addf %613, %713 : vector<8x32xf32>
    %715 = arith.index_cast %618 : i32 to index
    %c0_216 = arith.constant 0 : index
    %c0_217 = arith.constant 0 : index
    %716 = vector.load %arg13[%715, %c0_216, %c0_217] : memref<8x8x32xf32, #tpu.memory_space<vmem>>, vector<1x8x32xf32>
    %717 = vector.shape_cast %716 : vector<1x8x32xf32> to vector<8x32xf32>
    %718 = vector.shape_cast %710 : vector<8x32xf32> to vector<1x8x32xf32>
    tpu.vector_store %arg13[%715, %c0_216, %c0_217], %718 {strides = array<i32>} : memref<8x8x32xf32, #tpu.memory_space<vmem>>, vector<1x8x32xf32>,
    %c7_i32_218 = arith.constant 7 : i32
    %c7_i32_219 = arith.constant 7 : i32
    %719 = arith.subi %c7_i32_219, %c7_i32_218 : i32
    %720 = arith.index_cast %c7_i32_218 : i32 to index
    %c0_220 = arith.constant 0 : index
    %c0_221 = arith.constant 0 : index
    %721 = vector.load %arg11[%720, %c0_220, %c0_221] : memref<8x8x256xf32, #tpu.memory_space<vmem>>, vector<1x8x256xf32>
    %722 = vector.shape_cast %721 : vector<1x8x256xf32> to vector<8x256xf32>
    %723 = arith.index_cast %719 : i32 to index
    %c0_222 = arith.constant 0 : index
    %c0_223 = arith.constant 0 : index
    %724 = vector.load %arg11[%723, %c0_222, %c0_223] : memref<8x8x256xf32, #tpu.memory_space<vmem>>, vector<1x8x256xf32>
    %725 = vector.shape_cast %724 : vector<1x8x256xf32> to vector<8x256xf32>
    %726 = vector.extract_strided_slice %722 {offsets = [0, 0], sizes = [8, 128], strides = [1, 1]} : vector<8x256xf32> to vector<8x128xf32>
    %cst_224 = arith.constant dense<0.000000e+00> : vector<8x128xf32>
    %727 = tpu.matmul %658, %8, %cst_224 {dimension_numbers = #tpu.dot_dimension_numbers<[1], [0], [0], [1], [0, 0, 1, 1], [], []>} : vector<8x32xf32>, vector<32x128xf32>, vector<8x128xf32> -> vector<8x128xf32>
    %728 = arith.addf %726, %727 : vector<8x128xf32>
    %729 = vector.extract_strided_slice %728 {offsets = [0, 0], sizes = [8, 32], strides = [1, 1]} : vector<8x128xf32> to vector<8x32xf32>
    %cst_225 = arith.constant 5.000000e-01 : f32
    %730 = vector.broadcast %cst_225 : f32 to vector<8x32xf32>
    %731 = arith.mulf %730, %729 : vector<8x32xf32>
    %732 = math.tanh %731 : vector<8x32xf32>
    %cst_226 = arith.constant 5.000000e-01 : f32
    %733 = vector.broadcast %cst_226 : f32 to vector<8x32xf32>
    %734 = arith.mulf %733, %732 : vector<8x32xf32>
    %cst_227 = arith.constant 5.000000e-01 : f32
    %735 = vector.broadcast %cst_227 : f32 to vector<8x32xf32>
    %736 = arith.addf %734, %735 : vector<8x32xf32>
    %737 = vector.extract_strided_slice %728 {offsets = [0, 32], sizes = [8, 32], strides = [1, 1]} : vector<8x128xf32> to vector<8x32xf32>
    %cst_228 = arith.constant 5.000000e-01 : f32
    %738 = vector.broadcast %cst_228 : f32 to vector<8x32xf32>
    %739 = arith.mulf %738, %737 : vector<8x32xf32>
    %740 = math.tanh %739 : vector<8x32xf32>
    %cst_229 = arith.constant 5.000000e-01 : f32
    %741 = vector.broadcast %cst_229 : f32 to vector<8x32xf32>
    %742 = arith.mulf %741, %740 : vector<8x32xf32>
    %cst_230 = arith.constant 5.000000e-01 : f32
    %743 = vector.broadcast %cst_230 : f32 to vector<8x32xf32>
    %744 = arith.addf %742, %743 : vector<8x32xf32>
    %745 = vector.extract_strided_slice %728 {offsets = [0, 64], sizes = [8, 32], strides = [1, 1]} : vector<8x128xf32> to vector<8x32xf32>
    %746 = math.tanh %745 : vector<8x32xf32>
    %747 = vector.extract_strided_slice %728 {offsets = [0, 96], sizes = [8, 32], strides = [1, 1]} : vector<8x128xf32> to vector<8x32xf32>
    %cst_231 = arith.constant 5.000000e-01 : f32
    %748 = vector.broadcast %cst_231 : f32 to vector<8x32xf32>
    %749 = arith.mulf %748, %747 : vector<8x32xf32>
    %750 = math.tanh %749 : vector<8x32xf32>
    %cst_232 = arith.constant 5.000000e-01 : f32
    %751 = vector.broadcast %cst_232 : f32 to vector<8x32xf32>
    %752 = arith.mulf %751, %750 : vector<8x32xf32>
    %cst_233 = arith.constant 5.000000e-01 : f32
    %753 = vector.broadcast %cst_233 : f32 to vector<8x32xf32>
    %754 = arith.addf %752, %753 : vector<8x32xf32>
    %755 = arith.mulf %744, %656 : vector<8x32xf32>
    %756 = arith.mulf %736, %746 : vector<8x32xf32>
    %757 = arith.addf %755, %756 : vector<8x32xf32>
    %758 = math.tanh %757 : vector<8x32xf32>
    %759 = arith.mulf %754, %758 : vector<8x32xf32>
    %760 = vector.broadcast %c7_i32_218 : i32 to vector<8x1xi32>
    %761 = arith.cmpi sgt, %10, %760 : vector<8x1xi32>
    %762 = arith.extui %761 : vector<8x1xi1> to vector<8x1xi32>
    %763 = arith.sitofp %762 : vector<8x1xi32> to vector<8x1xf32>
    %764 = vector.broadcast %763 : vector<8x1xf32> to vector<8x32xf32>
    %765 = arith.mulf %759, %764 : vector<8x32xf32>
    %766 = arith.index_cast %c7_i32_218 : i32 to index
    %c0_234 = arith.constant 0 : index
    %c0_235 = arith.constant 0 : index
    %767 = vector.load %arg12[%766, %c0_234, %c0_235] : memref<8x8x32xf32, #tpu.memory_space<vmem>>, vector<1x8x32xf32>
    %768 = vector.shape_cast %767 : vector<1x8x32xf32> to vector<8x32xf32>
    %769 = vector.shape_cast %765 : vector<8x32xf32> to vector<1x8x32xf32>
    tpu.vector_store %arg12[%766, %c0_234, %c0_235], %769 {strides = array<i32>} : memref<8x8x32xf32, #tpu.memory_space<vmem>>, vector<1x8x32xf32>,
    %770 = vector.extract_strided_slice %725 {offsets = [0, 128], sizes = [8, 128], strides = [1, 1]} : vector<8x256xf32> to vector<8x128xf32>
    %cst_236 = arith.constant dense<0.000000e+00> : vector<8x128xf32>
    %771 = tpu.matmul %710, %9, %cst_236 {dimension_numbers = #tpu.dot_dimension_numbers<[1], [0], [0], [1], [0, 0, 1, 1], [], []>} : vector<8x32xf32>, vector<32x128xf32>, vector<8x128xf32> -> vector<8x128xf32>
    %772 = arith.addf %770, %771 : vector<8x128xf32>
    %773 = vector.extract_strided_slice %772 {offsets = [0, 0], sizes = [8, 32], strides = [1, 1]} : vector<8x128xf32> to vector<8x32xf32>
    %cst_237 = arith.constant 5.000000e-01 : f32
    %774 = vector.broadcast %cst_237 : f32 to vector<8x32xf32>
    %775 = arith.mulf %774, %773 : vector<8x32xf32>
    %776 = math.tanh %775 : vector<8x32xf32>
    %cst_238 = arith.constant 5.000000e-01 : f32
    %777 = vector.broadcast %cst_238 : f32 to vector<8x32xf32>
    %778 = arith.mulf %777, %776 : vector<8x32xf32>
    %cst_239 = arith.constant 5.000000e-01 : f32
    %779 = vector.broadcast %cst_239 : f32 to vector<8x32xf32>
    %780 = arith.addf %778, %779 : vector<8x32xf32>
    %781 = vector.extract_strided_slice %772 {offsets = [0, 32], sizes = [8, 32], strides = [1, 1]} : vector<8x128xf32> to vector<8x32xf32>
    %cst_240 = arith.constant 5.000000e-01 : f32
    %782 = vector.broadcast %cst_240 : f32 to vector<8x32xf32>
    %783 = arith.mulf %782, %781 : vector<8x32xf32>
    %784 = math.tanh %783 : vector<8x32xf32>
    %cst_241 = arith.constant 5.000000e-01 : f32
    %785 = vector.broadcast %cst_241 : f32 to vector<8x32xf32>
    %786 = arith.mulf %785, %784 : vector<8x32xf32>
    %cst_242 = arith.constant 5.000000e-01 : f32
    %787 = vector.broadcast %cst_242 : f32 to vector<8x32xf32>
    %788 = arith.addf %786, %787 : vector<8x32xf32>
    %789 = vector.extract_strided_slice %772 {offsets = [0, 64], sizes = [8, 32], strides = [1, 1]} : vector<8x128xf32> to vector<8x32xf32>
    %790 = math.tanh %789 : vector<8x32xf32>
    %791 = vector.extract_strided_slice %772 {offsets = [0, 96], sizes = [8, 32], strides = [1, 1]} : vector<8x128xf32> to vector<8x32xf32>
    %cst_243 = arith.constant 5.000000e-01 : f32
    %792 = vector.broadcast %cst_243 : f32 to vector<8x32xf32>
    %793 = arith.mulf %792, %791 : vector<8x32xf32>
    %794 = math.tanh %793 : vector<8x32xf32>
    %cst_244 = arith.constant 5.000000e-01 : f32
    %795 = vector.broadcast %cst_244 : f32 to vector<8x32xf32>
    %796 = arith.mulf %795, %794 : vector<8x32xf32>
    %cst_245 = arith.constant 5.000000e-01 : f32
    %797 = vector.broadcast %cst_245 : f32 to vector<8x32xf32>
    %798 = arith.addf %796, %797 : vector<8x32xf32>
    %799 = arith.mulf %788, %714 : vector<8x32xf32>
    %800 = arith.mulf %780, %790 : vector<8x32xf32>
    %801 = arith.addf %799, %800 : vector<8x32xf32>
    %802 = math.tanh %801 : vector<8x32xf32>
    %803 = arith.mulf %798, %802 : vector<8x32xf32>
    %804 = vector.broadcast %719 : i32 to vector<8x1xi32>
    %805 = arith.cmpi sgt, %10, %804 : vector<8x1xi32>
    %806 = arith.extui %805 : vector<8x1xi1> to vector<8x1xi32>
    %807 = arith.sitofp %806 : vector<8x1xi32> to vector<8x1xf32>
    %808 = arith.subf %803, %710 : vector<8x32xf32>
    %809 = vector.broadcast %807 : vector<8x1xf32> to vector<8x32xf32>
    %810 = arith.mulf %809, %808 : vector<8x32xf32>
    %811 = arith.addf %710, %810 : vector<8x32xf32>
    %812 = arith.subf %801, %714 : vector<8x32xf32>
    %813 = vector.broadcast %807 : vector<8x1xf32> to vector<8x32xf32>
    %814 = arith.mulf %813, %812 : vector<8x32xf32>
    %815 = arith.addf %714, %814 : vector<8x32xf32>
    %816 = arith.index_cast %719 : i32 to index
    %c0_246 = arith.constant 0 : index
    %c0_247 = arith.constant 0 : index
    %817 = vector.load %arg13[%816, %c0_246, %c0_247] : memref<8x8x32xf32, #tpu.memory_space<vmem>>, vector<1x8x32xf32>
    %818 = vector.shape_cast %817 : vector<1x8x32xf32> to vector<8x32xf32>
    %819 = vector.shape_cast %811 : vector<8x32xf32> to vector<1x8x32xf32>
    tpu.vector_store %arg13[%816, %c0_246, %c0_247], %819 {strides = array<i32>} : memref<8x8x32xf32, #tpu.memory_space<vmem>>, vector<1x8x32xf32>,
    %c8_i32 = arith.constant 8 : i32
    %c0_248 = arith.constant 0 : index
    %c0_249 = arith.constant 0 : index
    %c0_250 = arith.constant 0 : index
    %820 = vector.load %arg12[%c0_248, %c0_249, %c0_250] : memref<8x8x32xf32, #tpu.memory_space<vmem>>, vector<8x8x32xf32>
    %c0_251 = arith.constant 0 : index
    %c0_252 = arith.constant 0 : index
    %c0_253 = arith.constant 0 : index
    %821 = vector.load %arg13[%c0_251, %c0_252, %c0_253] : memref<8x8x32xf32, #tpu.memory_space<vmem>>, vector<8x8x32xf32>
    %822 = arith.addf %820, %821 : vector<8x8x32xf32>
    %823 = tpu.transpose %822, [1, 0, 2] : vector<8x8x32xf32> -> vector<8x8x32xf32>
    %824 = arith.truncf %823 : vector<8x8x32xf32> to vector<8x8x32xbf16>
    %c0_254 = arith.constant 0 : index
    %c0_255 = arith.constant 0 : index
    %825 = vector.load %arg7[%c0_254, %c0_255] : memref<32x96xbf16, #tpu.memory_space<vmem>>, vector<32x96xbf16>
    "tpu.trace_start"() <{level = 10 : i32, message = "blh,hg->blg"}> : () -> ()
    %cst_256 = arith.constant dense<0.000000e+00> : vector<8x8x96xf32>
    %826 = tpu.matmul %824, %825, %cst_256 {dimension_numbers = #tpu.dot_dimension_numbers<[2], [0], [0, 1], [1], [0, 0, 0, 1, 1, 1], [], []>} : vector<8x8x32xbf16>, vector<32x96xbf16>, vector<8x8x96xf32> -> vector<8x8x96xf32>
    "tpu.trace_stop"() : () -> ()
    %827 = vector.extract_strided_slice %826 {offsets = [0, 0, 0], sizes = [8, 8, 32], strides = [1, 1, 1]} : vector<8x8x96xf32> to vector<8x8x32xf32>
    %828 = arith.truncf %827 : vector<8x8x32xf32> to vector<8x8x32xbf16>
    %829 = vector.extract_strided_slice %826 {offsets = [0, 0, 32], sizes = [8, 8, 32], strides = [1, 1, 1]} : vector<8x8x96xf32> to vector<8x8x32xf32>
    %830 = arith.truncf %829 : vector<8x8x32xf32> to vector<8x8x32xbf16>
    %831 = vector.extract_strided_slice %826 {offsets = [0, 0, 64], sizes = [8, 8, 32], strides = [1, 1, 1]} : vector<8x8x96xf32> to vector<8x8x32xf32>
    %832 = arith.truncf %831 : vector<8x8x32xf32> to vector<8x8x32xbf16>
    %833 = tpu.iota {dimensions = array<i32: 2>} : vector<8x1x8xi32>
    %834 = vector.shape_cast %10 : vector<8x1xi32> to vector<8x1x1xi32>
    %835 = vector.broadcast %834 : vector<8x1x1xi32> to vector<8x1x8xi32>
    %836 = arith.cmpi slt, %833, %835 : vector<8x1x8xi32>
    %cst_257 = arith.constant 0.000000e+00 : f32
    %cst_258 = arith.constant -1.000000e+09 : f32
    %837 = vector.broadcast %cst_257 : f32 to vector<8x1x8xf32>
    %838 = vector.broadcast %cst_258 : f32 to vector<8x1x8xf32>
    %839 = arith.select %836, %837, %838 : vector<8x1x8xi1>, vector<8x1x8xf32>
    "tpu.trace_start"() <{level = 10 : i32, message = "bqh,bkh->bqk"}> : () -> ()
    %cst_259 = arith.constant dense<0.000000e+00> : vector<8x8x8xf32>
    %840 = tpu.matmul %828, %830, %cst_259 {dimension_numbers = #tpu.dot_dimension_numbers<[2], [2], [1], [1], [0, 0, 0, 1, 1, 1], [0], [0]>} : vector<8x8x32xbf16>, vector<8x8x32xbf16>, vector<8x8x8xf32> -> vector<8x8x8xf32>
    "tpu.trace_stop"() : () -> ()
    %841 = vector.broadcast %839 : vector<8x1x8xf32> to vector<8x8x8xf32>
    %842 = arith.addf %840, %841 : vector<8x8x8xf32>
    %cst_260 = arith.constant dense<0xFF800000> : vector<8x8xf32>
    %843 = vector.multi_reduction <maximumf>, %842, %cst_260 [2] : vector<8x8x8xf32> to vector<8x8xf32>
    %844 = vector.shape_cast %843 : vector<8x8xf32> to vector<8x8x1xf32>
    %845 = vector.broadcast %844 : vector<8x8x1xf32> to vector<8x8x8xf32>
    %846 = arith.subf %842, %845 : vector<8x8x8xf32>
    %847 = math.exp %846 : vector<8x8x8xf32>
    %cst_261 = arith.constant dense<0.000000e+00> : vector<8x8xf32>
    %848 = vector.multi_reduction <add>, %847, %cst_261 [2] : vector<8x8x8xf32> to vector<8x8xf32>
    %849 = vector.shape_cast %848 : vector<8x8xf32> to vector<8x8x1xf32>
    %850 = tpu.reciprocal %849 {approx = true} : vector<8x8x1xf32> -> vector<8x8x1xf32>
    %851 = vector.broadcast %850 : vector<8x8x1xf32> to vector<8x8x8xf32>
    %852 = arith.mulf %847, %851 : vector<8x8x8xf32>
    %cst_262 = arith.constant dense<0.000000e+00> : vector<8x8xf32>
    %853 = vector.multi_reduction <add>, %852, %cst_262 [1] : vector<8x8x8xf32> to vector<8x8xf32>
    %854 = vector.shape_cast %853 : vector<8x8xf32> to vector<8x1x8xf32>
    %855 = arith.truncf %854 : vector<8x1x8xf32> to vector<8x1x8xbf16>
    "tpu.trace_start"() <{level = 10 : i32, message = "bqk,bkh->bqh"}> : () -> ()
    %cst_263 = arith.constant dense<0.000000e+00> : vector<8x1x32xf32>
    %856 = tpu.matmul %855, %832, %cst_263 {dimension_numbers = #tpu.dot_dimension_numbers<[2], [1], [1], [2], [0, 0, 0, 1, 1, 2], [0], [0]>} : vector<8x1x8xbf16>, vector<8x8x32xbf16>, vector<8x1x32xf32> -> vector<8x1x32xf32>
    "tpu.trace_stop"() : () -> ()
    %857 = vector.shape_cast %856 : vector<8x1x32xf32> to vector<8x32xf32>
    %858 = arith.truncf %857 : vector<8x32xf32> to vector<8x32xbf16>
    %c0_264 = arith.constant 0 : index
    %c0_265 = arith.constant 0 : index
    %859 = vector.load %arg8[%c0_264, %c0_265] : memref<32x4xbf16, #tpu.memory_space<vmem>>, vector<32x4xbf16>
    %cst_266 = arith.constant dense<0.000000e+00> : vector<8x4xf32>
    %860 = tpu.matmul %858, %859, %cst_266 {dimension_numbers = #tpu.dot_dimension_numbers<[1], [0], [0], [1], [0, 0, 1, 1], [], []>} : vector<8x32xbf16>, vector<32x4xbf16>, vector<8x4xf32> -> vector<8x4xf32>
    %c0_267 = arith.constant 0 : index
    %c0_268 = arith.constant 0 : index
    %861 = vector.load %arg9[%c0_267, %c0_268] : memref<1x4xf32, #tpu.memory_space<vmem>>, vector<1x4xf32>
    %862 = vector.broadcast %861 : vector<1x4xf32> to vector<8x4xf32>
    %863 = arith.addf %860, %862 : vector<8x4xf32>
    %c0_269 = arith.constant 0 : index
    %c0_270 = arith.constant 0 : index
    %864 = vector.load %arg10[%c0_269, %c0_270] : memref<8x4xf32, #tpu.memory_space<vmem>>, vector<8x4xf32>
    tpu.vector_store %arg10[%c0_269, %c0_270], %863 {strides = array<i32>} : memref<8x4xf32, #tpu.memory_space<vmem>>, vector<8x4xf32>,
    return
  }
  func.func @transform_0(%arg0: i32) -> (i32, i32, i32) {
    %c0_i32 = arith.constant 0 : i32
    %c0_i32_0 = arith.constant 0 : i32
    %c0_i32_1 = arith.constant 0 : i32
    return %c0_i32, %arg0, %c0_i32_0 : i32, i32, i32
  }
  func.func @transform_1(%arg0: i32) -> (i32, i32) {
    %c0_i32 = arith.constant 0 : i32
    %c0_i32_0 = arith.constant 0 : i32
    return %arg0, %c0_i32 : i32, i32
  }
  func.func @transform_2(%arg0: i32) -> (i32, i32) {
    %c0_i32 = arith.constant 0 : i32
    %c0_i32_0 = arith.constant 0 : i32
    %c0_i32_1 = arith.constant 0 : i32
    return %c0_i32, %c0_i32_0 : i32, i32
  }
  func.func @transform_3(%arg0: i32) -> (i32, i32) {
    %c0_i32 = arith.constant 0 : i32
    %c0_i32_0 = arith.constant 0 : i32
    %c0_i32_1 = arith.constant 0 : i32
    return %c0_i32, %c0_i32_0 : i32, i32
  }
  func.func @transform_4(%arg0: i32) -> (i32, i32) {
    %c0_i32 = arith.constant 0 : i32
    %c0_i32_0 = arith.constant 0 : i32
    %c0_i32_1 = arith.constant 0 : i32
    return %c0_i32, %c0_i32_0 : i32, i32
  }
  func.func @transform_5(%arg0: i32) -> (i32, i32) {
    %c0_i32 = arith.constant 0 : i32
    %c0_i32_0 = arith.constant 0 : i32
    %c0_i32_1 = arith.constant 0 : i32
    return %c0_i32, %c0_i32_0 : i32, i32
  }
  func.func @transform_6(%arg0: i32) -> (i32, i32) {
    %c0_i32 = arith.constant 0 : i32
    %c0_i32_0 = arith.constant 0 : i32
    %c0_i32_1 = arith.constant 0 : i32
    return %c0_i32, %c0_i32_0 : i32, i32
  }
  func.func @transform_7(%arg0: i32) -> (i32, i32) {
    %c0_i32 = arith.constant 0 : i32
    %c0_i32_0 = arith.constant 0 : i32
    %c0_i32_1 = arith.constant 0 : i32
    return %c0_i32, %c0_i32_0 : i32, i32
  }
  func.func @transform_8(%arg0: i32) -> (i32, i32) {
    %c0_i32 = arith.constant 0 : i32
    %c0_i32_0 = arith.constant 0 : i32
    %c0_i32_1 = arith.constant 0 : i32
    return %c0_i32, %c0_i32_0 : i32, i32
  }
  func.func @transform_9(%arg0: i32) -> (i32, i32) {
    %c0_i32 = arith.constant 0 : i32
    %c0_i32_0 = arith.constant 0 : i32
    return %arg0, %c0_i32 : i32, i32
  }
}

module attributes {stable_mosaic.version = 11 : i64} {
  func.func @base_encoder_kernel(%arg0: i32, %arg1: memref<8x8x16xbf16, #tpu.memory_space<vmem>>, %arg2: memref<8x1xi32, #tpu.memory_space<vmem>>, %arg3: memref<16x256xbf16, #tpu.memory_space<vmem>>, %arg4: memref<1x256xf32, #tpu.memory_space<vmem>>, %arg5: memref<32x128xf32, #tpu.memory_space<vmem>>, %arg6: memref<32x128xf32, #tpu.memory_space<vmem>>, %arg7: memref<32x96xbf16, #tpu.memory_space<vmem>>, %arg8: memref<32x4xbf16, #tpu.memory_space<vmem>>, %arg9: memref<1x4xf32, #tpu.memory_space<vmem>>, %arg10: memref<8x4xf32, #tpu.memory_space<vmem>>, %arg11: memref<8x8x256xf32, #tpu.memory_space<vmem>>, %arg12: memref<8x8x32xf32, #tpu.memory_space<vmem>>, %arg13: memref<8x8x32xf32, #tpu.memory_space<vmem>>) attributes {dimension_semantics = [#tpu.dimension_semantics<parallel>], iteration_bounds = array<i64: 1>, scalar_prefetch = 0 : i64, scratch_operands = 3 : i64, tpu.core_type = #tpu.core_type<tc>, window_params = [{transform_indices = @transform_0, window_bounds = array<i64: 8, 8, 16>}, {transform_indices = @transform_1, window_bounds = array<i64: 8, 1>}, {pipeline_mode = #tpu.pipeline_mode<synchronous>, transform_indices = @transform_2, window_bounds = array<i64: 16, 256>}, {pipeline_mode = #tpu.pipeline_mode<synchronous>, transform_indices = @transform_3, window_bounds = array<i64: 1, 256>}, {pipeline_mode = #tpu.pipeline_mode<synchronous>, transform_indices = @transform_4, window_bounds = array<i64: 32, 128>}, {pipeline_mode = #tpu.pipeline_mode<synchronous>, transform_indices = @transform_5, window_bounds = array<i64: 32, 128>}, {pipeline_mode = #tpu.pipeline_mode<synchronous>, transform_indices = @transform_6, window_bounds = array<i64: 32, 96>}, {pipeline_mode = #tpu.pipeline_mode<synchronous>, transform_indices = @transform_7, window_bounds = array<i64: 32, 4>}, {pipeline_mode = #tpu.pipeline_mode<synchronous>, transform_indices = @transform_8, window_bounds = array<i64: 1, 4>}, {transform_indices = @transform_9, window_bounds = array<i64: 8, 4>}]} {
    %c0 = arith.constant 0 : index
    %c0_0 = arith.constant 0 : index
    %c0_1 = arith.constant 0 : index
    %0 = vector.load %arg1[%c0, %c0_0, %c0_1] : memref<8x8x16xbf16, #tpu.memory_space<vmem>>, vector<8x8x16xbf16>
    %c0_2 = arith.constant 0 : index
    %c0_3 = arith.constant 0 : index
    %1 = vector.load %arg3[%c0_2, %c0_3] : memref<16x256xbf16, #tpu.memory_space<vmem>>, vector<16x256xbf16>
    "tpu.trace_start"() <{level = 10 : i32, message = "lbd,dg->lbg"}> : () -> ()
    %cst = arith.constant dense<0.000000e+00> : vector<8x8x256xf32>
    %2 = tpu.matmul %0, %1, %cst {dimension_numbers = #tpu.dot_dimension_numbers<[2], [0], [0, 1], [1], [0, 0, 0, 1, 1, 1], [], []>} : vector<8x8x16xbf16>, vector<16x256xbf16>, vector<8x8x256xf32> -> vector<8x8x256xf32>
    "tpu.trace_stop"() : () -> ()
    %c0_4 = arith.constant 0 : index
    %c0_5 = arith.constant 0 : index
    %3 = vector.load %arg4[%c0_4, %c0_5] : memref<1x256xf32, #tpu.memory_space<vmem>>, vector<1x256xf32>
    %4 = vector.shape_cast %3 : vector<1x256xf32> to vector<1x1x256xf32>
    %5 = vector.broadcast %4 : vector<1x1x256xf32> to vector<8x8x256xf32>
    %6 = arith.addf %2, %5 : vector<8x8x256xf32>
    %c0_6 = arith.constant 0 : index
    %c0_7 = arith.constant 0 : index
    %c0_8 = arith.constant 0 : index
    %7 = vector.load %arg11[%c0_6, %c0_7, %c0_8] : memref<8x8x256xf32, #tpu.memory_space<vmem>>, vector<8x8x256xf32>
    tpu.vector_store %arg11[%c0_6, %c0_7, %c0_8], %6 {strides = array<i32>} : memref<8x8x256xf32, #tpu.memory_space<vmem>>, vector<8x8x256xf32>,
    %c0_9 = arith.constant 0 : index
    %c0_10 = arith.constant 0 : index
    %8 = vector.load %arg5[%c0_9, %c0_10] : memref<32x128xf32, #tpu.memory_space<vmem>>, vector<32x128xf32>
    %c0_11 = arith.constant 0 : index
    %c0_12 = arith.constant 0 : index
    %9 = vector.load %arg6[%c0_11, %c0_12] : memref<32x128xf32, #tpu.memory_space<vmem>>, vector<32x128xf32>
    %c0_13 = arith.constant 0 : index
    %c0_14 = arith.constant 0 : index
    %10 = vector.load %arg2[%c0_13, %c0_14] : memref<8x1xi32, #tpu.memory_space<vmem>>, vector<8x1xi32>
    %cst_15 = arith.constant 0.000000e+00 : f32
    %11 = vector.broadcast %cst_15 : f32 to vector<8x32xf32>
    %c0_i32 = arith.constant 0 : i32
    %c7_i32 = arith.constant 7 : i32
    %12 = arith.subi %c7_i32, %c0_i32 : i32
    %13 = arith.index_cast %c0_i32 : i32 to index
    %c0_16 = arith.constant 0 : index
    %c0_17 = arith.constant 0 : index
    %14 = vector.load %arg11[%13, %c0_16, %c0_17] : memref<8x8x256xf32, #tpu.memory_space<vmem>>, vector<1x8x256xf32>
    %15 = vector.shape_cast %14 : vector<1x8x256xf32> to vector<8x256xf32>
    %16 = arith.index_cast %12 : i32 to index
    %c0_18 = arith.constant 0 : index
    %c0_19 = arith.constant 0 : index
    %17 = vector.load %arg11[%16, %c0_18, %c0_19] : memref<8x8x256xf32, #tpu.memory_space<vmem>>, vector<1x8x256xf32>
    %18 = vector.shape_cast %17 : vector<1x8x256xf32> to vector<8x256xf32>
    %19 = vector.extract_strided_slice %15 {offsets = [0, 0], sizes = [8, 128], strides = [1, 1]} : vector<8x256xf32> to vector<8x128xf32>
    %cst_20 = arith.constant dense<0.000000e+00> : vector<8x128xf32>
    %20 = tpu.matmul %11, %8, %cst_20 {dimension_numbers = #tpu.dot_dimension_numbers<[1], [0], [0], [1], [0, 0, 1, 1], [], []>} : vector<8x32xf32>, vector<32x128xf32>, vector<8x128xf32> -> vector<8x128xf32>
    %21 = arith.addf %19, %20 : vector<8x128xf32>
    %22 = vector.extract_strided_slice %21 {offsets = [0, 0], sizes = [8, 32], strides = [1, 1]} : vector<8x128xf32> to vector<8x32xf32>
    %cst_21 = arith.constant 5.000000e-01 : f32
    %23 = vector.broadcast %cst_21 : f32 to vector<8x32xf32>
    %24 = arith.mulf %23, %22 : vector<8x32xf32>
    %25 = math.tanh %24 : vector<8x32xf32>
    %cst_22 = arith.constant 5.000000e-01 : f32
    %26 = vector.broadcast %cst_22 : f32 to vector<8x32xf32>
    %27 = arith.mulf %26, %25 : vector<8x32xf32>
    %cst_23 = arith.constant 5.000000e-01 : f32
    %28 = vector.broadcast %cst_23 : f32 to vector<8x32xf32>
    %29 = arith.addf %27, %28 : vector<8x32xf32>
    %30 = vector.extract_strided_slice %21 {offsets = [0, 32], sizes = [8, 32], strides = [1, 1]} : vector<8x128xf32> to vector<8x32xf32>
    %cst_24 = arith.constant 5.000000e-01 : f32
    %31 = vector.broadcast %cst_24 : f32 to vector<8x32xf32>
    %32 = arith.mulf %31, %30 : vector<8x32xf32>
    %33 = math.tanh %32 : vector<8x32xf32>
    %cst_25 = arith.constant 5.000000e-01 : f32
    %34 = vector.broadcast %cst_25 : f32 to vector<8x32xf32>
    %35 = arith.mulf %34, %33 : vector<8x32xf32>
    %cst_26 = arith.constant 5.000000e-01 : f32
    %36 = vector.broadcast %cst_26 : f32 to vector<8x32xf32>
    %37 = arith.addf %35, %36 : vector<8x32xf32>
    %38 = vector.extract_strided_slice %21 {offsets = [0, 64], sizes = [8, 32], strides = [1, 1]} : vector<8x128xf32> to vector<8x32xf32>
    %39 = math.tanh %38 : vector<8x32xf32>
    %40 = vector.extract_strided_slice %21 {offsets = [0, 96], sizes = [8, 32], strides = [1, 1]} : vector<8x128xf32> to vector<8x32xf32>
    %cst_27 = arith.constant 5.000000e-01 : f32
    %41 = vector.broadcast %cst_27 : f32 to vector<8x32xf32>
    %42 = arith.mulf %41, %40 : vector<8x32xf32>
    %43 = math.tanh %42 : vector<8x32xf32>
    %cst_28 = arith.constant 5.000000e-01 : f32
    %44 = vector.broadcast %cst_28 : f32 to vector<8x32xf32>
    %45 = arith.mulf %44, %43 : vector<8x32xf32>
    %cst_29 = arith.constant 5.000000e-01 : f32
    %46 = vector.broadcast %cst_29 : f32 to vector<8x32xf32>
    %47 = arith.addf %45, %46 : vector<8x32xf32>
    %48 = arith.mulf %37, %11 : vector<8x32xf32>
    %49 = arith.mulf %29, %39 : vector<8x32xf32>
    %50 = arith.addf %48, %49 : vector<8x32xf32>
    %51 = math.tanh %50 : vector<8x32xf32>
    %52 = arith.mulf %47, %51 : vector<8x32xf32>
    %53 = vector.broadcast %c0_i32 : i32 to vector<8x1xi32>
    %54 = arith.cmpi sgt, %10, %53 : vector<8x1xi32>
    %55 = arith.extui %54 : vector<8x1xi1> to vector<8x1xi32>
    %56 = arith.sitofp %55 : vector<8x1xi32> to vector<8x1xf32>
    %57 = vector.broadcast %56 : vector<8x1xf32> to vector<8x32xf32>
    %58 = arith.mulf %52, %57 : vector<8x32xf32>
    %59 = arith.index_cast %c0_i32 : i32 to index
    %c0_30 = arith.constant 0 : index
    %c0_31 = arith.constant 0 : index
    %60 = vector.load %arg12[%59, %c0_30, %c0_31] : memref<8x8x32xf32, #tpu.memory_space<vmem>>, vector<1x8x32xf32>
    %61 = vector.shape_cast %60 : vector<1x8x32xf32> to vector<8x32xf32>
    %62 = vector.shape_cast %58 : vector<8x32xf32> to vector<1x8x32xf32>
    tpu.vector_store %arg12[%59, %c0_30, %c0_31], %62 {strides = array<i32>} : memref<8x8x32xf32, #tpu.memory_space<vmem>>, vector<1x8x32xf32>,
    %63 = vector.extract_strided_slice %18 {offsets = [0, 128], sizes = [8, 128], strides = [1, 1]} : vector<8x256xf32> to vector<8x128xf32>
    %cst_32 = arith.constant dense<0.000000e+00> : vector<8x128xf32>
    %64 = tpu.matmul %11, %9, %cst_32 {dimension_numbers = #tpu.dot_dimension_numbers<[1], [0], [0], [1], [0, 0, 1, 1], [], []>} : vector<8x32xf32>, vector<32x128xf32>, vector<8x128xf32> -> vector<8x128xf32>
    %65 = arith.addf %63, %64 : vector<8x128xf32>
    %66 = vector.extract_strided_slice %65 {offsets = [0, 0], sizes = [8, 32], strides = [1, 1]} : vector<8x128xf32> to vector<8x32xf32>
    %cst_33 = arith.constant 5.000000e-01 : f32
    %67 = vector.broadcast %cst_33 : f32 to vector<8x32xf32>
    %68 = arith.mulf %67, %66 : vector<8x32xf32>
    %69 = math.tanh %68 : vector<8x32xf32>
    %cst_34 = arith.constant 5.000000e-01 : f32
    %70 = vector.broadcast %cst_34 : f32 to vector<8x32xf32>
    %71 = arith.mulf %70, %69 : vector<8x32xf32>
    %cst_35 = arith.constant 5.000000e-01 : f32
    %72 = vector.broadcast %cst_35 : f32 to vector<8x32xf32>
    %73 = arith.addf %71, %72 : vector<8x32xf32>
    %74 = vector.extract_strided_slice %65 {offsets = [0, 32], sizes = [8, 32], strides = [1, 1]} : vector<8x128xf32> to vector<8x32xf32>
    %cst_36 = arith.constant 5.000000e-01 : f32
    %75 = vector.broadcast %cst_36 : f32 to vector<8x32xf32>
    %76 = arith.mulf %75, %74 : vector<8x32xf32>
    %77 = math.tanh %76 : vector<8x32xf32>
    %cst_37 = arith.constant 5.000000e-01 : f32
    %78 = vector.broadcast %cst_37 : f32 to vector<8x32xf32>
    %79 = arith.mulf %78, %77 : vector<8x32xf32>
    %cst_38 = arith.constant 5.000000e-01 : f32
    %80 = vector.broadcast %cst_38 : f32 to vector<8x32xf32>
    %81 = arith.addf %79, %80 : vector<8x32xf32>
    %82 = vector.extract_strided_slice %65 {offsets = [0, 64], sizes = [8, 32], strides = [1, 1]} : vector<8x128xf32> to vector<8x32xf32>
    %83 = math.tanh %82 : vector<8x32xf32>
    %84 = vector.extract_strided_slice %65 {offsets = [0, 96], sizes = [8, 32], strides = [1, 1]} : vector<8x128xf32> to vector<8x32xf32>
    %cst_39 = arith.constant 5.000000e-01 : f32
    %85 = vector.broadcast %cst_39 : f32 to vector<8x32xf32>
    %86 = arith.mulf %85, %84 : vector<8x32xf32>
    %87 = math.tanh %86 : vector<8x32xf32>
    %cst_40 = arith.constant 5.000000e-01 : f32
    %88 = vector.broadcast %cst_40 : f32 to vector<8x32xf32>
    %89 = arith.mulf %88, %87 : vector<8x32xf32>
    %cst_41 = arith.constant 5.000000e-01 : f32
    %90 = vector.broadcast %cst_41 : f32 to vector<8x32xf32>
    %91 = arith.addf %89, %90 : vector<8x32xf32>
    %92 = arith.mulf %81, %11 : vector<8x32xf32>
    %93 = arith.mulf %73, %83 : vector<8x32xf32>
    %94 = arith.addf %92, %93 : vector<8x32xf32>
    %95 = math.tanh %94 : vector<8x32xf32>
    %96 = arith.mulf %91, %95 : vector<8x32xf32>
    %97 = vector.broadcast %12 : i32 to vector<8x1xi32>
    %98 = arith.cmpi sgt, %10, %97 : vector<8x1xi32>
    %99 = arith.extui %98 : vector<8x1xi1> to vector<8x1xi32>
    %100 = arith.sitofp %99 : vector<8x1xi32> to vector<8x1xf32>
    %101 = arith.subf %96, %11 : vector<8x32xf32>
    %102 = vector.broadcast %100 : vector<8x1xf32> to vector<8x32xf32>
    %103 = arith.mulf %102, %101 : vector<8x32xf32>
    %104 = arith.addf %11, %103 : vector<8x32xf32>
    %105 = arith.subf %94, %11 : vector<8x32xf32>
    %106 = vector.broadcast %100 : vector<8x1xf32> to vector<8x32xf32>
    %107 = arith.mulf %106, %105 : vector<8x32xf32>
    %108 = arith.addf %11, %107 : vector<8x32xf32>
    %109 = arith.index_cast %12 : i32 to index
    %c0_42 = arith.constant 0 : index
    %c0_43 = arith.constant 0 : index
    %110 = vector.load %arg13[%109, %c0_42, %c0_43] : memref<8x8x32xf32, #tpu.memory_space<vmem>>, vector<1x8x32xf32>
    %111 = vector.shape_cast %110 : vector<1x8x32xf32> to vector<8x32xf32>
    %112 = vector.shape_cast %104 : vector<8x32xf32> to vector<1x8x32xf32>
    tpu.vector_store %arg13[%109, %c0_42, %c0_43], %112 {strides = array<i32>} : memref<8x8x32xf32, #tpu.memory_space<vmem>>, vector<1x8x32xf32>,
    %c1_i32 = arith.constant 1 : i32
    %c7_i32_44 = arith.constant 7 : i32
    %113 = arith.subi %c7_i32_44, %c1_i32 : i32
    %114 = arith.index_cast %c1_i32 : i32 to index
    %c0_45 = arith.constant 0 : index
    %c0_46 = arith.constant 0 : index
    %115 = vector.load %arg11[%114, %c0_45, %c0_46] : memref<8x8x256xf32, #tpu.memory_space<vmem>>, vector<1x8x256xf32>
    %116 = vector.shape_cast %115 : vector<1x8x256xf32> to vector<8x256xf32>
    %117 = arith.index_cast %113 : i32 to index
    %c0_47 = arith.constant 0 : index
    %c0_48 = arith.constant 0 : index
    %118 = vector.load %arg11[%117, %c0_47, %c0_48] : memref<8x8x256xf32, #tpu.memory_space<vmem>>, vector<1x8x256xf32>
    %119 = vector.shape_cast %118 : vector<1x8x256xf32> to vector<8x256xf32>
    %120 = vector.extract_strided_slice %116 {offsets = [0, 0], sizes = [8, 128], strides = [1, 1]} : vector<8x256xf32> to vector<8x128xf32>
    %cst_49 = arith.constant dense<0.000000e+00> : vector<8x128xf32>
    %121 = tpu.matmul %52, %8, %cst_49 {dimension_numbers = #tpu.dot_dimension_numbers<[1], [0], [0], [1], [0, 0, 1, 1], [], []>} : vector<8x32xf32>, vector<32x128xf32>, vector<8x128xf32> -> vector<8x128xf32>
    %122 = arith.addf %120, %121 : vector<8x128xf32>
    %123 = vector.extract_strided_slice %122 {offsets = [0, 0], sizes = [8, 32], strides = [1, 1]} : vector<8x128xf32> to vector<8x32xf32>
    %cst_50 = arith.constant 5.000000e-01 : f32
    %124 = vector.broadcast %cst_50 : f32 to vector<8x32xf32>
    %125 = arith.mulf %124, %123 : vector<8x32xf32>
    %126 = math.tanh %125 : vector<8x32xf32>
    %cst_51 = arith.constant 5.000000e-01 : f32
    %127 = vector.broadcast %cst_51 : f32 to vector<8x32xf32>
    %128 = arith.mulf %127, %126 : vector<8x32xf32>
    %cst_52 = arith.constant 5.000000e-01 : f32
    %129 = vector.broadcast %cst_52 : f32 to vector<8x32xf32>
    %130 = arith.addf %128, %129 : vector<8x32xf32>
    %131 = vector.extract_strided_slice %122 {offsets = [0, 32], sizes = [8, 32], strides = [1, 1]} : vector<8x128xf32> to vector<8x32xf32>
    %cst_53 = arith.constant 5.000000e-01 : f32
    %132 = vector.broadcast %cst_53 : f32 to vector<8x32xf32>
    %133 = arith.mulf %132, %131 : vector<8x32xf32>
    %134 = math.tanh %133 : vector<8x32xf32>
    %cst_54 = arith.constant 5.000000e-01 : f32
    %135 = vector.broadcast %cst_54 : f32 to vector<8x32xf32>
    %136 = arith.mulf %135, %134 : vector<8x32xf32>
    %cst_55 = arith.constant 5.000000e-01 : f32
    %137 = vector.broadcast %cst_55 : f32 to vector<8x32xf32>
    %138 = arith.addf %136, %137 : vector<8x32xf32>
    %139 = vector.extract_strided_slice %122 {offsets = [0, 64], sizes = [8, 32], strides = [1, 1]} : vector<8x128xf32> to vector<8x32xf32>
    %140 = math.tanh %139 : vector<8x32xf32>
    %141 = vector.extract_strided_slice %122 {offsets = [0, 96], sizes = [8, 32], strides = [1, 1]} : vector<8x128xf32> to vector<8x32xf32>
    %cst_56 = arith.constant 5.000000e-01 : f32
    %142 = vector.broadcast %cst_56 : f32 to vector<8x32xf32>
    %143 = arith.mulf %142, %141 : vector<8x32xf32>
    %144 = math.tanh %143 : vector<8x32xf32>
    %cst_57 = arith.constant 5.000000e-01 : f32
    %145 = vector.broadcast %cst_57 : f32 to vector<8x32xf32>
    %146 = arith.mulf %145, %144 : vector<8x32xf32>
    %cst_58 = arith.constant 5.000000e-01 : f32
    %147 = vector.broadcast %cst_58 : f32 to vector<8x32xf32>
    %148 = arith.addf %146, %147 : vector<8x32xf32>
    %149 = arith.mulf %138, %50 : vector<8x32xf32>
    %150 = arith.mulf %130, %140 : vector<8x32xf32>
    %151 = arith.addf %149, %150 : vector<8x32xf32>
    %152 = math.tanh %151 : vector<8x32xf32>
    %153 = arith.mulf %148, %152 : vector<8x32xf32>
    %154 = vector.broadcast %c1_i32 : i32 to vector<8x1xi32>
    %155 = arith.cmpi sgt, %10, %154 : vector<8x1xi32>
    %156 = arith.extui %155 : vector<8x1xi1> to vector<8x1xi32>
    %157 = arith.sitofp %156 : vector<8x1xi32> to vector<8x1xf32>
    %158 = vector.broadcast %157 : vector<8x1xf32> to vector<8x32xf32>
    %159 = arith.mulf %153, %158 : vector<8x32xf32>
    %160 = arith.index_cast %c1_i32 : i32 to index
    %c0_59 = arith.constant 0 : index
    %c0_60 = arith.constant 0 : index
    %161 = vector.load %arg12[%160, %c0_59, %c0_60] : memref<8x8x32xf32, #tpu.memory_space<vmem>>, vector<1x8x32xf32>
    %162 = vector.shape_cast %161 : vector<1x8x32xf32> to vector<8x32xf32>
    %163 = vector.shape_cast %159 : vector<8x32xf32> to vector<1x8x32xf32>
    tpu.vector_store %arg12[%160, %c0_59, %c0_60], %163 {strides = array<i32>} : memref<8x8x32xf32, #tpu.memory_space<vmem>>, vector<1x8x32xf32>,
    %164 = vector.extract_strided_slice %119 {offsets = [0, 128], sizes = [8, 128], strides = [1, 1]} : vector<8x256xf32> to vector<8x128xf32>
    %cst_61 = arith.constant dense<0.000000e+00> : vector<8x128xf32>
    %165 = tpu.matmul %104, %9, %cst_61 {dimension_numbers = #tpu.dot_dimension_numbers<[1], [0], [0], [1], [0, 0, 1, 1], [], []>} : vector<8x32xf32>, vector<32x128xf32>, vector<8x128xf32> -> vector<8x128xf32>
    %166 = arith.addf %164, %165 : vector<8x128xf32>
    %167 = vector.extract_strided_slice %166 {offsets = [0, 0], sizes = [8, 32], strides = [1, 1]} : vector<8x128xf32> to vector<8x32xf32>
    %cst_62 = arith.constant 5.000000e-01 : f32
    %168 = vector.broadcast %cst_62 : f32 to vector<8x32xf32>
    %169 = arith.mulf %168, %167 : vector<8x32xf32>
    %170 = math.tanh %169 : vector<8x32xf32>
    %cst_63 = arith.constant 5.000000e-01 : f32
    %171 = vector.broadcast %cst_63 : f32 to vector<8x32xf32>
    %172 = arith.mulf %171, %170 : vector<8x32xf32>
    %cst_64 = arith.constant 5.000000e-01 : f32
    %173 = vector.broadcast %cst_64 : f32 to vector<8x32xf32>
    %174 = arith.addf %172, %173 : vector<8x32xf32>
    %175 = vector.extract_strided_slice %166 {offsets = [0, 32], sizes = [8, 32], strides = [1, 1]} : vector<8x128xf32> to vector<8x32xf32>
    %cst_65 = arith.constant 5.000000e-01 : f32
    %176 = vector.broadcast %cst_65 : f32 to vector<8x32xf32>
    %177 = arith.mulf %176, %175 : vector<8x32xf32>
    %178 = math.tanh %177 : vector<8x32xf32>
    %cst_66 = arith.constant 5.000000e-01 : f32
    %179 = vector.broadcast %cst_66 : f32 to vector<8x32xf32>
    %180 = arith.mulf %179, %178 : vector<8x32xf32>
    %cst_67 = arith.constant 5.000000e-01 : f32
    %181 = vector.broadcast %cst_67 : f32 to vector<8x32xf32>
    %182 = arith.addf %180, %181 : vector<8x32xf32>
    %183 = vector.extract_strided_slice %166 {offsets = [0, 64], sizes = [8, 32], strides = [1, 1]} : vector<8x128xf32> to vector<8x32xf32>
    %184 = math.tanh %183 : vector<8x32xf32>
    %185 = vector.extract_strided_slice %166 {offsets = [0, 96], sizes = [8, 32], strides = [1, 1]} : vector<8x128xf32> to vector<8x32xf32>
    %cst_68 = arith.constant 5.000000e-01 : f32
    %186 = vector.broadcast %cst_68 : f32 to vector<8x32xf32>
    %187 = arith.mulf %186, %185 : vector<8x32xf32>
    %188 = math.tanh %187 : vector<8x32xf32>
    %cst_69 = arith.constant 5.000000e-01 : f32
    %189 = vector.broadcast %cst_69 : f32 to vector<8x32xf32>
    %190 = arith.mulf %189, %188 : vector<8x32xf32>
    %cst_70 = arith.constant 5.000000e-01 : f32
    %191 = vector.broadcast %cst_70 : f32 to vector<8x32xf32>
    %192 = arith.addf %190, %191 : vector<8x32xf32>
    %193 = arith.mulf %182, %108 : vector<8x32xf32>
    %194 = arith.mulf %174, %184 : vector<8x32xf32>
    %195 = arith.addf %193, %194 : vector<8x32xf32>
    %196 = math.tanh %195 : vector<8x32xf32>
    %197 = arith.mulf %192, %196 : vector<8x32xf32>
    %198 = vector.broadcast %113 : i32 to vector<8x1xi32>
    %199 = arith.cmpi sgt, %10, %198 : vector<8x1xi32>
    %200 = arith.extui %199 : vector<8x1xi1> to vector<8x1xi32>
    %201 = arith.sitofp %200 : vector<8x1xi32> to vector<8x1xf32>
    %202 = arith.subf %197, %104 : vector<8x32xf32>
    %203 = vector.broadcast %201 : vector<8x1xf32> to vector<8x32xf32>
    %204 = arith.mulf %203, %202 : vector<8x32xf32>
    %205 = arith.addf %104, %204 : vector<8x32xf32>
    %206 = arith.subf %195, %108 : vector<8x32xf32>
    %207 = vector.broadcast %201 : vector<8x1xf32> to vector<8x32xf32>
    %208 = arith.mulf %207, %206 : vector<8x32xf32>
    %209 = arith.addf %108, %208 : vector<8x32xf32>
    %210 = arith.index_cast %113 : i32 to index
    %c0_71 = arith.constant 0 : index
    %c0_72 = arith.constant 0 : index
    %211 = vector.load %arg13[%210, %c0_71, %c0_72] : memref<8x8x32xf32, #tpu.memory_space<vmem>>, vector<1x8x32xf32>
    %212 = vector.shape_cast %211 : vector<1x8x32xf32> to vector<8x32xf32>
    %213 = vector.shape_cast %205 : vector<8x32xf32> to vector<1x8x32xf32>
    tpu.vector_store %arg13[%210, %c0_71, %c0_72], %213 {strides = array<i32>} : memref<8x8x32xf32, #tpu.memory_space<vmem>>, vector<1x8x32xf32>,
    %c2_i32 = arith.constant 2 : i32
    %c7_i32_73 = arith.constant 7 : i32
    %214 = arith.subi %c7_i32_73, %c2_i32 : i32
    %215 = arith.index_cast %c2_i32 : i32 to index
    %c0_74 = arith.constant 0 : index
    %c0_75 = arith.constant 0 : index
    %216 = vector.load %arg11[%215, %c0_74, %c0_75] : memref<8x8x256xf32, #tpu.memory_space<vmem>>, vector<1x8x256xf32>
    %217 = vector.shape_cast %216 : vector<1x8x256xf32> to vector<8x256xf32>
    %218 = arith.index_cast %214 : i32 to index
    %c0_76 = arith.constant 0 : index
    %c0_77 = arith.constant 0 : index
    %219 = vector.load %arg11[%218, %c0_76, %c0_77] : memref<8x8x256xf32, #tpu.memory_space<vmem>>, vector<1x8x256xf32>
    %220 = vector.shape_cast %219 : vector<1x8x256xf32> to vector<8x256xf32>
    %221 = vector.extract_strided_slice %217 {offsets = [0, 0], sizes = [8, 128], strides = [1, 1]} : vector<8x256xf32> to vector<8x128xf32>
    %cst_78 = arith.constant dense<0.000000e+00> : vector<8x128xf32>
    %222 = tpu.matmul %153, %8, %cst_78 {dimension_numbers = #tpu.dot_dimension_numbers<[1], [0], [0], [1], [0, 0, 1, 1], [], []>} : vector<8x32xf32>, vector<32x128xf32>, vector<8x128xf32> -> vector<8x128xf32>
    %223 = arith.addf %221, %222 : vector<8x128xf32>
    %224 = vector.extract_strided_slice %223 {offsets = [0, 0], sizes = [8, 32], strides = [1, 1]} : vector<8x128xf32> to vector<8x32xf32>
    %cst_79 = arith.constant 5.000000e-01 : f32
    %225 = vector.broadcast %cst_79 : f32 to vector<8x32xf32>
    %226 = arith.mulf %225, %224 : vector<8x32xf32>
    %227 = math.tanh %226 : vector<8x32xf32>
    %cst_80 = arith.constant 5.000000e-01 : f32
    %228 = vector.broadcast %cst_80 : f32 to vector<8x32xf32>
    %229 = arith.mulf %228, %227 : vector<8x32xf32>
    %cst_81 = arith.constant 5.000000e-01 : f32
    %230 = vector.broadcast %cst_81 : f32 to vector<8x32xf32>
    %231 = arith.addf %229, %230 : vector<8x32xf32>
    %232 = vector.extract_strided_slice %223 {offsets = [0, 32], sizes = [8, 32], strides = [1, 1]} : vector<8x128xf32> to vector<8x32xf32>
    %cst_82 = arith.constant 5.000000e-01 : f32
    %233 = vector.broadcast %cst_82 : f32 to vector<8x32xf32>
    %234 = arith.mulf %233, %232 : vector<8x32xf32>
    %235 = math.tanh %234 : vector<8x32xf32>
    %cst_83 = arith.constant 5.000000e-01 : f32
    %236 = vector.broadcast %cst_83 : f32 to vector<8x32xf32>
    %237 = arith.mulf %236, %235 : vector<8x32xf32>
    %cst_84 = arith.constant 5.000000e-01 : f32
    %238 = vector.broadcast %cst_84 : f32 to vector<8x32xf32>
    %239 = arith.addf %237, %238 : vector<8x32xf32>
    %240 = vector.extract_strided_slice %223 {offsets = [0, 64], sizes = [8, 32], strides = [1, 1]} : vector<8x128xf32> to vector<8x32xf32>
    %241 = math.tanh %240 : vector<8x32xf32>
    %242 = vector.extract_strided_slice %223 {offsets = [0, 96], sizes = [8, 32], strides = [1, 1]} : vector<8x128xf32> to vector<8x32xf32>
    %cst_85 = arith.constant 5.000000e-01 : f32
    %243 = vector.broadcast %cst_85 : f32 to vector<8x32xf32>
    %244 = arith.mulf %243, %242 : vector<8x32xf32>
    %245 = math.tanh %244 : vector<8x32xf32>
    %cst_86 = arith.constant 5.000000e-01 : f32
    %246 = vector.broadcast %cst_86 : f32 to vector<8x32xf32>
    %247 = arith.mulf %246, %245 : vector<8x32xf32>
    %cst_87 = arith.constant 5.000000e-01 : f32
    %248 = vector.broadcast %cst_87 : f32 to vector<8x32xf32>
    %249 = arith.addf %247, %248 : vector<8x32xf32>
    %250 = arith.mulf %239, %151 : vector<8x32xf32>
    %251 = arith.mulf %231, %241 : vector<8x32xf32>
    %252 = arith.addf %250, %251 : vector<8x32xf32>
    %253 = math.tanh %252 : vector<8x32xf32>
    %254 = arith.mulf %249, %253 : vector<8x32xf32>
    %255 = vector.broadcast %c2_i32 : i32 to vector<8x1xi32>
    %256 = arith.cmpi sgt, %10, %255 : vector<8x1xi32>
    %257 = arith.extui %256 : vector<8x1xi1> to vector<8x1xi32>
    %258 = arith.sitofp %257 : vector<8x1xi32> to vector<8x1xf32>
    %259 = vector.broadcast %258 : vector<8x1xf32> to vector<8x32xf32>
    %260 = arith.mulf %254, %259 : vector<8x32xf32>
    %261 = arith.index_cast %c2_i32 : i32 to index
    %c0_88 = arith.constant 0 : index
    %c0_89 = arith.constant 0 : index
    %262 = vector.load %arg12[%261, %c0_88, %c0_89] : memref<8x8x32xf32, #tpu.memory_space<vmem>>, vector<1x8x32xf32>
    %263 = vector.shape_cast %262 : vector<1x8x32xf32> to vector<8x32xf32>
    %264 = vector.shape_cast %260 : vector<8x32xf32> to vector<1x8x32xf32>
    tpu.vector_store %arg12[%261, %c0_88, %c0_89], %264 {strides = array<i32>} : memref<8x8x32xf32, #tpu.memory_space<vmem>>, vector<1x8x32xf32>,
    %265 = vector.extract_strided_slice %220 {offsets = [0, 128], sizes = [8, 128], strides = [1, 1]} : vector<8x256xf32> to vector<8x128xf32>
    %cst_90 = arith.constant dense<0.000000e+00> : vector<8x128xf32>
    %266 = tpu.matmul %205, %9, %cst_90 {dimension_numbers = #tpu.dot_dimension_numbers<[1], [0], [0], [1], [0, 0, 1, 1], [], []>} : vector<8x32xf32>, vector<32x128xf32>, vector<8x128xf32> -> vector<8x128xf32>
    %267 = arith.addf %265, %266 : vector<8x128xf32>
    %268 = vector.extract_strided_slice %267 {offsets = [0, 0], sizes = [8, 32], strides = [1, 1]} : vector<8x128xf32> to vector<8x32xf32>
    %cst_91 = arith.constant 5.000000e-01 : f32
    %269 = vector.broadcast %cst_91 : f32 to vector<8x32xf32>
    %270 = arith.mulf %269, %268 : vector<8x32xf32>
    %271 = math.tanh %270 : vector<8x32xf32>
    %cst_92 = arith.constant 5.000000e-01 : f32
    %272 = vector.broadcast %cst_92 : f32 to vector<8x32xf32>
    %273 = arith.mulf %272, %271 : vector<8x32xf32>
    %cst_93 = arith.constant 5.000000e-01 : f32
    %274 = vector.broadcast %cst_93 : f32 to vector<8x32xf32>
    %275 = arith.addf %273, %274 : vector<8x32xf32>
    %276 = vector.extract_strided_slice %267 {offsets = [0, 32], sizes = [8, 32], strides = [1, 1]} : vector<8x128xf32> to vector<8x32xf32>
    %cst_94 = arith.constant 5.000000e-01 : f32
    %277 = vector.broadcast %cst_94 : f32 to vector<8x32xf32>
    %278 = arith.mulf %277, %276 : vector<8x32xf32>
    %279 = math.tanh %278 : vector<8x32xf32>
    %cst_95 = arith.constant 5.000000e-01 : f32
    %280 = vector.broadcast %cst_95 : f32 to vector<8x32xf32>
    %281 = arith.mulf %280, %279 : vector<8x32xf32>
    %cst_96 = arith.constant 5.000000e-01 : f32
    %282 = vector.broadcast %cst_96 : f32 to vector<8x32xf32>
    %283 = arith.addf %281, %282 : vector<8x32xf32>
    %284 = vector.extract_strided_slice %267 {offsets = [0, 64], sizes = [8, 32], strides = [1, 1]} : vector<8x128xf32> to vector<8x32xf32>
    %285 = math.tanh %284 : vector<8x32xf32>
    %286 = vector.extract_strided_slice %267 {offsets = [0, 96], sizes = [8, 32], strides = [1, 1]} : vector<8x128xf32> to vector<8x32xf32>
    %cst_97 = arith.constant 5.000000e-01 : f32
    %287 = vector.broadcast %cst_97 : f32 to vector<8x32xf32>
    %288 = arith.mulf %287, %286 : vector<8x32xf32>
    %289 = math.tanh %288 : vector<8x32xf32>
    %cst_98 = arith.constant 5.000000e-01 : f32
    %290 = vector.broadcast %cst_98 : f32 to vector<8x32xf32>
    %291 = arith.mulf %290, %289 : vector<8x32xf32>
    %cst_99 = arith.constant 5.000000e-01 : f32
    %292 = vector.broadcast %cst_99 : f32 to vector<8x32xf32>
    %293 = arith.addf %291, %292 : vector<8x32xf32>
    %294 = arith.mulf %283, %209 : vector<8x32xf32>
    %295 = arith.mulf %275, %285 : vector<8x32xf32>
    %296 = arith.addf %294, %295 : vector<8x32xf32>
    %297 = math.tanh %296 : vector<8x32xf32>
    %298 = arith.mulf %293, %297 : vector<8x32xf32>
    %299 = vector.broadcast %214 : i32 to vector<8x1xi32>
    %300 = arith.cmpi sgt, %10, %299 : vector<8x1xi32>
    %301 = arith.extui %300 : vector<8x1xi1> to vector<8x1xi32>
    %302 = arith.sitofp %301 : vector<8x1xi32> to vector<8x1xf32>
    %303 = arith.subf %298, %205 : vector<8x32xf32>
    %304 = vector.broadcast %302 : vector<8x1xf32> to vector<8x32xf32>
    %305 = arith.mulf %304, %303 : vector<8x32xf32>
    %306 = arith.addf %205, %305 : vector<8x32xf32>
    %307 = arith.subf %296, %209 : vector<8x32xf32>
    %308 = vector.broadcast %302 : vector<8x1xf32> to vector<8x32xf32>
    %309 = arith.mulf %308, %307 : vector<8x32xf32>
    %310 = arith.addf %209, %309 : vector<8x32xf32>
    %311 = arith.index_cast %214 : i32 to index
    %c0_100 = arith.constant 0 : index
    %c0_101 = arith.constant 0 : index
    %312 = vector.load %arg13[%311, %c0_100, %c0_101] : memref<8x8x32xf32, #tpu.memory_space<vmem>>, vector<1x8x32xf32>
    %313 = vector.shape_cast %312 : vector<1x8x32xf32> to vector<8x32xf32>
    %314 = vector.shape_cast %306 : vector<8x32xf32> to vector<1x8x32xf32>
    tpu.vector_store %arg13[%311, %c0_100, %c0_101], %314 {strides = array<i32>} : memref<8x8x32xf32, #tpu.memory_space<vmem>>, vector<1x8x32xf32>,
    %c3_i32 = arith.constant 3 : i32
    %c7_i32_102 = arith.constant 7 : i32
    %315 = arith.subi %c7_i32_102, %c3_i32 : i32
    %316 = arith.index_cast %c3_i32 : i32 to index
    %c0_103 = arith.constant 0 : index
    %c0_104 = arith.constant 0 : index
    %317 = vector.load %arg11[%316, %c0_103, %c0_104] : memref<8x8x256xf32, #tpu.memory_space<vmem>>, vector<1x8x256xf32>
    %318 = vector.shape_cast %317 : vector<1x8x256xf32> to vector<8x256xf32>
    %319 = arith.index_cast %315 : i32 to index
    %c0_105 = arith.constant 0 : index
    %c0_106 = arith.constant 0 : index
    %320 = vector.load %arg11[%319, %c0_105, %c0_106] : memref<8x8x256xf32, #tpu.memory_space<vmem>>, vector<1x8x256xf32>
    %321 = vector.shape_cast %320 : vector<1x8x256xf32> to vector<8x256xf32>
    %322 = vector.extract_strided_slice %318 {offsets = [0, 0], sizes = [8, 128], strides = [1, 1]} : vector<8x256xf32> to vector<8x128xf32>
    %cst_107 = arith.constant dense<0.000000e+00> : vector<8x128xf32>
    %323 = tpu.matmul %254, %8, %cst_107 {dimension_numbers = #tpu.dot_dimension_numbers<[1], [0], [0], [1], [0, 0, 1, 1], [], []>} : vector<8x32xf32>, vector<32x128xf32>, vector<8x128xf32> -> vector<8x128xf32>
    %324 = arith.addf %322, %323 : vector<8x128xf32>
    %325 = vector.extract_strided_slice %324 {offsets = [0, 0], sizes = [8, 32], strides = [1, 1]} : vector<8x128xf32> to vector<8x32xf32>
    %cst_108 = arith.constant 5.000000e-01 : f32
    %326 = vector.broadcast %cst_108 : f32 to vector<8x32xf32>
    %327 = arith.mulf %326, %325 : vector<8x32xf32>
    %328 = math.tanh %327 : vector<8x32xf32>
    %cst_109 = arith.constant 5.000000e-01 : f32
    %329 = vector.broadcast %cst_109 : f32 to vector<8x32xf32>
    %330 = arith.mulf %329, %328 : vector<8x32xf32>
    %cst_110 = arith.constant 5.000000e-01 : f32
    %331 = vector.broadcast %cst_110 : f32 to vector<8x32xf32>
    %332 = arith.addf %330, %331 : vector<8x32xf32>
    %333 = vector.extract_strided_slice %324 {offsets = [0, 32], sizes = [8, 32], strides = [1, 1]} : vector<8x128xf32> to vector<8x32xf32>
    %cst_111 = arith.constant 5.000000e-01 : f32
    %334 = vector.broadcast %cst_111 : f32 to vector<8x32xf32>
    %335 = arith.mulf %334, %333 : vector<8x32xf32>
    %336 = math.tanh %335 : vector<8x32xf32>
    %cst_112 = arith.constant 5.000000e-01 : f32
    %337 = vector.broadcast %cst_112 : f32 to vector<8x32xf32>
    %338 = arith.mulf %337, %336 : vector<8x32xf32>
    %cst_113 = arith.constant 5.000000e-01 : f32
    %339 = vector.broadcast %cst_113 : f32 to vector<8x32xf32>
    %340 = arith.addf %338, %339 : vector<8x32xf32>
    %341 = vector.extract_strided_slice %324 {offsets = [0, 64], sizes = [8, 32], strides = [1, 1]} : vector<8x128xf32> to vector<8x32xf32>
    %342 = math.tanh %341 : vector<8x32xf32>
    %343 = vector.extract_strided_slice %324 {offsets = [0, 96], sizes = [8, 32], strides = [1, 1]} : vector<8x128xf32> to vector<8x32xf32>
    %cst_114 = arith.constant 5.000000e-01 : f32
    %344 = vector.broadcast %cst_114 : f32 to vector<8x32xf32>
    %345 = arith.mulf %344, %343 : vector<8x32xf32>
    %346 = math.tanh %345 : vector<8x32xf32>
    %cst_115 = arith.constant 5.000000e-01 : f32
    %347 = vector.broadcast %cst_115 : f32 to vector<8x32xf32>
    %348 = arith.mulf %347, %346 : vector<8x32xf32>
    %cst_116 = arith.constant 5.000000e-01 : f32
    %349 = vector.broadcast %cst_116 : f32 to vector<8x32xf32>
    %350 = arith.addf %348, %349 : vector<8x32xf32>
    %351 = arith.mulf %340, %252 : vector<8x32xf32>
    %352 = arith.mulf %332, %342 : vector<8x32xf32>
    %353 = arith.addf %351, %352 : vector<8x32xf32>
    %354 = math.tanh %353 : vector<8x32xf32>
    %355 = arith.mulf %350, %354 : vector<8x32xf32>
    %356 = vector.broadcast %c3_i32 : i32 to vector<8x1xi32>
    %357 = arith.cmpi sgt, %10, %356 : vector<8x1xi32>
    %358 = arith.extui %357 : vector<8x1xi1> to vector<8x1xi32>
    %359 = arith.sitofp %358 : vector<8x1xi32> to vector<8x1xf32>
    %360 = vector.broadcast %359 : vector<8x1xf32> to vector<8x32xf32>
    %361 = arith.mulf %355, %360 : vector<8x32xf32>
    %362 = arith.index_cast %c3_i32 : i32 to index
    %c0_117 = arith.constant 0 : index
    %c0_118 = arith.constant 0 : index
    %363 = vector.load %arg12[%362, %c0_117, %c0_118] : memref<8x8x32xf32, #tpu.memory_space<vmem>>, vector<1x8x32xf32>
    %364 = vector.shape_cast %363 : vector<1x8x32xf32> to vector<8x32xf32>
    %365 = vector.shape_cast %361 : vector<8x32xf32> to vector<1x8x32xf32>
    tpu.vector_store %arg12[%362, %c0_117, %c0_118], %365 {strides = array<i32>} : memref<8x8x32xf32, #tpu.memory_space<vmem>>, vector<1x8x32xf32>,
    %366 = vector.extract_strided_slice %321 {offsets = [0, 128], sizes = [8, 128], strides = [1, 1]} : vector<8x256xf32> to vector<8x128xf32>
    %cst_119 = arith.constant dense<0.000000e+00> : vector<8x128xf32>
    %367 = tpu.matmul %306, %9, %cst_119 {dimension_numbers = #tpu.dot_dimension_numbers<[1], [0], [0], [1], [0, 0, 1, 1], [], []>} : vector<8x32xf32>, vector<32x128xf32>, vector<8x128xf32> -> vector<8x128xf32>
    %368 = arith.addf %366, %367 : vector<8x128xf32>
    %369 = vector.extract_strided_slice %368 {offsets = [0, 0], sizes = [8, 32], strides = [1, 1]} : vector<8x128xf32> to vector<8x32xf32>
    %cst_120 = arith.constant 5.000000e-01 : f32
    %370 = vector.broadcast %cst_120 : f32 to vector<8x32xf32>
    %371 = arith.mulf %370, %369 : vector<8x32xf32>
    %372 = math.tanh %371 : vector<8x32xf32>
    %cst_121 = arith.constant 5.000000e-01 : f32
    %373 = vector.broadcast %cst_121 : f32 to vector<8x32xf32>
    %374 = arith.mulf %373, %372 : vector<8x32xf32>
    %cst_122 = arith.constant 5.000000e-01 : f32
    %375 = vector.broadcast %cst_122 : f32 to vector<8x32xf32>
    %376 = arith.addf %374, %375 : vector<8x32xf32>
    %377 = vector.extract_strided_slice %368 {offsets = [0, 32], sizes = [8, 32], strides = [1, 1]} : vector<8x128xf32> to vector<8x32xf32>
    %cst_123 = arith.constant 5.000000e-01 : f32
    %378 = vector.broadcast %cst_123 : f32 to vector<8x32xf32>
    %379 = arith.mulf %378, %377 : vector<8x32xf32>
    %380 = math.tanh %379 : vector<8x32xf32>
    %cst_124 = arith.constant 5.000000e-01 : f32
    %381 = vector.broadcast %cst_124 : f32 to vector<8x32xf32>
    %382 = arith.mulf %381, %380 : vector<8x32xf32>
    %cst_125 = arith.constant 5.000000e-01 : f32
    %383 = vector.broadcast %cst_125 : f32 to vector<8x32xf32>
    %384 = arith.addf %382, %383 : vector<8x32xf32>
    %385 = vector.extract_strided_slice %368 {offsets = [0, 64], sizes = [8, 32], strides = [1, 1]} : vector<8x128xf32> to vector<8x32xf32>
    %386 = math.tanh %385 : vector<8x32xf32>
    %387 = vector.extract_strided_slice %368 {offsets = [0, 96], sizes = [8, 32], strides = [1, 1]} : vector<8x128xf32> to vector<8x32xf32>
    %cst_126 = arith.constant 5.000000e-01 : f32
    %388 = vector.broadcast %cst_126 : f32 to vector<8x32xf32>
    %389 = arith.mulf %388, %387 : vector<8x32xf32>
    %390 = math.tanh %389 : vector<8x32xf32>
    %cst_127 = arith.constant 5.000000e-01 : f32
    %391 = vector.broadcast %cst_127 : f32 to vector<8x32xf32>
    %392 = arith.mulf %391, %390 : vector<8x32xf32>
    %cst_128 = arith.constant 5.000000e-01 : f32
    %393 = vector.broadcast %cst_128 : f32 to vector<8x32xf32>
    %394 = arith.addf %392, %393 : vector<8x32xf32>
    %395 = arith.mulf %384, %310 : vector<8x32xf32>
    %396 = arith.mulf %376, %386 : vector<8x32xf32>
    %397 = arith.addf %395, %396 : vector<8x32xf32>
    %398 = math.tanh %397 : vector<8x32xf32>
    %399 = arith.mulf %394, %398 : vector<8x32xf32>
    %400 = vector.broadcast %315 : i32 to vector<8x1xi32>
    %401 = arith.cmpi sgt, %10, %400 : vector<8x1xi32>
    %402 = arith.extui %401 : vector<8x1xi1> to vector<8x1xi32>
    %403 = arith.sitofp %402 : vector<8x1xi32> to vector<8x1xf32>
    %404 = arith.subf %399, %306 : vector<8x32xf32>
    %405 = vector.broadcast %403 : vector<8x1xf32> to vector<8x32xf32>
    %406 = arith.mulf %405, %404 : vector<8x32xf32>
    %407 = arith.addf %306, %406 : vector<8x32xf32>
    %408 = arith.subf %397, %310 : vector<8x32xf32>
    %409 = vector.broadcast %403 : vector<8x1xf32> to vector<8x32xf32>
    %410 = arith.mulf %409, %408 : vector<8x32xf32>
    %411 = arith.addf %310, %410 : vector<8x32xf32>
    %412 = arith.index_cast %315 : i32 to index
    %c0_129 = arith.constant 0 : index
    %c0_130 = arith.constant 0 : index
    %413 = vector.load %arg13[%412, %c0_129, %c0_130] : memref<8x8x32xf32, #tpu.memory_space<vmem>>, vector<1x8x32xf32>
    %414 = vector.shape_cast %413 : vector<1x8x32xf32> to vector<8x32xf32>
    %415 = vector.shape_cast %407 : vector<8x32xf32> to vector<1x8x32xf32>
    tpu.vector_store %arg13[%412, %c0_129, %c0_130], %415 {strides = array<i32>} : memref<8x8x32xf32, #tpu.memory_space<vmem>>, vector<1x8x32xf32>,
    %c4_i32 = arith.constant 4 : i32
    %c7_i32_131 = arith.constant 7 : i32
    %416 = arith.subi %c7_i32_131, %c4_i32 : i32
    %417 = arith.index_cast %c4_i32 : i32 to index
    %c0_132 = arith.constant 0 : index
    %c0_133 = arith.constant 0 : index
    %418 = vector.load %arg11[%417, %c0_132, %c0_133] : memref<8x8x256xf32, #tpu.memory_space<vmem>>, vector<1x8x256xf32>
    %419 = vector.shape_cast %418 : vector<1x8x256xf32> to vector<8x256xf32>
    %420 = arith.index_cast %416 : i32 to index
    %c0_134 = arith.constant 0 : index
    %c0_135 = arith.constant 0 : index
    %421 = vector.load %arg11[%420, %c0_134, %c0_135] : memref<8x8x256xf32, #tpu.memory_space<vmem>>, vector<1x8x256xf32>
    %422 = vector.shape_cast %421 : vector<1x8x256xf32> to vector<8x256xf32>
    %423 = vector.extract_strided_slice %419 {offsets = [0, 0], sizes = [8, 128], strides = [1, 1]} : vector<8x256xf32> to vector<8x128xf32>
    %cst_136 = arith.constant dense<0.000000e+00> : vector<8x128xf32>
    %424 = tpu.matmul %355, %8, %cst_136 {dimension_numbers = #tpu.dot_dimension_numbers<[1], [0], [0], [1], [0, 0, 1, 1], [], []>} : vector<8x32xf32>, vector<32x128xf32>, vector<8x128xf32> -> vector<8x128xf32>
    %425 = arith.addf %423, %424 : vector<8x128xf32>
    %426 = vector.extract_strided_slice %425 {offsets = [0, 0], sizes = [8, 32], strides = [1, 1]} : vector<8x128xf32> to vector<8x32xf32>
    %cst_137 = arith.constant 5.000000e-01 : f32
    %427 = vector.broadcast %cst_137 : f32 to vector<8x32xf32>
    %428 = arith.mulf %427, %426 : vector<8x32xf32>
    %429 = math.tanh %428 : vector<8x32xf32>
    %cst_138 = arith.constant 5.000000e-01 : f32
    %430 = vector.broadcast %cst_138 : f32 to vector<8x32xf32>
    %431 = arith.mulf %430, %429 : vector<8x32xf32>
    %cst_139 = arith.constant 5.000000e-01 : f32
    %432 = vector.broadcast %cst_139 : f32 to vector<8x32xf32>
    %433 = arith.addf %431, %432 : vector<8x32xf32>
    %434 = vector.extract_strided_slice %425 {offsets = [0, 32], sizes = [8, 32], strides = [1, 1]} : vector<8x128xf32> to vector<8x32xf32>
    %cst_140 = arith.constant 5.000000e-01 : f32
    %435 = vector.broadcast %cst_140 : f32 to vector<8x32xf32>
    %436 = arith.mulf %435, %434 : vector<8x32xf32>
    %437 = math.tanh %436 : vector<8x32xf32>
    %cst_141 = arith.constant 5.000000e-01 : f32
    %438 = vector.broadcast %cst_141 : f32 to vector<8x32xf32>
    %439 = arith.mulf %438, %437 : vector<8x32xf32>
    %cst_142 = arith.constant 5.000000e-01 : f32
    %440 = vector.broadcast %cst_142 : f32 to vector<8x32xf32>
    %441 = arith.addf %439, %440 : vector<8x32xf32>
    %442 = vector.extract_strided_slice %425 {offsets = [0, 64], sizes = [8, 32], strides = [1, 1]} : vector<8x128xf32> to vector<8x32xf32>
    %443 = math.tanh %442 : vector<8x32xf32>
    %444 = vector.extract_strided_slice %425 {offsets = [0, 96], sizes = [8, 32], strides = [1, 1]} : vector<8x128xf32> to vector<8x32xf32>
    %cst_143 = arith.constant 5.000000e-01 : f32
    %445 = vector.broadcast %cst_143 : f32 to vector<8x32xf32>
    %446 = arith.mulf %445, %444 : vector<8x32xf32>
    %447 = math.tanh %446 : vector<8x32xf32>
    %cst_144 = arith.constant 5.000000e-01 : f32
    %448 = vector.broadcast %cst_144 : f32 to vector<8x32xf32>
    %449 = arith.mulf %448, %447 : vector<8x32xf32>
    %cst_145 = arith.constant 5.000000e-01 : f32
    %450 = vector.broadcast %cst_145 : f32 to vector<8x32xf32>
    %451 = arith.addf %449, %450 : vector<8x32xf32>
    %452 = arith.mulf %441, %353 : vector<8x32xf32>
    %453 = arith.mulf %433, %443 : vector<8x32xf32>
    %454 = arith.addf %452, %453 : vector<8x32xf32>
    %455 = math.tanh %454 : vector<8x32xf32>
    %456 = arith.mulf %451, %455 : vector<8x32xf32>
    %457 = vector.broadcast %c4_i32 : i32 to vector<8x1xi32>
    %458 = arith.cmpi sgt, %10, %457 : vector<8x1xi32>
    %459 = arith.extui %458 : vector<8x1xi1> to vector<8x1xi32>
    %460 = arith.sitofp %459 : vector<8x1xi32> to vector<8x1xf32>
    %461 = vector.broadcast %460 : vector<8x1xf32> to vector<8x32xf32>
    %462 = arith.mulf %456, %461 : vector<8x32xf32>
    %463 = arith.index_cast %c4_i32 : i32 to index
    %c0_146 = arith.constant 0 : index
    %c0_147 = arith.constant 0 : index
    %464 = vector.load %arg12[%463, %c0_146, %c0_147] : memref<8x8x32xf32, #tpu.memory_space<vmem>>, vector<1x8x32xf32>
    %465 = vector.shape_cast %464 : vector<1x8x32xf32> to vector<8x32xf32>
    %466 = vector.shape_cast %462 : vector<8x32xf32> to vector<1x8x32xf32>
    tpu.vector_store %arg12[%463, %c0_146, %c0_147], %466 {strides = array<i32>} : memref<8x8x32xf32, #tpu.memory_space<vmem>>, vector<1x8x32xf32>,
    %467 = vector.extract_strided_slice %422 {offsets = [0, 128], sizes = [8, 128], strides = [1, 1]} : vector<8x256xf32> to vector<8x128xf32>
    %cst_148 = arith.constant dense<0.000000e+00> : vector<8x128xf32>
    %468 = tpu.matmul %407, %9, %cst_148 {dimension_numbers = #tpu.dot_dimension_numbers<[1], [0], [0], [1], [0, 0, 1, 1], [], []>} : vector<8x32xf32>, vector<32x128xf32>, vector<8x128xf32> -> vector<8x128xf32>
    %469 = arith.addf %467, %468 : vector<8x128xf32>
    %470 = vector.extract_strided_slice %469 {offsets = [0, 0], sizes = [8, 32], strides = [1, 1]} : vector<8x128xf32> to vector<8x32xf32>
    %cst_149 = arith.constant 5.000000e-01 : f32
    %471 = vector.broadcast %cst_149 : f32 to vector<8x32xf32>
    %472 = arith.mulf %471, %470 : vector<8x32xf32>
    %473 = math.tanh %472 : vector<8x32xf32>
    %cst_150 = arith.constant 5.000000e-01 : f32
    %474 = vector.broadcast %cst_150 : f32 to vector<8x32xf32>
    %475 = arith.mulf %474, %473 : vector<8x32xf32>
    %cst_151 = arith.constant 5.000000e-01 : f32
    %476 = vector.broadcast %cst_151 : f32 to vector<8x32xf32>
    %477 = arith.addf %475, %476 : vector<8x32xf32>
    %478 = vector.extract_strided_slice %469 {offsets = [0, 32], sizes = [8, 32], strides = [1, 1]} : vector<8x128xf32> to vector<8x32xf32>
    %cst_152 = arith.constant 5.000000e-01 : f32
    %479 = vector.broadcast %cst_152 : f32 to vector<8x32xf32>
    %480 = arith.mulf %479, %478 : vector<8x32xf32>
    %481 = math.tanh %480 : vector<8x32xf32>
    %cst_153 = arith.constant 5.000000e-01 : f32
    %482 = vector.broadcast %cst_153 : f32 to vector<8x32xf32>
    %483 = arith.mulf %482, %481 : vector<8x32xf32>
    %cst_154 = arith.constant 5.000000e-01 : f32
    %484 = vector.broadcast %cst_154 : f32 to vector<8x32xf32>
    %485 = arith.addf %483, %484 : vector<8x32xf32>
    %486 = vector.extract_strided_slice %469 {offsets = [0, 64], sizes = [8, 32], strides = [1, 1]} : vector<8x128xf32> to vector<8x32xf32>
    %487 = math.tanh %486 : vector<8x32xf32>
    %488 = vector.extract_strided_slice %469 {offsets = [0, 96], sizes = [8, 32], strides = [1, 1]} : vector<8x128xf32> to vector<8x32xf32>
    %cst_155 = arith.constant 5.000000e-01 : f32
    %489 = vector.broadcast %cst_155 : f32 to vector<8x32xf32>
    %490 = arith.mulf %489, %488 : vector<8x32xf32>
    %491 = math.tanh %490 : vector<8x32xf32>
    %cst_156 = arith.constant 5.000000e-01 : f32
    %492 = vector.broadcast %cst_156 : f32 to vector<8x32xf32>
    %493 = arith.mulf %492, %491 : vector<8x32xf32>
    %cst_157 = arith.constant 5.000000e-01 : f32
    %494 = vector.broadcast %cst_157 : f32 to vector<8x32xf32>
    %495 = arith.addf %493, %494 : vector<8x32xf32>
    %496 = arith.mulf %485, %411 : vector<8x32xf32>
    %497 = arith.mulf %477, %487 : vector<8x32xf32>
    %498 = arith.addf %496, %497 : vector<8x32xf32>
    %499 = math.tanh %498 : vector<8x32xf32>
    %500 = arith.mulf %495, %499 : vector<8x32xf32>
    %501 = vector.broadcast %416 : i32 to vector<8x1xi32>
    %502 = arith.cmpi sgt, %10, %501 : vector<8x1xi32>
    %503 = arith.extui %502 : vector<8x1xi1> to vector<8x1xi32>
    %504 = arith.sitofp %503 : vector<8x1xi32> to vector<8x1xf32>
    %505 = arith.subf %500, %407 : vector<8x32xf32>
    %506 = vector.broadcast %504 : vector<8x1xf32> to vector<8x32xf32>
    %507 = arith.mulf %506, %505 : vector<8x32xf32>
    %508 = arith.addf %407, %507 : vector<8x32xf32>
    %509 = arith.subf %498, %411 : vector<8x32xf32>
    %510 = vector.broadcast %504 : vector<8x1xf32> to vector<8x32xf32>
    %511 = arith.mulf %510, %509 : vector<8x32xf32>
    %512 = arith.addf %411, %511 : vector<8x32xf32>
    %513 = arith.index_cast %416 : i32 to index
    %c0_158 = arith.constant 0 : index
    %c0_159 = arith.constant 0 : index
    %514 = vector.load %arg13[%513, %c0_158, %c0_159] : memref<8x8x32xf32, #tpu.memory_space<vmem>>, vector<1x8x32xf32>
    %515 = vector.shape_cast %514 : vector<1x8x32xf32> to vector<8x32xf32>
    %516 = vector.shape_cast %508 : vector<8x32xf32> to vector<1x8x32xf32>
    tpu.vector_store %arg13[%513, %c0_158, %c0_159], %516 {strides = array<i32>} : memref<8x8x32xf32, #tpu.memory_space<vmem>>, vector<1x8x32xf32>,
    %c5_i32 = arith.constant 5 : i32
    %c7_i32_160 = arith.constant 7 : i32
    %517 = arith.subi %c7_i32_160, %c5_i32 : i32
    %518 = arith.index_cast %c5_i32 : i32 to index
    %c0_161 = arith.constant 0 : index
    %c0_162 = arith.constant 0 : index
    %519 = vector.load %arg11[%518, %c0_161, %c0_162] : memref<8x8x256xf32, #tpu.memory_space<vmem>>, vector<1x8x256xf32>
    %520 = vector.shape_cast %519 : vector<1x8x256xf32> to vector<8x256xf32>
    %521 = arith.index_cast %517 : i32 to index
    %c0_163 = arith.constant 0 : index
    %c0_164 = arith.constant 0 : index
    %522 = vector.load %arg11[%521, %c0_163, %c0_164] : memref<8x8x256xf32, #tpu.memory_space<vmem>>, vector<1x8x256xf32>
    %523 = vector.shape_cast %522 : vector<1x8x256xf32> to vector<8x256xf32>
    %524 = vector.extract_strided_slice %520 {offsets = [0, 0], sizes = [8, 128], strides = [1, 1]} : vector<8x256xf32> to vector<8x128xf32>
    %cst_165 = arith.constant dense<0.000000e+00> : vector<8x128xf32>
    %525 = tpu.matmul %456, %8, %cst_165 {dimension_numbers = #tpu.dot_dimension_numbers<[1], [0], [0], [1], [0, 0, 1, 1], [], []>} : vector<8x32xf32>, vector<32x128xf32>, vector<8x128xf32> -> vector<8x128xf32>
    %526 = arith.addf %524, %525 : vector<8x128xf32>
    %527 = vector.extract_strided_slice %526 {offsets = [0, 0], sizes = [8, 32], strides = [1, 1]} : vector<8x128xf32> to vector<8x32xf32>
    %cst_166 = arith.constant 5.000000e-01 : f32
    %528 = vector.broadcast %cst_166 : f32 to vector<8x32xf32>
    %529 = arith.mulf %528, %527 : vector<8x32xf32>
    %530 = math.tanh %529 : vector<8x32xf32>
    %cst_167 = arith.constant 5.000000e-01 : f32
    %531 = vector.broadcast %cst_167 : f32 to vector<8x32xf32>
    %532 = arith.mulf %531, %530 : vector<8x32xf32>
    %cst_168 = arith.constant 5.000000e-01 : f32
    %533 = vector.broadcast %cst_168 : f32 to vector<8x32xf32>
    %534 = arith.addf %532, %533 : vector<8x32xf32>
    %535 = vector.extract_strided_slice %526 {offsets = [0, 32], sizes = [8, 32], strides = [1, 1]} : vector<8x128xf32> to vector<8x32xf32>
    %cst_169 = arith.constant 5.000000e-01 : f32
    %536 = vector.broadcast %cst_169 : f32 to vector<8x32xf32>
    %537 = arith.mulf %536, %535 : vector<8x32xf32>
    %538 = math.tanh %537 : vector<8x32xf32>
    %cst_170 = arith.constant 5.000000e-01 : f32
    %539 = vector.broadcast %cst_170 : f32 to vector<8x32xf32>
    %540 = arith.mulf %539, %538 : vector<8x32xf32>
    %cst_171 = arith.constant 5.000000e-01 : f32
    %541 = vector.broadcast %cst_171 : f32 to vector<8x32xf32>
    %542 = arith.addf %540, %541 : vector<8x32xf32>
    %543 = vector.extract_strided_slice %526 {offsets = [0, 64], sizes = [8, 32], strides = [1, 1]} : vector<8x128xf32> to vector<8x32xf32>
    %544 = math.tanh %543 : vector<8x32xf32>
    %545 = vector.extract_strided_slice %526 {offsets = [0, 96], sizes = [8, 32], strides = [1, 1]} : vector<8x128xf32> to vector<8x32xf32>
    %cst_172 = arith.constant 5.000000e-01 : f32
    %546 = vector.broadcast %cst_172 : f32 to vector<8x32xf32>
    %547 = arith.mulf %546, %545 : vector<8x32xf32>
    %548 = math.tanh %547 : vector<8x32xf32>
    %cst_173 = arith.constant 5.000000e-01 : f32
    %549 = vector.broadcast %cst_173 : f32 to vector<8x32xf32>
    %550 = arith.mulf %549, %548 : vector<8x32xf32>
    %cst_174 = arith.constant 5.000000e-01 : f32
    %551 = vector.broadcast %cst_174 : f32 to vector<8x32xf32>
    %552 = arith.addf %550, %551 : vector<8x32xf32>
    %553 = arith.mulf %542, %454 : vector<8x32xf32>
    %554 = arith.mulf %534, %544 : vector<8x32xf32>
    %555 = arith.addf %553, %554 : vector<8x32xf32>
    %556 = math.tanh %555 : vector<8x32xf32>
    %557 = arith.mulf %552, %556 : vector<8x32xf32>
    %558 = vector.broadcast %c5_i32 : i32 to vector<8x1xi32>
    %559 = arith.cmpi sgt, %10, %558 : vector<8x1xi32>
    %560 = arith.extui %559 : vector<8x1xi1> to vector<8x1xi32>
    %561 = arith.sitofp %560 : vector<8x1xi32> to vector<8x1xf32>
    %562 = vector.broadcast %561 : vector<8x1xf32> to vector<8x32xf32>
    %563 = arith.mulf %557, %562 : vector<8x32xf32>
    %564 = arith.index_cast %c5_i32 : i32 to index
    %c0_175 = arith.constant 0 : index
    %c0_176 = arith.constant 0 : index
    %565 = vector.load %arg12[%564, %c0_175, %c0_176] : memref<8x8x32xf32, #tpu.memory_space<vmem>>, vector<1x8x32xf32>
    %566 = vector.shape_cast %565 : vector<1x8x32xf32> to vector<8x32xf32>
    %567 = vector.shape_cast %563 : vector<8x32xf32> to vector<1x8x32xf32>
    tpu.vector_store %arg12[%564, %c0_175, %c0_176], %567 {strides = array<i32>} : memref<8x8x32xf32, #tpu.memory_space<vmem>>, vector<1x8x32xf32>,
    %568 = vector.extract_strided_slice %523 {offsets = [0, 128], sizes = [8, 128], strides = [1, 1]} : vector<8x256xf32> to vector<8x128xf32>
    %cst_177 = arith.constant dense<0.000000e+00> : vector<8x128xf32>
    %569 = tpu.matmul %508, %9, %cst_177 {dimension_numbers = #tpu.dot_dimension_numbers<[1], [0], [0], [1], [0, 0, 1, 1], [], []>} : vector<8x32xf32>, vector<32x128xf32>, vector<8x128xf32> -> vector<8x128xf32>
    %570 = arith.addf %568, %569 : vector<8x128xf32>
    %571 = vector.extract_strided_slice %570 {offsets = [0, 0], sizes = [8, 32], strides = [1, 1]} : vector<8x128xf32> to vector<8x32xf32>
    %cst_178 = arith.constant 5.000000e-01 : f32
    %572 = vector.broadcast %cst_178 : f32 to vector<8x32xf32>
    %573 = arith.mulf %572, %571 : vector<8x32xf32>
    %574 = math.tanh %573 : vector<8x32xf32>
    %cst_179 = arith.constant 5.000000e-01 : f32
    %575 = vector.broadcast %cst_179 : f32 to vector<8x32xf32>
    %576 = arith.mulf %575, %574 : vector<8x32xf32>
    %cst_180 = arith.constant 5.000000e-01 : f32
    %577 = vector.broadcast %cst_180 : f32 to vector<8x32xf32>
    %578 = arith.addf %576, %577 : vector<8x32xf32>
    %579 = vector.extract_strided_slice %570 {offsets = [0, 32], sizes = [8, 32], strides = [1, 1]} : vector<8x128xf32> to vector<8x32xf32>
    %cst_181 = arith.constant 5.000000e-01 : f32
    %580 = vector.broadcast %cst_181 : f32 to vector<8x32xf32>
    %581 = arith.mulf %580, %579 : vector<8x32xf32>
    %582 = math.tanh %581 : vector<8x32xf32>
    %cst_182 = arith.constant 5.000000e-01 : f32
    %583 = vector.broadcast %cst_182 : f32 to vector<8x32xf32>
    %584 = arith.mulf %583, %582 : vector<8x32xf32>
    %cst_183 = arith.constant 5.000000e-01 : f32
    %585 = vector.broadcast %cst_183 : f32 to vector<8x32xf32>
    %586 = arith.addf %584, %585 : vector<8x32xf32>
    %587 = vector.extract_strided_slice %570 {offsets = [0, 64], sizes = [8, 32], strides = [1, 1]} : vector<8x128xf32> to vector<8x32xf32>
    %588 = math.tanh %587 : vector<8x32xf32>
    %589 = vector.extract_strided_slice %570 {offsets = [0, 96], sizes = [8, 32], strides = [1, 1]} : vector<8x128xf32> to vector<8x32xf32>
    %cst_184 = arith.constant 5.000000e-01 : f32
    %590 = vector.broadcast %cst_184 : f32 to vector<8x32xf32>
    %591 = arith.mulf %590, %589 : vector<8x32xf32>
    %592 = math.tanh %591 : vector<8x32xf32>
    %cst_185 = arith.constant 5.000000e-01 : f32
    %593 = vector.broadcast %cst_185 : f32 to vector<8x32xf32>
    %594 = arith.mulf %593, %592 : vector<8x32xf32>
    %cst_186 = arith.constant 5.000000e-01 : f32
    %595 = vector.broadcast %cst_186 : f32 to vector<8x32xf32>
    %596 = arith.addf %594, %595 : vector<8x32xf32>
    %597 = arith.mulf %586, %512 : vector<8x32xf32>
    %598 = arith.mulf %578, %588 : vector<8x32xf32>
    %599 = arith.addf %597, %598 : vector<8x32xf32>
    %600 = math.tanh %599 : vector<8x32xf32>
    %601 = arith.mulf %596, %600 : vector<8x32xf32>
    %602 = vector.broadcast %517 : i32 to vector<8x1xi32>
    %603 = arith.cmpi sgt, %10, %602 : vector<8x1xi32>
    %604 = arith.extui %603 : vector<8x1xi1> to vector<8x1xi32>
    %605 = arith.sitofp %604 : vector<8x1xi32> to vector<8x1xf32>
    %606 = arith.subf %601, %508 : vector<8x32xf32>
    %607 = vector.broadcast %605 : vector<8x1xf32> to vector<8x32xf32>
    %608 = arith.mulf %607, %606 : vector<8x32xf32>
    %609 = arith.addf %508, %608 : vector<8x32xf32>
    %610 = arith.subf %599, %512 : vector<8x32xf32>
    %611 = vector.broadcast %605 : vector<8x1xf32> to vector<8x32xf32>
    %612 = arith.mulf %611, %610 : vector<8x32xf32>
    %613 = arith.addf %512, %612 : vector<8x32xf32>
    %614 = arith.index_cast %517 : i32 to index
    %c0_187 = arith.constant 0 : index
    %c0_188 = arith.constant 0 : index
    %615 = vector.load %arg13[%614, %c0_187, %c0_188] : memref<8x8x32xf32, #tpu.memory_space<vmem>>, vector<1x8x32xf32>
    %616 = vector.shape_cast %615 : vector<1x8x32xf32> to vector<8x32xf32>
    %617 = vector.shape_cast %609 : vector<8x32xf32> to vector<1x8x32xf32>
    tpu.vector_store %arg13[%614, %c0_187, %c0_188], %617 {strides = array<i32>} : memref<8x8x32xf32, #tpu.memory_space<vmem>>, vector<1x8x32xf32>,
    %c6_i32 = arith.constant 6 : i32
    %c7_i32_189 = arith.constant 7 : i32
    %618 = arith.subi %c7_i32_189, %c6_i32 : i32
    %619 = arith.index_cast %c6_i32 : i32 to index
    %c0_190 = arith.constant 0 : index
    %c0_191 = arith.constant 0 : index
    %620 = vector.load %arg11[%619, %c0_190, %c0_191] : memref<8x8x256xf32, #tpu.memory_space<vmem>>, vector<1x8x256xf32>
    %621 = vector.shape_cast %620 : vector<1x8x256xf32> to vector<8x256xf32>
    %622 = arith.index_cast %618 : i32 to index
    %c0_192 = arith.constant 0 : index
    %c0_193 = arith.constant 0 : index
    %623 = vector.load %arg11[%622, %c0_192, %c0_193] : memref<8x8x256xf32, #tpu.memory_space<vmem>>, vector<1x8x256xf32>
    %624 = vector.shape_cast %623 : vector<1x8x256xf32> to vector<8x256xf32>
    %625 = vector.extract_strided_slice %621 {offsets = [0, 0], sizes = [8, 128], strides = [1, 1]} : vector<8x256xf32> to vector<8x128xf32>
    %cst_194 = arith.constant dense<0.000000e+00> : vector<8x128xf32>
    %626 = tpu.matmul %557, %8, %cst_194 {dimension_numbers = #tpu.dot_dimension_numbers<[1], [0], [0], [1], [0, 0, 1, 1], [], []>} : vector<8x32xf32>, vector<32x128xf32>, vector<8x128xf32> -> vector<8x128xf32>
    %627 = arith.addf %625, %626 : vector<8x128xf32>
    %628 = vector.extract_strided_slice %627 {offsets = [0, 0], sizes = [8, 32], strides = [1, 1]} : vector<8x128xf32> to vector<8x32xf32>
    %cst_195 = arith.constant 5.000000e-01 : f32
    %629 = vector.broadcast %cst_195 : f32 to vector<8x32xf32>
    %630 = arith.mulf %629, %628 : vector<8x32xf32>
    %631 = math.tanh %630 : vector<8x32xf32>
    %cst_196 = arith.constant 5.000000e-01 : f32
    %632 = vector.broadcast %cst_196 : f32 to vector<8x32xf32>
    %633 = arith.mulf %632, %631 : vector<8x32xf32>
    %cst_197 = arith.constant 5.000000e-01 : f32
    %634 = vector.broadcast %cst_197 : f32 to vector<8x32xf32>
    %635 = arith.addf %633, %634 : vector<8x32xf32>
    %636 = vector.extract_strided_slice %627 {offsets = [0, 32], sizes = [8, 32], strides = [1, 1]} : vector<8x128xf32> to vector<8x32xf32>
    %cst_198 = arith.constant 5.000000e-01 : f32
    %637 = vector.broadcast %cst_198 : f32 to vector<8x32xf32>
    %638 = arith.mulf %637, %636 : vector<8x32xf32>
    %639 = math.tanh %638 : vector<8x32xf32>
    %cst_199 = arith.constant 5.000000e-01 : f32
    %640 = vector.broadcast %cst_199 : f32 to vector<8x32xf32>
    %641 = arith.mulf %640, %639 : vector<8x32xf32>
    %cst_200 = arith.constant 5.000000e-01 : f32
    %642 = vector.broadcast %cst_200 : f32 to vector<8x32xf32>
    %643 = arith.addf %641, %642 : vector<8x32xf32>
    %644 = vector.extract_strided_slice %627 {offsets = [0, 64], sizes = [8, 32], strides = [1, 1]} : vector<8x128xf32> to vector<8x32xf32>
    %645 = math.tanh %644 : vector<8x32xf32>
    %646 = vector.extract_strided_slice %627 {offsets = [0, 96], sizes = [8, 32], strides = [1, 1]} : vector<8x128xf32> to vector<8x32xf32>
    %cst_201 = arith.constant 5.000000e-01 : f32
    %647 = vector.broadcast %cst_201 : f32 to vector<8x32xf32>
    %648 = arith.mulf %647, %646 : vector<8x32xf32>
    %649 = math.tanh %648 : vector<8x32xf32>
    %cst_202 = arith.constant 5.000000e-01 : f32
    %650 = vector.broadcast %cst_202 : f32 to vector<8x32xf32>
    %651 = arith.mulf %650, %649 : vector<8x32xf32>
    %cst_203 = arith.constant 5.000000e-01 : f32
    %652 = vector.broadcast %cst_203 : f32 to vector<8x32xf32>
    %653 = arith.addf %651, %652 : vector<8x32xf32>
    %654 = arith.mulf %643, %555 : vector<8x32xf32>
    %655 = arith.mulf %635, %645 : vector<8x32xf32>
    %656 = arith.addf %654, %655 : vector<8x32xf32>
    %657 = math.tanh %656 : vector<8x32xf32>
    %658 = arith.mulf %653, %657 : vector<8x32xf32>
    %659 = vector.broadcast %c6_i32 : i32 to vector<8x1xi32>
    %660 = arith.cmpi sgt, %10, %659 : vector<8x1xi32>
    %661 = arith.extui %660 : vector<8x1xi1> to vector<8x1xi32>
    %662 = arith.sitofp %661 : vector<8x1xi32> to vector<8x1xf32>
    %663 = vector.broadcast %662 : vector<8x1xf32> to vector<8x32xf32>
    %664 = arith.mulf %658, %663 : vector<8x32xf32>
    %665 = arith.index_cast %c6_i32 : i32 to index
    %c0_204 = arith.constant 0 : index
    %c0_205 = arith.constant 0 : index
    %666 = vector.load %arg12[%665, %c0_204, %c0_205] : memref<8x8x32xf32, #tpu.memory_space<vmem>>, vector<1x8x32xf32>
    %667 = vector.shape_cast %666 : vector<1x8x32xf32> to vector<8x32xf32>
    %668 = vector.shape_cast %664 : vector<8x32xf32> to vector<1x8x32xf32>
    tpu.vector_store %arg12[%665, %c0_204, %c0_205], %668 {strides = array<i32>} : memref<8x8x32xf32, #tpu.memory_space<vmem>>, vector<1x8x32xf32>,
    %669 = vector.extract_strided_slice %624 {offsets = [0, 128], sizes = [8, 128], strides = [1, 1]} : vector<8x256xf32> to vector<8x128xf32>
    %cst_206 = arith.constant dense<0.000000e+00> : vector<8x128xf32>
    %670 = tpu.matmul %609, %9, %cst_206 {dimension_numbers = #tpu.dot_dimension_numbers<[1], [0], [0], [1], [0, 0, 1, 1], [], []>} : vector<8x32xf32>, vector<32x128xf32>, vector<8x128xf32> -> vector<8x128xf32>
    %671 = arith.addf %669, %670 : vector<8x128xf32>
    %672 = vector.extract_strided_slice %671 {offsets = [0, 0], sizes = [8, 32], strides = [1, 1]} : vector<8x128xf32> to vector<8x32xf32>
    %cst_207 = arith.constant 5.000000e-01 : f32
    %673 = vector.broadcast %cst_207 : f32 to vector<8x32xf32>
    %674 = arith.mulf %673, %672 : vector<8x32xf32>
    %675 = math.tanh %674 : vector<8x32xf32>
    %cst_208 = arith.constant 5.000000e-01 : f32
    %676 = vector.broadcast %cst_208 : f32 to vector<8x32xf32>
    %677 = arith.mulf %676, %675 : vector<8x32xf32>
    %cst_209 = arith.constant 5.000000e-01 : f32
    %678 = vector.broadcast %cst_209 : f32 to vector<8x32xf32>
    %679 = arith.addf %677, %678 : vector<8x32xf32>
    %680 = vector.extract_strided_slice %671 {offsets = [0, 32], sizes = [8, 32], strides = [1, 1]} : vector<8x128xf32> to vector<8x32xf32>
    %cst_210 = arith.constant 5.000000e-01 : f32
    %681 = vector.broadcast %cst_210 : f32 to vector<8x32xf32>
    %682 = arith.mulf %681, %680 : vector<8x32xf32>
    %683 = math.tanh %682 : vector<8x32xf32>
    %cst_211 = arith.constant 5.000000e-01 : f32
    %684 = vector.broadcast %cst_211 : f32 to vector<8x32xf32>
    %685 = arith.mulf %684, %683 : vector<8x32xf32>
    %cst_212 = arith.constant 5.000000e-01 : f32
    %686 = vector.broadcast %cst_212 : f32 to vector<8x32xf32>
    %687 = arith.addf %685, %686 : vector<8x32xf32>
    %688 = vector.extract_strided_slice %671 {offsets = [0, 64], sizes = [8, 32], strides = [1, 1]} : vector<8x128xf32> to vector<8x32xf32>
    %689 = math.tanh %688 : vector<8x32xf32>
    %690 = vector.extract_strided_slice %671 {offsets = [0, 96], sizes = [8, 32], strides = [1, 1]} : vector<8x128xf32> to vector<8x32xf32>
    %cst_213 = arith.constant 5.000000e-01 : f32
    %691 = vector.broadcast %cst_213 : f32 to vector<8x32xf32>
    %692 = arith.mulf %691, %690 : vector<8x32xf32>
    %693 = math.tanh %692 : vector<8x32xf32>
    %cst_214 = arith.constant 5.000000e-01 : f32
    %694 = vector.broadcast %cst_214 : f32 to vector<8x32xf32>
    %695 = arith.mulf %694, %693 : vector<8x32xf32>
    %cst_215 = arith.constant 5.000000e-01 : f32
    %696 = vector.broadcast %cst_215 : f32 to vector<8x32xf32>
    %697 = arith.addf %695, %696 : vector<8x32xf32>
    %698 = arith.mulf %687, %613 : vector<8x32xf32>
    %699 = arith.mulf %679, %689 : vector<8x32xf32>
    %700 = arith.addf %698, %699 : vector<8x32xf32>
    %701 = math.tanh %700 : vector<8x32xf32>
    %702 = arith.mulf %697, %701 : vector<8x32xf32>
    %703 = vector.broadcast %618 : i32 to vector<8x1xi32>
    %704 = arith.cmpi sgt, %10, %703 : vector<8x1xi32>
    %705 = arith.extui %704 : vector<8x1xi1> to vector<8x1xi32>
    %706 = arith.sitofp %705 : vector<8x1xi32> to vector<8x1xf32>
    %707 = arith.subf %702, %609 : vector<8x32xf32>
    %708 = vector.broadcast %706 : vector<8x1xf32> to vector<8x32xf32>
    %709 = arith.mulf %708, %707 : vector<8x32xf32>
    %710 = arith.addf %609, %709 : vector<8x32xf32>
    %711 = arith.subf %700, %613 : vector<8x32xf32>
    %712 = vector.broadcast %706 : vector<8x1xf32> to vector<8x32xf32>
    %713 = arith.mulf %712, %711 : vector<8x32xf32>
    %714 = arith.addf %613, %713 : vector<8x32xf32>
    %715 = arith.index_cast %618 : i32 to index
    %c0_216 = arith.constant 0 : index
    %c0_217 = arith.constant 0 : index
    %716 = vector.load %arg13[%715, %c0_216, %c0_217] : memref<8x8x32xf32, #tpu.memory_space<vmem>>, vector<1x8x32xf32>
    %717 = vector.shape_cast %716 : vector<1x8x32xf32> to vector<8x32xf32>
    %718 = vector.shape_cast %710 : vector<8x32xf32> to vector<1x8x32xf32>
    tpu.vector_store %arg13[%715, %c0_216, %c0_217], %718 {strides = array<i32>} : memref<8x8x32xf32, #tpu.memory_space<vmem>>, vector<1x8x32xf32>,
    %c7_i32_218 = arith.constant 7 : i32
    %c7_i32_219 = arith.constant 7 : i32
    %719 = arith.subi %c7_i32_219, %c7_i32_218 : i32
    %720 = arith.index_cast %c7_i32_218 : i32 to index
    %c0_220 = arith.constant 0 : index
    %c0_221 = arith.constant 0 : index
    %721 = vector.load %arg11[%720, %c0_220, %c0_221] : memref<8x8x256xf32, #tpu.memory_space<vmem>>, vector<1x8x256xf32>
    %722 = vector.shape_cast %721 : vector<1x8x256xf32> to vector<8x256xf32>
    %723 = arith.index_cast %719 : i32 to index
    %c0_222 = arith.constant 0 : index
    %c0_223 = arith.constant 0 : index
    %724 = vector.load %arg11[%723, %c0_222, %c0_223] : memref<8x8x256xf32, #tpu.memory_space<vmem>>, vector<1x8x256xf32>
    %725 = vector.shape_cast %724 : vector<1x8x256xf32> to vector<8x256xf32>
    %726 = vector.extract_strided_slice %722 {offsets = [0, 0], sizes = [8, 128], strides = [1, 1]} : vector<8x256xf32> to vector<8x128xf32>
    %cst_224 = arith.constant dense<0.000000e+00> : vector<8x128xf32>
    %727 = tpu.matmul %658, %8, %cst_224 {dimension_numbers = #tpu.dot_dimension_numbers<[1], [0], [0], [1], [0, 0, 1, 1], [], []>} : vector<8x32xf32>, vector<32x128xf32>, vector<8x128xf32> -> vector<8x128xf32>
    %728 = arith.addf %726, %727 : vector<8x128xf32>
    %729 = vector.extract_strided_slice %728 {offsets = [0, 0], sizes = [8, 32], strides = [1, 1]} : vector<8x128xf32> to vector<8x32xf32>
    %cst_225 = arith.constant 5.000000e-01 : f32
    %730 = vector.broadcast %cst_225 : f32 to vector<8x32xf32>
    %731 = arith.mulf %730, %729 : vector<8x32xf32>
    %732 = math.tanh %731 : vector<8x32xf32>
    %cst_226 = arith.constant 5.000000e-01 : f32
    %733 = vector.broadcast %cst_226 : f32 to vector<8x32xf32>
    %734 = arith.mulf %733, %732 : vector<8x32xf32>
    %cst_227 = arith.constant 5.000000e-01 : f32
    %735 = vector.broadcast %cst_227 : f32 to vector<8x32xf32>
    %736 = arith.addf %734, %735 : vector<8x32xf32>
    %737 = vector.extract_strided_slice %728 {offsets = [0, 32], sizes = [8, 32], strides = [1, 1]} : vector<8x128xf32> to vector<8x32xf32>
    %cst_228 = arith.constant 5.000000e-01 : f32
    %738 = vector.broadcast %cst_228 : f32 to vector<8x32xf32>
    %739 = arith.mulf %738, %737 : vector<8x32xf32>
    %740 = math.tanh %739 : vector<8x32xf32>
    %cst_229 = arith.constant 5.000000e-01 : f32
    %741 = vector.broadcast %cst_229 : f32 to vector<8x32xf32>
    %742 = arith.mulf %741, %740 : vector<8x32xf32>
    %cst_230 = arith.constant 5.000000e-01 : f32
    %743 = vector.broadcast %cst_230 : f32 to vector<8x32xf32>
    %744 = arith.addf %742, %743 : vector<8x32xf32>
    %745 = vector.extract_strided_slice %728 {offsets = [0, 64], sizes = [8, 32], strides = [1, 1]} : vector<8x128xf32> to vector<8x32xf32>
    %746 = math.tanh %745 : vector<8x32xf32>
    %747 = vector.extract_strided_slice %728 {offsets = [0, 96], sizes = [8, 32], strides = [1, 1]} : vector<8x128xf32> to vector<8x32xf32>
    %cst_231 = arith.constant 5.000000e-01 : f32
    %748 = vector.broadcast %cst_231 : f32 to vector<8x32xf32>
    %749 = arith.mulf %748, %747 : vector<8x32xf32>
    %750 = math.tanh %749 : vector<8x32xf32>
    %cst_232 = arith.constant 5.000000e-01 : f32
    %751 = vector.broadcast %cst_232 : f32 to vector<8x32xf32>
    %752 = arith.mulf %751, %750 : vector<8x32xf32>
    %cst_233 = arith.constant 5.000000e-01 : f32
    %753 = vector.broadcast %cst_233 : f32 to vector<8x32xf32>
    %754 = arith.addf %752, %753 : vector<8x32xf32>
    %755 = arith.mulf %744, %656 : vector<8x32xf32>
    %756 = arith.mulf %736, %746 : vector<8x32xf32>
    %757 = arith.addf %755, %756 : vector<8x32xf32>
    %758 = math.tanh %757 : vector<8x32xf32>
    %759 = arith.mulf %754, %758 : vector<8x32xf32>
    %760 = vector.broadcast %c7_i32_218 : i32 to vector<8x1xi32>
    %761 = arith.cmpi sgt, %10, %760 : vector<8x1xi32>
    %762 = arith.extui %761 : vector<8x1xi1> to vector<8x1xi32>
    %763 = arith.sitofp %762 : vector<8x1xi32> to vector<8x1xf32>
    %764 = vector.broadcast %763 : vector<8x1xf32> to vector<8x32xf32>
    %765 = arith.mulf %759, %764 : vector<8x32xf32>
    %766 = arith.index_cast %c7_i32_218 : i32 to index
    %c0_234 = arith.constant 0 : index
    %c0_235 = arith.constant 0 : index
    %767 = vector.load %arg12[%766, %c0_234, %c0_235] : memref<8x8x32xf32, #tpu.memory_space<vmem>>, vector<1x8x32xf32>
    %768 = vector.shape_cast %767 : vector<1x8x32xf32> to vector<8x32xf32>
    %769 = vector.shape_cast %765 : vector<8x32xf32> to vector<1x8x32xf32>
    tpu.vector_store %arg12[%766, %c0_234, %c0_235], %769 {strides = array<i32>} : memref<8x8x32xf32, #tpu.memory_space<vmem>>, vector<1x8x32xf32>,
    %770 = vector.extract_strided_slice %725 {offsets = [0, 128], sizes = [8, 128], strides = [1, 1]} : vector<8x256xf32> to vector<8x128xf32>
    %cst_236 = arith.constant dense<0.000000e+00> : vector<8x128xf32>
    %771 = tpu.matmul %710, %9, %cst_236 {dimension_numbers = #tpu.dot_dimension_numbers<[1], [0], [0], [1], [0, 0, 1, 1], [], []>} : vector<8x32xf32>, vector<32x128xf32>, vector<8x128xf32> -> vector<8x128xf32>
    %772 = arith.addf %770, %771 : vector<8x128xf32>
    %773 = vector.extract_strided_slice %772 {offsets = [0, 0], sizes = [8, 32], strides = [1, 1]} : vector<8x128xf32> to vector<8x32xf32>
    %cst_237 = arith.constant 5.000000e-01 : f32
    %774 = vector.broadcast %cst_237 : f32 to vector<8x32xf32>
    %775 = arith.mulf %774, %773 : vector<8x32xf32>
    %776 = math.tanh %775 : vector<8x32xf32>
    %cst_238 = arith.constant 5.000000e-01 : f32
    %777 = vector.broadcast %cst_238 : f32 to vector<8x32xf32>
    %778 = arith.mulf %777, %776 : vector<8x32xf32>
    %cst_239 = arith.constant 5.000000e-01 : f32
    %779 = vector.broadcast %cst_239 : f32 to vector<8x32xf32>
    %780 = arith.addf %778, %779 : vector<8x32xf32>
    %781 = vector.extract_strided_slice %772 {offsets = [0, 32], sizes = [8, 32], strides = [1, 1]} : vector<8x128xf32> to vector<8x32xf32>
    %cst_240 = arith.constant 5.000000e-01 : f32
    %782 = vector.broadcast %cst_240 : f32 to vector<8x32xf32>
    %783 = arith.mulf %782, %781 : vector<8x32xf32>
    %784 = math.tanh %783 : vector<8x32xf32>
    %cst_241 = arith.constant 5.000000e-01 : f32
    %785 = vector.broadcast %cst_241 : f32 to vector<8x32xf32>
    %786 = arith.mulf %785, %784 : vector<8x32xf32>
    %cst_242 = arith.constant 5.000000e-01 : f32
    %787 = vector.broadcast %cst_242 : f32 to vector<8x32xf32>
    %788 = arith.addf %786, %787 : vector<8x32xf32>
    %789 = vector.extract_strided_slice %772 {offsets = [0, 64], sizes = [8, 32], strides = [1, 1]} : vector<8x128xf32> to vector<8x32xf32>
    %790 = math.tanh %789 : vector<8x32xf32>
    %791 = vector.extract_strided_slice %772 {offsets = [0, 96], sizes = [8, 32], strides = [1, 1]} : vector<8x128xf32> to vector<8x32xf32>
    %cst_243 = arith.constant 5.000000e-01 : f32
    %792 = vector.broadcast %cst_243 : f32 to vector<8x32xf32>
    %793 = arith.mulf %792, %791 : vector<8x32xf32>
    %794 = math.tanh %793 : vector<8x32xf32>
    %cst_244 = arith.constant 5.000000e-01 : f32
    %795 = vector.broadcast %cst_244 : f32 to vector<8x32xf32>
    %796 = arith.mulf %795, %794 : vector<8x32xf32>
    %cst_245 = arith.constant 5.000000e-01 : f32
    %797 = vector.broadcast %cst_245 : f32 to vector<8x32xf32>
    %798 = arith.addf %796, %797 : vector<8x32xf32>
    %799 = arith.mulf %788, %714 : vector<8x32xf32>
    %800 = arith.mulf %780, %790 : vector<8x32xf32>
    %801 = arith.addf %799, %800 : vector<8x32xf32>
    %802 = math.tanh %801 : vector<8x32xf32>
    %803 = arith.mulf %798, %802 : vector<8x32xf32>
    %804 = vector.broadcast %719 : i32 to vector<8x1xi32>
    %805 = arith.cmpi sgt, %10, %804 : vector<8x1xi32>
    %806 = arith.extui %805 : vector<8x1xi1> to vector<8x1xi32>
    %807 = arith.sitofp %806 : vector<8x1xi32> to vector<8x1xf32>
    %808 = arith.subf %803, %710 : vector<8x32xf32>
    %809 = vector.broadcast %807 : vector<8x1xf32> to vector<8x32xf32>
    %810 = arith.mulf %809, %808 : vector<8x32xf32>
    %811 = arith.addf %710, %810 : vector<8x32xf32>
    %812 = arith.subf %801, %714 : vector<8x32xf32>
    %813 = vector.broadcast %807 : vector<8x1xf32> to vector<8x32xf32>
    %814 = arith.mulf %813, %812 : vector<8x32xf32>
    %815 = arith.addf %714, %814 : vector<8x32xf32>
    %816 = arith.index_cast %719 : i32 to index
    %c0_246 = arith.constant 0 : index
    %c0_247 = arith.constant 0 : index
    %817 = vector.load %arg13[%816, %c0_246, %c0_247] : memref<8x8x32xf32, #tpu.memory_space<vmem>>, vector<1x8x32xf32>
    %818 = vector.shape_cast %817 : vector<1x8x32xf32> to vector<8x32xf32>
    %819 = vector.shape_cast %811 : vector<8x32xf32> to vector<1x8x32xf32>
    tpu.vector_store %arg13[%816, %c0_246, %c0_247], %819 {strides = array<i32>} : memref<8x8x32xf32, #tpu.memory_space<vmem>>, vector<1x8x32xf32>,
    %c8_i32 = arith.constant 8 : i32
    %c0_248 = arith.constant 0 : index
    %c0_249 = arith.constant 0 : index
    %c0_250 = arith.constant 0 : index
    %820 = vector.load %arg12[%c0_248, %c0_249, %c0_250] : memref<8x8x32xf32, #tpu.memory_space<vmem>>, vector<8x8x32xf32>
    %c0_251 = arith.constant 0 : index
    %c0_252 = arith.constant 0 : index
    %c0_253 = arith.constant 0 : index
    %821 = vector.load %arg13[%c0_251, %c0_252, %c0_253] : memref<8x8x32xf32, #tpu.memory_space<vmem>>, vector<8x8x32xf32>
    %822 = arith.addf %820, %821 : vector<8x8x32xf32>
    %823 = tpu.transpose %822, [1, 0, 2] : vector<8x8x32xf32> -> vector<8x8x32xf32>
    %824 = arith.truncf %823 : vector<8x8x32xf32> to vector<8x8x32xbf16>
    %c0_254 = arith.constant 0 : index
    %c0_255 = arith.constant 0 : index
    %825 = vector.load %arg7[%c0_254, %c0_255] : memref<32x96xbf16, #tpu.memory_space<vmem>>, vector<32x96xbf16>
    "tpu.trace_start"() <{level = 10 : i32, message = "blh,hg->blg"}> : () -> ()
    %cst_256 = arith.constant dense<0.000000e+00> : vector<8x8x96xf32>
    %826 = tpu.matmul %824, %825, %cst_256 {dimension_numbers = #tpu.dot_dimension_numbers<[2], [0], [0, 1], [1], [0, 0, 0, 1, 1, 1], [], []>} : vector<8x8x32xbf16>, vector<32x96xbf16>, vector<8x8x96xf32> -> vector<8x8x96xf32>
    "tpu.trace_stop"() : () -> ()
    %827 = vector.extract_strided_slice %826 {offsets = [0, 0, 0], sizes = [8, 8, 32], strides = [1, 1, 1]} : vector<8x8x96xf32> to vector<8x8x32xf32>
    %828 = arith.truncf %827 : vector<8x8x32xf32> to vector<8x8x32xbf16>
    %829 = vector.extract_strided_slice %826 {offsets = [0, 0, 32], sizes = [8, 8, 32], strides = [1, 1, 1]} : vector<8x8x96xf32> to vector<8x8x32xf32>
    %830 = arith.truncf %829 : vector<8x8x32xf32> to vector<8x8x32xbf16>
    %831 = vector.extract_strided_slice %826 {offsets = [0, 0, 64], sizes = [8, 8, 32], strides = [1, 1, 1]} : vector<8x8x96xf32> to vector<8x8x32xf32>
    %832 = arith.truncf %831 : vector<8x8x32xf32> to vector<8x8x32xbf16>
    %833 = tpu.iota {dimensions = array<i32: 2>} : vector<8x1x8xi32>
    %834 = vector.shape_cast %10 : vector<8x1xi32> to vector<8x1x1xi32>
    %835 = vector.broadcast %834 : vector<8x1x1xi32> to vector<8x1x8xi32>
    %836 = arith.cmpi slt, %833, %835 : vector<8x1x8xi32>
    %cst_257 = arith.constant 0.000000e+00 : f32
    %cst_258 = arith.constant -1.000000e+09 : f32
    %837 = vector.broadcast %cst_257 : f32 to vector<8x1x8xf32>
    %838 = vector.broadcast %cst_258 : f32 to vector<8x1x8xf32>
    %839 = arith.select %836, %837, %838 : vector<8x1x8xi1>, vector<8x1x8xf32>
    "tpu.trace_start"() <{level = 10 : i32, message = "bqh,bkh->bqk"}> : () -> ()
    %cst_259 = arith.constant dense<0.000000e+00> : vector<8x8x8xf32>
    %840 = tpu.matmul %828, %830, %cst_259 {dimension_numbers = #tpu.dot_dimension_numbers<[2], [2], [1], [1], [0, 0, 0, 1, 1, 1], [0], [0]>} : vector<8x8x32xbf16>, vector<8x8x32xbf16>, vector<8x8x8xf32> -> vector<8x8x8xf32>
    "tpu.trace_stop"() : () -> ()
    %841 = vector.broadcast %839 : vector<8x1x8xf32> to vector<8x8x8xf32>
    %842 = arith.addf %840, %841 : vector<8x8x8xf32>
    %cst_260 = arith.constant dense<0xFF800000> : vector<8x8xf32>
    %843 = vector.multi_reduction <maximumf>, %842, %cst_260 [2] : vector<8x8x8xf32> to vector<8x8xf32>
    %844 = vector.shape_cast %843 : vector<8x8xf32> to vector<8x8x1xf32>
    %845 = vector.broadcast %844 : vector<8x8x1xf32> to vector<8x8x8xf32>
    %846 = arith.subf %842, %845 : vector<8x8x8xf32>
    %847 = math.exp %846 : vector<8x8x8xf32>
    %cst_261 = arith.constant dense<0.000000e+00> : vector<8x8xf32>
    %848 = vector.multi_reduction <add>, %847, %cst_261 [2] : vector<8x8x8xf32> to vector<8x8xf32>
    %849 = vector.shape_cast %848 : vector<8x8xf32> to vector<8x8x1xf32>
    %850 = tpu.reciprocal %849 {approx = true} : vector<8x8x1xf32> -> vector<8x8x1xf32>
    %851 = vector.broadcast %850 : vector<8x8x1xf32> to vector<8x8x8xf32>
    %852 = arith.mulf %847, %851 : vector<8x8x8xf32>
    %cst_262 = arith.constant dense<0.000000e+00> : vector<8x8xf32>
    %853 = vector.multi_reduction <add>, %852, %cst_262 [1] : vector<8x8x8xf32> to vector<8x8xf32>
    %854 = vector.shape_cast %853 : vector<8x8xf32> to vector<8x1x8xf32>
    %855 = arith.truncf %854 : vector<8x1x8xf32> to vector<8x1x8xbf16>
    "tpu.trace_start"() <{level = 10 : i32, message = "bqk,bkh->bqh"}> : () -> ()
    %cst_263 = arith.constant dense<0.000000e+00> : vector<8x1x32xf32>
    %856 = tpu.matmul %855, %832, %cst_263 {dimension_numbers = #tpu.dot_dimension_numbers<[2], [1], [1], [2], [0, 0, 0, 1, 1, 2], [0], [0]>} : vector<8x1x8xbf16>, vector<8x8x32xbf16>, vector<8x1x32xf32> -> vector<8x1x32xf32>
    "tpu.trace_stop"() : () -> ()
    %857 = vector.shape_cast %856 : vector<8x1x32xf32> to vector<8x32xf32>
    %858 = arith.truncf %857 : vector<8x32xf32> to vector<8x32xbf16>
    %c0_264 = arith.constant 0 : index
    %c0_265 = arith.constant 0 : index
    %859 = vector.load %arg8[%c0_264, %c0_265] : memref<32x4xbf16, #tpu.memory_space<vmem>>, vector<32x4xbf16>
    %cst_266 = arith.constant dense<0.000000e+00> : vector<8x4xf32>
    %860 = tpu.matmul %858, %859, %cst_266 {dimension_numbers = #tpu.dot_dimension_numbers<[1], [0], [0], [1], [0, 0, 1, 1], [], []>} : vector<8x32xbf16>, vector<32x4xbf16>, vector<8x4xf32> -> vector<8x4xf32>
    %c0_267 = arith.constant 0 : index
    %c0_268 = arith.constant 0 : index
    %861 = vector.load %arg9[%c0_267, %c0_268] : memref<1x4xf32, #tpu.memory_space<vmem>>, vector<1x4xf32>
    %862 = vector.broadcast %861 : vector<1x4xf32> to vector<8x4xf32>
    %863 = arith.addf %860, %862 : vector<8x4xf32>
    %c0_269 = arith.constant 0 : index
    %c0_270 = arith.constant 0 : index
    %864 = vector.load %arg10[%c0_269, %c0_270] : memref<8x4xf32, #tpu.memory_space<vmem>>, vector<8x4xf32>
    tpu.vector_store %arg10[%c0_269, %c0_270], %863 {strides = array<i32>} : memref<8x4xf32, #tpu.memory_space<vmem>>, vector<8x4xf32>,
    return
  }
  func.func @transform_0(%arg0: i32) -> (i32, i32, i32) {
    %c0_i32 = arith.constant 0 : i32
    %c0_i32_0 = arith.constant 0 : i32
    %c0_i32_1 = arith.constant 0 : i32
    return %c0_i32, %arg0, %c0_i32_0 : i32, i32, i32
  }
  func.func @transform_1(%arg0: i32) -> (i32, i32) {
    %c0_i32 = arith.constant 0 : i32
    %c0_i32_0 = arith.constant 0 : i32
    return %arg0, %c0_i32 : i32, i32
  }
  func.func @transform_2(%arg0: i32) -> (i32, i32) {
    %c0_i32 = arith.constant 0 : i32
    %c0_i32_0 = arith.constant 0 : i32
    %c0_i32_1 = arith.constant 0 : i32
    return %c0_i32, %c0_i32_0 : i32, i32
  }
  func.func @transform_3(%arg0: i32) -> (i32, i32) {
    %c0_i32 = arith.constant 0 : i32
    %c0_i32_0 = arith.constant 0 : i32
    %c0_i32_1 = arith.constant 0 : i32
    return %c0_i32, %c0_i32_0 : i32, i32
  }
  func.func @transform_4(%arg0: i32) -> (i32, i32) {
    %c0_i32 = arith.constant 0 : i32
    %c0_i32_0 = arith.constant 0 : i32
    %c0_i32_1 = arith.constant 0 : i32
    return %c0_i32, %c0_i32_0 : i32, i32
  }
  func.func @transform_5(%arg0: i32) -> (i32, i32) {
    %c0_i32 = arith.constant 0 : i32
    %c0_i32_0 = arith.constant 0 : i32
    %c0_i32_1 = arith.constant 0 : i32
    return %c0_i32, %c0_i32_0 : i32, i32
  }
  func.func @transform_6(%arg0: i32) -> (i32, i32) {
    %c0_i32 = arith.constant 0 : i32
    %c0_i32_0 = arith.constant 0 : i32
    %c0_i32_1 = arith.constant 0 : i32
    return %c0_i32, %c0_i32_0 : i32, i32
  }
  func.func @transform_7(%arg0: i32) -> (i32, i32) {
    %c0_i32 = arith.constant 0 : i32
    %c0_i32_0 = arith.constant 0 : i32
    %c0_i32_1 = arith.constant 0 : i32
    return %c0_i32, %c0_i32_0 : i32, i32
  }
  func.func @transform_8(%arg0: i32) -> (i32, i32) {
    %c0_i32 = arith.constant 0 : i32
    %c0_i32_0 = arith.constant 0 : i32
    %c0_i32_1 = arith.constant 0 : i32
    return %c0_i32, %c0_i32_0 : i32, i32
  }
  func.func @transform_9(%arg0: i32) -> (i32, i32) {
    %c0_i32 = arith.constant 0 : i32
    %c0_i32_0 = arith.constant 0 : i32
    return %arg0, %c0_i32 : i32, i32
  }
}

</mosaic_0001>

<llo_original>
// kernel: tpu_custom_call.1
$region0: #{tpu_custom_call.1}
  #allocation0 [shape = 'u32[]', space=smem, size = 0x4, offset = 0x4, fixed_abs, tag = 'smem constant byte address 0x4 - core index']
  #allocation1 [shape = 'u32[144,128]{1,0:T(1,128)}', space=vmem, size = 0x12000, scoped, tag = 'internal scratch']
  #allocation2 [shape = 'f32[8,8,256]{2,1,0:T(8,128)}', space=vmem, size = 0x10000, scoped, tag = 'scratch operand']
  #allocation3 [shape = 'f32[8,8,32]{2,1,0:T(8,128)}', space=vmem, size = 0x8000, scoped, tag = 'scratch operand']
  #allocation4 [shape = 'f32[8,8,32]{2,1,0:T(8,128)}', space=vmem, size = 0x8000, scoped, tag = 'scratch operand']
  %s0 = inlined_call_operand.hbm [shape: bf16[8,8,16], index: 0, kind: input, shape index: {}]
  %s1 = inlined_call_operand.vmem [shape: s32[8,1], index: 1, kind: input, shape index: {}]
  %s2 = inlined_call_operand.hbm [shape: bf16[16,256], index: 2, kind: input, shape index: {}]
  %s3 = inlined_call_operand.vmem [shape: f32[1,256], index: 3, kind: input, shape index: {}]
  %s4 = inlined_call_operand.vmem [shape: f32[32,128], index: 4, kind: input, shape index: {}]
  %s5 = inlined_call_operand.hbm [shape: f32[32,128], index: 5, kind: input, shape index: {}]
  %s6 = inlined_call_operand.hbm [shape: bf16[32,96], index: 6, kind: input, shape index: {}]
  %s7 = inlined_call_operand.vmem [shape: bf16[32,4], index: 7, kind: input, shape index: {}]
  %s8 = inlined_call_operand.vmem [shape: f32[1,4], index: 8, kind: input, shape index: {}]
  %s9 = inlined_call_operand.vmem [shape: f32[8,4], index: 9, kind: output, shape index: {}]
  %s10 = sld [smem:[#allocation0]]
  $region62: #{tpu_custom_call.1} parent=0
    _
  %s12 = ssub.s32 1, %s10
  %s13 = scalar_select 0, %s12, %s10
  $region1: #{tpu_custom_call.1} parent=0
    #allocation5 [shape = 'u8[16384]{0}', space=vmem, size = 0x4000, scoped, tag = 'input window, operand 0, single buffered']
    #allocation6 [shape = 's32[1]{0}', space=sflag, size = 0x4, scoped, tag = 'scoped memory for tpu_custom_call.1']
    #allocation7 [shape = 'u8[8192]{0}', space=vmem, size = 0x2000, scoped, tag = 'input window, operand 2, single buffered']
    #allocation8 [shape = 's32[1]{0}', space=sflag, size = 0x4, scoped, tag = 'scoped memory for tpu_custom_call.1']
    #allocation9 [shape = 'u8[16384]{0}', space=vmem, size = 0x4000, scoped, tag = 'input window, operand 5, single buffered']
    #allocation10 [shape = 'u8[8192]{0}', space=vmem, size = 0x2000, scoped, tag = 'input window, operand 6, single buffered']
    #allocation11 [shape = 's32[1]{0}', space=sflag, size = 0x4, scoped, tag = 'scoped memory for tpu_custom_call.1']
    %14 = vsyncpa [#allocation6], 0
    %15 = vsyncpa [#allocation8], 0
    %16 = vsyncpa [#allocation11], 0
    // Predicated region
    $region2: #{tpu_custom_call.1} parent=1 // pred_check
      _
    $region3: #{tpu_custom_call.1} parent=1 // pred_check_branch
      %18 = sbr.rel (0) target = $region5
    $region4: #{tpu_custom_call.1} parent=1 // pred_region
      %s20 = ssub.s32 512, 512
      %21 = vsyncadd [#allocation6], %s20
      %s22 = sshll.u32 [#allocation5], 4
      %s23 = int_to_ptr.vmem [resolvable:$true] %s22
      %28 = dma.hbm_to_vmem [thread:$0]  %s0, 512, %s23, [#allocation6], 64, 64, 4
    $region5: #{tpu_custom_call.1} parent=1 // pred_fallthru
      _
    // Predicated region
    $region6: #{tpu_custom_call.1} parent=1 // pred_check
      _
    $region7: #{tpu_custom_call.1} parent=1 // pred_check_branch
      %30 = sbr.rel (0) target = $region9
    $region8: #{tpu_custom_call.1} parent=1 // pred_region
      _
    $region9: #{tpu_custom_call.1} parent=1 // pred_fallthru
      _
    // Predicated region
    $region10: #{tpu_custom_call.1} parent=1 // pred_check
      _
    $region11: #{tpu_custom_call.1} parent=1 // pred_check_branch
      %32 = sbr.rel (0) target = $region13
    $region12: #{tpu_custom_call.1} parent=1 // pred_region
      %s34 = ssub.s32 256, 256
      %35 = vsyncadd [#allocation8], %s34
      %s36 = sshll.u32 [#allocation7], 4
      %s37 = int_to_ptr.vmem [resolvable:$true] %s36
      %42 = dma.hbm_to_vmem [thread:$0]  %s2, 256, %s37, [#allocation8], 128, 128, 8
    $region13: #{tpu_custom_call.1} parent=1 // pred_fallthru
      _
    // Predicated region
    $region14: #{tpu_custom_call.1} parent=1 // pred_check
      _
    $region15: #{tpu_custom_call.1} parent=1 // pred_check_branch
      %44 = sbr.rel (0) target = $region17
    $region16: #{tpu_custom_call.1} parent=1 // pred_region
      _
    $region17: #{tpu_custom_call.1} parent=1 // pred_fallthru
      _
    // Predicated region
    $region18: #{tpu_custom_call.1} parent=1 // pred_check
      _
    $region19: #{tpu_custom_call.1} parent=1 // pred_check_branch
      %46 = sbr.rel (0) target = $region21
    $region20: #{tpu_custom_call.1} parent=1 // pred_region
      _
    $region21: #{tpu_custom_call.1} parent=1 // pred_fallthru
      _
    // Predicated region
    $region22: #{tpu_custom_call.1} parent=1 // pred_check
      _
    $region23: #{tpu_custom_call.1} parent=1 // pred_check_branch
      %48 = sbr.rel (0) target = $region25
    $region24: #{tpu_custom_call.1} parent=1 // pred_region
      %s50 = ssub.s32 512, 512
      %51 = vsyncadd [#allocation8], %s50
      %s52 = sshll.u32 [#allocation9], 4
      %s53 = int_to_ptr.vmem [resolvable:$true] %s52
      %58 = dma.hbm_to_vmem [thread:$0]  %s5, 512, %s53, [#allocation8], 128, 128, 8
    $region25: #{tpu_custom_call.1} parent=1 // pred_fallthru
      _
    // Predicated region
    $region26: #{tpu_custom_call.1} parent=1 // pred_check
      _
    $region27: #{tpu_custom_call.1} parent=1 // pred_check_branch
      %60 = sbr.rel (0) target = $region29
    $region28: #{tpu_custom_call.1} parent=1 // pred_region
      %s62 = ssub.s32 256, 256
      %63 = vsyncadd [#allocation11], %s62
      %s64 = sshll.u32 [#allocation10], 4
      %s65 = int_to_ptr.vmem [resolvable:$true] %s64
      %70 = dma.hbm_to_vmem [thread:$0]  %s6, 256, %s65, [#allocation11], 64, 64, 4
    $region29: #{tpu_custom_call.1} parent=1 // pred_fallthru
      _
    // Predicated region
    $region30: #{tpu_custom_call.1} parent=1 // pred_check
      _
    $region31: #{tpu_custom_call.1} parent=1 // pred_check_branch
      %72 = sbr.rel (0) target = $region33
    $region32: #{tpu_custom_call.1} parent=1 // pred_region
      _
    $region33: #{tpu_custom_call.1} parent=1 // pred_fallthru
      _
    // Predicated region
    $region34: #{tpu_custom_call.1} parent=1 // pred_check
      _
    $region35: #{tpu_custom_call.1} parent=1 // pred_check_branch
      %74 = sbr.rel (0) target = $region37
    $region36: #{tpu_custom_call.1} parent=1 // pred_region
      _
    $region37: #{tpu_custom_call.1} parent=1 // pred_fallthru
      _
    // Predicated region
    $region38: #{tpu_custom_call.1} parent=1 // pred_check
      _
    $region39: #{tpu_custom_call.1} parent=1 // pred_check_branch
      %76 = sbr.rel (0) target = $region41
    $region40: #{tpu_custom_call.1} parent=1 // pred_region
      %77 = dma.done [#allocation6], 512
    $region41: #{tpu_custom_call.1} parent=1 // pred_fallthru
      _
    // Predicated region
    $region42: #{tpu_custom_call.1} parent=1 // pred_check
      _
    $region43: #{tpu_custom_call.1} parent=1 // pred_check_branch
      %79 = sbr.rel (0) target = $region45
    $region44: #{tpu_custom_call.1} parent=1 // pred_region
      %80 = dma.done [#allocation8], 256
    $region45: #{tpu_custom_call.1} parent=1 // pred_fallthru
      _
    // Predicated region
    $region46: #{tpu_custom_call.1} parent=1 // pred_check
      _
    $region47: #{tpu_custom_call.1} parent=1 // pred_check_branch
      %82 = sbr.rel (0) target = $region49
    $region48: #{tpu_custom_call.1} parent=1 // pred_region
      %83 = dma.done [#allocation8], 512
    $region49: #{tpu_custom_call.1} parent=1 // pred_fallthru
      _
    // Predicated region
    $region50: #{tpu_custom_call.1} parent=1 // pred_check
      _
    $region51: #{tpu_custom_call.1} parent=1 // pred_check_branch
      %85 = sbr.rel (0) target = $region53
    $region52: #{tpu_custom_call.1} parent=1 // pred_region
      %86 = dma.done [#allocation11], 256
    $region53: #{tpu_custom_call.1} parent=1 // pred_fallthru
      _
    %v88 = vld [vmem:[#allocation5] sm:$0xf]
    %v89 = vld [vmem:[#allocation5 + $0x4] sm:$0xf]
    %v90 = vld [vmem:[#allocation5 + $0x8] sm:$0xf]
    %v91 = vld [vmem:[#allocation5 + $0xc] sm:$0xf]
    %v92 = vld [vmem:[#allocation5 + $0x10] sm:$0xf]
    %v93 = vld [vmem:[#allocation5 + $0x14] sm:$0xf]
    %v94 = vld [vmem:[#allocation5 + $0x18] sm:$0xf]
    %v95 = vld [vmem:[#allocation5 + $0x1c] sm:$0xf]
    %v96 = vld [vmem:[#allocation7] sm:$0xff]
    %v97 = vld [vmem:[#allocation7 + $0x8] sm:$0xff]
    %v98 = vld [vmem:[%s3] sm:$0x3]
    %v100 = vlaneseq
    %v101 = vshrl.u32 %v100, 7
    %v102 = vsub.s32 0, %v101
    %v103 = vrot.slane %v98, %v102
    %v104 = vlaneseq
    %v105 = vshrl.u32 %v104, 7
    %v106 = vsub.s32 1, %v105
    %v107 = vrot.slane %v98, %v106
    %v118 = vunpack.c.l.b16 %v88
    %v119 = vunpack.c.l.b16 %v89
    %v120 = vunpack.c.l.b16 %v90
    %v121 = vunpack.c.l.b16 %v91
    %v122 = vunpack.c.l.b16 %v92
    %v123 = vunpack.c.l.b16 %v93
    %v124 = vunpack.c.l.b16 %v94
    %v125 = vunpack.c.l.b16 %v95
    %v126 = vpack.c.b16 %v119, %v118
    %v127 = vpack.c.b16 %v121, %v120
    %v128 = vpack.c.b16 %v123, %v122
    %v129 = vpack.c.b16 %v125, %v124
    %v132 = vunpack.c.l.b16 %v96
    %v133 = vunpack.c.h.b16 %v96
    %v134 = vunpack.c.l.b16 %v97
    %v135 = vunpack.c.h.b16 %v97
    %v136 = vpack.c.b16 %v134, %v132
    %v137 = vpack.c.b16 %v135, %v133
    %vm140 = vcmask 130048
    %v142 = vsel %vm140, %v126, 0
    %v145 = vsel %vm140, %v127, 0
    %v148 = vsel %vm140, %v128, 0
    %v151 = vsel %vm140, %v129, 0
    %153 = vmatprep.subr.bf16.mxu0 0
    %154 = vmatpush1.bf16.msra.mxu0 0
    %155 = vmatprep.subr.bf16.mxu0 0
    %156 = vmatpush1.bf16.msra.mxu0 0
    %157 = vmatprep.subr.bf16.mxu0 0
    %158 = vmatpush1.bf16.msra.mxu0 0
    %159 = vmatprep.subr.bf16.mxu0 0
    %160 = vmatpush1.bf16.msra.mxu0 0
    %161 = vmatprep.subr.bf16.mxu0 0
    %162 = vmatpush1.bf16.msra.mxu0 0
    %163 = vmatprep.subr.bf16.mxu0 0
    %164 = vmatpush1.bf16.msra.mxu0 0
    %165 = vmatprep.subr.bf16.mxu0 0
    %166 = vmatpush1.bf16.msra.mxu0 0
    %167 = vmatprep.subr.bf16.mxu0 %v137
    %168 = vmatpush1.bf16.msra.mxu0 %v136
    %169 = vmatprep.subr.bf16.mxu0 0
    %170 = vmatpush2.bf16.msra.mxu0 0
    %171 = vmatprep.subr.bf16.mxu0 0
    %172 = vmatpush2.bf16.msra.mxu0 0
    %173 = vmatprep.subr.bf16.mxu0 0
    %174 = vmatpush2.bf16.msra.mxu0 0
    %175 = vmatprep.subr.bf16.mxu0 0
    %176 = vmatpush2.bf16.msra.mxu0 0
    %177 = vmatprep.subr.bf16.mxu0 0
    %178 = vmatpush2.bf16.msra.mxu0 0
    %179 = vmatprep.subr.bf16.mxu0 0
    %180 = vmatpush2.bf16.msra.mxu0 0
    %181 = vmatprep.subr.bf16.mxu0 0
    %182 = vmatpush2.bf16.msra.mxu0 0
    %183 = vmatprep.subr.bf16.mxu0 0
    %184 = vmatpush2.bf16.msra.mxu0 0
    %185 = vmatprep.mubr.bf16.mxu0 0
    %186 = vmatmul.mubr.bf16.gmra.mxu0 %v142
    %v187 = vpop.f32.mrf.mxu0
    %v188 = vadd.f32 %v103, %v187
    %v189 = vpop.f32.mrf.mxu0
    %v190 = vadd.f32 %v107, %v189
    %v191 = vpop.f32.mrf.mxu0
    %v192 = vadd.f32 %v103, %v191
    %v193 = vpop.f32.mrf.mxu0
    %v194 = vadd.f32 %v107, %v193
    %195 = vmatprep.mubr.bf16.mxu0 0
    %196 = vmatmul.mubr.bf16.gmra.mxu0 %v145
    %v197 = vpop.f32.mrf.mxu0
    %v198 = vadd.f32 %v103, %v197
    %v199 = vpop.f32.mrf.mxu0
    %v200 = vadd.f32 %v107, %v199
    %v201 = vpop.f32.mrf.mxu0
    %v202 = vadd.f32 %v103, %v201
    %v203 = vpop.f32.mrf.mxu0
    %v204 = vadd.f32 %v107, %v203
    %205 = vmatprep.mubr.bf16.mxu0 0
    %206 = vmatmul.mubr.bf16.gmra.mxu0 %v148
    %v207 = vpop.f32.mrf.mxu0
    %v208 = vadd.f32 %v103, %v207
    %v209 = vpop.f32.mrf.mxu0
    %v210 = vadd.f32 %v107, %v209
    %v211 = vpop.f32.mrf.mxu0
    %v212 = vadd.f32 %v103, %v211
    %v213 = vpop.f32.mrf.mxu0
    %v214 = vadd.f32 %v107, %v213
    %215 = vmatprep.mubr.bf16.mxu0 0
    %216 = vmatmul.mubr.bf16.gmra.mxu0 %v151
    %v217 = vpop.f32.mrf.mxu0
    %v218 = vadd.f32 %v103, %v217
    %v219 = vpop.f32.mrf.mxu0
    %v220 = vadd.f32 %v107, %v219
    %v221 = vpop.f32.mrf.mxu0
    %v222 = vadd.f32 %v103, %v221
    %v223 = vpop.f32.mrf.mxu0
    %v224 = vadd.f32 %v107, %v223
    %225 = vdwg.mxu0
    %226 = vst [vmem:[#allocation2] sm:$0xff] %v188
    %227 = vst [vmem:[#allocation2 + $0x8] sm:$0xff] %v190
    %228 = vst [vmem:[#allocation2 + $0x10] sm:$0xff] %v192
    %229 = vst [vmem:[#allocation2 + $0x18] sm:$0xff] %v194
    %230 = vst [vmem:[#allocation2 + $0x20] sm:$0xff] %v198
    %231 = vst [vmem:[#allocation2 + $0x28] sm:$0xff] %v200
    %232 = vst [vmem:[#allocation2 + $0x30] sm:$0xff] %v202
    %233 = vst [vmem:[#allocation2 + $0x38] sm:$0xff] %v204
    %234 = vst [vmem:[#allocation2 + $0x40] sm:$0xff] %v208
    %235 = vst [vmem:[#allocation2 + $0x48] sm:$0xff] %v210
    %236 = vst [vmem:[#allocation2 + $0x50] sm:$0xff] %v212
    %237 = vst [vmem:[#allocation2 + $0x58] sm:$0xff] %v214
    %238 = vst [vmem:[#allocation2 + $0x60] sm:$0xff] %v218
    %239 = vst [vmem:[#allocation2 + $0x68] sm:$0xff] %v220
    %240 = vst [vmem:[#allocation2 + $0x70] sm:$0xff] %v222
    %241 = vst [vmem:[#allocation2 + $0x78] sm:$0xff] %v224
    %v242 = vld [vmem:[%s4] sm:$0xff]
    %v243 = vld [vmem:[%s4 + $0x8] sm:$0xff]
    %v244 = vld [vmem:[%s4 + $0x10] sm:$0xff]
    %v245 = vld [vmem:[%s4 + $0x18] sm:$0xff]
    %v246 = vld [vmem:[#allocation9] sm:$0xff]
    %v247 = vld [vmem:[#allocation9 + $0x8] sm:$0xff]
    %v248 = vld [vmem:[#allocation9 + $0x10] sm:$0xff]
    %v249 = vld [vmem:[#allocation9 + $0x18] sm:$0xff]
    %v250 = vld [vmem:[%s1] sm:$0xff]
    %v251 = vld [vmem:[#allocation2] sm:$0xff]
    %s252 = scalar_lea.vmem [#allocation2], 112
    %v253 = vld [vmem:[%s252 + $0x8] sm:$0xff]
    %vm254 = vcmask 261120
    %v256 = vsel %vm254, 0.0, 0
    %258 = vmatprep.subr.mxu0 0.0
    %259 = vmatpush1.msra.mxu0 0.0
    %260 = vmatprep.subr.mxu0 0.0
    %261 = vmatpush1.msra.mxu0 0.0
    %262 = vmatprep.subr.mxu0 0.0
    %263 = vmatpush1.msra.mxu0 0.0
    %264 = vmatprep.subr.mxu0 0.0
    %265 = vmatpush1.msra.mxu0 0.0
    %266 = vmatprep.subr.mxu0 0.0
    %267 = vmatpush1.msra.mxu0 0.0
    %268 = vmatprep.subr.mxu0 0.0
    %269 = vmatpush1.msra.mxu0 0.0
    %270 = vmatprep.subr.mxu0 0.0
    %271 = vmatpush1.msra.mxu0 0.0
    %272 = vmatprep.subr.mxu0 0.0
    %273 = vmatpush1.msra.mxu0 0.0
    %274 = vmatprep.subr.mxu0 0.0
    %275 = vmatpush1.msra.mxu0 0.0
    %276 = vmatprep.subr.mxu0 0.0
    %277 = vmatpush1.msra.mxu0 0.0
    %278 = vmatprep.subr.mxu0 0.0
    %279 = vmatpush1.msra.mxu0 0.0
    %280 = vmatprep.subr.mxu0 0.0
    %281 = vmatpush1.msra.mxu0 0.0
    %282 = vmatprep.subr.mxu0 0.0
    %283 = vmatpush1.msra.mxu0 %v245
    %284 = vmatprep.subr.mxu0 0.0
    %285 = vmatpush1.msra.mxu0 %v244
    %286 = vmatprep.subr.mxu0 0.0
    %287 = vmatpush1.msra.mxu0 %v243
    %288 = vmatprep.subr.mxu0 0.0
    %289 = vmatpush1.msra.mxu0 %v242
    %290 = vmatprep.subr.mxu0 0.0
    %291 = vmatpush2.msra.mxu0 0.0
    %292 = vmatprep.subr.mxu0 0.0
    %293 = vmatpush2.msra.mxu0 0.0
    %294 = vmatprep.subr.mxu0 0.0
    %295 = vmatpush2.msra.mxu0 0.0
    %296 = vmatprep.subr.mxu0 0.0
    %297 = vmatpush2.msra.mxu0 0.0
    %298 = vmatprep.subr.mxu0 0.0
    %299 = vmatpush2.msra.mxu0 0.0
    %300 = vmatprep.subr.mxu0 0.0
    %301 = vmatpush2.msra.mxu0 0.0
    %302 = vmatprep.subr.mxu0 0.0
    %303 = vmatpush2.msra.mxu0 0.0
    %304 = vmatprep.subr.mxu0 0.0
    %305 = vmatpush2.msra.mxu0 0.0
    %306 = vmatprep.subr.mxu0 0.0
    %307 = vmatpush2.msra.mxu0 0.0
    %308 = vmatprep.subr.mxu0 0.0
    %309 = vmatpush2.msra.mxu0 0.0
    %310 = vmatprep.subr.mxu0 0.0
    %311 = vmatpush2.msra.mxu0 0.0
    %312 = vmatprep.subr.mxu0 0.0
    %313 = vmatpush2.msra.mxu0 0.0
    %314 = vmatprep.subr.mxu0 0.0
    %315 = vmatpush2.msra.mxu0 0.0
    %316 = vmatprep.subr.mxu0 0.0
    %317 = vmatpush2.msra.mxu0 0.0
    %318 = vmatprep.subr.mxu0 0.0
    %319 = vmatpush2.msra.mxu0 0.0
    %320 = vmatprep.subr.mxu0 0.0
    %321 = vmatpush2.msra.mxu0 0.0
    %322 = vmatprep.mubr.f32.mxu0 0.0
    %323 = vmatmul.mubr.f32.gmra.mxu0 %v256
    %v324 = vpop.f32.mrf.mxu0
    %v325 = vadd.f32 0.0, %v324
    %v326 = vpop.f32.mrf.mxu0
    %327 = vdwg.mxu0
    %v328 = vadd.f32 %v251, %v325
    %v329 = vmul.f32 %v328, 0.5
    %v330 = vtanh.pop %v329
    %v331 = vmul.f32 %v330, 0.5
    %v332 = vadd.f32 %v331, 0.5
    %v333 = vtanh.pop %v328
    %v334 = vmul.f32 %v332, 0.0
    %336 = vrot.lane.b32.xlu0 %v333, 64
    %v337 = vpop.permute.xlu0 %336
    %v339 = vmul.f32 %v332, %v337
    %341 = vrot.lane.b32.xlu0 %v339, 32
    %v342 = vpop.permute.xlu0 %341
    %v344 = vadd.f32 %v334, %v342
    %v345 = vtanh.pop %v344
    %347 = vrot.lane.b32.xlu0 %v345, 64
    %v348 = vpop.permute.xlu0 %347
    %v350 = vmul.f32 %v332, %v348
    %vm351 = vcmp.gt.s32.totalorder %v250, 0
    %v352 = vsel %vm351, 1, 0
    %v353 = vcvt.s32.f32 %v352
    %355 = vset.pattern.permute.xlu0 0
    %356 = vperm.xlu0 %355, %v353
    %v357 = vpop.permute.xlu0 %356
    %v359 = vmul.f32 %v350, %v357
    %361 = vrot.lane.b32.xlu0 %v359, 32
    %v362 = vpop.permute.xlu0 %361
    %364 = vst.msk [vmem:[#allocation3] sm:$0xff] %vm254, %v362
    %365 = vmatprep.subr.mxu0 0.0
    %366 = vmatpush1.msra.mxu0 0.0
    %367 = vmatprep.subr.mxu0 0.0
    %368 = vmatpush1.msra.mxu0 0.0
    %369 = vmatprep.subr.mxu0 0.0
    %370 = vmatpush1.msra.mxu0 0.0
    %371 = vmatprep.subr.mxu0 0.0
    %372 = vmatpush1.msra.mxu0 0.0
    %373 = vmatprep.subr.mxu0 0.0
    %374 = vmatpush1.msra.mxu0 0.0
    %375 = vmatprep.subr.mxu0 0.0
    %376 = vmatpush1.msra.mxu0 0.0
    %377 = vmatprep.subr.mxu0 0.0
    %378 = vmatpush1.msra.mxu0 0.0
    %379 = vmatprep.subr.mxu0 0.0
    %380 = vmatpush1.msra.mxu0 0.0
    %381 = vmatprep.subr.mxu0 0.0
    %382 = vmatpush1.msra.mxu0 0.0
    %383 = vmatprep.subr.mxu0 0.0
    %384 = vmatpush1.msra.mxu0 0.0
    %385 = vmatprep.subr.mxu0 0.0
    %386 = vmatpush1.msra.mxu0 0.0
    %387 = vmatprep.subr.mxu0 0.0
    %388 = vmatpush1.msra.mxu0 0.0
    %389 = vmatprep.subr.mxu0 0.0
    %390 = vmatpush1.msra.mxu0 %v249
    %391 = vmatprep.subr.mxu0 0.0
    %392 = vmatpush1.msra.mxu0 %v248
    %393 = vmatprep.subr.mxu0 0.0
    %394 = vmatpush1.msra.mxu0 %v247
    %395 = vmatprep.subr.mxu0 0.0
    %396 = vmatpush1.msra.mxu0 %v246
    %397 = vmatprep.subr.mxu0 0.0
    %398 = vmatpush2.msra.mxu0 0.0
    %399 = vmatprep.subr.mxu0 0.0
    %400 = vmatpush2.msra.mxu0 0.0
    %401 = vmatprep.subr.mxu0 0.0
    %402 = vmatpush2.msra.mxu0 0.0
    %403 = vmatprep.subr.mxu0 0.0
    %404 = vmatpush2.msra.mxu0 0.0
    %405 = vmatprep.subr.mxu0 0.0
    %406 = vmatpush2.msra.mxu0 0.0
    %407 = vmatprep.subr.mxu0 0.0
    %408 = vmatpush2.msra.mxu0 0.0
    %409 = vmatprep.subr.mxu0 0.0
    %410 = vmatpush2.msra.mxu0 0.0
    %411 = vmatprep.subr.mxu0 0.0
    %412 = vmatpush2.msra.mxu0 0.0
    %413 = vmatprep.subr.mxu0 0.0
    %414 = vmatpush2.msra.mxu0 0.0
    %415 = vmatprep.subr.mxu0 0.0
    %416 = vmatpush2.msra.mxu0 0.0
    %417 = vmatprep.subr.mxu0 0.0
    %418 = vmatpush2.msra.mxu0 0.0
    %419 = vmatprep.subr.mxu0 0.0
    %420 = vmatpush2.msra.mxu0 0.0
    %421 = vmatprep.subr.mxu0 0.0
    %422 = vmatpush2.msra.mxu0 0.0
    %423 = vmatprep.subr.mxu0 0.0
    %424 = vmatpush2.msra.mxu0 0.0
    %425 = vmatprep.subr.mxu0 0.0
    %426 = vmatpush2.msra.mxu0 0.0
    %427 = vmatprep.subr.mxu0 0.0
    %428 = vmatpush2.msra.mxu0 0.0
    %429 = vmatprep.mubr.f32.mxu0 0.0
    %430 = vmatmul.mubr.f32.gmra.mxu0 %v256
    %v431 = vpop.f32.mrf.mxu0
    %v432 = vadd.f32 0.0, %v431
    %v433 = vpop.f32.mrf.mxu0
    %434 = vdwg.mxu0
    %v435 = vadd.f32 %v253, %v432
    %v436 = vmul.f32 %v435, 0.5
    %v437 = vtanh.pop %v436
    %v438 = vmul.f32 %v437, 0.5
    %v439 = vadd.f32 %v438, 0.5
    %v440 = vtanh.pop %v435
    %v441 = vmul.f32 %v439, 0.0
    %443 = vrot.lane.b32.xlu0 %v440, 64
    %v444 = vpop.permute.xlu0 %443
    %v446 = vmul.f32 %v439, %v444
    %448 = vrot.lane.b32.xlu0 %v446, 32
    %v449 = vpop.permute.xlu0 %448
    %v451 = vadd.f32 %v441, %v449
    %v452 = vtanh.pop %v451
    %454 = vrot.lane.b32.xlu0 %v452, 64
    %v455 = vpop.permute.xlu0 %454
    %v457 = vmul.f32 %v439, %v455
    %vm458 = vcmp.gt.s32.totalorder %v250, 7
    %v459 = vsel %vm458, 1, 0
    %v460 = vcvt.s32.f32 %v459
    %462 = vset.pattern.permute.xlu0 0
    %463 = vperm.xlu0 %462, %v460
    %v464 = vpop.permute.xlu0 %463
    %v466 = vmul.f32 %v464, %v457
    %v467 = vadd.f32 %v466, 0.0
    %v468 = vmul.f32 %v464, %v451
    %v469 = vadd.f32 %v468, 0.0
    %471 = vrot.lane.b32.xlu0 %v467, 32
    %v472 = vpop.permute.xlu0 %471
    %s474 = scalar_lea.vmem [#allocation4], 56
    %475 = vst.msk [vmem:[%s474] sm:$0xff] %vm254, %v472
    %s476 = scalar_lea.vmem [#allocation2], 16
    %v477 = vld [vmem:[%s476] sm:$0xff]
    %s478 = scalar_lea.vmem [#allocation2], 96
    %v479 = vld [vmem:[%s478 + $0x8] sm:$0xff]
    %481 = vrot.lane.b32.xlu0 %v350, 32
    %v482 = vpop.permute.xlu0 %481
    %v483 = vsel %vm254, %v482, 0
    %485 = vmatprep.subr.mxu0 0.0
    %486 = vmatpush1.msra.mxu0 0.0
    %487 = vmatprep.subr.mxu0 0.0
    %488 = vmatpush1.msra.mxu0 0.0
    %489 = vmatprep.subr.mxu0 0.0
    %490 = vmatpush1.msra.mxu0 0.0
    %491 = vmatprep.subr.mxu0 0.0
    %492 = vmatpush1.msra.mxu0 0.0
    %493 = vmatprep.subr.mxu0 0.0
    %494 = vmatpush1.msra.mxu0 0.0
    %495 = vmatprep.subr.mxu0 0.0
    %496 = vmatpush1.msra.mxu0 0.0
    %497 = vmatprep.subr.mxu0 0.0
    %498 = vmatpush1.msra.mxu0 0.0
    %499 = vmatprep.subr.mxu0 0.0
    %500 = vmatpush1.msra.mxu0 0.0
    %501 = vmatprep.subr.mxu0 0.0
    %502 = vmatpush1.msra.mxu0 0.0
    %503 = vmatprep.subr.mxu0 0.0
    %504 = vmatpush1.msra.mxu0 0.0
    %505 = vmatprep.subr.mxu0 0.0
    %506 = vmatpush1.msra.mxu0 0.0
    %507 = vmatprep.subr.mxu0 0.0
    %508 = vmatpush1.msra.mxu0 0.0
    %509 = vmatprep.subr.mxu0 0.0
    %510 = vmatpush1.msra.mxu0 %v245
    %511 = vmatprep.subr.mxu0 0.0
    %512 = vmatpush1.msra.mxu0 %v244
    %513 = vmatprep.subr.mxu0 0.0
    %514 = vmatpush1.msra.mxu0 %v243
    %515 = vmatprep.subr.mxu0 0.0
    %516 = vmatpush1.msra.mxu0 %v242
    %517 = vmatprep.subr.mxu0 0.0
    %518 = vmatpush2.msra.mxu0 0.0
    %519 = vmatprep.subr.mxu0 0.0
    %520 = vmatpush2.msra.mxu0 0.0
    %521 = vmatprep.subr.mxu0 0.0
    %522 = vmatpush2.msra.mxu0 0.0
    %523 = vmatprep.subr.mxu0 0.0
    %524 = vmatpush2.msra.mxu0 0.0
    %525 = vmatprep.subr.mxu0 0.0
    %526 = vmatpush2.msra.mxu0 0.0
    %527 = vmatprep.subr.mxu0 0.0
    %528 = vmatpush2.msra.mxu0 0.0
    %529 = vmatprep.subr.mxu0 0.0
    %530 = vmatpush2.msra.mxu0 0.0
    %531 = vmatprep.subr.mxu0 0.0
    %532 = vmatpush2.msra.mxu0 0.0
    %533 = vmatprep.subr.mxu0 0.0
    %534 = vmatpush2.msra.mxu0 0.0
    %535 = vmatprep.subr.mxu0 0.0
    %536 = vmatpush2.msra.mxu0 0.0
    %537 = vmatprep.subr.mxu0 0.0
    %538 = vmatpush2.msra.mxu0 0.0
    %539 = vmatprep.subr.mxu0 0.0
    %540 = vmatpush2.msra.mxu0 0.0
    %541 = vmatprep.subr.mxu0 0.0
    %542 = vmatpush2.msra.mxu0 0.0
    %543 = vmatprep.subr.mxu0 0.0
    %544 = vmatpush2.msra.mxu0 0.0
    %545 = vmatprep.subr.mxu0 0.0
    %546 = vmatpush2.msra.mxu0 0.0
    %547 = vmatprep.subr.mxu0 0.0
    %548 = vmatpush2.msra.mxu0 0.0
    %549 = vmatprep.mubr.f32.mxu0 0.0
    %550 = vmatmul.mubr.f32.gmra.mxu0 %v483
    %v551 = vpop.f32.mrf.mxu0
    %v552 = vadd.f32 0.0, %v551
    %v553 = vpop.f32.mrf.mxu0
    %554 = vdwg.mxu0
    %v555 = vadd.f32 %v477, %v552
    %v556 = vmul.f32 %v555, 0.5
    %v557 = vtanh.pop %v556
    %v558 = vmul.f32 %v557, 0.5
    %v559 = vadd.f32 %v558, 0.5
    %v560 = vtanh.pop %v555
    %v561 = vmul.f32 %v559, %v344
    %563 = vrot.lane.b32.xlu0 %v560, 64
    %v564 = vpop.permute.xlu0 %563
    %v566 = vmul.f32 %v559, %v564
    %568 = vrot.lane.b32.xlu0 %v566, 32
    %v569 = vpop.permute.xlu0 %568
    %v571 = vadd.f32 %v561, %v569
    %v572 = vtanh.pop %v571
    %574 = vrot.lane.b32.xlu0 %v572, 64
    %v575 = vpop.permute.xlu0 %574
    %v577 = vmul.f32 %v559, %v575
    %vm578 = vcmp.gt.s32.totalorder %v250, 1
    %v579 = vsel %vm578, 1, 0
    %v580 = vcvt.s32.f32 %v579
    %582 = vset.pattern.permute.xlu0 0
    %583 = vperm.xlu0 %582, %v580
    %v584 = vpop.permute.xlu0 %583
    %v586 = vmul.f32 %v577, %v584
    %588 = vrot.lane.b32.xlu0 %v586, 32
    %v589 = vpop.permute.xlu0 %588
    %s591 = scalar_lea.vmem [#allocation3], 8
    %592 = vst.msk [vmem:[%s591] sm:$0xff] %vm254, %v589
    %v593 = vsel %vm254, %v472, 0
    %595 = vmatprep.subr.mxu0 0.0
    %596 = vmatpush1.msra.mxu0 0.0
    %597 = vmatprep.subr.mxu0 0.0
    %598 = vmatpush1.msra.mxu0 0.0
    %599 = vmatprep.subr.mxu0 0.0
    %600 = vmatpush1.msra.mxu0 0.0
    %601 = vmatprep.subr.mxu0 0.0
    %602 = vmatpush1.msra.mxu0 0.0
    %603 = vmatprep.subr.mxu0 0.0
    %604 = vmatpush1.msra.mxu0 0.0
    %605 = vmatprep.subr.mxu0 0.0
    %606 = vmatpush1.msra.mxu0 0.0
    %607 = vmatprep.subr.mxu0 0.0
    %608 = vmatpush1.msra.mxu0 0.0
    %609 = vmatprep.subr.mxu0 0.0
    %610 = vmatpush1.msra.mxu0 0.0
    %611 = vmatprep.subr.mxu0 0.0
    %612 = vmatpush1.msra.mxu0 0.0
    %613 = vmatprep.subr.mxu0 0.0
    %614 = vmatpush1.msra.mxu0 0.0
    %615 = vmatprep.subr.mxu0 0.0
    %616 = vmatpush1.msra.mxu0 0.0
    %617 = vmatprep.subr.mxu0 0.0
    %618 = vmatpush1.msra.mxu0 0.0
    %619 = vmatprep.subr.mxu0 0.0
    %620 = vmatpush1.msra.mxu0 %v249
    %621 = vmatprep.subr.mxu0 0.0
    %622 = vmatpush1.msra.mxu0 %v248
    %623 = vmatprep.subr.mxu0 0.0
    %624 = vmatpush1.msra.mxu0 %v247
    %625 = vmatprep.subr.mxu0 0.0
    %626 = vmatpush1.msra.mxu0 %v246
    %627 = vmatprep.subr.mxu0 0.0
    %628 = vmatpush2.msra.mxu0 0.0
    %629 = vmatprep.subr.mxu0 0.0
    %630 = vmatpush2.msra.mxu0 0.0
    %631 = vmatprep.subr.mxu0 0.0
    %632 = vmatpush2.msra.mxu0 0.0
    %633 = vmatprep.subr.mxu0 0.0
    %634 = vmatpush2.msra.mxu0 0.0
    %635 = vmatprep.subr.mxu0 0.0
    %636 = vmatpush2.msra.mxu0 0.0
    %637 = vmatprep.subr.mxu0 0.0
    %638 = vmatpush2.msra.mxu0 0.0
    %639 = vmatprep.subr.mxu0 0.0
    %640 = vmatpush2.msra.mxu0 0.0
    %641 = vmatprep.subr.mxu0 0.0
    %642 = vmatpush2.msra.mxu0 0.0
    %643 = vmatprep.subr.mxu0 0.0
    %644 = vmatpush2.msra.mxu0 0.0
    %645 = vmatprep.subr.mxu0 0.0
    %646 = vmatpush2.msra.mxu0 0.0
    %647 = vmatprep.subr.mxu0 0.0
    %648 = vmatpush2.msra.mxu0 0.0
    %649 = vmatprep.subr.mxu0 0.0
    %650 = vmatpush2.msra.mxu0 0.0
    %651 = vmatprep.subr.mxu0 0.0
    %652 = vmatpush2.msra.mxu0 0.0
    %653 = vmatprep.subr.mxu0 0.0
    %654 = vmatpush2.msra.mxu0 0.0
    %655 = vmatprep.subr.mxu0 0.0
    %656 = vmatpush2.msra.mxu0 0.0
    %657 = vmatprep.subr.mxu0 0.0
    %658 = vmatpush2.msra.mxu0 0.0
    %659 = vmatprep.mubr.f32.mxu0 0.0
    %660 = vmatmul.mubr.f32.gmra.mxu0 %v593
    %v661 = vpop.f32.mrf.mxu0
    %v662 = vadd.f32 0.0, %v661
    %v663 = vpop.f32.mrf.mxu0
    %664 = vdwg.mxu0
    %v665 = vadd.f32 %v479, %v662
    %v666 = vmul.f32 %v665, 0.5
    %v667 = vtanh.pop %v666
    %v668 = vmul.f32 %v667, 0.5
    %v669 = vadd.f32 %v668, 0.5
    %v670 = vtanh.pop %v665
    %v671 = vmul.f32 %v669, %v469
    %673 = vrot.lane.b32.xlu0 %v670, 64
    %v674 = vpop.permute.xlu0 %673
    %v676 = vmul.f32 %v669, %v674
    %678 = vrot.lane.b32.xlu0 %v676, 32
    %v679 = vpop.permute.xlu0 %678
    %v681 = vadd.f32 %v671, %v679
    %v682 = vtanh.pop %v681
    %684 = vrot.lane.b32.xlu0 %v682, 64
    %v685 = vpop.permute.xlu0 %684
    %v687 = vmul.f32 %v669, %v685
    %vm688 = vcmp.gt.s32.totalorder %v250, 6
    %v689 = vsel %vm688, 1, 0
    %v690 = vcvt.s32.f32 %v689
    %v691 = vsub.f32 %v687, %v467
    %693 = vset.pattern.permute.xlu0 0
    %694 = vperm.xlu0 %693, %v690
    %v695 = vpop.permute.xlu0 %694
    %v697 = vmul.f32 %v695, %v691
    %v698 = vadd.f32 %v467, %v697
    %v699 = vsub.f32 %v681, %v469
    %v700 = vmul.f32 %v695, %v699
    %v701 = vadd.f32 %v469, %v700
    %703 = vrot.lane.b32.xlu0 %v698, 32
    %v704 = vpop.permute.xlu0 %703
    %s706 = scalar_lea.vmem [#allocation4], 48
    %707 = vst.msk [vmem:[%s706] sm:$0xff] %vm254, %v704
    %s708 = scalar_lea.vmem [#allocation2], 32
    %v709 = vld [vmem:[%s708] sm:$0xff]
    %s710 = scalar_lea.vmem [#allocation2], 80
    %v711 = vld [vmem:[%s710 + $0x8] sm:$0xff]
    %713 = vrot.lane.b32.xlu0 %v577, 32
    %v714 = vpop.permute.xlu0 %713
    %v715 = vsel %vm254, %v714, 0
    %717 = vmatprep.subr.mxu0 0.0
    %718 = vmatpush1.msra.mxu0 0.0
    %719 = vmatprep.subr.mxu0 0.0
    %720 = vmatpush1.msra.mxu0 0.0
    %721 = vmatprep.subr.mxu0 0.0
    %722 = vmatpush1.msra.mxu0 0.0
    %723 = vmatprep.subr.mxu0 0.0
    %724 = vmatpush1.msra.mxu0 0.0
    %725 = vmatprep.subr.mxu0 0.0
    %726 = vmatpush1.msra.mxu0 0.0
    %727 = vmatprep.subr.mxu0 0.0
    %728 = vmatpush1.msra.mxu0 0.0
    %729 = vmatprep.subr.mxu0 0.0
    %730 = vmatpush1.msra.mxu0 0.0
    %731 = vmatprep.subr.mxu0 0.0
    %732 = vmatpush1.msra.mxu0 0.0
    %733 = vmatprep.subr.mxu0 0.0
    %734 = vmatpush1.msra.mxu0 0.0
    %735 = vmatprep.subr.mxu0 0.0
    %736 = vmatpush1.msra.mxu0 0.0
    %737 = vmatprep.subr.mxu0 0.0
    %738 = vmatpush1.msra.mxu0 0.0
    %739 = vmatprep.subr.mxu0 0.0
    %740 = vmatpush1.msra.mxu0 0.0
    %741 = vmatprep.subr.mxu0 0.0
    %742 = vmatpush1.msra.mxu0 %v245
    %743 = vmatprep.subr.mxu0 0.0
    %744 = vmatpush1.msra.mxu0 %v244
    %745 = vmatprep.subr.mxu0 0.0
    %746 = vmatpush1.msra.mxu0 %v243
    %747 = vmatprep.subr.mxu0 0.0
    %748 = vmatpush1.msra.mxu0 %v242
    %749 = vmatprep.subr.mxu0 0.0
    %750 = vmatpush2.msra.mxu0 0.0
    %751 = vmatprep.subr.mxu0 0.0
    %752 = vmatpush2.msra.mxu0 0.0
    %753 = vmatprep.subr.mxu0 0.0
    %754 = vmatpush2.msra.mxu0 0.0
    %755 = vmatprep.subr.mxu0 0.0
    %756 = vmatpush2.msra.mxu0 0.0
    %757 = vmatprep.subr.mxu0 0.0
    %758 = vmatpush2.msra.mxu0 0.0
    %759 = vmatprep.subr.mxu0 0.0
    %760 = vmatpush2.msra.mxu0 0.0
    %761 = vmatprep.subr.mxu0 0.0
    %762 = vmatpush2.msra.mxu0 0.0
    %763 = vmatprep.subr.mxu0 0.0
    %764 = vmatpush2.msra.mxu0 0.0
    %765 = vmatprep.subr.mxu0 0.0
    %766 = vmatpush2.msra.mxu0 0.0
    %767 = vmatprep.subr.mxu0 0.0
    %768 = vmatpush2.msra.mxu0 0.0
    %769 = vmatprep.subr.mxu0 0.0
    %770 = vmatpush2.msra.mxu0 0.0
    %771 = vmatprep.subr.mxu0 0.0
    %772 = vmatpush2.msra.mxu0 0.0
    %773 = vmatprep.subr.mxu0 0.0
    %774 = vmatpush2.msra.mxu0 0.0
    %775 = vmatprep.subr.mxu0 0.0
    %776 = vmatpush2.msra.mxu0 0.0
    %777 = vmatprep.subr.mxu0 0.0
    %778 = vmatpush2.msra.mxu0 0.0
    %779 = vmatprep.subr.mxu0 0.0
    %780 = vmatpush2.msra.mxu0 0.0
    %781 = vmatprep.mubr.f32.mxu0 0.0
    %782 = vmatmul.mubr.f32.gmra.mxu0 %v715
    %v783 = vpop.f32.mrf.mxu0
    %v784 = vadd.f32 0.0, %v783
    %v785 = vpop.f32.mrf.mxu0
    %786 = vdwg.mxu0
    %v787 = vadd.f32 %v709, %v784
    %v788 = vmul.f32 %v787, 0.5
    %v789 = vtanh.pop %v788
    %v790 = vmul.f32 %v789, 0.5
    %v791 = vadd.f32 %v790, 0.5
    %v792 = vtanh.pop %v787
    %v793 = vmul.f32 %v791, %v571
    %795 = vrot.lane.b32.xlu0 %v792, 64
    %v796 = vpop.permute.xlu0 %795
    %v798 = vmul.f32 %v791, %v796
    %800 = vrot.lane.b32.xlu0 %v798, 32
    %v801 = vpop.permute.xlu0 %800
    %v803 = vadd.f32 %v793, %v801
    %v804 = vtanh.pop %v803
    %806 = vrot.lane.b32.xlu0 %v804, 64
    %v807 = vpop.permute.xlu0 %806
    %v809 = vmul.f32 %v791, %v807
    %vm810 = vcmp.gt.s32.totalorder %v250, 2
    %v811 = vsel %vm810, 1, 0
    %v812 = vcvt.s32.f32 %v811
    %814 = vset.pattern.permute.xlu0 0
    %815 = vperm.xlu0 %814, %v812
    %v816 = vpop.permute.xlu0 %815
    %v818 = vmul.f32 %v809, %v816
    %820 = vrot.lane.b32.xlu0 %v818, 32
    %v821 = vpop.permute.xlu0 %820
    %s823 = scalar_lea.vmem [#allocation3], 16
    %824 = vst.msk [vmem:[%s823] sm:$0xff] %vm254, %v821
    %v825 = vsel %vm254, %v704, 0
    %827 = vmatprep.subr.mxu0 0.0
    %828 = vmatpush1.msra.mxu0 0.0
    %829 = vmatprep.subr.mxu0 0.0
    %830 = vmatpush1.msra.mxu0 0.0
    %831 = vmatprep.subr.mxu0 0.0
    %832 = vmatpush1.msra.mxu0 0.0
    %833 = vmatprep.subr.mxu0 0.0
    %834 = vmatpush1.msra.mxu0 0.0
    %835 = vmatprep.subr.mxu0 0.0
    %836 = vmatpush1.msra.mxu0 0.0
    %837 = vmatprep.subr.mxu0 0.0
    %838 = vmatpush1.msra.mxu0 0.0
    %839 = vmatprep.subr.mxu0 0.0
    %840 = vmatpush1.msra.mxu0 0.0
    %841 = vmatprep.subr.mxu0 0.0
    %842 = vmatpush1.msra.mxu0 0.0
    %843 = vmatprep.subr.mxu0 0.0
    %844 = vmatpush1.msra.mxu0 0.0
    %845 = vmatprep.subr.mxu0 0.0
    %846 = vmatpush1.msra.mxu0 0.0
    %847 = vmatprep.subr.mxu0 0.0
    %848 = vmatpush1.msra.mxu0 0.0
    %849 = vmatprep.subr.mxu0 0.0
    %850 = vmatpush1.msra.mxu0 0.0
    %851 = vmatprep.subr.mxu0 0.0
    %852 = vmatpush1.msra.mxu0 %v249
    %853 = vmatprep.subr.mxu0 0.0
    %854 = vmatpush1.msra.mxu0 %v248
    %855 = vmatprep.subr.mxu0 0.0
    %856 = vmatpush1.msra.mxu0 %v247
    %857 = vmatprep.subr.mxu0 0.0
    %858 = vmatpush1.msra.mxu0 %v246
    %859 = vmatprep.subr.mxu0 0.0
    %860 = vmatpush2.msra.mxu0 0.0
    %861 = vmatprep.subr.mxu0 0.0
    %862 = vmatpush2.msra.mxu0 0.0
    %863 = vmatprep.subr.mxu0 0.0
    %864 = vmatpush2.msra.mxu0 0.0
    %865 = vmatprep.subr.mxu0 0.0
    %866 = vmatpush2.msra.mxu0 0.0
    %867 = vmatprep.subr.mxu0 0.0
    %868 = vmatpush2.msra.mxu0 0.0
    %869 = vmatprep.subr.mxu0 0.0
    %870 = vmatpush2.msra.mxu0 0.0
    %871 = vmatprep.subr.mxu0 0.0
    %872 = vmatpush2.msra.mxu0 0.0
    %873 = vmatprep.subr.mxu0 0.0
    %874 = vmatpush2.msra.mxu0 0.0
    %875 = vmatprep.subr.mxu0 0.0
    %876 = vmatpush2.msra.mxu0 0.0
    %877 = vmatprep.subr.mxu0 0.0
    %878 = vmatpush2.msra.mxu0 0.0
    %879 = vmatprep.subr.mxu0 0.0
    %880 = vmatpush2.msra.mxu0 0.0
    %881 = vmatprep.subr.mxu0 0.0
    %882 = vmatpush2.msra.mxu0 0.0
    %883 = vmatprep.subr.mxu0 0.0
    %884 = vmatpush2.msra.mxu0 0.0
    %885 = vmatprep.subr.mxu0 0.0
    %886 = vmatpush2.msra.mxu0 0.0
    %887 = vmatprep.subr.mxu0 0.0
    %888 = vmatpush2.msra.mxu0 0.0
    %889 = vmatprep.subr.mxu0 0.0
    %890 = vmatpush2.msra.mxu0 0.0
    %891 = vmatprep.mubr.f32.mxu0 0.0
    %892 = vmatmul.mubr.f32.gmra.mxu0 %v825
    %v893 = vpop.f32.mrf.mxu0
    %v894 = vadd.f32 0.0, %v893
    %v895 = vpop.f32.mrf.mxu0
    %896 = vdwg.mxu0
    %v897 = vadd.f32 %v711, %v894
    %v898 = vmul.f32 %v897, 0.5
    %v899 = vtanh.pop %v898
    %v900 = vmul.f32 %v899, 0.5
    %v901 = vadd.f32 %v900, 0.5
    %v902 = vtanh.pop %v897
    %v903 = vmul.f32 %v901, %v701
    %905 = vrot.lane.b32.xlu0 %v902, 64
    %v906 = vpop.permute.xlu0 %905
    %v908 = vmul.f32 %v901, %v906
    %910 = vrot.lane.b32.xlu0 %v908, 32
    %v911 = vpop.permute.xlu0 %910
    %v913 = vadd.f32 %v903, %v911
    %v914 = vtanh.pop %v913
    %916 = vrot.lane.b32.xlu0 %v914, 64
    %v917 = vpop.permute.xlu0 %916
    %v919 = vmul.f32 %v901, %v917
    %vm920 = vcmp.gt.s32.totalorder %v250, 5
    %v921 = vsel %vm920, 1, 0
    %v922 = vcvt.s32.f32 %v921
    %v923 = vsub.f32 %v919, %v698
    %925 = vset.pattern.permute.xlu0 0
    %926 = vperm.xlu0 %925, %v922
    %v927 = vpop.permute.xlu0 %926
    %v929 = vmul.f32 %v927, %v923
    %v930 = vadd.f32 %v698, %v929
    %v931 = vsub.f32 %v913, %v701
    %v932 = vmul.f32 %v927, %v931
    %v933 = vadd.f32 %v701, %v932
    %935 = vrot.lane.b32.xlu0 %v930, 32
    %v936 = vpop.permute.xlu0 %935
    %s938 = scalar_lea.vmem [#allocation4], 40
    %939 = vst.msk [vmem:[%s938] sm:$0xff] %vm254, %v936
    %s940 = scalar_lea.vmem [#allocation2], 48
    %v941 = vld [vmem:[%s940] sm:$0xff]
    %s942 = scalar_lea.vmem [#allocation2], 64
    %v943 = vld [vmem:[%s942 + $0x8] sm:$0xff]
    %945 = vrot.lane.b32.xlu0 %v809, 32
    %v946 = vpop.permute.xlu0 %945
    %v947 = vsel %vm254, %v946, 0
    %949 = vmatprep.subr.mxu0 0.0
    %950 = vmatpush1.msra.mxu0 0.0
    %951 = vmatprep.subr.mxu0 0.0
    %952 = vmatpush1.msra.mxu0 0.0
    %953 = vmatprep.subr.mxu0 0.0
    %954 = vmatpush1.msra.mxu0 0.0
    %955 = vmatprep.subr.mxu0 0.0
    %956 = vmatpush1.msra.mxu0 0.0
    %957 = vmatprep.subr.mxu0 0.0
    %958 = vmatpush1.msra.mxu0 0.0
    %959 = vmatprep.subr.mxu0 0.0
    %960 = vmatpush1.msra.mxu0 0.0
    %961 = vmatprep.subr.mxu0 0.0
    %962 = vmatpush1.msra.mxu0 0.0
    %963 = vmatprep.subr.mxu0 0.0
    %964 = vmatpush1.msra.mxu0 0.0
    %965 = vmatprep.subr.mxu0 0.0
    %966 = vmatpush1.msra.mxu0 0.0
    %967 = vmatprep.subr.mxu0 0.0
    %968 = vmatpush1.msra.mxu0 0.0
    %969 = vmatprep.subr.mxu0 0.0
    %970 = vmatpush1.msra.mxu0 0.0
    %971 = vmatprep.subr.mxu0 0.0
    %972 = vmatpush1.msra.mxu0 0.0
    %973 = vmatprep.subr.mxu0 0.0
    %974 = vmatpush1.msra.mxu0 %v245
    %975 = vmatprep.subr.mxu0 0.0
    %976 = vmatpush1.msra.mxu0 %v244
    %977 = vmatprep.subr.mxu0 0.0
    %978 = vmatpush1.msra.mxu0 %v243
    %979 = vmatprep.subr.mxu0 0.0
    %980 = vmatpush1.msra.mxu0 %v242
    %981 = vmatprep.subr.mxu0 0.0
    %982 = vmatpush2.msra.mxu0 0.0
    %983 = vmatprep.subr.mxu0 0.0
    %984 = vmatpush2.msra.mxu0 0.0
    %985 = vmatprep.subr.mxu0 0.0
    %986 = vmatpush2.msra.mxu0 0.0
    %987 = vmatprep.subr.mxu0 0.0
    %988 = vmatpush2.msra.mxu0 0.0
    %989 = vmatprep.subr.mxu0 0.0
    %990 = vmatpush2.msra.mxu0 0.0
    %991 = vmatprep.subr.mxu0 0.0
    %992 = vmatpush2.msra.mxu0 0.0
    %993 = vmatprep.subr.mxu0 0.0
    %994 = vmatpush2.msra.mxu0 0.0
    %995 = vmatprep.subr.mxu0 0.0
    %996 = vmatpush2.msra.mxu0 0.0
    %997 = vmatprep.subr.mxu0 0.0
    %998 = vmatpush2.msra.mxu0 0.0
    %999 = vmatprep.subr.mxu0 0.0
    %1000 = vmatpush2.msra.mxu0 0.0
    %1001 = vmatprep.subr.mxu0 0.0
    %1002 = vmatpush2.msra.mxu0 0.0
    %1003 = vmatprep.subr.mxu0 0.0
    %1004 = vmatpush2.msra.mxu0 0.0
    %1005 = vmatprep.subr.mxu0 0.0
    %1006 = vmatpush2.msra.mxu0 0.0
    %1007 = vmatprep.subr.mxu0 0.0
    %1008 = vmatpush2.msra.mxu0 0.0
    %1009 = vmatprep.subr.mxu0 0.0
    %1010 = vmatpush2.msra.mxu0 0.0
    %1011 = vmatprep.subr.mxu0 0.0
    %1012 = vmatpush2.msra.mxu0 0.0
    %1013 = vmatprep.mubr.f32.mxu0 0.0
    %1014 = vmatmul.mubr.f32.gmra.mxu0 %v947
    %v1015 = vpop.f32.mrf.mxu0
    %v1016 = vadd.f32 0.0, %v1015
    %v1017 = vpop.f32.mrf.mxu0
    %1018 = vdwg.mxu0
    %v1019 = vadd.f32 %v941, %v1016
    %v1020 = vmul.f32 %v1019, 0.5
    %v1021 = vtanh.pop %v1020
    %v1022 = vmul.f32 %v1021, 0.5
    %v1023 = vadd.f32 %v1022, 0.5
    %v1024 = vtanh.pop %v1019
    %v1025 = vmul.f32 %v1023, %v803
    %1027 = vrot.lane.b32.xlu0 %v1024, 64
    %v1028 = vpop.permute.xlu0 %1027
    %v1030 = vmul.f32 %v1023, %v1028
    %1032 = vrot.lane.b32.xlu0 %v1030, 32
    %v1033 = vpop.permute.xlu0 %1032
    %v1035 = vadd.f32 %v1025, %v1033
    %v1036 = vtanh.pop %v1035
    %1038 = vrot.lane.b32.xlu0 %v1036, 64
    %v1039 = vpop.permute.xlu0 %1038
    %v1041 = vmul.f32 %v1023, %v1039
    %vm1042 = vcmp.gt.s32.totalorder %v250, 3
    %v1043 = vsel %vm1042, 1, 0
    %v1044 = vcvt.s32.f32 %v1043
    %1046 = vset.pattern.permute.xlu0 0
    %1047 = vperm.xlu0 %1046, %v1044
    %v1048 = vpop.permute.xlu0 %1047
    %v1050 = vmul.f32 %v1041, %v1048
    %1052 = vrot.lane.b32.xlu0 %v1050, 32
    %v1053 = vpop.permute.xlu0 %1052
    %s1055 = scalar_lea.vmem [#allocation3], 24
    %1056 = vst.msk [vmem:[%s1055] sm:$0xff] %vm254, %v1053
    %v1057 = vsel %vm254, %v936, 0
    %1059 = vmatprep.subr.mxu0 0.0
    %1060 = vmatpush1.msra.mxu0 0.0
    %1061 = vmatprep.subr.mxu0 0.0
    %1062 = vmatpush1.msra.mxu0 0.0
    %1063 = vmatprep.subr.mxu0 0.0
    %1064 = vmatpush1.msra.mxu0 0.0
    %1065 = vmatprep.subr.mxu0 0.0
    %1066 = vmatpush1.msra.mxu0 0.0
    %1067 = vmatprep.subr.mxu0 0.0
    %1068 = vmatpush1.msra.mxu0 0.0
    %1069 = vmatprep.subr.mxu0 0.0
    %1070 = vmatpush1.msra.mxu0 0.0
    %1071 = vmatprep.subr.mxu0 0.0
    %1072 = vmatpush1.msra.mxu0 0.0
    %1073 = vmatprep.subr.mxu0 0.0
    %1074 = vmatpush1.msra.mxu0 0.0
    %1075 = vmatprep.subr.mxu0 0.0
    %1076 = vmatpush1.msra.mxu0 0.0
    %1077 = vmatprep.subr.mxu0 0.0
    %1078 = vmatpush1.msra.mxu0 0.0
    %1079 = vmatprep.subr.mxu0 0.0
    %1080 = vmatpush1.msra.mxu0 0.0
    %1081 = vmatprep.subr.mxu0 0.0
    %1082 = vmatpush1.msra.mxu0 0.0
    %1083 = vmatprep.subr.mxu0 0.0
    %1084 = vmatpush1.msra.mxu0 %v249
    %1085 = vmatprep.subr.mxu0 0.0
    %1086 = vmatpush1.msra.mxu0 %v248
    %1087 = vmatprep.subr.mxu0 0.0
    %1088 = vmatpush1.msra.mxu0 %v247
    %1089 = vmatprep.subr.mxu0 0.0
    %1090 = vmatpush1.msra.mxu0 %v246
    %1091 = vmatprep.subr.mxu0 0.0
    %1092 = vmatpush2.msra.mxu0 0.0
    %1093 = vmatprep.subr.mxu0 0.0
    %1094 = vmatpush2.msra.mxu0 0.0
    %1095 = vmatprep.subr.mxu0 0.0
    %1096 = vmatpush2.msra.mxu0 0.0
    %1097 = vmatprep.subr.mxu0 0.0
    %1098 = vmatpush2.msra.mxu0 0.0
    %1099 = vmatprep.subr.mxu0 0.0
    %1100 = vmatpush2.msra.mxu0 0.0
    %1101 = vmatprep.subr.mxu0 0.0
    %1102 = vmatpush2.msra.mxu0 0.0
    %1103 = vmatprep.subr.mxu0 0.0
    %1104 = vmatpush2.msra.mxu0 0.0
    %1105 = vmatprep.subr.mxu0 0.0
    %1106 = vmatpush2.msra.mxu0 0.0
    %1107 = vmatprep.subr.mxu0 0.0
    %1108 = vmatpush2.msra.mxu0 0.0
    %1109 = vmatprep.subr.mxu0 0.0
    %1110 = vmatpush2.msra.mxu0 0.0
    %1111 = vmatprep.subr.mxu0 0.0
    %1112 = vmatpush2.msra.mxu0 0.0
    %1113 = vmatprep.subr.mxu0 0.0
    %1114 = vmatpush2.msra.mxu0 0.0
    %1115 = vmatprep.subr.mxu0 0.0
    %1116 = vmatpush2.msra.mxu0 0.0
    %1117 = vmatprep.subr.mxu0 0.0
    %1118 = vmatpush2.msra.mxu0 0.0
    %1119 = vmatprep.subr.mxu0 0.0
    %1120 = vmatpush2.msra.mxu0 0.0
    %1121 = vmatprep.subr.mxu0 0.0
    %1122 = vmatpush2.msra.mxu0 0.0
    %1123 = vmatprep.mubr.f32.mxu0 0.0
    %1124 = vmatmul.mubr.f32.gmra.mxu0 %v1057
    %v1125 = vpop.f32.mrf.mxu0
    %v1126 = vadd.f32 0.0, %v1125
    %v1127 = vpop.f32.mrf.mxu0
    %1128 = vdwg.mxu0
    %v1129 = vadd.f32 %v943, %v1126
    %v1130 = vmul.f32 %v1129, 0.5
    %v1131 = vtanh.pop %v1130
    %v1132 = vmul.f32 %v1131, 0.5
    %v1133 = vadd.f32 %v1132, 0.5
    %v1134 = vtanh.pop %v1129
    %v1135 = vmul.f32 %v1133, %v933
    %1137 = vrot.lane.b32.xlu0 %v1134, 64
    %v1138 = vpop.permute.xlu0 %1137
    %v1140 = vmul.f32 %v1133, %v1138
    %1142 = vrot.lane.b32.xlu0 %v1140, 32
    %v1143 = vpop.permute.xlu0 %1142
    %v1145 = vadd.f32 %v1135, %v1143
    %v1146 = vtanh.pop %v1145
    %1148 = vrot.lane.b32.xlu0 %v1146, 64
    %v1149 = vpop.permute.xlu0 %1148
    %v1151 = vmul.f32 %v1133, %v1149
    %vm1152 = vcmp.gt.s32.totalorder %v250, 4
    %v1153 = vsel %vm1152, 1, 0
    %v1154 = vcvt.s32.f32 %v1153
    %v1155 = vsub.f32 %v1151, %v930
    %1157 = vset.pattern.permute.xlu0 0
    %1158 = vperm.xlu0 %1157, %v1154
    %v1159 = vpop.permute.xlu0 %1158
    %v1161 = vmul.f32 %v1159, %v1155
    %v1162 = vadd.f32 %v930, %v1161
    %v1163 = vsub.f32 %v1145, %v933
    %v1164 = vmul.f32 %v1159, %v1163
    %v1165 = vadd.f32 %v933, %v1164
    %1167 = vrot.lane.b32.xlu0 %v1162, 32
    %v1168 = vpop.permute.xlu0 %1167
    %s1170 = scalar_lea.vmem [#allocation4], 32
    %1171 = vst.msk [vmem:[%s1170] sm:$0xff] %vm254, %v1168
    %v1172 = vld [vmem:[%s942] sm:$0xff]
    %v1173 = vld [vmem:[%s940 + $0x8] sm:$0xff]
    %1175 = vrot.lane.b32.xlu0 %v1041, 32
    %v1176 = vpop.permute.xlu0 %1175
    %v1177 = vsel %vm254, %v1176, 0
    %1179 = vmatprep.subr.mxu0 0.0
    %1180 = vmatpush1.msra.mxu0 0.0
    %1181 = vmatprep.subr.mxu0 0.0
    %1182 = vmatpush1.msra.mxu0 0.0
    %1183 = vmatprep.subr.mxu0 0.0
    %1184 = vmatpush1.msra.mxu0 0.0
    %1185 = vmatprep.subr.mxu0 0.0
    %1186 = vmatpush1.msra.mxu0 0.0
    %1187 = vmatprep.subr.mxu0 0.0
    %1188 = vmatpush1.msra.mxu0 0.0
    %1189 = vmatprep.subr.mxu0 0.0
    %1190 = vmatpush1.msra.mxu0 0.0
    %1191 = vmatprep.subr.mxu0 0.0
    %1192 = vmatpush1.msra.mxu0 0.0
    %1193 = vmatprep.subr.mxu0 0.0
    %1194 = vmatpush1.msra.mxu0 0.0
    %1195 = vmatprep.subr.mxu0 0.0
    %1196 = vmatpush1.msra.mxu0 0.0
    %1197 = vmatprep.subr.mxu0 0.0
    %1198 = vmatpush1.msra.mxu0 0.0
    %1199 = vmatprep.subr.mxu0 0.0
    %1200 = vmatpush1.msra.mxu0 0.0
    %1201 = vmatprep.subr.mxu0 0.0
    %1202 = vmatpush1.msra.mxu0 0.0
    %1203 = vmatprep.subr.mxu0 0.0
    %1204 = vmatpush1.msra.mxu0 %v245
    %1205 = vmatprep.subr.mxu0 0.0
    %1206 = vmatpush1.msra.mxu0 %v244
    %1207 = vmatprep.subr.mxu0 0.0
    %1208 = vmatpush1.msra.mxu0 %v243
    %1209 = vmatprep.subr.mxu0 0.0
    %1210 = vmatpush1.msra.mxu0 %v242
    %1211 = vmatprep.subr.mxu0 0.0
    %1212 = vmatpush2.msra.mxu0 0.0
    %1213 = vmatprep.subr.mxu0 0.0
    %1214 = vmatpush2.msra.mxu0 0.0
    %1215 = vmatprep.subr.mxu0 0.0
    %1216 = vmatpush2.msra.mxu0 0.0
    %1217 = vmatprep.subr.mxu0 0.0
    %1218 = vmatpush2.msra.mxu0 0.0
    %1219 = vmatprep.subr.mxu0 0.0
    %1220 = vmatpush2.msra.mxu0 0.0
    %1221 = vmatprep.subr.mxu0 0.0
    %1222 = vmatpush2.msra.mxu0 0.0
    %1223 = vmatprep.subr.mxu0 0.0
    %1224 = vmatpush2.msra.mxu0 0.0
    %1225 = vmatprep.subr.mxu0 0.0
    %1226 = vmatpush2.msra.mxu0 0.0
    %1227 = vmatprep.subr.mxu0 0.0
    %1228 = vmatpush2.msra.mxu0 0.0
    %1229 = vmatprep.subr.mxu0 0.0
    %1230 = vmatpush2.msra.mxu0 0.0
    %1231 = vmatprep.subr.mxu0 0.0
    %1232 = vmatpush2.msra.mxu0 0.0
    %1233 = vmatprep.subr.mxu0 0.0
    %1234 = vmatpush2.msra.mxu0 0.0
    %1235 = vmatprep.subr.mxu0 0.0
    %1236 = vmatpush2.msra.mxu0 0.0
    %1237 = vmatprep.subr.mxu0 0.0
    %1238 = vmatpush2.msra.mxu0 0.0
    %1239 = vmatprep.subr.mxu0 0.0
    %1240 = vmatpush2.msra.mxu0 0.0
    %1241 = vmatprep.subr.mxu0 0.0
    %1242 = vmatpush2.msra.mxu0 0.0
    %1243 = vmatprep.mubr.f32.mxu0 0.0
    %1244 = vmatmul.mubr.f32.gmra.mxu0 %v1177
    %v1245 = vpop.f32.mrf.mxu0
    %v1246 = vadd.f32 0.0, %v1245
    %v1247 = vpop.f32.mrf.mxu0
    %1248 = vdwg.mxu0
    %v1249 = vadd.f32 %v1172, %v1246
    %v1250 = vmul.f32 %v1249, 0.5
    %v1251 = vtanh.pop %v1250
    %v1252 = vmul.f32 %v1251, 0.5
    %v1253 = vadd.f32 %v1252, 0.5
    %v1254 = vtanh.pop %v1249
    %v1255 = vmul.f32 %v1253, %v1035
    %1257 = vrot.lane.b32.xlu0 %v1254, 64
    %v1258 = vpop.permute.xlu0 %1257
    %v1260 = vmul.f32 %v1253, %v1258
    %1262 = vrot.lane.b32.xlu0 %v1260, 32
    %v1263 = vpop.permute.xlu0 %1262
    %v1265 = vadd.f32 %v1255, %v1263
    %v1266 = vtanh.pop %v1265
    %1268 = vrot.lane.b32.xlu0 %v1266, 64
    %v1269 = vpop.permute.xlu0 %1268
    %v1271 = vmul.f32 %v1253, %v1269
    %v1272 = vmul.f32 %v1271, %v1159
    %1274 = vrot.lane.b32.xlu0 %v1272, 32
    %v1275 = vpop.permute.xlu0 %1274
    %s1277 = scalar_lea.vmem [#allocation3], 32
    %1278 = vst.msk [vmem:[%s1277] sm:$0xff] %vm254, %v1275
    %v1279 = vsel %vm254, %v1168, 0
    %1281 = vmatprep.subr.mxu0 0.0
    %1282 = vmatpush1.msra.mxu0 0.0
    %1283 = vmatprep.subr.mxu0 0.0
    %1284 = vmatpush1.msra.mxu0 0.0
    %1285 = vmatprep.subr.mxu0 0.0
    %1286 = vmatpush1.msra.mxu0 0.0
    %1287 = vmatprep.subr.mxu0 0.0
    %1288 = vmatpush1.msra.mxu0 0.0
    %1289 = vmatprep.subr.mxu0 0.0
    %1290 = vmatpush1.msra.mxu0 0.0
    %1291 = vmatprep.subr.mxu0 0.0
    %1292 = vmatpush1.msra.mxu0 0.0
    %1293 = vmatprep.subr.mxu0 0.0
    %1294 = vmatpush1.msra.mxu0 0.0
    %1295 = vmatprep.subr.mxu0 0.0
    %1296 = vmatpush1.msra.mxu0 0.0
    %1297 = vmatprep.subr.mxu0 0.0
    %1298 = vmatpush1.msra.mxu0 0.0
    %1299 = vmatprep.subr.mxu0 0.0
    %1300 = vmatpush1.msra.mxu0 0.0
    %1301 = vmatprep.subr.mxu0 0.0
    %1302 = vmatpush1.msra.mxu0 0.0
    %1303 = vmatprep.subr.mxu0 0.0
    %1304 = vmatpush1.msra.mxu0 0.0
    %1305 = vmatprep.subr.mxu0 0.0
    %1306 = vmatpush1.msra.mxu0 %v249
    %1307 = vmatprep.subr.mxu0 0.0
    %1308 = vmatpush1.msra.mxu0 %v248
    %1309 = vmatprep.subr.mxu0 0.0
    %1310 = vmatpush1.msra.mxu0 %v247
    %1311 = vmatprep.subr.mxu0 0.0
    %1312 = vmatpush1.msra.mxu0 %v246
    %1313 = vmatprep.subr.mxu0 0.0
    %1314 = vmatpush2.msra.mxu0 0.0
    %1315 = vmatprep.subr.mxu0 0.0
    %1316 = vmatpush2.msra.mxu0 0.0
    %1317 = vmatprep.subr.mxu0 0.0
    %1318 = vmatpush2.msra.mxu0 0.0
    %1319 = vmatprep.subr.mxu0 0.0
    %1320 = vmatpush2.msra.mxu0 0.0
    %1321 = vmatprep.subr.mxu0 0.0
    %1322 = vmatpush2.msra.mxu0 0.0
    %1323 = vmatprep.subr.mxu0 0.0
    %1324 = vmatpush2.msra.mxu0 0.0
    %1325 = vmatprep.subr.mxu0 0.0
    %1326 = vmatpush2.msra.mxu0 0.0
    %1327 = vmatprep.subr.mxu0 0.0
    %1328 = vmatpush2.msra.mxu0 0.0
    %1329 = vmatprep.subr.mxu0 0.0
    %1330 = vmatpush2.msra.mxu0 0.0
    %1331 = vmatprep.subr.mxu0 0.0
    %1332 = vmatpush2.msra.mxu0 0.0
    %1333 = vmatprep.subr.mxu0 0.0
    %1334 = vmatpush2.msra.mxu0 0.0
    %1335 = vmatprep.subr.mxu0 0.0
    %1336 = vmatpush2.msra.mxu0 0.0
    %1337 = vmatprep.subr.mxu0 0.0
    %1338 = vmatpush2.msra.mxu0 0.0
    %1339 = vmatprep.subr.mxu0 0.0
    %1340 = vmatpush2.msra.mxu0 0.0
    %1341 = vmatprep.subr.mxu0 0.0
    %1342 = vmatpush2.msra.mxu0 0.0
    %1343 = vmatprep.subr.mxu0 0.0
    %1344 = vmatpush2.msra.mxu0 0.0
    %1345 = vmatprep.mubr.f32.mxu0 0.0
    %1346 = vmatmul.mubr.f32.gmra.mxu0 %v1279
    %v1347 = vpop.f32.mrf.mxu0
    %v1348 = vadd.f32 0.0, %v1347
    %v1349 = vpop.f32.mrf.mxu0
    %1350 = vdwg.mxu0
    %v1351 = vadd.f32 %v1173, %v1348
    %v1352 = vmul.f32 %v1351, 0.5
    %v1353 = vtanh.pop %v1352
    %v1354 = vmul.f32 %v1353, 0.5
    %v1355 = vadd.f32 %v1354, 0.5
    %v1356 = vtanh.pop %v1351
    %v1357 = vmul.f32 %v1355, %v1165
    %1359 = vrot.lane.b32.xlu0 %v1356, 64
    %v1360 = vpop.permute.xlu0 %1359
    %v1362 = vmul.f32 %v1355, %v1360
    %1364 = vrot.lane.b32.xlu0 %v1362, 32
    %v1365 = vpop.permute.xlu0 %1364
    %v1367 = vadd.f32 %v1357, %v1365
    %v1368 = vtanh.pop %v1367
    %1370 = vrot.lane.b32.xlu0 %v1368, 64
    %v1371 = vpop.permute.xlu0 %1370
    %v1373 = vmul.f32 %v1355, %v1371
    %v1374 = vsub.f32 %v1373, %v1162
    %v1375 = vmul.f32 %v1048, %v1374
    %v1376 = vadd.f32 %v1162, %v1375
    %v1377 = vsub.f32 %v1367, %v1165
    %v1378 = vmul.f32 %v1048, %v1377
    %v1379 = vadd.f32 %v1165, %v1378
    %1381 = vrot.lane.b32.xlu0 %v1376, 32
    %v1382 = vpop.permute.xlu0 %1381
    %s1384 = scalar_lea.vmem [#allocation4], 24
    %1385 = vst.msk [vmem:[%s1384] sm:$0xff] %vm254, %v1382
    %v1386 = vld [vmem:[%s710] sm:$0xff]
    %v1387 = vld [vmem:[%s708 + $0x8] sm:$0xff]
    %1389 = vrot.lane.b32.xlu0 %v1271, 32
    %v1390 = vpop.permute.xlu0 %1389
    %v1391 = vsel %vm254, %v1390, 0
    %1393 = vmatprep.subr.mxu0 0.0
    %1394 = vmatpush1.msra.mxu0 0.0
    %1395 = vmatprep.subr.mxu0 0.0
    %1396 = vmatpush1.msra.mxu0 0.0
    %1397 = vmatprep.subr.mxu0 0.0
    %1398 = vmatpush1.msra.mxu0 0.0
    %1399 = vmatprep.subr.mxu0 0.0
    %1400 = vmatpush1.msra.mxu0 0.0
    %1401 = vmatprep.subr.mxu0 0.0
    %1402 = vmatpush1.msra.mxu0 0.0
    %1403 = vmatprep.subr.mxu0 0.0
    %1404 = vmatpush1.msra.mxu0 0.0
    %1405 = vmatprep.subr.mxu0 0.0
    %1406 = vmatpush1.msra.mxu0 0.0
    %1407 = vmatprep.subr.mxu0 0.0
    %1408 = vmatpush1.msra.mxu0 0.0
    %1409 = vmatprep.subr.mxu0 0.0
    %1410 = vmatpush1.msra.mxu0 0.0
    %1411 = vmatprep.subr.mxu0 0.0
    %1412 = vmatpush1.msra.mxu0 0.0
    %1413 = vmatprep.subr.mxu0 0.0
    %1414 = vmatpush1.msra.mxu0 0.0
    %1415 = vmatprep.subr.mxu0 0.0
    %1416 = vmatpush1.msra.mxu0 0.0
    %1417 = vmatprep.subr.mxu0 0.0
    %1418 = vmatpush1.msra.mxu0 %v245
    %1419 = vmatprep.subr.mxu0 0.0
    %1420 = vmatpush1.msra.mxu0 %v244
    %1421 = vmatprep.subr.mxu0 0.0
    %1422 = vmatpush1.msra.mxu0 %v243
    %1423 = vmatprep.subr.mxu0 0.0
    %1424 = vmatpush1.msra.mxu0 %v242
    %1425 = vmatprep.subr.mxu0 0.0
    %1426 = vmatpush2.msra.mxu0 0.0
    %1427 = vmatprep.subr.mxu0 0.0
    %1428 = vmatpush2.msra.mxu0 0.0
    %1429 = vmatprep.subr.mxu0 0.0
    %1430 = vmatpush2.msra.mxu0 0.0
    %1431 = vmatprep.subr.mxu0 0.0
    %1432 = vmatpush2.msra.mxu0 0.0
    %1433 = vmatprep.subr.mxu0 0.0
    %1434 = vmatpush2.msra.mxu0 0.0
    %1435 = vmatprep.subr.mxu0 0.0
    %1436 = vmatpush2.msra.mxu0 0.0
    %1437 = vmatprep.subr.mxu0 0.0
    %1438 = vmatpush2.msra.mxu0 0.0
    %1439 = vmatprep.subr.mxu0 0.0
    %1440 = vmatpush2.msra.mxu0 0.0
    %1441 = vmatprep.subr.mxu0 0.0
    %1442 = vmatpush2.msra.mxu0 0.0
    %1443 = vmatprep.subr.mxu0 0.0
    %1444 = vmatpush2.msra.mxu0 0.0
    %1445 = vmatprep.subr.mxu0 0.0
    %1446 = vmatpush2.msra.mxu0 0.0
    %1447 = vmatprep.subr.mxu0 0.0
    %1448 = vmatpush2.msra.mxu0 0.0
    %1449 = vmatprep.subr.mxu0 0.0
    %1450 = vmatpush2.msra.mxu0 0.0
    %1451 = vmatprep.subr.mxu0 0.0
    %1452 = vmatpush2.msra.mxu0 0.0
    %1453 = vmatprep.subr.mxu0 0.0
    %1454 = vmatpush2.msra.mxu0 0.0
    %1455 = vmatprep.subr.mxu0 0.0
    %1456 = vmatpush2.msra.mxu0 0.0
    %1457 = vmatprep.mubr.f32.mxu0 0.0
    %1458 = vmatmul.mubr.f32.gmra.mxu0 %v1391
    %v1459 = vpop.f32.mrf.mxu0
    %v1460 = vadd.f32 0.0, %v1459
    %v1461 = vpop.f32.mrf.mxu0
    %1462 = vdwg.mxu0
    %v1463 = vadd.f32 %v1386, %v1460
    %v1464 = vmul.f32 %v1463, 0.5
    %v1465 = vtanh.pop %v1464
    %v1466 = vmul.f32 %v1465, 0.5
    %v1467 = vadd.f32 %v1466, 0.5
    %v1468 = vtanh.pop %v1463
    %v1469 = vmul.f32 %v1467, %v1265
    %1471 = vrot.lane.b32.xlu0 %v1468, 64
    %v1472 = vpop.permute.xlu0 %1471
    %v1474 = vmul.f32 %v1467, %v1472
    %1476 = vrot.lane.b32.xlu0 %v1474, 32
    %v1477 = vpop.permute.xlu0 %1476
    %v1479 = vadd.f32 %v1469, %v1477
    %v1480 = vtanh.pop %v1479
    %1482 = vrot.lane.b32.xlu0 %v1480, 64
    %v1483 = vpop.permute.xlu0 %1482
    %v1485 = vmul.f32 %v1467, %v1483
    %v1486 = vmul.f32 %v1485, %v927
    %1488 = vrot.lane.b32.xlu0 %v1486, 32
    %v1489 = vpop.permute.xlu0 %1488
    %s1491 = scalar_lea.vmem [#allocation3], 40
    %1492 = vst.msk [vmem:[%s1491] sm:$0xff] %vm254, %v1489
    %v1493 = vsel %vm254, %v1382, 0
    %1495 = vmatprep.subr.mxu0 0.0
    %1496 = vmatpush1.msra.mxu0 0.0
    %1497 = vmatprep.subr.mxu0 0.0
    %1498 = vmatpush1.msra.mxu0 0.0
    %1499 = vmatprep.subr.mxu0 0.0
    %1500 = vmatpush1.msra.mxu0 0.0
    %1501 = vmatprep.subr.mxu0 0.0
    %1502 = vmatpush1.msra.mxu0 0.0
    %1503 = vmatprep.subr.mxu0 0.0
    %1504 = vmatpush1.msra.mxu0 0.0
    %1505 = vmatprep.subr.mxu0 0.0
    %1506 = vmatpush1.msra.mxu0 0.0
    %1507 = vmatprep.subr.mxu0 0.0
    %1508 = vmatpush1.msra.mxu0 0.0
    %1509 = vmatprep.subr.mxu0 0.0
    %1510 = vmatpush1.msra.mxu0 0.0
    %1511 = vmatprep.subr.mxu0 0.0
    %1512 = vmatpush1.msra.mxu0 0.0
    %1513 = vmatprep.subr.mxu0 0.0
    %1514 = vmatpush1.msra.mxu0 0.0
    %1515 = vmatprep.subr.mxu0 0.0
    %1516 = vmatpush1.msra.mxu0 0.0
    %1517 = vmatprep.subr.mxu0 0.0
    %1518 = vmatpush1.msra.mxu0 0.0
    %1519 = vmatprep.subr.mxu0 0.0
    %1520 = vmatpush1.msra.mxu0 %v249
    %1521 = vmatprep.subr.mxu0 0.0
    %1522 = vmatpush1.msra.mxu0 %v248
    %1523 = vmatprep.subr.mxu0 0.0
    %1524 = vmatpush1.msra.mxu0 %v247
    %1525 = vmatprep.subr.mxu0 0.0
    %1526 = vmatpush1.msra.mxu0 %v246
    %1527 = vmatprep.subr.mxu0 0.0
    %1528 = vmatpush2.msra.mxu0 0.0
    %1529 = vmatprep.subr.mxu0 0.0
    %1530 = vmatpush2.msra.mxu0 0.0
    %1531 = vmatprep.subr.mxu0 0.0
    %1532 = vmatpush2.msra.mxu0 0.0
    %1533 = vmatprep.subr.mxu0 0.0
    %1534 = vmatpush2.msra.mxu0 0.0
    %1535 = vmatprep.subr.mxu0 0.0
    %1536 = vmatpush2.msra.mxu0 0.0
    %1537 = vmatprep.subr.mxu0 0.0
    %1538 = vmatpush2.msra.mxu0 0.0
    %1539 = vmatprep.subr.mxu0 0.0
    %1540 = vmatpush2.msra.mxu0 0.0
    %1541 = vmatprep.subr.mxu0 0.0
    %1542 = vmatpush2.msra.mxu0 0.0
    %1543 = vmatprep.subr.mxu0 0.0
    %1544 = vmatpush2.msra.mxu0 0.0
    %1545 = vmatprep.subr.mxu0 0.0
    %1546 = vmatpush2.msra.mxu0 0.0
    %1547 = vmatprep.subr.mxu0 0.0
    %1548 = vmatpush2.msra.mxu0 0.0
    %1549 = vmatprep.subr.mxu0 0.0
    %1550 = vmatpush2.msra.mxu0 0.0
    %1551 = vmatprep.subr.mxu0 0.0
    %1552 = vmatpush2.msra.mxu0 0.0
    %1553 = vmatprep.subr.mxu0 0.0
    %1554 = vmatpush2.msra.mxu0 0.0
    %1555 = vmatprep.subr.mxu0 0.0
    %1556 = vmatpush2.msra.mxu0 0.0
    %1557 = vmatprep.subr.mxu0 0.0
    %1558 = vmatpush2.msra.mxu0 0.0
    %1559 = vmatprep.mubr.f32.mxu0 0.0
    %1560 = vmatmul.mubr.f32.gmra.mxu0 %v1493
    %v1561 = vpop.f32.mrf.mxu0
    %v1562 = vadd.f32 0.0, %v1561
    %v1563 = vpop.f32.mrf.mxu0
    %1564 = vdwg.mxu0
    %v1565 = vadd.f32 %v1387, %v1562
    %v1566 = vmul.f32 %v1565, 0.5
    %v1567 = vtanh.pop %v1566
    %v1568 = vmul.f32 %v1567, 0.5
    %v1569 = vadd.f32 %v1568, 0.5
    %v1570 = vtanh.pop %v1565
    %v1571 = vmul.f32 %v1569, %v1379
    %1573 = vrot.lane.b32.xlu0 %v1570, 64
    %v1574 = vpop.permute.xlu0 %1573
    %v1576 = vmul.f32 %v1569, %v1574
    %1578 = vrot.lane.b32.xlu0 %v1576, 32
    %v1579 = vpop.permute.xlu0 %1578
    %v1581 = vadd.f32 %v1571, %v1579
    %v1582 = vtanh.pop %v1581
    %1584 = vrot.lane.b32.xlu0 %v1582, 64
    %v1585 = vpop.permute.xlu0 %1584
    %v1587 = vmul.f32 %v1569, %v1585
    %v1588 = vsub.f32 %v1587, %v1376
    %v1589 = vmul.f32 %v816, %v1588
    %v1590 = vadd.f32 %v1376, %v1589
    %v1591 = vsub.f32 %v1581, %v1379
    %v1592 = vmul.f32 %v816, %v1591
    %v1593 = vadd.f32 %v1379, %v1592
    %1595 = vrot.lane.b32.xlu0 %v1590, 32
    %v1596 = vpop.permute.xlu0 %1595
    %s1598 = scalar_lea.vmem [#allocation4], 16
    %1599 = vst.msk [vmem:[%s1598] sm:$0xff] %vm254, %v1596
    %v1600 = vld [vmem:[%s478] sm:$0xff]
    %v1601 = vld [vmem:[%s476 + $0x8] sm:$0xff]
    %1603 = vrot.lane.b32.xlu0 %v1485, 32
    %v1604 = vpop.permute.xlu0 %1603
    %v1605 = vsel %vm254, %v1604, 0
    %1607 = vmatprep.subr.mxu0 0.0
    %1608 = vmatpush1.msra.mxu0 0.0
    %1609 = vmatprep.subr.mxu0 0.0
    %1610 = vmatpush1.msra.mxu0 0.0
    %1611 = vmatprep.subr.mxu0 0.0
    %1612 = vmatpush1.msra.mxu0 0.0
    %1613 = vmatprep.subr.mxu0 0.0
    %1614 = vmatpush1.msra.mxu0 0.0
    %1615 = vmatprep.subr.mxu0 0.0
    %1616 = vmatpush1.msra.mxu0 0.0
    %1617 = vmatprep.subr.mxu0 0.0
    %1618 = vmatpush1.msra.mxu0 0.0
    %1619 = vmatprep.subr.mxu0 0.0
    %1620 = vmatpush1.msra.mxu0 0.0
    %1621 = vmatprep.subr.mxu0 0.0
    %1622 = vmatpush1.msra.mxu0 0.0
    %1623 = vmatprep.subr.mxu0 0.0
    %1624 = vmatpush1.msra.mxu0 0.0
    %1625 = vmatprep.subr.mxu0 0.0
    %1626 = vmatpush1.msra.mxu0 0.0
    %1627 = vmatprep.subr.mxu0 0.0
    %1628 = vmatpush1.msra.mxu0 0.0
    %1629 = vmatprep.subr.mxu0 0.0
    %1630 = vmatpush1.msra.mxu0 0.0
    %1631 = vmatprep.subr.mxu0 0.0
    %1632 = vmatpush1.msra.mxu0 %v245
    %1633 = vmatprep.subr.mxu0 0.0
    %1634 = vmatpush1.msra.mxu0 %v244
    %1635 = vmatprep.subr.mxu0 0.0
    %1636 = vmatpush1.msra.mxu0 %v243
    %1637 = vmatprep.subr.mxu0 0.0
    %1638 = vmatpush1.msra.mxu0 %v242
    %1639 = vmatprep.subr.mxu0 0.0
    %1640 = vmatpush2.msra.mxu0 0.0
    %1641 = vmatprep.subr.mxu0 0.0
    %1642 = vmatpush2.msra.mxu0 0.0
    %1643 = vmatprep.subr.mxu0 0.0
    %1644 = vmatpush2.msra.mxu0 0.0
    %1645 = vmatprep.subr.mxu0 0.0
    %1646 = vmatpush2.msra.mxu0 0.0
    %1647 = vmatprep.subr.mxu0 0.0
    %1648 = vmatpush2.msra.mxu0 0.0
    %1649 = vmatprep.subr.mxu0 0.0
    %1650 = vmatpush2.msra.mxu0 0.0
    %1651 = vmatprep.subr.mxu0 0.0
    %1652 = vmatpush2.msra.mxu0 0.0
    %1653 = vmatprep.subr.mxu0 0.0
    %1654 = vmatpush2.msra.mxu0 0.0
    %1655 = vmatprep.subr.mxu0 0.0
    %1656 = vmatpush2.msra.mxu0 0.0
    %1657 = vmatprep.subr.mxu0 0.0
    %1658 = vmatpush2.msra.mxu0 0.0
    %1659 = vmatprep.subr.mxu0 0.0
    %1660 = vmatpush2.msra.mxu0 0.0
    %1661 = vmatprep.subr.mxu0 0.0
    %1662 = vmatpush2.msra.mxu0 0.0
    %1663 = vmatprep.subr.mxu0 0.0
    %1664 = vmatpush2.msra.mxu0 0.0
    %1665 = vmatprep.subr.mxu0 0.0
    %1666 = vmatpush2.msra.mxu0 0.0
    %1667 = vmatprep.subr.mxu0 0.0
    %1668 = vmatpush2.msra.mxu0 0.0
    %1669 = vmatprep.subr.mxu0 0.0
    %1670 = vmatpush2.msra.mxu0 0.0
    %1671 = vmatprep.mubr.f32.mxu0 0.0
    %1672 = vmatmul.mubr.f32.gmra.mxu0 %v1605
    %v1673 = vpop.f32.mrf.mxu0
    %v1674 = vadd.f32 0.0, %v1673
    %v1675 = vpop.f32.mrf.mxu0
    %1676 = vdwg.mxu0
    %v1677 = vadd.f32 %v1600, %v1674
    %v1678 = vmul.f32 %v1677, 0.5
    %v1679 = vtanh.pop %v1678
    %v1680 = vmul.f32 %v1679, 0.5
    %v1681 = vadd.f32 %v1680, 0.5
    %v1682 = vtanh.pop %v1677
    %v1683 = vmul.f32 %v1681, %v1479
    %1685 = vrot.lane.b32.xlu0 %v1682, 64
    %v1686 = vpop.permute.xlu0 %1685
    %v1688 = vmul.f32 %v1681, %v1686
    %1690 = vrot.lane.b32.xlu0 %v1688, 32
    %v1691 = vpop.permute.xlu0 %1690
    %v1693 = vadd.f32 %v1683, %v1691
    %v1694 = vtanh.pop %v1693
    %1696 = vrot.lane.b32.xlu0 %v1694, 64
    %v1697 = vpop.permute.xlu0 %1696
    %v1699 = vmul.f32 %v1681, %v1697
    %v1700 = vmul.f32 %v1699, %v695
    %1702 = vrot.lane.b32.xlu0 %v1700, 32
    %v1703 = vpop.permute.xlu0 %1702
    %s1705 = scalar_lea.vmem [#allocation3], 48
    %1706 = vst.msk [vmem:[%s1705] sm:$0xff] %vm254, %v1703
    %v1707 = vsel %vm254, %v1596, 0
    %1709 = vmatprep.subr.mxu0 0.0
    %1710 = vmatpush1.msra.mxu0 0.0
    %1711 = vmatprep.subr.mxu0 0.0
    %1712 = vmatpush1.msra.mxu0 0.0
    %1713 = vmatprep.subr.mxu0 0.0
    %1714 = vmatpush1.msra.mxu0 0.0
    %1715 = vmatprep.subr.mxu0 0.0
    %1716 = vmatpush1.msra.mxu0 0.0
    %1717 = vmatprep.subr.mxu0 0.0
    %1718 = vmatpush1.msra.mxu0 0.0
    %1719 = vmatprep.subr.mxu0 0.0
    %1720 = vmatpush1.msra.mxu0 0.0
    %1721 = vmatprep.subr.mxu0 0.0
    %1722 = vmatpush1.msra.mxu0 0.0
    %1723 = vmatprep.subr.mxu0 0.0
    %1724 = vmatpush1.msra.mxu0 0.0
    %1725 = vmatprep.subr.mxu0 0.0
    %1726 = vmatpush1.msra.mxu0 0.0
    %1727 = vmatprep.subr.mxu0 0.0
    %1728 = vmatpush1.msra.mxu0 0.0
    %1729 = vmatprep.subr.mxu0 0.0
    %1730 = vmatpush1.msra.mxu0 0.0
    %1731 = vmatprep.subr.mxu0 0.0
    %1732 = vmatpush1.msra.mxu0 0.0
    %1733 = vmatprep.subr.mxu0 0.0
    %1734 = vmatpush1.msra.mxu0 %v249
    %1735 = vmatprep.subr.mxu0 0.0
    %1736 = vmatpush1.msra.mxu0 %v248
    %1737 = vmatprep.subr.mxu0 0.0
    %1738 = vmatpush1.msra.mxu0 %v247
    %1739 = vmatprep.subr.mxu0 0.0
    %1740 = vmatpush1.msra.mxu0 %v246
    %1741 = vmatprep.subr.mxu0 0.0
    %1742 = vmatpush2.msra.mxu0 0.0
    %1743 = vmatprep.subr.mxu0 0.0
    %1744 = vmatpush2.msra.mxu0 0.0
    %1745 = vmatprep.subr.mxu0 0.0
    %1746 = vmatpush2.msra.mxu0 0.0
    %1747 = vmatprep.subr.mxu0 0.0
    %1748 = vmatpush2.msra.mxu0 0.0
    %1749 = vmatprep.subr.mxu0 0.0
    %1750 = vmatpush2.msra.mxu0 0.0
    %1751 = vmatprep.subr.mxu0 0.0
    %1752 = vmatpush2.msra.mxu0 0.0
    %1753 = vmatprep.subr.mxu0 0.0
    %1754 = vmatpush2.msra.mxu0 0.0
    %1755 = vmatprep.subr.mxu0 0.0
    %1756 = vmatpush2.msra.mxu0 0.0
    %1757 = vmatprep.subr.mxu0 0.0
    %1758 = vmatpush2.msra.mxu0 0.0
    %1759 = vmatprep.subr.mxu0 0.0
    %1760 = vmatpush2.msra.mxu0 0.0
    %1761 = vmatprep.subr.mxu0 0.0
    %1762 = vmatpush2.msra.mxu0 0.0
    %1763 = vmatprep.subr.mxu0 0.0
    %1764 = vmatpush2.msra.mxu0 0.0
    %1765 = vmatprep.subr.mxu0 0.0
    %1766 = vmatpush2.msra.mxu0 0.0
    %1767 = vmatprep.subr.mxu0 0.0
    %1768 = vmatpush2.msra.mxu0 0.0
    %1769 = vmatprep.subr.mxu0 0.0
    %1770 = vmatpush2.msra.mxu0 0.0
    %1771 = vmatprep.subr.mxu0 0.0
    %1772 = vmatpush2.msra.mxu0 0.0
    %1773 = vmatprep.mubr.f32.mxu0 0.0
    %1774 = vmatmul.mubr.f32.gmra.mxu0 %v1707
    %v1775 = vpop.f32.mrf.mxu0
    %v1776 = vadd.f32 0.0, %v1775
    %v1777 = vpop.f32.mrf.mxu0
    %1778 = vdwg.mxu0
    %v1779 = vadd.f32 %v1601, %v1776
    %v1780 = vmul.f32 %v1779, 0.5
    %v1781 = vtanh.pop %v1780
    %v1782 = vmul.f32 %v1781, 0.5
    %v1783 = vadd.f32 %v1782, 0.5
    %v1784 = vtanh.pop %v1779
    %v1785 = vmul.f32 %v1783, %v1593
    %1787 = vrot.lane.b32.xlu0 %v1784, 64
    %v1788 = vpop.permute.xlu0 %1787
    %v1790 = vmul.f32 %v1783, %v1788
    %1792 = vrot.lane.b32.xlu0 %v1790, 32
    %v1793 = vpop.permute.xlu0 %1792
    %v1795 = vadd.f32 %v1785, %v1793
    %v1796 = vtanh.pop %v1795
    %1798 = vrot.lane.b32.xlu0 %v1796, 64
    %v1799 = vpop.permute.xlu0 %1798
    %v1801 = vmul.f32 %v1783, %v1799
    %v1802 = vsub.f32 %v1801, %v1590
    %v1803 = vmul.f32 %v584, %v1802
    %v1804 = vadd.f32 %v1590, %v1803
    %v1805 = vsub.f32 %v1795, %v1593
    %v1806 = vmul.f32 %v584, %v1805
    %v1807 = vadd.f32 %v1593, %v1806
    %1809 = vrot.lane.b32.xlu0 %v1804, 32
    %v1810 = vpop.permute.xlu0 %1809
    %s1812 = scalar_lea.vmem [#allocation4], 8
    %1813 = vst.msk [vmem:[%s1812] sm:$0xff] %vm254, %v1810
    %v1814 = vld [vmem:[%s252] sm:$0xff]
    %v1815 = vld [vmem:[#allocation2 + $0x8] sm:$0xff]
    %1817 = vrot.lane.b32.xlu0 %v1699, 32
    %v1818 = vpop.permute.xlu0 %1817
    %v1819 = vsel %vm254, %v1818, 0
    %1821 = vmatprep.subr.mxu0 0.0
    %1822 = vmatpush1.msra.mxu0 0.0
    %1823 = vmatprep.subr.mxu0 0.0
    %1824 = vmatpush1.msra.mxu0 0.0
    %1825 = vmatprep.subr.mxu0 0.0
    %1826 = vmatpush1.msra.mxu0 0.0
    %1827 = vmatprep.subr.mxu0 0.0
    %1828 = vmatpush1.msra.mxu0 0.0
    %1829 = vmatprep.subr.mxu0 0.0
    %1830 = vmatpush1.msra.mxu0 0.0
    %1831 = vmatprep.subr.mxu0 0.0
    %1832 = vmatpush1.msra.mxu0 0.0
    %1833 = vmatprep.subr.mxu0 0.0
    %1834 = vmatpush1.msra.mxu0 0.0
    %1835 = vmatprep.subr.mxu0 0.0
    %1836 = vmatpush1.msra.mxu0 0.0
    %1837 = vmatprep.subr.mxu0 0.0
    %1838 = vmatpush1.msra.mxu0 0.0
    %1839 = vmatprep.subr.mxu0 0.0
    %1840 = vmatpush1.msra.mxu0 0.0
    %1841 = vmatprep.subr.mxu0 0.0
    %1842 = vmatpush1.msra.mxu0 0.0
    %1843 = vmatprep.subr.mxu0 0.0
    %1844 = vmatpush1.msra.mxu0 0.0
    %1845 = vmatprep.subr.mxu0 0.0
    %1846 = vmatpush1.msra.mxu0 %v245
    %1847 = vmatprep.subr.mxu0 0.0
    %1848 = vmatpush1.msra.mxu0 %v244
    %1849 = vmatprep.subr.mxu0 0.0
    %1850 = vmatpush1.msra.mxu0 %v243
    %1851 = vmatprep.subr.mxu0 0.0
    %1852 = vmatpush1.msra.mxu0 %v242
    %1853 = vmatprep.subr.mxu0 0.0
    %1854 = vmatpush2.msra.mxu0 0.0
    %1855 = vmatprep.subr.mxu0 0.0
    %1856 = vmatpush2.msra.mxu0 0.0
    %1857 = vmatprep.subr.mxu0 0.0
    %1858 = vmatpush2.msra.mxu0 0.0
    %1859 = vmatprep.subr.mxu0 0.0
    %1860 = vmatpush2.msra.mxu0 0.0
    %1861 = vmatprep.subr.mxu0 0.0
    %1862 = vmatpush2.msra.mxu0 0.0
    %1863 = vmatprep.subr.mxu0 0.0
    %1864 = vmatpush2.msra.mxu0 0.0
    %1865 = vmatprep.subr.mxu0 0.0
    %1866 = vmatpush2.msra.mxu0 0.0
    %1867 = vmatprep.subr.mxu0 0.0
    %1868 = vmatpush2.msra.mxu0 0.0
    %1869 = vmatprep.subr.mxu0 0.0
    %1870 = vmatpush2.msra.mxu0 0.0
    %1871 = vmatprep.subr.mxu0 0.0
    %1872 = vmatpush2.msra.mxu0 0.0
    %1873 = vmatprep.subr.mxu0 0.0
    %1874 = vmatpush2.msra.mxu0 0.0
    %1875 = vmatprep.subr.mxu0 0.0
    %1876 = vmatpush2.msra.mxu0 0.0
    %1877 = vmatprep.subr.mxu0 0.0
    %1878 = vmatpush2.msra.mxu0 0.0
    %1879 = vmatprep.subr.mxu0 0.0
    %1880 = vmatpush2.msra.mxu0 0.0
    %1881 = vmatprep.subr.mxu0 0.0
    %1882 = vmatpush2.msra.mxu0 0.0
    %1883 = vmatprep.subr.mxu0 0.0
    %1884 = vmatpush2.msra.mxu0 0.0
    %1885 = vmatprep.mubr.f32.mxu0 0.0
    %1886 = vmatmul.mubr.f32.gmra.mxu0 %v1819
    %v1887 = vpop.f32.mrf.mxu0
    %v1888 = vadd.f32 0.0, %v1887
    %v1889 = vpop.f32.mrf.mxu0
    %1890 = vdwg.mxu0
    %v1891 = vadd.f32 %v1814, %v1888
    %v1892 = vmul.f32 %v1891, 0.5
    %v1893 = vtanh.pop %v1892
    %v1894 = vmul.f32 %v1893, 0.5
    %v1895 = vadd.f32 %v1894, 0.5
    %v1896 = vtanh.pop %v1891
    %v1897 = vmul.f32 %v1895, %v1693
    %1899 = vrot.lane.b32.xlu0 %v1896, 64
    %v1900 = vpop.permute.xlu0 %1899
    %v1902 = vmul.f32 %v1895, %v1900
    %1904 = vrot.lane.b32.xlu0 %v1902, 32
    %v1905 = vpop.permute.xlu0 %1904
    %v1907 = vadd.f32 %v1897, %v1905
    %v1908 = vtanh.pop %v1907
    %1910 = vrot.lane.b32.xlu0 %v1908, 64
    %v1911 = vpop.permute.xlu0 %1910
    %v1913 = vmul.f32 %v1895, %v1911
    %v1914 = vmul.f32 %v1913, %v464
    %1916 = vrot.lane.b32.xlu0 %v1914, 32
    %v1917 = vpop.permute.xlu0 %1916
    %s1919 = scalar_lea.vmem [#allocation3], 56
    %1920 = vst.msk [vmem:[%s1919] sm:$0xff] %vm254, %v1917
    %v1921 = vsel %vm254, %v1810, 0
    %1923 = vmatprep.subr.mxu0 0.0
    %1924 = vmatpush1.msra.mxu0 0.0
    %1925 = vmatprep.subr.mxu0 0.0
    %1926 = vmatpush1.msra.mxu0 0.0
    %1927 = vmatprep.subr.mxu0 0.0
    %1928 = vmatpush1.msra.mxu0 0.0
    %1929 = vmatprep.subr.mxu0 0.0
    %1930 = vmatpush1.msra.mxu0 0.0
    %1931 = vmatprep.subr.mxu0 0.0
    %1932 = vmatpush1.msra.mxu0 0.0
    %1933 = vmatprep.subr.mxu0 0.0
    %1934 = vmatpush1.msra.mxu0 0.0
    %1935 = vmatprep.subr.mxu0 0.0
    %1936 = vmatpush1.msra.mxu0 0.0
    %1937 = vmatprep.subr.mxu0 0.0
    %1938 = vmatpush1.msra.mxu0 0.0
    %1939 = vmatprep.subr.mxu0 0.0
    %1940 = vmatpush1.msra.mxu0 0.0
    %1941 = vmatprep.subr.mxu0 0.0
    %1942 = vmatpush1.msra.mxu0 0.0
    %1943 = vmatprep.subr.mxu0 0.0
    %1944 = vmatpush1.msra.mxu0 0.0
    %1945 = vmatprep.subr.mxu0 0.0
    %1946 = vmatpush1.msra.mxu0 0.0
    %1947 = vmatprep.subr.mxu0 0.0
    %1948 = vmatpush1.msra.mxu0 %v249
    %1949 = vmatprep.subr.mxu0 0.0
    %1950 = vmatpush1.msra.mxu0 %v248
    %1951 = vmatprep.subr.mxu0 0.0
    %1952 = vmatpush1.msra.mxu0 %v247
    %1953 = vmatprep.subr.mxu0 0.0
    %1954 = vmatpush1.msra.mxu0 %v246
    %1955 = vmatprep.subr.mxu0 0.0
    %1956 = vmatpush2.msra.mxu0 0.0
    %1957 = vmatprep.subr.mxu0 0.0
    %1958 = vmatpush2.msra.mxu0 0.0
    %1959 = vmatprep.subr.mxu0 0.0
    %1960 = vmatpush2.msra.mxu0 0.0
    %1961 = vmatprep.subr.mxu0 0.0
    %1962 = vmatpush2.msra.mxu0 0.0
    %1963 = vmatprep.subr.mxu0 0.0
    %1964 = vmatpush2.msra.mxu0 0.0
    %1965 = vmatprep.subr.mxu0 0.0
    %1966 = vmatpush2.msra.mxu0 0.0
    %1967 = vmatprep.subr.mxu0 0.0
    %1968 = vmatpush2.msra.mxu0 0.0
    %1969 = vmatprep.subr.mxu0 0.0
    %1970 = vmatpush2.msra.mxu0 0.0
    %1971 = vmatprep.subr.mxu0 0.0
    %1972 = vmatpush2.msra.mxu0 0.0
    %1973 = vmatprep.subr.mxu0 0.0
    %1974 = vmatpush2.msra.mxu0 0.0
    %1975 = vmatprep.subr.mxu0 0.0
    %1976 = vmatpush2.msra.mxu0 0.0
    %1977 = vmatprep.subr.mxu0 0.0
    %1978 = vmatpush2.msra.mxu0 0.0
    %1979 = vmatprep.subr.mxu0 0.0
    %1980 = vmatpush2.msra.mxu0 0.0
    %1981 = vmatprep.subr.mxu0 0.0
    %1982 = vmatpush2.msra.mxu0 0.0
    %1983 = vmatprep.subr.mxu0 0.0
    %1984 = vmatpush2.msra.mxu0 0.0
    %1985 = vmatprep.subr.mxu0 0.0
    %1986 = vmatpush2.msra.mxu0 0.0
    %1987 = vmatprep.mubr.f32.mxu0 0.0
    %1988 = vmatmul.mubr.f32.gmra.mxu0 %v1921
    %v1989 = vpop.f32.mrf.mxu0
    %v1990 = vadd.f32 0.0, %v1989
    %v1991 = vpop.f32.mrf.mxu0
    %1992 = vdwg.mxu0
    %v1993 = vadd.f32 %v1815, %v1990
    %v1994 = vmul.f32 %v1993, 0.5
    %v1995 = vtanh.pop %v1994
    %v1996 = vmul.f32 %v1995, 0.5
    %v1997 = vadd.f32 %v1996, 0.5
    %v1998 = vtanh.pop %v1993
    %v1999 = vmul.f32 %v1997, %v1807
    %2001 = vrot.lane.b32.xlu0 %v1998, 64
    %v2002 = vpop.permute.xlu0 %2001
    %v2004 = vmul.f32 %v1997, %v2002
    %2006 = vrot.lane.b32.xlu0 %v2004, 32
    %v2007 = vpop.permute.xlu0 %2006
    %v2009 = vadd.f32 %v1999, %v2007
    %v2010 = vtanh.pop %v2009
    %2012 = vrot.lane.b32.xlu0 %v2010, 64
    %v2013 = vpop.permute.xlu0 %2012
    %v2015 = vmul.f32 %v1997, %v2013
    %v2016 = vsub.f32 %v2015, %v1804
    %v2017 = vmul.f32 %v357, %v2016
    %v2018 = vadd.f32 %v1804, %v2017
    %2020 = vrot.lane.b32.xlu0 %v2018, 32
    %v2021 = vpop.permute.xlu0 %2020
    %2023 = vst.msk [vmem:[#allocation4] sm:$0xff] %vm254, %v2021
    %v2024 = vld [vmem:[#allocation3] sm:$0xff]
    %v2025 = vld [vmem:[#allocation3 + $0x8] sm:$0xff]
    %v2026 = vld [vmem:[#allocation3 + $0x10] sm:$0xff]
    %v2027 = vld [vmem:[#allocation3 + $0x18] sm:$0xff]
    %v2028 = vld [vmem:[#allocation3 + $0x20] sm:$0xff]
    %v2029 = vld [vmem:[#allocation3 + $0x28] sm:$0xff]
    %v2030 = vld [vmem:[#allocation3 + $0x30] sm:$0xff]
    %v2031 = vld [vmem:[#allocation3 + $0x38] sm:$0xff]
    %v2032 = vld [vmem:[#allocation4] sm:$0xff]
    %v2033 = vld [vmem:[#allocation4 + $0x8] sm:$0xff]
    %v2034 = vld [vmem:[#allocation4 + $0x10] sm:$0xff]
    %v2035 = vld [vmem:[#allocation4 + $0x18] sm:$0xff]
    %v2036 = vld [vmem:[#allocation4 + $0x20] sm:$0xff]
    %v2037 = vld [vmem:[#allocation4 + $0x28] sm:$0xff]
    %v2038 = vld [vmem:[#allocation4 + $0x30] sm:$0xff]
    %v2039 = vld [vmem:[#allocation4 + $0x38] sm:$0xff]
    %v2040 = vadd.f32 %v2024, %v2032
    %v2041 = vadd.f32 %v2025, %v2033
    %v2042 = vadd.f32 %v2026, %v2034
    %v2043 = vadd.f32 %v2027, %v2035
    %v2044 = vadd.f32 %v2028, %v2036
    %v2045 = vadd.f32 %v2029, %v2037
    %v2046 = vadd.f32 %v2030, %v2038
    %v2047 = vadd.f32 %v2031, %v2039
    %v2048 = vcombine.low %v2040, %v2042
    %v2049 = vcombine.high %v2040, %v2042
    %v2051 = vunpack.c.l.s4 1983009808
    %v2052 = vunpack.c.0.s8 %v2051
    %v2053 = vlaneseq
    %v2054 = vshrl.u32 %v2053, 7
    %v2055 = vsub.s32 %v2052, %v2054
    %v2056 = vrot.slane %v2048, %v2055
    %v2058 = vunpack.c.l.s4 1983009808
    %v2059 = vunpack.c.0.s8 %v2058
    %v2060 = vlaneseq
    %v2061 = vshrl.u32 %v2060, 7
    %v2062 = vsub.s32 %v2059, %v2061
    %v2063 = vrot.slane %v2049, %v2062
    %v2064 = vcombine.low %v2041, %v2043
    %v2065 = vcombine.high %v2041, %v2043
    %v2067 = vunpack.c.l.s4 1983009808
    %v2068 = vunpack.c.0.s8 %v2067
    %v2069 = vlaneseq
    %v2070 = vshrl.u32 %v2069, 7
    %v2071 = vsub.s32 %v2068, %v2070
    %v2072 = vrot.slane %v2064, %v2071
    %v2074 = vunpack.c.l.s4 1983009808
    %v2075 = vunpack.c.0.s8 %v2074
    %v2076 = vlaneseq
    %v2077 = vshrl.u32 %v2076, 7
    %v2078 = vsub.s32 %v2075, %v2077
    %v2079 = vrot.slane %v2065, %v2078
    %v2080 = vcombine.low %v2044, %v2046
    %v2081 = vcombine.high %v2044, %v2046
    %v2083 = vunpack.c.l.s4 1983009808
    %v2084 = vunpack.c.0.s8 %v2083
    %v2085 = vlaneseq
    %v2086 = vshrl.u32 %v2085, 7
    %v2087 = vsub.s32 %v2084, %v2086
    %v2088 = vrot.slane %v2080, %v2087
    %v2090 = vunpack.c.l.s4 1983009808
    %v2091 = vunpack.c.0.s8 %v2090
    %v2092 = vlaneseq
    %v2093 = vshrl.u32 %v2092, 7
    %v2094 = vsub.s32 %v2091, %v2093
    %v2095 = vrot.slane %v2081, %v2094
    %v2096 = vcombine.low %v2045, %v2047
    %v2097 = vcombine.high %v2045, %v2047
    %v2099 = vunpack.c.l.s4 1983009808
    %v2100 = vunpack.c.0.s8 %v2099
    %v2101 = vlaneseq
    %v2102 = vshrl.u32 %v2101, 7
    %v2103 = vsub.s32 %v2100, %v2102
    %v2104 = vrot.slane %v2096, %v2103
    %v2106 = vunpack.c.l.s4 1983009808
    %v2107 = vunpack.c.0.s8 %v2106
    %v2108 = vlaneseq
    %v2109 = vshrl.u32 %v2108, 7
    %v2110 = vsub.s32 %v2107, %v2109
    %v2111 = vrot.slane %v2097, %v2110
    %v2112 = vcombine.low %v2056, %v2072
    %v2113 = vcombine.high %v2056, %v2072
    %v2115 = vunpack.c.l.s4 1934713408
    %v2116 = vunpack.c.0.s8 %v2115
    %v2117 = vlaneseq
    %v2118 = vshrl.u32 %v2117, 7
    %v2119 = vsub.s32 %v2116, %v2118
    %v2120 = vrot.slane %v2112, %v2119
    %v2122 = vunpack.c.l.s4 1934713408
    %v2123 = vunpack.c.0.s8 %v2122
    %v2124 = vlaneseq
    %v2125 = vshrl.u32 %v2124, 7
    %v2126 = vsub.s32 %v2123, %v2125
    %v2127 = vrot.slane %v2113, %v2126
    %v2128 = vcombine.low %v2063, %v2079
    %v2129 = vcombine.high %v2063, %v2079
    %v2131 = vunpack.c.l.s4 1934713408
    %v2132 = vunpack.c.0.s8 %v2131
    %v2133 = vlaneseq
    %v2134 = vshrl.u32 %v2133, 7
    %v2135 = vsub.s32 %v2132, %v2134
    %v2136 = vrot.slane %v2128, %v2135
    %v2138 = vunpack.c.l.s4 1934713408
    %v2139 = vunpack.c.0.s8 %v2138
    %v2140 = vlaneseq
    %v2141 = vshrl.u32 %v2140, 7
    %v2142 = vsub.s32 %v2139, %v2141
    %v2143 = vrot.slane %v2129, %v2142
    %v2144 = vcombine.low %v2088, %v2104
    %v2145 = vcombine.high %v2088, %v2104
    %v2147 = vunpack.c.l.s4 1934713408
    %v2148 = vunpack.c.0.s8 %v2147
    %v2149 = vlaneseq
    %v2150 = vshrl.u32 %v2149, 7
    %v2151 = vsub.s32 %v2148, %v2150
    %v2152 = vrot.slane %v2144, %v2151
    %v2154 = vunpack.c.l.s4 1934713408
    %v2155 = vunpack.c.0.s8 %v2154
    %v2156 = vlaneseq
    %v2157 = vshrl.u32 %v2156, 7
    %v2158 = vsub.s32 %v2155, %v2157
    %v2159 = vrot.slane %v2145, %v2158
    %v2160 = vcombine.low %v2095, %v2111
    %v2161 = vcombine.high %v2095, %v2111
    %v2163 = vunpack.c.l.s4 1934713408
    %v2164 = vunpack.c.0.s8 %v2163
    %v2165 = vlaneseq
    %v2166 = vshrl.u32 %v2165, 7
    %v2167 = vsub.s32 %v2164, %v2166
    %v2168 = vrot.slane %v2160, %v2167
    %v2170 = vunpack.c.l.s4 1934713408
    %v2171 = vunpack.c.0.s8 %v2170
    %v2172 = vlaneseq
    %v2173 = vshrl.u32 %v2172, 7
    %v2174 = vsub.s32 %v2171, %v2173
    %v2175 = vrot.slane %v2161, %v2174
    %v2176 = vcombine.low %v2120, %v2152
    %v2177 = vcombine.high %v2120, %v2152
    %v2178 = vcombine.low %v2127, %v2159
    %v2179 = vcombine.high %v2127, %v2159
    %v2180 = vcombine.low %v2136, %v2168
    %v2181 = vcombine.high %v2136, %v2168
    %v2182 = vcombine.low %v2143, %v2175
    %v2183 = vcombine.high %v2143, %v2175
    %v2184 = vpack.c.bf16 %v2176, %v2176
    %v2185 = vpack.c.bf16 %v2177, %v2177
    %v2186 = vpack.c.bf16 %v2178, %v2178
    %v2187 = vpack.c.bf16 %v2179, %v2179
    %v2188 = vpack.c.bf16 %v2180, %v2180
    %v2189 = vpack.c.bf16 %v2181, %v2181
    %v2190 = vpack.c.bf16 %v2182, %v2182
    %v2191 = vpack.c.bf16 %v2183, %v2183
    %v2192 = vld [vmem:[#allocation10] sm:$0xf]
    %v2193 = vld [vmem:[#allocation10 + $0x4] sm:$0xf]
    %v2194 = vld [vmem:[#allocation10 + $0x8] sm:$0xf]
    %v2195 = vld [vmem:[#allocation10 + $0xc] sm:$0xf]
    %v2204 = vunpack.c.l.b16 %v2184
    %v2205 = vunpack.c.l.b16 %v2185
    %v2206 = vunpack.c.l.b16 %v2186
    %v2207 = vunpack.c.l.b16 %v2187
    %v2208 = vunpack.c.l.b16 %v2188
    %v2209 = vunpack.c.l.b16 %v2189
    %v2210 = vunpack.c.l.b16 %v2190
    %v2211 = vunpack.c.l.b16 %v2191
    %v2212 = vpack.c.b16 %v2205, %v2204
    %v2213 = vpack.c.b16 %v2207, %v2206
    %v2214 = vpack.c.b16 %v2209, %v2208
    %v2215 = vpack.c.b16 %v2211, %v2210
    %v2220 = vunpack.c.l.b16 %v2192
    %v2221 = vunpack.c.l.b16 %v2193
    %v2222 = vunpack.c.l.b16 %v2194
    %v2223 = vunpack.c.l.b16 %v2195
    %v2224 = vpack.c.b16 %v2221, %v2220
    %v2225 = vpack.c.b16 %v2223, %v2222
    %v2229 = vsel %vm254, %v2212, 0
    %v2232 = vsel %vm254, %v2213, 0
    %v2235 = vsel %vm254, %v2214, 0
    %v2238 = vsel %vm254, %v2215, 0
    %2240 = vmatprep.subr.bf16.mxu0 0
    %2241 = vmatpush1.bf16.msra.mxu0 0
    %2242 = vmatprep.subr.bf16.mxu0 0
    %2243 = vmatpush1.bf16.msra.mxu0 0
    %2244 = vmatprep.subr.bf16.mxu0 0
    %2245 = vmatpush1.bf16.msra.mxu0 0
    %2246 = vmatprep.subr.bf16.mxu0 0
    %2247 = vmatpush1.bf16.msra.mxu0 0
    %2248 = vmatprep.subr.bf16.mxu0 0
    %2249 = vmatpush1.bf16.msra.mxu0 0
    %2250 = vmatprep.subr.bf16.mxu0 0
    %2251 = vmatpush1.bf16.msra.mxu0 0
    %2252 = vmatprep.subr.bf16.mxu0 0
    %2253 = vmatpush1.bf16.msra.mxu0 %v2225
    %2254 = vmatprep.subr.bf16.mxu0 0
    %2255 = vmatpush1.bf16.msra.mxu0 %v2224
    %2256 = vmatprep.subr.bf16.mxu0 0
    %2257 = vmatpush2.bf16.msra.mxu0 0
    %2258 = vmatprep.subr.bf16.mxu0 0
    %2259 = vmatpush2.bf16.msra.mxu0 0
    %2260 = vmatprep.subr.bf16.mxu0 0
    %2261 = vmatpush2.bf16.msra.mxu0 0
    %2262 = vmatprep.subr.bf16.mxu0 0
    %2263 = vmatpush2.bf16.msra.mxu0 0
    %2264 = vmatprep.subr.bf16.mxu0 0
    %2265 = vmatpush2.bf16.msra.mxu0 0
    %2266 = vmatprep.subr.bf16.mxu0 0
    %2267 = vmatpush2.bf16.msra.mxu0 0
    %2268 = vmatprep.subr.bf16.mxu0 0
    %2269 = vmatpush2.bf16.msra.mxu0 0
    %2270 = vmatprep.subr.bf16.mxu0 0
    %2271 = vmatpush2.bf16.msra.mxu0 0
    %2272 = vmatprep.mubr.bf16.mxu0 0
    %2273 = vmatmul.mubr.bf16.gmra.mxu0 %v2229
    %v2274 = vpop.f32.mrf.mxu0
    %v2275 = vadd.f32 0.0, %v2274
    %v2276 = vpop.f32.mrf.mxu0
    %v2277 = vpop.f32.mrf.mxu0
    %v2278 = vadd.f32 0.0, %v2277
    %v2279 = vpop.f32.mrf.mxu0
    %2280 = vmatprep.mubr.bf16.mxu0 0
    %2281 = vmatmul.mubr.bf16.gmra.mxu0 %v2232
    %v2282 = vpop.f32.mrf.mxu0
    %v2283 = vadd.f32 0.0, %v2282
    %v2284 = vpop.f32.mrf.mxu0
    %v2285 = vpop.f32.mrf.mxu0
    %v2286 = vadd.f32 0.0, %v2285
    %v2287 = vpop.f32.mrf.mxu0
    %2288 = vmatprep.mubr.bf16.mxu0 0
    %2289 = vmatmul.mubr.bf16.gmra.mxu0 %v2235
    %v2290 = vpop.f32.mrf.mxu0
    %v2291 = vadd.f32 0.0, %v2290
    %v2292 = vpop.f32.mrf.mxu0
    %v2293 = vpop.f32.mrf.mxu0
    %v2294 = vadd.f32 0.0, %v2293
    %v2295 = vpop.f32.mrf.mxu0
    %2296 = vmatprep.mubr.bf16.mxu0 0
    %2297 = vmatmul.mubr.bf16.gmra.mxu0 %v2238
    %v2298 = vpop.f32.mrf.mxu0
    %v2299 = vadd.f32 0.0, %v2298
    %v2300 = vpop.f32.mrf.mxu0
    %v2301 = vpop.f32.mrf.mxu0
    %v2302 = vadd.f32 0.0, %v2301
    %v2303 = vpop.f32.mrf.mxu0
    %2304 = vdwg.mxu0
    %v2305 = vpack.c.bf16 %v2275, %v2275
    %v2306 = vpack.c.bf16 %v2278, %v2278
    %v2307 = vpack.c.bf16 %v2283, %v2283
    %v2308 = vpack.c.bf16 %v2286, %v2286
    %v2309 = vpack.c.bf16 %v2291, %v2291
    %v2310 = vpack.c.bf16 %v2294, %v2294
    %v2311 = vpack.c.bf16 %v2299, %v2299
    %v2312 = vpack.c.bf16 %v2302, %v2302
    %v2313 = vlaneseq
    %v2314 = vand.u32 %v2313, 127
    %v2315 = vcombine.high %v250, %v250
    %v2317 = vunpack.c.l.s4 1966171168
    %v2318 = vunpack.c.0.s8 %v2317
    %v2319 = vlaneseq
    %v2320 = vshrl.u32 %v2319, 7
    %v2321 = vsub.s32 %v2318, %v2320
    %v2322 = vrot.slane %v250, %v2321
    %v2324 = vunpack.c.l.s4 1966171168
    %v2325 = vunpack.c.0.s8 %v2324
    %v2326 = vlaneseq
    %v2327 = vshrl.u32 %v2326, 7
    %v2328 = vsub.s32 %v2325, %v2327
    %v2329 = vrot.slane %v2315, %v2328
    %v2330 = vcombine.high %v2322, %v2322
    %v2331 = vcombine.high %v2329, %v2329
    %v2333 = vunpack.c.l.s4 1966171168
    %v2334 = vunpack.c.0.s8 %v2333
    %v2335 = vlaneseq
    %v2336 = vshrl.u32 %v2335, 7
    %v2337 = vsub.s32 %v2334, %v2336
    %v2338 = vrot.slane %v2322, %v2337
    %v2340 = vunpack.c.l.s4 1966171168
    %v2341 = vunpack.c.0.s8 %v2340
    %v2342 = vlaneseq
    %v2343 = vshrl.u32 %v2342, 7
    %v2344 = vsub.s32 %v2341, %v2343
    %v2345 = vrot.slane %v2329, %v2344
    %v2347 = vunpack.c.l.s4 1966171168
    %v2348 = vunpack.c.0.s8 %v2347
    %v2349 = vlaneseq
    %v2350 = vshrl.u32 %v2349, 7
    %v2351 = vsub.s32 %v2348, %v2350
    %v2352 = vrot.slane %v2330, %v2351
    %v2354 = vunpack.c.l.s4 1966171168
    %v2355 = vunpack.c.0.s8 %v2354
    %v2356 = vlaneseq
    %v2357 = vshrl.u32 %v2356, 7
    %v2358 = vsub.s32 %v2355, %v2357
    %v2359 = vrot.slane %v2331, %v2358
    %v2360 = vcombine.high %v2338, %v2338
    %v2361 = vcombine.high %v2345, %v2345
    %v2362 = vcombine.high %v2352, %v2352
    %v2363 = vcombine.high %v2359, %v2359
    %2364 = vset.pattern.permute.xlu0 0
    %2365 = vperm.xlu0 %2364, %v2338
    %v2366 = vpop.permute.xlu0 %2365
    %v2367 = vlaneseq
    %v2368 = vshrl.u32 %v2367, 7
    %v2369 = vsub.s32 0, %v2368
    %v2370 = vrot.slane %v2366, %v2369
    %2371 = vset.pattern.permute.xlu0 0
    %2372 = vperm.xlu0 %2371, %v2352
    %v2373 = vpop.permute.xlu0 %2372
    %v2374 = vlaneseq
    %v2375 = vshrl.u32 %v2374, 7
    %v2376 = vsub.s32 0, %v2375
    %v2377 = vrot.slane %v2373, %v2376
    %2378 = vset.pattern.permute.xlu0 0
    %2379 = vperm.xlu0 %2378, %v2360
    %v2380 = vpop.permute.xlu0 %2379
    %v2381 = vlaneseq
    %v2382 = vshrl.u32 %v2381, 7
    %v2383 = vsub.s32 0, %v2382
    %v2384 = vrot.slane %v2380, %v2383
    %2385 = vset.pattern.permute.xlu0 0
    %2386 = vperm.xlu0 %2385, %v2362
    %v2387 = vpop.permute.xlu0 %2386
    %v2388 = vlaneseq
    %v2389 = vshrl.u32 %v2388, 7
    %v2390 = vsub.s32 0, %v2389
    %v2391 = vrot.slane %v2387, %v2390
    %2392 = vset.pattern.permute.xlu0 0
    %2393 = vperm.xlu0 %2392, %v2345
    %v2394 = vpop.permute.xlu0 %2393
    %v2395 = vlaneseq
    %v2396 = vshrl.u32 %v2395, 7
    %v2397 = vsub.s32 0, %v2396
    %v2398 = vrot.slane %v2394, %v2397
    %2399 = vset.pattern.permute.xlu0 0
    %2400 = vperm.xlu0 %2399, %v2359
    %v2401 = vpop.permute.xlu0 %2400
    %v2402 = vlaneseq
    %v2403 = vshrl.u32 %v2402, 7
    %v2404 = vsub.s32 0, %v2403
    %v2405 = vrot.slane %v2401, %v2404
    %2406 = vset.pattern.permute.xlu0 0
    %2407 = vperm.xlu0 %2406, %v2361
    %v2408 = vpop.permute.xlu0 %2407
    %v2409 = vlaneseq
    %v2410 = vshrl.u32 %v2409, 7
    %v2411 = vsub.s32 0, %v2410
    %v2412 = vrot.slane %v2408, %v2411
    %2413 = vset.pattern.permute.xlu0 0
    %2414 = vperm.xlu0 %2413, %v2363
    %v2415 = vpop.permute.xlu0 %2414
    %v2416 = vlaneseq
    %v2417 = vshrl.u32 %v2416, 7
    %v2418 = vsub.s32 0, %v2417
    %v2419 = vrot.slane %v2415, %v2418
    %vm2420 = vcmp.lt.s32.totalorder %v2314, %v2370
    %vm2421 = vcmp.lt.s32.totalorder %v2314, %v2377
    %vm2422 = vcmp.lt.s32.totalorder %v2314, %v2384
    %vm2423 = vcmp.lt.s32.totalorder %v2314, %v2391
    %vm2424 = vcmp.lt.s32.totalorder %v2314, %v2398
    %vm2425 = vcmp.lt.s32.totalorder %v2314, %v2405
    %vm2426 = vcmp.lt.s32.totalorder %v2314, %v2412
    %vm2427 = vcmp.lt.s32.totalorder %v2314, %v2419
    %v2428 = vsel %vm2420, 0.0, -1e+09
    %v2429 = vsel %vm2421, 0.0, -1e+09
    %v2430 = vsel %vm2422, 0.0, -1e+09
    %v2431 = vsel %vm2423, 0.0, -1e+09
    %v2432 = vsel %vm2424, 0.0, -1e+09
    %v2433 = vsel %vm2425, 0.0, -1e+09
    %v2434 = vsel %vm2426, 0.0, -1e+09
    %v2435 = vsel %vm2427, 0.0, -1e+09
    %2437 = vrot.lane.b32.xlu0 %v2305, 96
    %v2438 = vpop.permute.xlu0 %2437
    %v2440 = vsel %vm254, %v2305, 0
    %v2443 = vsel %vm254, %v2438, 0
    %2445 = vmatprep.subr.bf16.mxu0 0
    %2446 = vmatpush1.bf16.xpose.msra.mxu0 0
    %2447 = vmatprep.subr.bf16.mxu0 0
    %2448 = vmatpush1.bf16.xpose.msra.mxu0 0
    %2449 = vmatprep.subr.bf16.mxu0 0
    %2450 = vmatpush1.bf16.xpose.msra.mxu0 0
    %2451 = vmatprep.subr.bf16.mxu0 0
    %2452 = vmatpush1.bf16.xpose.msra.mxu0 0
    %2453 = vmatprep.subr.bf16.mxu0 0
    %2454 = vmatpush1.bf16.xpose.msra.mxu0 0
    %2455 = vmatprep.subr.bf16.mxu0 0
    %2456 = vmatpush1.bf16.xpose.msra.mxu0 0
    %2457 = vmatprep.subr.bf16.mxu0 0
    %2458 = vmatpush1.bf16.xpose.msra.mxu0 0
    %2459 = vmatprep.subr.bf16.mxu0 0
    %2460 = vmatpush1.bf16.xpose.msra.mxu0 %v2443
    %2461 = vmatprep.subr.bf16.mxu0 0
    %2462 = vmatpush2.bf16.xpose.msra.mxu0 0
    %2463 = vmatprep.subr.bf16.mxu0 0
    %2464 = vmatpush2.bf16.xpose.msra.mxu0 0
    %2465 = vmatprep.subr.bf16.mxu0 0
    %2466 = vmatpush2.bf16.xpose.msra.mxu0 0
    %2467 = vmatprep.subr.bf16.mxu0 0
    %2468 = vmatpush2.bf16.xpose.msra.mxu0 0
    %2469 = vmatprep.subr.bf16.mxu0 0
    %2470 = vmatpush2.bf16.xpose.msra.mxu0 0
    %2471 = vmatprep.subr.bf16.mxu0 0
    %2472 = vmatpush2.bf16.xpose.msra.mxu0 0
    %2473 = vmatprep.subr.bf16.mxu0 0
    %2474 = vmatpush2.bf16.xpose.msra.mxu0 0
    %2475 = vmatprep.subr.bf16.mxu0 0
    %2476 = vmatpush2.bf16.xpose.msra.mxu0 0
    %2477 = vmatprep.mubr.bf16.mxu0 0
    %2478 = vmatmul.mubr.bf16.gmra.mxu0 %v2440
    %v2479 = vpop.f32.mrf.mxu0
    %v2480 = vadd.f32 %v2428, %v2479
    %v2481 = vpop.f32.mrf.mxu0
    %v2482 = vpop.f32.mrf.mxu0
    %v2483 = vpop.f32.mrf.mxu0
    %2484 = vdwg.mxu0
    %2486 = vrot.lane.b32.xlu0 %v2306, 96
    %v2487 = vpop.permute.xlu0 %2486
    %v2489 = vsel %vm254, %v2306, 0
    %v2492 = vsel %vm254, %v2487, 0
    %2494 = vmatprep.subr.bf16.mxu0 0
    %2495 = vmatpush1.bf16.xpose.msra.mxu0 0
    %2496 = vmatprep.subr.bf16.mxu0 0
    %2497 = vmatpush1.bf16.xpose.msra.mxu0 0
    %2498 = vmatprep.subr.bf16.mxu0 0
    %2499 = vmatpush1.bf16.xpose.msra.mxu0 0
    %2500 = vmatprep.subr.bf16.mxu0 0
    %2501 = vmatpush1.bf16.xpose.msra.mxu0 0
    %2502 = vmatprep.subr.bf16.mxu0 0
    %2503 = vmatpush1.bf16.xpose.msra.mxu0 0
    %2504 = vmatprep.subr.bf16.mxu0 0
    %2505 = vmatpush1.bf16.xpose.msra.mxu0 0
    %2506 = vmatprep.subr.bf16.mxu0 0
    %2507 = vmatpush1.bf16.xpose.msra.mxu0 0
    %2508 = vmatprep.subr.bf16.mxu0 0
    %2509 = vmatpush1.bf16.xpose.msra.mxu0 %v2492
    %2510 = vmatprep.subr.bf16.mxu0 0
    %2511 = vmatpush2.bf16.xpose.msra.mxu0 0
    %2512 = vmatprep.subr.bf16.mxu0 0
    %2513 = vmatpush2.bf16.xpose.msra.mxu0 0
    %2514 = vmatprep.subr.bf16.mxu0 0
    %2515 = vmatpush2.bf16.xpose.msra.mxu0 0
    %2516 = vmatprep.subr.bf16.mxu0 0
    %2517 = vmatpush2.bf16.xpose.msra.mxu0 0
    %2518 = vmatprep.subr.bf16.mxu0 0
    %2519 = vmatpush2.bf16.xpose.msra.mxu0 0
    %2520 = vmatprep.subr.bf16.mxu0 0
    %2521 = vmatpush2.bf16.xpose.msra.mxu0 0
    %2522 = vmatprep.subr.bf16.mxu0 0
    %2523 = vmatpush2.bf16.xpose.msra.mxu0 0
    %2524 = vmatprep.subr.bf16.mxu0 0
    %2525 = vmatpush2.bf16.xpose.msra.mxu0 0
    %2526 = vmatprep.mubr.bf16.mxu0 0
    %2527 = vmatmul.mubr.bf16.gmra.mxu0 %v2489
    %v2528 = vpop.f32.mrf.mxu0
    %v2529 = vadd.f32 %v2429, %v2528
    %v2530 = vpop.f32.mrf.mxu0
    %v2531 = vpop.f32.mrf.mxu0
    %v2532 = vpop.f32.mrf.mxu0
    %2533 = vdwg.mxu0
    %2535 = vrot.lane.b32.xlu0 %v2307, 96
    %v2536 = vpop.permute.xlu0 %2535
    %v2538 = vsel %vm254, %v2307, 0
    %v2541 = vsel %vm254, %v2536, 0
    %2543 = vmatprep.subr.bf16.mxu0 0
    %2544 = vmatpush1.bf16.xpose.msra.mxu0 0
    %2545 = vmatprep.subr.bf16.mxu0 0
    %2546 = vmatpush1.bf16.xpose.msra.mxu0 0
    %2547 = vmatprep.subr.bf16.mxu0 0
    %2548 = vmatpush1.bf16.xpose.msra.mxu0 0
    %2549 = vmatprep.subr.bf16.mxu0 0
    %2550 = vmatpush1.bf16.xpose.msra.mxu0 0
    %2551 = vmatprep.subr.bf16.mxu0 0
    %2552 = vmatpush1.bf16.xpose.msra.mxu0 0
    %2553 = vmatprep.subr.bf16.mxu0 0
    %2554 = vmatpush1.bf16.xpose.msra.mxu0 0
    %2555 = vmatprep.subr.bf16.mxu0 0
    %2556 = vmatpush1.bf16.xpose.msra.mxu0 0
    %2557 = vmatprep.subr.bf16.mxu0 0
    %2558 = vmatpush1.bf16.xpose.msra.mxu0 %v2541
    %2559 = vmatprep.subr.bf16.mxu0 0
    %2560 = vmatpush2.bf16.xpose.msra.mxu0 0
    %2561 = vmatprep.subr.bf16.mxu0 0
    %2562 = vmatpush2.bf16.xpose.msra.mxu0 0
    %2563 = vmatprep.subr.bf16.mxu0 0
    %2564 = vmatpush2.bf16.xpose.msra.mxu0 0
    %2565 = vmatprep.subr.bf16.mxu0 0
    %2566 = vmatpush2.bf16.xpose.msra.mxu0 0
    %2567 = vmatprep.subr.bf16.mxu0 0
    %2568 = vmatpush2.bf16.xpose.msra.mxu0 0
    %2569 = vmatprep.subr.bf16.mxu0 0
    %2570 = vmatpush2.bf16.xpose.msra.mxu0 0
    %2571 = vmatprep.subr.bf16.mxu0 0
    %2572 = vmatpush2.bf16.xpose.msra.mxu0 0
    %2573 = vmatprep.subr.bf16.mxu0 0
    %2574 = vmatpush2.bf16.xpose.msra.mxu0 0
    %2575 = vmatprep.mubr.bf16.mxu0 0
    %2576 = vmatmul.mubr.bf16.gmra.mxu0 %v2538
    %v2577 = vpop.f32.mrf.mxu0
    %v2578 = vadd.f32 %v2430, %v2577
    %v2579 = vpop.f32.mrf.mxu0
    %v2580 = vpop.f32.mrf.mxu0
    %v2581 = vpop.f32.mrf.mxu0
    %2582 = vdwg.mxu0
    %2584 = vrot.lane.b32.xlu0 %v2308, 96
    %v2585 = vpop.permute.xlu0 %2584
    %v2587 = vsel %vm254, %v2308, 0
    %v2590 = vsel %vm254, %v2585, 0
    %2592 = vmatprep.subr.bf16.mxu0 0
    %2593 = vmatpush1.bf16.xpose.msra.mxu0 0
    %2594 = vmatprep.subr.bf16.mxu0 0
    %2595 = vmatpush1.bf16.xpose.msra.mxu0 0
    %2596 = vmatprep.subr.bf16.mxu0 0
    %2597 = vmatpush1.bf16.xpose.msra.mxu0 0
    %2598 = vmatprep.subr.bf16.mxu0 0
    %2599 = vmatpush1.bf16.xpose.msra.mxu0 0
    %2600 = vmatprep.subr.bf16.mxu0 0
    %2601 = vmatpush1.bf16.xpose.msra.mxu0 0
    %2602 = vmatprep.subr.bf16.mxu0 0
    %2603 = vmatpush1.bf16.xpose.msra.mxu0 0
    %2604 = vmatprep.subr.bf16.mxu0 0
    %2605 = vmatpush1.bf16.xpose.msra.mxu0 0
    %2606 = vmatprep.subr.bf16.mxu0 0
    %2607 = vmatpush1.bf16.xpose.msra.mxu0 %v2590
    %2608 = vmatprep.subr.bf16.mxu0 0
    %2609 = vmatpush2.bf16.xpose.msra.mxu0 0
    %2610 = vmatprep.subr.bf16.mxu0 0
    %2611 = vmatpush2.bf16.xpose.msra.mxu0 0
    %2612 = vmatprep.subr.bf16.mxu0 0
    %2613 = vmatpush2.bf16.xpose.msra.mxu0 0
    %2614 = vmatprep.subr.bf16.mxu0 0
    %2615 = vmatpush2.bf16.xpose.msra.mxu0 0
    %2616 = vmatprep.subr.bf16.mxu0 0
    %2617 = vmatpush2.bf16.xpose.msra.mxu0 0
    %2618 = vmatprep.subr.bf16.mxu0 0
    %2619 = vmatpush2.bf16.xpose.msra.mxu0 0
    %2620 = vmatprep.subr.bf16.mxu0 0
    %2621 = vmatpush2.bf16.xpose.msra.mxu0 0
    %2622 = vmatprep.subr.bf16.mxu0 0
    %2623 = vmatpush2.bf16.xpose.msra.mxu0 0
    %2624 = vmatprep.mubr.bf16.mxu0 0
    %2625 = vmatmul.mubr.bf16.gmra.mxu0 %v2587
    %v2626 = vpop.f32.mrf.mxu0
    %v2627 = vadd.f32 %v2431, %v2626
    %v2628 = vpop.f32.mrf.mxu0
    %v2629 = vpop.f32.mrf.mxu0
    %v2630 = vpop.f32.mrf.mxu0
    %2631 = vdwg.mxu0
    %2633 = vrot.lane.b32.xlu0 %v2309, 96
    %v2634 = vpop.permute.xlu0 %2633
    %v2636 = vsel %vm254, %v2309, 0
    %v2639 = vsel %vm254, %v2634, 0
    %2641 = vmatprep.subr.bf16.mxu0 0
    %2642 = vmatpush1.bf16.xpose.msra.mxu0 0
    %2643 = vmatprep.subr.bf16.mxu0 0
    %2644 = vmatpush1.bf16.xpose.msra.mxu0 0
    %2645 = vmatprep.subr.bf16.mxu0 0
    %2646 = vmatpush1.bf16.xpose.msra.mxu0 0
    %2647 = vmatprep.subr.bf16.mxu0 0
    %2648 = vmatpush1.bf16.xpose.msra.mxu0 0
    %2649 = vmatprep.subr.bf16.mxu0 0
    %2650 = vmatpush1.bf16.xpose.msra.mxu0 0
    %2651 = vmatprep.subr.bf16.mxu0 0
    %2652 = vmatpush1.bf16.xpose.msra.mxu0 0
    %2653 = vmatprep.subr.bf16.mxu0 0
    %2654 = vmatpush1.bf16.xpose.msra.mxu0 0
    %2655 = vmatprep.subr.bf16.mxu0 0
    %2656 = vmatpush1.bf16.xpose.msra.mxu0 %v2639
    %2657 = vmatprep.subr.bf16.mxu0 0
    %2658 = vmatpush2.bf16.xpose.msra.mxu0 0
    %2659 = vmatprep.subr.bf16.mxu0 0
    %2660 = vmatpush2.bf16.xpose.msra.mxu0 0
    %2661 = vmatprep.subr.bf16.mxu0 0
    %2662 = vmatpush2.bf16.xpose.msra.mxu0 0
    %2663 = vmatprep.subr.bf16.mxu0 0
    %2664 = vmatpush2.bf16.xpose.msra.mxu0 0
    %2665 = vmatprep.subr.bf16.mxu0 0
    %2666 = vmatpush2.bf16.xpose.msra.mxu0 0
    %2667 = vmatprep.subr.bf16.mxu0 0
    %2668 = vmatpush2.bf16.xpose.msra.mxu0 0
    %2669 = vmatprep.subr.bf16.mxu0 0
    %2670 = vmatpush2.bf16.xpose.msra.mxu0 0
    %2671 = vmatprep.subr.bf16.mxu0 0
    %2672 = vmatpush2.bf16.xpose.msra.mxu0 0
    %2673 = vmatprep.mubr.bf16.mxu0 0
    %2674 = vmatmul.mubr.bf16.gmra.mxu0 %v2636
    %v2675 = vpop.f32.mrf.mxu0
    %v2676 = vadd.f32 %v2432, %v2675
    %v2677 = vpop.f32.mrf.mxu0
    %v2678 = vpop.f32.mrf.mxu0
    %v2679 = vpop.f32.mrf.mxu0
    %2680 = vdwg.mxu0
    %2682 = vrot.lane.b32.xlu0 %v2310, 96
    %v2683 = vpop.permute.xlu0 %2682
    %v2685 = vsel %vm254, %v2310, 0
    %v2688 = vsel %vm254, %v2683, 0
    %2690 = vmatprep.subr.bf16.mxu0 0
    %2691 = vmatpush1.bf16.xpose.msra.mxu0 0
    %2692 = vmatprep.subr.bf16.mxu0 0
    %2693 = vmatpush1.bf16.xpose.msra.mxu0 0
    %2694 = vmatprep.subr.bf16.mxu0 0
    %2695 = vmatpush1.bf16.xpose.msra.mxu0 0
    %2696 = vmatprep.subr.bf16.mxu0 0
    %2697 = vmatpush1.bf16.xpose.msra.mxu0 0
    %2698 = vmatprep.subr.bf16.mxu0 0
    %2699 = vmatpush1.bf16.xpose.msra.mxu0 0
    %2700 = vmatprep.subr.bf16.mxu0 0
    %2701 = vmatpush1.bf16.xpose.msra.mxu0 0
    %2702 = vmatprep.subr.bf16.mxu0 0
    %2703 = vmatpush1.bf16.xpose.msra.mxu0 0
    %2704 = vmatprep.subr.bf16.mxu0 0
    %2705 = vmatpush1.bf16.xpose.msra.mxu0 %v2688
    %2706 = vmatprep.subr.bf16.mxu0 0
    %2707 = vmatpush2.bf16.xpose.msra.mxu0 0
    %2708 = vmatprep.subr.bf16.mxu0 0
    %2709 = vmatpush2.bf16.xpose.msra.mxu0 0
    %2710 = vmatprep.subr.bf16.mxu0 0
    %2711 = vmatpush2.bf16.xpose.msra.mxu0 0
    %2712 = vmatprep.subr.bf16.mxu0 0
    %2713 = vmatpush2.bf16.xpose.msra.mxu0 0
    %2714 = vmatprep.subr.bf16.mxu0 0
    %2715 = vmatpush2.bf16.xpose.msra.mxu0 0
    %2716 = vmatprep.subr.bf16.mxu0 0
    %2717 = vmatpush2.bf16.xpose.msra.mxu0 0
    %2718 = vmatprep.subr.bf16.mxu0 0
    %2719 = vmatpush2.bf16.xpose.msra.mxu0 0
    %2720 = vmatprep.subr.bf16.mxu0 0
    %2721 = vmatpush2.bf16.xpose.msra.mxu0 0
    %2722 = vmatprep.mubr.bf16.mxu0 0
    %2723 = vmatmul.mubr.bf16.gmra.mxu0 %v2685
    %v2724 = vpop.f32.mrf.mxu0
    %v2725 = vadd.f32 %v2433, %v2724
    %v2726 = vpop.f32.mrf.mxu0
    %v2727 = vpop.f32.mrf.mxu0
    %v2728 = vpop.f32.mrf.mxu0
    %2729 = vdwg.mxu0
    %2731 = vrot.lane.b32.xlu0 %v2311, 96
    %v2732 = vpop.permute.xlu0 %2731
    %v2734 = vsel %vm254, %v2311, 0
    %v2737 = vsel %vm254, %v2732, 0
    %2739 = vmatprep.subr.bf16.mxu0 0
    %2740 = vmatpush1.bf16.xpose.msra.mxu0 0
    %2741 = vmatprep.subr.bf16.mxu0 0
    %2742 = vmatpush1.bf16.xpose.msra.mxu0 0
    %2743 = vmatprep.subr.bf16.mxu0 0
    %2744 = vmatpush1.bf16.xpose.msra.mxu0 0
    %2745 = vmatprep.subr.bf16.mxu0 0
    %2746 = vmatpush1.bf16.xpose.msra.mxu0 0
    %2747 = vmatprep.subr.bf16.mxu0 0
    %2748 = vmatpush1.bf16.xpose.msra.mxu0 0
    %2749 = vmatprep.subr.bf16.mxu0 0
    %2750 = vmatpush1.bf16.xpose.msra.mxu0 0
    %2751 = vmatprep.subr.bf16.mxu0 0
    %2752 = vmatpush1.bf16.xpose.msra.mxu0 0
    %2753 = vmatprep.subr.bf16.mxu0 0
    %2754 = vmatpush1.bf16.xpose.msra.mxu0 %v2737
    %2755 = vmatprep.subr.bf16.mxu0 0
    %2756 = vmatpush2.bf16.xpose.msra.mxu0 0
    %2757 = vmatprep.subr.bf16.mxu0 0
    %2758 = vmatpush2.bf16.xpose.msra.mxu0 0
    %2759 = vmatprep.subr.bf16.mxu0 0
    %2760 = vmatpush2.bf16.xpose.msra.mxu0 0
    %2761 = vmatprep.subr.bf16.mxu0 0
    %2762 = vmatpush2.bf16.xpose.msra.mxu0 0
    %2763 = vmatprep.subr.bf16.mxu0 0
    %2764 = vmatpush2.bf16.xpose.msra.mxu0 0
    %2765 = vmatprep.subr.bf16.mxu0 0
    %2766 = vmatpush2.bf16.xpose.msra.mxu0 0
    %2767 = vmatprep.subr.bf16.mxu0 0
    %2768 = vmatpush2.bf16.xpose.msra.mxu0 0
    %2769 = vmatprep.subr.bf16.mxu0 0
    %2770 = vmatpush2.bf16.xpose.msra.mxu0 0
    %2771 = vmatprep.mubr.bf16.mxu0 0
    %2772 = vmatmul.mubr.bf16.gmra.mxu0 %v2734
    %v2773 = vpop.f32.mrf.mxu0
    %v2774 = vadd.f32 %v2434, %v2773
    %v2775 = vpop.f32.mrf.mxu0
    %v2776 = vpop.f32.mrf.mxu0
    %v2777 = vpop.f32.mrf.mxu0
    %2778 = vdwg.mxu0
    %2780 = vrot.lane.b32.xlu0 %v2312, 96
    %v2781 = vpop.permute.xlu0 %2780
    %v2783 = vsel %vm254, %v2312, 0
    %v2786 = vsel %vm254, %v2781, 0
    %2788 = vmatprep.subr.bf16.mxu0 0
    %2789 = vmatpush1.bf16.xpose.msra.mxu0 0
    %2790 = vmatprep.subr.bf16.mxu0 0
    %2791 = vmatpush1.bf16.xpose.msra.mxu0 0
    %2792 = vmatprep.subr.bf16.mxu0 0
    %2793 = vmatpush1.bf16.xpose.msra.mxu0 0
    %2794 = vmatprep.subr.bf16.mxu0 0
    %2795 = vmatpush1.bf16.xpose.msra.mxu0 0
    %2796 = vmatprep.subr.bf16.mxu0 0
    %2797 = vmatpush1.bf16.xpose.msra.mxu0 0
    %2798 = vmatprep.subr.bf16.mxu0 0
    %2799 = vmatpush1.bf16.xpose.msra.mxu0 0
    %2800 = vmatprep.subr.bf16.mxu0 0
    %2801 = vmatpush1.bf16.xpose.msra.mxu0 0
    %2802 = vmatprep.subr.bf16.mxu0 0
    %2803 = vmatpush1.bf16.xpose.msra.mxu0 %v2786
    %2804 = vmatprep.subr.bf16.mxu0 0
    %2805 = vmatpush2.bf16.xpose.msra.mxu0 0
    %2806 = vmatprep.subr.bf16.mxu0 0
    %2807 = vmatpush2.bf16.xpose.msra.mxu0 0
    %2808 = vmatprep.subr.bf16.mxu0 0
    %2809 = vmatpush2.bf16.xpose.msra.mxu0 0
    %2810 = vmatprep.subr.bf16.mxu0 0
    %2811 = vmatpush2.bf16.xpose.msra.mxu0 0
    %2812 = vmatprep.subr.bf16.mxu0 0
    %2813 = vmatpush2.bf16.xpose.msra.mxu0 0
    %2814 = vmatprep.subr.bf16.mxu0 0
    %2815 = vmatpush2.bf16.xpose.msra.mxu0 0
    %2816 = vmatprep.subr.bf16.mxu0 0
    %2817 = vmatpush2.bf16.xpose.msra.mxu0 0
    %2818 = vmatprep.subr.bf16.mxu0 0
    %2819 = vmatpush2.bf16.xpose.msra.mxu0 0
    %2820 = vmatprep.mubr.bf16.mxu0 0
    %2821 = vmatmul.mubr.bf16.gmra.mxu0 %v2783
    %v2822 = vpop.f32.mrf.mxu0
    %v2823 = vadd.f32 %v2435, %v2822
    %v2824 = vpop.f32.mrf.mxu0
    %v2825 = vpop.f32.mrf.mxu0
    %v2826 = vpop.f32.mrf.mxu0
    %2827 = vdwg.mxu0
    %vm2828 = vcmask 64512
    %v2829 = vsel %vm2828, %v2480, -inf
    %2830 = vmax.xlane.f32.xlu0 %v2829
    %v2831 = vpop.xlane.xlu0 %2830
    %v2832 = vsel %vm2828, %v2529, -inf
    %2833 = vmax.xlane.f32.xlu0 %v2832
    %v2834 = vpop.xlane.xlu0 %2833
    %v2835 = vsel %vm2828, %v2578, -inf
    %2836 = vmax.xlane.f32.xlu0 %v2835
    %v2837 = vpop.xlane.xlu0 %2836
    %v2838 = vsel %vm2828, %v2627, -inf
    %2839 = vmax.xlane.f32.xlu0 %v2838
    %v2840 = vpop.xlane.xlu0 %2839
    %v2841 = vsel %vm2828, %v2676, -inf
    %2842 = vmax.xlane.f32.xlu0 %v2841
    %v2843 = vpop.xlane.xlu0 %2842
    %v2844 = vsel %vm2828, %v2725, -inf
    %2845 = vmax.xlane.f32.xlu0 %v2844
    %v2846 = vpop.xlane.xlu0 %2845
    %v2847 = vsel %vm2828, %v2774, -inf
    %2848 = vmax.xlane.f32.xlu0 %v2847
    %v2849 = vpop.xlane.xlu0 %2848
    %v2850 = vsel %vm2828, %v2823, -inf
    %2851 = vmax.xlane.f32.xlu0 %v2850
    %v2852 = vpop.xlane.xlu0 %2851
    %v2853 = vsub.f32 %v2480, %v2831
    %v2854 = vsub.f32 %v2529, %v2834
    %v2855 = vsub.f32 %v2578, %v2837
    %v2856 = vsub.f32 %v2627, %v2840
    %v2857 = vsub.f32 %v2676, %v2843
    %v2858 = vsub.f32 %v2725, %v2846
    %v2859 = vsub.f32 %v2774, %v2849
    %v2860 = vsub.f32 %v2823, %v2852
    %v2861 = vmul.f32 %v2853, 1.442695
    %v2862 = vpow.pop %v2861
    %v2863 = vmul.f32 %v2854, 1.442695
    %v2864 = vpow.pop %v2863
    %v2865 = vmul.f32 %v2855, 1.442695
    %v2866 = vpow.pop %v2865
    %v2867 = vmul.f32 %v2856, 1.442695
    %v2868 = vpow.pop %v2867
    %v2869 = vmul.f32 %v2857, 1.442695
    %v2870 = vpow.pop %v2869
    %v2871 = vmul.f32 %v2858, 1.442695
    %v2872 = vpow.pop %v2871
    %v2873 = vmul.f32 %v2859, 1.442695
    %v2874 = vpow.pop %v2873
    %v2875 = vmul.f32 %v2860, 1.442695
    %v2876 = vpow.pop %v2875
    %v2877 = vsel %vm2828, %v2862, 0.0
    %2878 = vadd.xlane.f32.xlu0 %v2877
    %v2879 = vpop.xlane.xlu0 %2878
    %v2880 = vsel %vm2828, %v2864, 0.0
    %2881 = vadd.xlane.f32.xlu0 %v2880
    %v2882 = vpop.xlane.xlu0 %2881
    %v2883 = vsel %vm2828, %v2866, 0.0
    %2884 = vadd.xlane.f32.xlu0 %v2883
    %v2885 = vpop.xlane.xlu0 %2884
    %v2886 = vsel %vm2828, %v2868, 0.0
    %2887 = vadd.xlane.f32.xlu0 %v2886
    %v2888 = vpop.xlane.xlu0 %2887
    %v2889 = vsel %vm2828, %v2870, 0.0
    %2890 = vadd.xlane.f32.xlu0 %v2889
    %v2891 = vpop.xlane.xlu0 %2890
    %v2892 = vsel %vm2828, %v2872, 0.0
    %2893 = vadd.xlane.f32.xlu0 %v2892
    %v2894 = vpop.xlane.xlu0 %2893
    %v2895 = vsel %vm2828, %v2874, 0.0
    %2896 = vadd.xlane.f32.xlu0 %v2895
    %v2897 = vpop.xlane.xlu0 %2896
    %v2898 = vsel %vm2828, %v2876, 0.0
    %2899 = vadd.xlane.f32.xlu0 %v2898
    %v2900 = vpop.xlane.xlu0 %2899
    %v2901 = vrcp.pop %v2879
    %v2902 = vrcp.pop %v2882
    %v2903 = vrcp.pop %v2885
    %v2904 = vrcp.pop %v2888
    %v2905 = vrcp.pop %v2891
    %v2906 = vrcp.pop %v2894
    %v2907 = vrcp.pop %v2897
    %v2908 = vrcp.pop %v2900
    %v2909 = vmul.f32 %v2862, %v2901
    %v2910 = vmul.f32 %v2864, %v2902
    %v2911 = vmul.f32 %v2866, %v2903
    %v2912 = vmul.f32 %v2868, %v2904
    %v2913 = vmul.f32 %v2870, %v2905
    %v2914 = vmul.f32 %v2872, %v2906
    %v2915 = vmul.f32 %v2874, %v2907
    %v2916 = vmul.f32 %v2876, %v2908
    %v2917 = vsel %vm2828, %v2909, 0.0
    %v2918 = vrot.slane %v2917, 4
    %v2919 = vadd.f32 %v2917, %v2918
    %v2920 = vrot.slane %v2919, 2
    %v2921 = vadd.f32 %v2919, %v2920
    %v2922 = vrot.slane %v2921, 1
    %v2923 = vadd.f32 %v2921, %v2922
    %v2924 = vsel %vm2828, %v2910, 0.0
    %v2925 = vrot.slane %v2924, 4
    %v2926 = vadd.f32 %v2924, %v2925
    %v2927 = vrot.slane %v2926, 2
    %v2928 = vadd.f32 %v2926, %v2927
    %v2929 = vrot.slane %v2928, 1
    %v2930 = vadd.f32 %v2928, %v2929
    %v2931 = vsel %vm2828, %v2911, 0.0
    %v2932 = vrot.slane %v2931, 4
    %v2933 = vadd.f32 %v2931, %v2932
    %v2934 = vrot.slane %v2933, 2
    %v2935 = vadd.f32 %v2933, %v2934
    %v2936 = vrot.slane %v2935, 1
    %v2937 = vadd.f32 %v2935, %v2936
    %v2938 = vsel %vm2828, %v2912, 0.0
    %v2939 = vrot.slane %v2938, 4
    %v2940 = vadd.f32 %v2938, %v2939
    %v2941 = vrot.slane %v2940, 2
    %v2942 = vadd.f32 %v2940, %v2941
    %v2943 = vrot.slane %v2942, 1
    %v2944 = vadd.f32 %v2942, %v2943
    %v2945 = vsel %vm2828, %v2913, 0.0
    %v2946 = vrot.slane %v2945, 4
    %v2947 = vadd.f32 %v2945, %v2946
    %v2948 = vrot.slane %v2947, 2
    %v2949 = vadd.f32 %v2947, %v2948
    %v2950 = vrot.slane %v2949, 1
    %v2951 = vadd.f32 %v2949, %v2950
    %v2952 = vsel %vm2828, %v2914, 0.0
    %v2953 = vrot.slane %v2952, 4
    %v2954 = vadd.f32 %v2952, %v2953
    %v2955 = vrot.slane %v2954, 2
    %v2956 = vadd.f32 %v2954, %v2955
    %v2957 = vrot.slane %v2956, 1
    %v2958 = vadd.f32 %v2956, %v2957
    %v2959 = vsel %vm2828, %v2915, 0.0
    %v2960 = vrot.slane %v2959, 4
    %v2961 = vadd.f32 %v2959, %v2960
    %v2962 = vrot.slane %v2961, 2
    %v2963 = vadd.f32 %v2961, %v2962
    %v2964 = vrot.slane %v2963, 1
    %v2965 = vadd.f32 %v2963, %v2964
    %v2966 = vsel %vm2828, %v2916, 0.0
    %v2967 = vrot.slane %v2966, 4
    %v2968 = vadd.f32 %v2966, %v2967
    %v2969 = vrot.slane %v2968, 2
    %v2970 = vadd.f32 %v2968, %v2969
    %v2971 = vrot.slane %v2970, 1
    %v2972 = vadd.f32 %v2970, %v2971
    %v2973 = vpack.c.bf16 %v2923, %v2923
    %v2974 = vpack.c.bf16 %v2930, %v2930
    %v2975 = vpack.c.bf16 %v2937, %v2937
    %v2976 = vpack.c.bf16 %v2944, %v2944
    %v2977 = vpack.c.bf16 %v2951, %v2951
    %v2978 = vpack.c.bf16 %v2958, %v2958
    %v2979 = vpack.c.bf16 %v2965, %v2965
    %v2980 = vpack.c.bf16 %v2972, %v2972
    %2981 = vrot.lane.b32.xlu0 %v2305, 64
    %v2982 = vpop.permute.xlu0 %2981
    %v2984 = vsel %vm2828, %v2973, 0
    %vm2986 = vcmask 1043456
    %v2988 = vsel %vm2986, %v2982, 0
    %2990 = vmatprep.subr.bf16.mxu0 0
    %2991 = vmatpush1.bf16.msra.mxu0 0
    %2992 = vmatprep.subr.bf16.mxu0 0
    %2993 = vmatpush1.bf16.msra.mxu0 0
    %2994 = vmatprep.subr.bf16.mxu0 0
    %2995 = vmatpush1.bf16.msra.mxu0 0
    %2996 = vmatprep.subr.bf16.mxu0 0
    %2997 = vmatpush1.bf16.msra.mxu0 0
    %2998 = vmatprep.subr.bf16.mxu0 0
    %2999 = vmatpush1.bf16.msra.mxu0 0
    %3000 = vmatprep.subr.bf16.mxu0 0
    %3001 = vmatpush1.bf16.msra.mxu0 0
    %3002 = vmatprep.subr.bf16.mxu0 0
    %3003 = vmatpush1.bf16.msra.mxu0 0
    %3004 = vmatprep.subr.bf16.mxu0 0
    %3005 = vmatpush1.bf16.msra.mxu0 %v2988
    %3006 = vmatprep.subr.bf16.mxu0 0
    %3007 = vmatpush2.bf16.msra.mxu0 0
    %3008 = vmatprep.subr.bf16.mxu0 0
    %3009 = vmatpush2.bf16.msra.mxu0 0
    %3010 = vmatprep.subr.bf16.mxu0 0
    %3011 = vmatpush2.bf16.msra.mxu0 0
    %3012 = vmatprep.subr.bf16.mxu0 0
    %3013 = vmatpush2.bf16.msra.mxu0 0
    %3014 = vmatprep.subr.bf16.mxu0 0
    %3015 = vmatpush2.bf16.msra.mxu0 0
    %3016 = vmatprep.subr.bf16.mxu0 0
    %3017 = vmatpush2.bf16.msra.mxu0 0
    %3018 = vmatprep.subr.bf16.mxu0 0
    %3019 = vmatpush2.bf16.msra.mxu0 0
    %3020 = vmatprep.subr.bf16.mxu0 0
    %3021 = vmatpush2.bf16.msra.mxu0 0
    %3022 = vmatprep.mubr.bf16.mxu0 0
    %3023 = vmatmul.mubr.bf16.gmra.mxu0 %v2984
    %v3024 = vpop.f32.mrf.mxu0
    %v3025 = vadd.f32 0.0, %v3024
    %v3026 = vpop.f32.mrf.mxu0
    %v3027 = vpop.f32.mrf.mxu0
    %v3028 = vpop.f32.mrf.mxu0
    %3029 = vdwg.mxu0
    %3030 = vrot.lane.b32.xlu0 %v2306, 64
    %v3031 = vpop.permute.xlu0 %3030
    %v3033 = vsel %vm2828, %v2974, 0
    %v3036 = vsel %vm2986, %v3031, 0
    %3038 = vmatprep.subr.bf16.mxu0 0
    %3039 = vmatpush1.bf16.msra.mxu0 0
    %3040 = vmatprep.subr.bf16.mxu0 0
    %3041 = vmatpush1.bf16.msra.mxu0 0
    %3042 = vmatprep.subr.bf16.mxu0 0
    %3043 = vmatpush1.bf16.msra.mxu0 0
    %3044 = vmatprep.subr.bf16.mxu0 0
    %3045 = vmatpush1.bf16.msra.mxu0 0
    %3046 = vmatprep.subr.bf16.mxu0 0
    %3047 = vmatpush1.bf16.msra.mxu0 0
    %3048 = vmatprep.subr.bf16.mxu0 0
    %3049 = vmatpush1.bf16.msra.mxu0 0
    %3050 = vmatprep.subr.bf16.mxu0 0
    %3051 = vmatpush1.bf16.msra.mxu0 0
    %3052 = vmatprep.subr.bf16.mxu0 0
    %3053 = vmatpush1.bf16.msra.mxu0 %v3036
    %3054 = vmatprep.subr.bf16.mxu0 0
    %3055 = vmatpush2.bf16.msra.mxu0 0
    %3056 = vmatprep.subr.bf16.mxu0 0
    %3057 = vmatpush2.bf16.msra.mxu0 0
    %3058 = vmatprep.subr.bf16.mxu0 0
    %3059 = vmatpush2.bf16.msra.mxu0 0
    %3060 = vmatprep.subr.bf16.mxu0 0
    %3061 = vmatpush2.bf16.msra.mxu0 0
    %3062 = vmatprep.subr.bf16.mxu0 0
    %3063 = vmatpush2.bf16.msra.mxu0 0
    %3064 = vmatprep.subr.bf16.mxu0 0
    %3065 = vmatpush2.bf16.msra.mxu0 0
    %3066 = vmatprep.subr.bf16.mxu0 0
    %3067 = vmatpush2.bf16.msra.mxu0 0
    %3068 = vmatprep.subr.bf16.mxu0 0
    %3069 = vmatpush2.bf16.msra.mxu0 0
    %3070 = vmatprep.mubr.bf16.mxu0 0
    %3071 = vmatmul.mubr.bf16.gmra.mxu0 %v3033
    %v3072 = vpop.f32.mrf.mxu0
    %v3073 = vadd.f32 0.0, %v3072
    %v3074 = vpop.f32.mrf.mxu0
    %v3075 = vpop.f32.mrf.mxu0
    %v3076 = vpop.f32.mrf.mxu0
    %3077 = vdwg.mxu0
    %3078 = vrot.lane.b32.xlu0 %v2307, 64
    %v3079 = vpop.permute.xlu0 %3078
    %v3081 = vsel %vm2828, %v2975, 0
    %v3084 = vsel %vm2986, %v3079, 0
    %3086 = vmatprep.subr.bf16.mxu0 0
    %3087 = vmatpush1.bf16.msra.mxu0 0
    %3088 = vmatprep.subr.bf16.mxu0 0
    %3089 = vmatpush1.bf16.msra.mxu0 0
    %3090 = vmatprep.subr.bf16.mxu0 0
    %3091 = vmatpush1.bf16.msra.mxu0 0
    %3092 = vmatprep.subr.bf16.mxu0 0
    %3093 = vmatpush1.bf16.msra.mxu0 0
    %3094 = vmatprep.subr.bf16.mxu0 0
    %3095 = vmatpush1.bf16.msra.mxu0 0
    %3096 = vmatprep.subr.bf16.mxu0 0
    %3097 = vmatpush1.bf16.msra.mxu0 0
    %3098 = vmatprep.subr.bf16.mxu0 0
    %3099 = vmatpush1.bf16.msra.mxu0 0
    %3100 = vmatprep.subr.bf16.mxu0 0
    %3101 = vmatpush1.bf16.msra.mxu0 %v3084
    %3102 = vmatprep.subr.bf16.mxu0 0
    %3103 = vmatpush2.bf16.msra.mxu0 0
    %3104 = vmatprep.subr.bf16.mxu0 0
    %3105 = vmatpush2.bf16.msra.mxu0 0
    %3106 = vmatprep.subr.bf16.mxu0 0
    %3107 = vmatpush2.bf16.msra.mxu0 0
    %3108 = vmatprep.subr.bf16.mxu0 0
    %3109 = vmatpush2.bf16.msra.mxu0 0
    %3110 = vmatprep.subr.bf16.mxu0 0
    %3111 = vmatpush2.bf16.msra.mxu0 0
    %3112 = vmatprep.subr.bf16.mxu0 0
    %3113 = vmatpush2.bf16.msra.mxu0 0
    %3114 = vmatprep.subr.bf16.mxu0 0
    %3115 = vmatpush2.bf16.msra.mxu0 0
    %3116 = vmatprep.subr.bf16.mxu0 0
    %3117 = vmatpush2.bf16.msra.mxu0 0
    %3118 = vmatprep.mubr.bf16.mxu0 0
    %3119 = vmatmul.mubr.bf16.gmra.mxu0 %v3081
    %v3120 = vpop.f32.mrf.mxu0
    %v3121 = vadd.f32 0.0, %v3120
    %v3122 = vpop.f32.mrf.mxu0
    %v3123 = vpop.f32.mrf.mxu0
    %v3124 = vpop.f32.mrf.mxu0
    %3125 = vdwg.mxu0
    %3126 = vrot.lane.b32.xlu0 %v2308, 64
    %v3127 = vpop.permute.xlu0 %3126
    %v3129 = vsel %vm2828, %v2976, 0
    %v3132 = vsel %vm2986, %v3127, 0
    %3134 = vmatprep.subr.bf16.mxu0 0
    %3135 = vmatpush1.bf16.msra.mxu0 0
    %3136 = vmatprep.subr.bf16.mxu0 0
    %3137 = vmatpush1.bf16.msra.mxu0 0
    %3138 = vmatprep.subr.bf16.mxu0 0
    %3139 = vmatpush1.bf16.msra.mxu0 0
    %3140 = vmatprep.subr.bf16.mxu0 0
    %3141 = vmatpush1.bf16.msra.mxu0 0
    %3142 = vmatprep.subr.bf16.mxu0 0
    %3143 = vmatpush1.bf16.msra.mxu0 0
    %3144 = vmatprep.subr.bf16.mxu0 0
    %3145 = vmatpush1.bf16.msra.mxu0 0
    %3146 = vmatprep.subr.bf16.mxu0 0
    %3147 = vmatpush1.bf16.msra.mxu0 0
    %3148 = vmatprep.subr.bf16.mxu0 0
    %3149 = vmatpush1.bf16.msra.mxu0 %v3132
    %3150 = vmatprep.subr.bf16.mxu0 0
    %3151 = vmatpush2.bf16.msra.mxu0 0
    %3152 = vmatprep.subr.bf16.mxu0 0
    %3153 = vmatpush2.bf16.msra.mxu0 0
    %3154 = vmatprep.subr.bf16.mxu0 0
    %3155 = vmatpush2.bf16.msra.mxu0 0
    %3156 = vmatprep.subr.bf16.mxu0 0
    %3157 = vmatpush2.bf16.msra.mxu0 0
    %3158 = vmatprep.subr.bf16.mxu0 0
    %3159 = vmatpush2.bf16.msra.mxu0 0
    %3160 = vmatprep.subr.bf16.mxu0 0
    %3161 = vmatpush2.bf16.msra.mxu0 0
    %3162 = vmatprep.subr.bf16.mxu0 0
    %3163 = vmatpush2.bf16.msra.mxu0 0
    %3164 = vmatprep.subr.bf16.mxu0 0
    %3165 = vmatpush2.bf16.msra.mxu0 0
    %3166 = vmatprep.mubr.bf16.mxu0 0
    %3167 = vmatmul.mubr.bf16.gmra.mxu0 %v3129
    %v3168 = vpop.f32.mrf.mxu0
    %v3169 = vadd.f32 0.0, %v3168
    %v3170 = vpop.f32.mrf.mxu0
    %v3171 = vpop.f32.mrf.mxu0
    %v3172 = vpop.f32.mrf.mxu0
    %3173 = vdwg.mxu0
    %3174 = vrot.lane.b32.xlu0 %v2309, 64
    %v3175 = vpop.permute.xlu0 %3174
    %v3177 = vsel %vm2828, %v2977, 0
    %v3180 = vsel %vm2986, %v3175, 0
    %3182 = vmatprep.subr.bf16.mxu0 0
    %3183 = vmatpush1.bf16.msra.mxu0 0
    %3184 = vmatprep.subr.bf16.mxu0 0
    %3185 = vmatpush1.bf16.msra.mxu0 0
    %3186 = vmatprep.subr.bf16.mxu0 0
    %3187 = vmatpush1.bf16.msra.mxu0 0
    %3188 = vmatprep.subr.bf16.mxu0 0
    %3189 = vmatpush1.bf16.msra.mxu0 0
    %3190 = vmatprep.subr.bf16.mxu0 0
    %3191 = vmatpush1.bf16.msra.mxu0 0
    %3192 = vmatprep.subr.bf16.mxu0 0
    %3193 = vmatpush1.bf16.msra.mxu0 0
    %3194 = vmatprep.subr.bf16.mxu0 0
    %3195 = vmatpush1.bf16.msra.mxu0 0
    %3196 = vmatprep.subr.bf16.mxu0 0
    %3197 = vmatpush1.bf16.msra.mxu0 %v3180
    %3198 = vmatprep.subr.bf16.mxu0 0
    %3199 = vmatpush2.bf16.msra.mxu0 0
    %3200 = vmatprep.subr.bf16.mxu0 0
    %3201 = vmatpush2.bf16.msra.mxu0 0
    %3202 = vmatprep.subr.bf16.mxu0 0
    %3203 = vmatpush2.bf16.msra.mxu0 0
    %3204 = vmatprep.subr.bf16.mxu0 0
    %3205 = vmatpush2.bf16.msra.mxu0 0
    %3206 = vmatprep.subr.bf16.mxu0 0
    %3207 = vmatpush2.bf16.msra.mxu0 0
    %3208 = vmatprep.subr.bf16.mxu0 0
    %3209 = vmatpush2.bf16.msra.mxu0 0
    %3210 = vmatprep.subr.bf16.mxu0 0
    %3211 = vmatpush2.bf16.msra.mxu0 0
    %3212 = vmatprep.subr.bf16.mxu0 0
    %3213 = vmatpush2.bf16.msra.mxu0 0
    %3214 = vmatprep.mubr.bf16.mxu0 0
    %3215 = vmatmul.mubr.bf16.gmra.mxu0 %v3177
    %v3216 = vpop.f32.mrf.mxu0
    %v3217 = vadd.f32 0.0, %v3216
    %v3218 = vpop.f32.mrf.mxu0
    %v3219 = vpop.f32.mrf.mxu0
    %v3220 = vpop.f32.mrf.mxu0
    %3221 = vdwg.mxu0
    %3222 = vrot.lane.b32.xlu0 %v2310, 64
    %v3223 = vpop.permute.xlu0 %3222
    %v3225 = vsel %vm2828, %v2978, 0
    %v3228 = vsel %vm2986, %v3223, 0
    %3230 = vmatprep.subr.bf16.mxu0 0
    %3231 = vmatpush1.bf16.msra.mxu0 0
    %3232 = vmatprep.subr.bf16.mxu0 0
    %3233 = vmatpush1.bf16.msra.mxu0 0
    %3234 = vmatprep.subr.bf16.mxu0 0
    %3235 = vmatpush1.bf16.msra.mxu0 0
    %3236 = vmatprep.subr.bf16.mxu0 0
    %3237 = vmatpush1.bf16.msra.mxu0 0
    %3238 = vmatprep.subr.bf16.mxu0 0
    %3239 = vmatpush1.bf16.msra.mxu0 0
    %3240 = vmatprep.subr.bf16.mxu0 0
    %3241 = vmatpush1.bf16.msra.mxu0 0
    %3242 = vmatprep.subr.bf16.mxu0 0
    %3243 = vmatpush1.bf16.msra.mxu0 0
    %3244 = vmatprep.subr.bf16.mxu0 0
    %3245 = vmatpush1.bf16.msra.mxu0 %v3228
    %3246 = vmatprep.subr.bf16.mxu0 0
    %3247 = vmatpush2.bf16.msra.mxu0 0
    %3248 = vmatprep.subr.bf16.mxu0 0
    %3249 = vmatpush2.bf16.msra.mxu0 0
    %3250 = vmatprep.subr.bf16.mxu0 0
    %3251 = vmatpush2.bf16.msra.mxu0 0
    %3252 = vmatprep.subr.bf16.mxu0 0
    %3253 = vmatpush2.bf16.msra.mxu0 0
    %3254 = vmatprep.subr.bf16.mxu0 0
    %3255 = vmatpush2.bf16.msra.mxu0 0
    %3256 = vmatprep.subr.bf16.mxu0 0
    %3257 = vmatpush2.bf16.msra.mxu0 0
    %3258 = vmatprep.subr.bf16.mxu0 0
    %3259 = vmatpush2.bf16.msra.mxu0 0
    %3260 = vmatprep.subr.bf16.mxu0 0
    %3261 = vmatpush2.bf16.msra.mxu0 0
    %3262 = vmatprep.mubr.bf16.mxu0 0
    %3263 = vmatmul.mubr.bf16.gmra.mxu0 %v3225
    %v3264 = vpop.f32.mrf.mxu0
    %v3265 = vadd.f32 0.0, %v3264
    %v3266 = vpop.f32.mrf.mxu0
    %v3267 = vpop.f32.mrf.mxu0
    %v3268 = vpop.f32.mrf.mxu0
    %3269 = vdwg.mxu0
    %3270 = vrot.lane.b32.xlu0 %v2311, 64
    %v3271 = vpop.permute.xlu0 %3270
    %v3273 = vsel %vm2828, %v2979, 0
    %v3276 = vsel %vm2986, %v3271, 0
    %3278 = vmatprep.subr.bf16.mxu0 0
    %3279 = vmatpush1.bf16.msra.mxu0 0
    %3280 = vmatprep.subr.bf16.mxu0 0
    %3281 = vmatpush1.bf16.msra.mxu0 0
    %3282 = vmatprep.subr.bf16.mxu0 0
    %3283 = vmatpush1.bf16.msra.mxu0 0
    %3284 = vmatprep.subr.bf16.mxu0 0
    %3285 = vmatpush1.bf16.msra.mxu0 0
    %3286 = vmatprep.subr.bf16.mxu0 0
    %3287 = vmatpush1.bf16.msra.mxu0 0
    %3288 = vmatprep.subr.bf16.mxu0 0
    %3289 = vmatpush1.bf16.msra.mxu0 0
    %3290 = vmatprep.subr.bf16.mxu0 0
    %3291 = vmatpush1.bf16.msra.mxu0 0
    %3292 = vmatprep.subr.bf16.mxu0 0
    %3293 = vmatpush1.bf16.msra.mxu0 %v3276
    %3294 = vmatprep.subr.bf16.mxu0 0
    %3295 = vmatpush2.bf16.msra.mxu0 0
    %3296 = vmatprep.subr.bf16.mxu0 0
    %3297 = vmatpush2.bf16.msra.mxu0 0
    %3298 = vmatprep.subr.bf16.mxu0 0
    %3299 = vmatpush2.bf16.msra.mxu0 0
    %3300 = vmatprep.subr.bf16.mxu0 0
    %3301 = vmatpush2.bf16.msra.mxu0 0
    %3302 = vmatprep.subr.bf16.mxu0 0
    %3303 = vmatpush2.bf16.msra.mxu0 0
    %3304 = vmatprep.subr.bf16.mxu0 0
    %3305 = vmatpush2.bf16.msra.mxu0 0
    %3306 = vmatprep.subr.bf16.mxu0 0
    %3307 = vmatpush2.bf16.msra.mxu0 0
    %3308 = vmatprep.subr.bf16.mxu0 0
    %3309 = vmatpush2.bf16.msra.mxu0 0
    %3310 = vmatprep.mubr.bf16.mxu0 0
    %3311 = vmatmul.mubr.bf16.gmra.mxu0 %v3273
    %v3312 = vpop.f32.mrf.mxu0
    %v3313 = vadd.f32 0.0, %v3312
    %v3314 = vpop.f32.mrf.mxu0
    %v3315 = vpop.f32.mrf.mxu0
    %v3316 = vpop.f32.mrf.mxu0
    %3317 = vdwg.mxu0
    %3318 = vrot.lane.b32.xlu0 %v2312, 64
    %v3319 = vpop.permute.xlu0 %3318
    %v3321 = vsel %vm2828, %v2980, 0
    %v3324 = vsel %vm2986, %v3319, 0
    %3326 = vmatprep.subr.bf16.mxu0 0
    %3327 = vmatpush1.bf16.msra.mxu0 0
    %3328 = vmatprep.subr.bf16.mxu0 0
    %3329 = vmatpush1.bf16.msra.mxu0 0
    %3330 = vmatprep.subr.bf16.mxu0 0
    %3331 = vmatpush1.bf16.msra.mxu0 0
    %3332 = vmatprep.subr.bf16.mxu0 0
    %3333 = vmatpush1.bf16.msra.mxu0 0
    %3334 = vmatprep.subr.bf16.mxu0 0
    %3335 = vmatpush1.bf16.msra.mxu0 0
    %3336 = vmatprep.subr.bf16.mxu0 0
    %3337 = vmatpush1.bf16.msra.mxu0 0
    %3338 = vmatprep.subr.bf16.mxu0 0
    %3339 = vmatpush1.bf16.msra.mxu0 0
    %3340 = vmatprep.subr.bf16.mxu0 0
    %3341 = vmatpush1.bf16.msra.mxu0 %v3324
    %3342 = vmatprep.subr.bf16.mxu0 0
    %3343 = vmatpush2.bf16.msra.mxu0 0
    %3344 = vmatprep.subr.bf16.mxu0 0
    %3345 = vmatpush2.bf16.msra.mxu0 0
    %3346 = vmatprep.subr.bf16.mxu0 0
    %3347 = vmatpush2.bf16.msra.mxu0 0
    %3348 = vmatprep.subr.bf16.mxu0 0
    %3349 = vmatpush2.bf16.msra.mxu0 0
    %3350 = vmatprep.subr.bf16.mxu0 0
    %3351 = vmatpush2.bf16.msra.mxu0 0
    %3352 = vmatprep.subr.bf16.mxu0 0
    %3353 = vmatpush2.bf16.msra.mxu0 0
    %3354 = vmatprep.subr.bf16.mxu0 0
    %3355 = vmatpush2.bf16.msra.mxu0 0
    %3356 = vmatprep.subr.bf16.mxu0 0
    %3357 = vmatpush2.bf16.msra.mxu0 0
    %3358 = vmatprep.mubr.bf16.mxu0 0
    %3359 = vmatmul.mubr.bf16.gmra.mxu0 %v3321
    %v3360 = vpop.f32.mrf.mxu0
    %v3361 = vadd.f32 0.0, %v3360
    %v3362 = vpop.f32.mrf.mxu0
    %v3363 = vpop.f32.mrf.mxu0
    %v3364 = vpop.f32.mrf.mxu0
    %3365 = vdwg.mxu0
    %v3366 = vpack.c.bf16 %v3025, %v3025
    %v3367 = vpack.c.bf16 %v3073, %v3073
    %v3368 = vpack.c.bf16 %v3121, %v3121
    %v3369 = vpack.c.bf16 %v3169, %v3169
    %v3370 = vpack.c.bf16 %v3217, %v3217
    %v3371 = vpack.c.bf16 %v3265, %v3265
    %v3372 = vpack.c.bf16 %v3313, %v3313
    %v3373 = vpack.c.bf16 %v3361, %v3361
    %v3374 = vld [vmem:[%s7] sm:$0xf]
    %v3375 = vld [vmem:[%s7 + $0x4] sm:$0xf]
    %v3376 = vld [vmem:[%s7 + $0x8] sm:$0xf]
    %v3377 = vld [vmem:[%s7 + $0xc] sm:$0xf]
    %v3378 = vld [vmem:[%s8] sm:$0x1]
    %v3380 = vlaneseq
    %v3381 = vshrl.u32 %v3380, 7
    %v3382 = vsub.s32 0, %v3381
    %v3383 = vrot.slane %v3378, %v3382
    %v3393 = vunpack.c.l.b16 %v3366
    %v3394 = vunpack.c.l.b16 %v3367
    %v3395 = vunpack.c.l.b16 %v3368
    %v3396 = vunpack.c.l.b16 %v3369
    %v3397 = vunpack.c.l.b16 %v3370
    %v3398 = vunpack.c.l.b16 %v3371
    %v3399 = vunpack.c.l.b16 %v3372
    %v3400 = vunpack.c.l.b16 %v3373
    %v3401 = vrot.slane %v3394, 7
    %vm3402 = vcmask 1041409
    %v3403 = vsel %vm3402, %v3401, %v3393
    %v3404 = vrot.slane %v3395, 6
    %vm3405 = vcmask 1042434
    %v3406 = vsel %vm3405, %v3404, %v3403
    %v3407 = vrot.slane %v3396, 5
    %vm3408 = vcmask 1043459
    %v3409 = vsel %vm3408, %v3407, %v3406
    %v3410 = vrot.slane %v3397, 4
    %vm3411 = vcmask 1044484
    %v3412 = vsel %vm3411, %v3410, %v3409
    %v3413 = vrot.slane %v3398, 3
    %vm3414 = vcmask 1045509
    %v3415 = vsel %vm3414, %v3413, %v3412
    %v3416 = vrot.slane %v3399, 2
    %vm3417 = vcmask 1046534
    %v3418 = vsel %vm3417, %v3416, %v3415
    %v3419 = vrot.slane %v3400, 1
    %vm3420 = vcmask 1047559
    %v3421 = vsel %vm3420, %v3419, %v3418
    %v3422 = vpack.c.b16 %v3421, %v3421
    %v3427 = vunpack.c.l.b16 %v3374
    %v3428 = vunpack.c.l.b16 %v3375
    %v3429 = vunpack.c.l.b16 %v3376
    %v3430 = vunpack.c.l.b16 %v3377
    %v3431 = vpack.c.b16 %v3428, %v3427
    %v3432 = vpack.c.b16 %v3430, %v3429
    %v3436 = vsel %vm254, %v3422, 0
    %3438 = vmatprep.subr.bf16.mxu0 0
    %3439 = vmatpush1.bf16.msra.mxu0 0
    %3440 = vmatprep.subr.bf16.mxu0 0
    %3441 = vmatpush1.bf16.msra.mxu0 0
    %3442 = vmatprep.subr.bf16.mxu0 0
    %3443 = vmatpush1.bf16.msra.mxu0 0
    %3444 = vmatprep.subr.bf16.mxu0 0
    %3445 = vmatpush1.bf16.msra.mxu0 0
    %3446 = vmatprep.subr.bf16.mxu0 0
    %3447 = vmatpush1.bf16.msra.mxu0 0
    %3448 = vmatprep.subr.bf16.mxu0 0
    %3449 = vmatpush1.bf16.msra.mxu0 0
    %3450 = vmatprep.subr.bf16.mxu0 0
    %3451 = vmatpush1.bf16.msra.mxu0 %v3432
    %3452 = vmatprep.subr.bf16.mxu0 0
    %3453 = vmatpush1.bf16.msra.mxu0 %v3431
    %3454 = vmatprep.subr.bf16.mxu0 0
    %3455 = vmatpush2.bf16.msra.mxu0 0
    %3456 = vmatprep.subr.bf16.mxu0 0
    %3457 = vmatpush2.bf16.msra.mxu0 0
    %3458 = vmatprep.subr.bf16.mxu0 0
    %3459 = vmatpush2.bf16.msra.mxu0 0
    %3460 = vmatprep.subr.bf16.mxu0 0
    %3461 = vmatpush2.bf16.msra.mxu0 0
    %3462 = vmatprep.subr.bf16.mxu0 0
    %3463 = vmatpush2.bf16.msra.mxu0 0
    %3464 = vmatprep.subr.bf16.mxu0 0
    %3465 = vmatpush2.bf16.msra.mxu0 0
    %3466 = vmatprep.subr.bf16.mxu0 0
    %3467 = vmatpush2.bf16.msra.mxu0 0
    %3468 = vmatprep.subr.bf16.mxu0 0
    %3469 = vmatpush2.bf16.msra.mxu0 0
    %3470 = vmatprep.mubr.bf16.mxu0 0
    %3471 = vmatmul.mubr.bf16.gmra.mxu0 %v3436
    %v3472 = vpop.f32.mrf.mxu0
    %v3473 = vadd.f32 %v3383, %v3472
    %v3474 = vpop.f32.mrf.mxu0
    %v3475 = vpop.f32.mrf.mxu0
    %v3476 = vpop.f32.mrf.mxu0
    %3477 = vdwg.mxu0
    %vm3478 = vcmask 31744
    %3479 = vst.msk [vmem:[%s9] sm:$0xff] %vm3478, %v3473
    // Predicated region
    $region54: #{tpu_custom_call.1} parent=1 // pred_check
      _
    $region55: #{tpu_custom_call.1} parent=1 // pred_check_branch
      %3481 = sbr.rel (0) target = $region57
    $region56: #{tpu_custom_call.1} parent=1 // pred_region
      _
    $region57: #{tpu_custom_call.1} parent=1 // pred_fallthru
      _
    // Predicated region
    $region58: #{tpu_custom_call.1} parent=1 // pred_check
      _
    $region59: #{tpu_custom_call.1} parent=1 // pred_check_branch
      %3483 = sbr.rel (0) target = $region61
    $region60: #{tpu_custom_call.1} parent=1 // pred_region
      _
    $region61: #{tpu_custom_call.1} parent=1 // pred_fallthru
      _
    %3484 = vsyncpa [#allocation6], 1
    %3485 = vsyncpa [#allocation8], 1
    %3486 = vsyncpa [#allocation11], 1

// kernel: tpu_custom_call.1
$region0: #{tpu_custom_call.1}
  #allocation0 [shape = 'u32[]', space=smem, size = 0x4, offset = 0x4, fixed_abs, tag = 'smem constant byte address 0x4 - core index']
  #allocation1 [shape = 'u32[144,128]{1,0:T(1,128)}', space=vmem, size = 0x12000, scoped, tag = 'internal scratch']
  #allocation2 [shape = 'f32[8,8,256]{2,1,0:T(8,128)}', space=vmem, size = 0x10000, scoped, tag = 'scratch operand']
  #allocation3 [shape = 'f32[8,8,32]{2,1,0:T(8,128)}', space=vmem, size = 0x8000, scoped, tag = 'scratch operand']
  #allocation4 [shape = 'f32[8,8,32]{2,1,0:T(8,128)}', space=vmem, size = 0x8000, scoped, tag = 'scratch operand']
  %s0 = inlined_call_operand.hbm [shape: bf16[8,8,16], index: 0, kind: input, shape index: {}]
  %s1 = inlined_call_operand.vmem [shape: s32[8,1], index: 1, kind: input, shape index: {}]
  %s2 = inlined_call_operand.hbm [shape: bf16[16,256], index: 2, kind: input, shape index: {}]
  %s3 = inlined_call_operand.vmem [shape: f32[1,256], index: 3, kind: input, shape index: {}]
  %s4 = inlined_call_operand.vmem [shape: f32[32,128], index: 4, kind: input, shape index: {}]
  %s5 = inlined_call_operand.hbm [shape: f32[32,128], index: 5, kind: input, shape index: {}]
  %s6 = inlined_call_operand.hbm [shape: bf16[32,96], index: 6, kind: input, shape index: {}]
  %s7 = inlined_call_operand.vmem [shape: bf16[32,4], index: 7, kind: input, shape index: {}]
  %s8 = inlined_call_operand.vmem [shape: f32[1,4], index: 8, kind: input, shape index: {}]
  %s9 = inlined_call_operand.vmem [shape: f32[8,4], index: 9, kind: output, shape index: {}]
  %s10 = sld [smem:[#allocation0]]
  $region62: #{tpu_custom_call.1} parent=0
    _
  %s12 = ssub.s32 1, %s10
  %s13 = scalar_select 0, %s12, %s10
  $region1: #{tpu_custom_call.1} parent=0
    #allocation5 [shape = 'u8[16384]{0}', space=vmem, size = 0x4000, scoped, tag = 'input window, operand 0, single buffered']
    #allocation6 [shape = 's32[1]{0}', space=sflag, size = 0x4, scoped, tag = 'scoped memory for tpu_custom_call.1']
    #allocation7 [shape = 'u8[8192]{0}', space=vmem, size = 0x2000, scoped, tag = 'input window, operand 2, single buffered']
    #allocation8 [shape = 's32[1]{0}', space=sflag, size = 0x4, scoped, tag = 'scoped memory for tpu_custom_call.1']
    #allocation9 [shape = 'u8[16384]{0}', space=vmem, size = 0x4000, scoped, tag = 'input window, operand 5, single buffered']
    #allocation10 [shape = 'u8[8192]{0}', space=vmem, size = 0x2000, scoped, tag = 'input window, operand 6, single buffered']
    #allocation11 [shape = 's32[1]{0}', space=sflag, size = 0x4, scoped, tag = 'scoped memory for tpu_custom_call.1']
    %14 = vsyncpa [#allocation6], 0
    %15 = vsyncpa [#allocation8], 0
    %16 = vsyncpa [#allocation11], 0
    // Predicated region
    $region2: #{tpu_custom_call.1} parent=1 // pred_check
      _
    $region3: #{tpu_custom_call.1} parent=1 // pred_check_branch
      %18 = sbr.rel (0) target = $region5
    $region4: #{tpu_custom_call.1} parent=1 // pred_region
      %s20 = ssub.s32 512, 512
      %21 = vsyncadd [#allocation6], %s20
      %s22 = sshll.u32 [#allocation5], 4
      %s23 = int_to_ptr.vmem [resolvable:$true] %s22
      %28 = dma.hbm_to_vmem [thread:$0]  %s0, 512, %s23, [#allocation6], 64, 64, 4
    $region5: #{tpu_custom_call.1} parent=1 // pred_fallthru
      _
    // Predicated region
    $region6: #{tpu_custom_call.1} parent=1 // pred_check
      _
    $region7: #{tpu_custom_call.1} parent=1 // pred_check_branch
      %30 = sbr.rel (0) target = $region9
    $region8: #{tpu_custom_call.1} parent=1 // pred_region
      _
    $region9: #{tpu_custom_call.1} parent=1 // pred_fallthru
      _
    // Predicated region
    $region10: #{tpu_custom_call.1} parent=1 // pred_check
      _
    $region11: #{tpu_custom_call.1} parent=1 // pred_check_branch
      %32 = sbr.rel (0) target = $region13
    $region12: #{tpu_custom_call.1} parent=1 // pred_region
      %s34 = ssub.s32 256, 256
      %35 = vsyncadd [#allocation8], %s34
      %s36 = sshll.u32 [#allocation7], 4
      %s37 = int_to_ptr.vmem [resolvable:$true] %s36
      %42 = dma.hbm_to_vmem [thread:$0]  %s2, 256, %s37, [#allocation8], 128, 128, 8
    $region13: #{tpu_custom_call.1} parent=1 // pred_fallthru
      _
    // Predicated region
    $region14: #{tpu_custom_call.1} parent=1 // pred_check
      _
    $region15: #{tpu_custom_call.1} parent=1 // pred_check_branch
      %44 = sbr.rel (0) target = $region17
    $region16: #{tpu_custom_call.1} parent=1 // pred_region
      _
    $region17: #{tpu_custom_call.1} parent=1 // pred_fallthru
      _
    // Predicated region
    $region18: #{tpu_custom_call.1} parent=1 // pred_check
      _
    $region19: #{tpu_custom_call.1} parent=1 // pred_check_branch
      %46 = sbr.rel (0) target = $region21
    $region20: #{tpu_custom_call.1} parent=1 // pred_region
      _
    $region21: #{tpu_custom_call.1} parent=1 // pred_fallthru
      _
    // Predicated region
    $region22: #{tpu_custom_call.1} parent=1 // pred_check
      _
    $region23: #{tpu_custom_call.1} parent=1 // pred_check_branch
      %48 = sbr.rel (0) target = $region25
    $region24: #{tpu_custom_call.1} parent=1 // pred_region
      %s50 = ssub.s32 512, 512
      %51 = vsyncadd [#allocation8], %s50
      %s52 = sshll.u32 [#allocation9], 4
      %s53 = int_to_ptr.vmem [resolvable:$true] %s52
      %58 = dma.hbm_to_vmem [thread:$0]  %s5, 512, %s53, [#allocation8], 128, 128, 8
    $region25: #{tpu_custom_call.1} parent=1 // pred_fallthru
      _
    // Predicated region
    $region26: #{tpu_custom_call.1} parent=1 // pred_check
      _
    $region27: #{tpu_custom_call.1} parent=1 // pred_check_branch
      %60 = sbr.rel (0) target = $region29
    $region28: #{tpu_custom_call.1} parent=1 // pred_region
      %s62 = ssub.s32 256, 256
      %63 = vsyncadd [#allocation11], %s62
      %s64 = sshll.u32 [#allocation10], 4
      %s65 = int_to_ptr.vmem [resolvable:$true] %s64
      %70 = dma.hbm_to_vmem [thread:$0]  %s6, 256, %s65, [#allocation11], 64, 64, 4
    $region29: #{tpu_custom_call.1} parent=1 // pred_fallthru
      _
    // Predicated region
    $region30: #{tpu_custom_call.1} parent=1 // pred_check
      _
    $region31: #{tpu_custom_call.1} parent=1 // pred_check_branch
      %72 = sbr.rel (0) target = $region33
    $region32: #{tpu_custom_call.1} parent=1 // pred_region
      _
    $region33: #{tpu_custom_call.1} parent=1 // pred_fallthru
      _
    // Predicated region
    $region34: #{tpu_custom_call.1} parent=1 // pred_check
      _
    $region35: #{tpu_custom_call.1} parent=1 // pred_check_branch
      %74 = sbr.rel (0) target = $region37
    $region36: #{tpu_custom_call.1} parent=1 // pred_region
      _
    $region37: #{tpu_custom_call.1} parent=1 // pred_fallthru
      _
    // Predicated region
    $region38: #{tpu_custom_call.1} parent=1 // pred_check
      _
    $region39: #{tpu_custom_call.1} parent=1 // pred_check_branch
      %76 = sbr.rel (0) target = $region41
    $region40: #{tpu_custom_call.1} parent=1 // pred_region
      %77 = dma.done [#allocation6], 512
    $region41: #{tpu_custom_call.1} parent=1 // pred_fallthru
      _
    // Predicated region
    $region42: #{tpu_custom_call.1} parent=1 // pred_check
      _
    $region43: #{tpu_custom_call.1} parent=1 // pred_check_branch
      %79 = sbr.rel (0) target = $region45
    $region44: #{tpu_custom_call.1} parent=1 // pred_region
      %80 = dma.done [#allocation8], 256
    $region45: #{tpu_custom_call.1} parent=1 // pred_fallthru
      _
    // Predicated region
    $region46: #{tpu_custom_call.1} parent=1 // pred_check
      _
    $region47: #{tpu_custom_call.1} parent=1 // pred_check_branch
      %82 = sbr.rel (0) target = $region49
    $region48: #{tpu_custom_call.1} parent=1 // pred_region
      %83 = dma.done [#allocation8], 512
    $region49: #{tpu_custom_call.1} parent=1 // pred_fallthru
      _
    // Predicated region
    $region50: #{tpu_custom_call.1} parent=1 // pred_check
      _
    $region51: #{tpu_custom_call.1} parent=1 // pred_check_branch
      %85 = sbr.rel (0) target = $region53
    $region52: #{tpu_custom_call.1} parent=1 // pred_region
      %86 = dma.done [#allocation11], 256
    $region53: #{tpu_custom_call.1} parent=1 // pred_fallthru
      _
    %v88 = vld [vmem:[#allocation5] sm:$0xf]
    %v89 = vld [vmem:[#allocation5 + $0x4] sm:$0xf]
    %v90 = vld [vmem:[#allocation5 + $0x8] sm:$0xf]
    %v91 = vld [vmem:[#allocation5 + $0xc] sm:$0xf]
    %v92 = vld [vmem:[#allocation5 + $0x10] sm:$0xf]
    %v93 = vld [vmem:[#allocation5 + $0x14] sm:$0xf]
    %v94 = vld [vmem:[#allocation5 + $0x18] sm:$0xf]
    %v95 = vld [vmem:[#allocation5 + $0x1c] sm:$0xf]
    %v96 = vld [vmem:[#allocation7] sm:$0xff]
    %v97 = vld [vmem:[#allocation7 + $0x8] sm:$0xff]
    %v98 = vld [vmem:[%s3] sm:$0x3]
    %v100 = vlaneseq
    %v101 = vshrl.u32 %v100, 7
    %v102 = vsub.s32 0, %v101
    %v103 = vrot.slane %v98, %v102
    %v104 = vlaneseq
    %v105 = vshrl.u32 %v104, 7
    %v106 = vsub.s32 1, %v105
    %v107 = vrot.slane %v98, %v106
    %v118 = vunpack.c.l.b16 %v88
    %v119 = vunpack.c.l.b16 %v89
    %v120 = vunpack.c.l.b16 %v90
    %v121 = vunpack.c.l.b16 %v91
    %v122 = vunpack.c.l.b16 %v92
    %v123 = vunpack.c.l.b16 %v93
    %v124 = vunpack.c.l.b16 %v94
    %v125 = vunpack.c.l.b16 %v95
    %v126 = vpack.c.b16 %v119, %v118
    %v127 = vpack.c.b16 %v121, %v120
    %v128 = vpack.c.b16 %v123, %v122
    %v129 = vpack.c.b16 %v125, %v124
    %v132 = vunpack.c.l.b16 %v96
    %v133 = vunpack.c.h.b16 %v96
    %v134 = vunpack.c.l.b16 %v97
    %v135 = vunpack.c.h.b16 %v97
    %v136 = vpack.c.b16 %v134, %v132
    %v137 = vpack.c.b16 %v135, %v133
    %vm140 = vcmask 130048
    %v142 = vsel %vm140, %v126, 0
    %v145 = vsel %vm140, %v127, 0
    %v148 = vsel %vm140, %v128, 0
    %v151 = vsel %vm140, %v129, 0
    %153 = vmatprep.subr.bf16.mxu0 0
    %154 = vmatpush1.bf16.msra.mxu0 0
    %155 = vmatprep.subr.bf16.mxu0 0
    %156 = vmatpush1.bf16.msra.mxu0 0
    %157 = vmatprep.subr.bf16.mxu0 0
    %158 = vmatpush1.bf16.msra.mxu0 0
    %159 = vmatprep.subr.bf16.mxu0 0
    %160 = vmatpush1.bf16.msra.mxu0 0
    %161 = vmatprep.subr.bf16.mxu0 0
    %162 = vmatpush1.bf16.msra.mxu0 0
    %163 = vmatprep.subr.bf16.mxu0 0
    %164 = vmatpush1.bf16.msra.mxu0 0
    %165 = vmatprep.subr.bf16.mxu0 0
    %166 = vmatpush1.bf16.msra.mxu0 0
    %167 = vmatprep.subr.bf16.mxu0 %v137
    %168 = vmatpush1.bf16.msra.mxu0 %v136
    %169 = vmatprep.subr.bf16.mxu0 0
    %170 = vmatpush2.bf16.msra.mxu0 0
    %171 = vmatprep.subr.bf16.mxu0 0
    %172 = vmatpush2.bf16.msra.mxu0 0
    %173 = vmatprep.subr.bf16.mxu0 0
    %174 = vmatpush2.bf16.msra.mxu0 0
    %175 = vmatprep.subr.bf16.mxu0 0
    %176 = vmatpush2.bf16.msra.mxu0 0
    %177 = vmatprep.subr.bf16.mxu0 0
    %178 = vmatpush2.bf16.msra.mxu0 0
    %179 = vmatprep.subr.bf16.mxu0 0
    %180 = vmatpush2.bf16.msra.mxu0 0
    %181 = vmatprep.subr.bf16.mxu0 0
    %182 = vmatpush2.bf16.msra.mxu0 0
    %183 = vmatprep.subr.bf16.mxu0 0
    %184 = vmatpush2.bf16.msra.mxu0 0
    %185 = vmatprep.mubr.bf16.mxu0 0
    %186 = vmatmul.mubr.bf16.gmra.mxu0 %v142
    %v187 = vpop.f32.mrf.mxu0
    %v188 = vadd.f32 %v103, %v187
    %v189 = vpop.f32.mrf.mxu0
    %v190 = vadd.f32 %v107, %v189
    %v191 = vpop.f32.mrf.mxu0
    %v192 = vadd.f32 %v103, %v191
    %v193 = vpop.f32.mrf.mxu0
    %v194 = vadd.f32 %v107, %v193
    %195 = vmatprep.mubr.bf16.mxu0 0
    %196 = vmatmul.mubr.bf16.gmra.mxu0 %v145
    %v197 = vpop.f32.mrf.mxu0
    %v198 = vadd.f32 %v103, %v197
    %v199 = vpop.f32.mrf.mxu0
    %v200 = vadd.f32 %v107, %v199
    %v201 = vpop.f32.mrf.mxu0
    %v202 = vadd.f32 %v103, %v201
    %v203 = vpop.f32.mrf.mxu0
    %v204 = vadd.f32 %v107, %v203
    %205 = vmatprep.mubr.bf16.mxu0 0
    %206 = vmatmul.mubr.bf16.gmra.mxu0 %v148
    %v207 = vpop.f32.mrf.mxu0
    %v208 = vadd.f32 %v103, %v207
    %v209 = vpop.f32.mrf.mxu0
    %v210 = vadd.f32 %v107, %v209
    %v211 = vpop.f32.mrf.mxu0
    %v212 = vadd.f32 %v103, %v211
    %v213 = vpop.f32.mrf.mxu0
    %v214 = vadd.f32 %v107, %v213
    %215 = vmatprep.mubr.bf16.mxu0 0
    %216 = vmatmul.mubr.bf16.gmra.mxu0 %v151
    %v217 = vpop.f32.mrf.mxu0
    %v218 = vadd.f32 %v103, %v217
    %v219 = vpop.f32.mrf.mxu0
    %v220 = vadd.f32 %v107, %v219
    %v221 = vpop.f32.mrf.mxu0
    %v222 = vadd.f32 %v103, %v221
    %v223 = vpop.f32.mrf.mxu0
    %v224 = vadd.f32 %v107, %v223
    %225 = vdwg.mxu0
    %226 = vst [vmem:[#allocation2] sm:$0xff] %v188
    %227 = vst [vmem:[#allocation2 + $0x8] sm:$0xff] %v190
    %228 = vst [vmem:[#allocation2 + $0x10] sm:$0xff] %v192
    %229 = vst [vmem:[#allocation2 + $0x18] sm:$0xff] %v194
    %230 = vst [vmem:[#allocation2 + $0x20] sm:$0xff] %v198
    %231 = vst [vmem:[#allocation2 + $0x28] sm:$0xff] %v200
    %232 = vst [vmem:[#allocation2 + $0x30] sm:$0xff] %v202
    %233 = vst [vmem:[#allocation2 + $0x38] sm:$0xff] %v204
    %234 = vst [vmem:[#allocation2 + $0x40] sm:$0xff] %v208
    %235 = vst [vmem:[#allocation2 + $0x48] sm:$0xff] %v210
    %236 = vst [vmem:[#allocation2 + $0x50] sm:$0xff] %v212
    %237 = vst [vmem:[#allocation2 + $0x58] sm:$0xff] %v214
    %238 = vst [vmem:[#allocation2 + $0x60] sm:$0xff] %v218
    %239 = vst [vmem:[#allocation2 + $0x68] sm:$0xff] %v220
    %240 = vst [vmem:[#allocation2 + $0x70] sm:$0xff] %v222
    %241 = vst [vmem:[#allocation2 + $0x78] sm:$0xff] %v224
    %v242 = vld [vmem:[%s4] sm:$0xff]
    %v243 = vld [vmem:[%s4 + $0x8] sm:$0xff]
    %v244 = vld [vmem:[%s4 + $0x10] sm:$0xff]
    %v245 = vld [vmem:[%s4 + $0x18] sm:$0xff]
    %v246 = vld [vmem:[#allocation9] sm:$0xff]
    %v247 = vld [vmem:[#allocation9 + $0x8] sm:$0xff]
    %v248 = vld [vmem:[#allocation9 + $0x10] sm:$0xff]
    %v249 = vld [vmem:[#allocation9 + $0x18] sm:$0xff]
    %v250 = vld [vmem:[%s1] sm:$0xff]
    %v251 = vld [vmem:[#allocation2] sm:$0xff]
    %s252 = scalar_lea.vmem [#allocation2], 112
    %v253 = vld [vmem:[%s252 + $0x8] sm:$0xff]
    %vm254 = vcmask 261120
    %v256 = vsel %vm254, 0.0, 0
    %258 = vmatprep.subr.mxu0 0.0
    %259 = vmatpush1.msra.mxu0 0.0
    %260 = vmatprep.subr.mxu0 0.0
    %261 = vmatpush1.msra.mxu0 0.0
    %262 = vmatprep.subr.mxu0 0.0
    %263 = vmatpush1.msra.mxu0 0.0
    %264 = vmatprep.subr.mxu0 0.0
    %265 = vmatpush1.msra.mxu0 0.0
    %266 = vmatprep.subr.mxu0 0.0
    %267 = vmatpush1.msra.mxu0 0.0
    %268 = vmatprep.subr.mxu0 0.0
    %269 = vmatpush1.msra.mxu0 0.0
    %270 = vmatprep.subr.mxu0 0.0
    %271 = vmatpush1.msra.mxu0 0.0
    %272 = vmatprep.subr.mxu0 0.0
    %273 = vmatpush1.msra.mxu0 0.0
    %274 = vmatprep.subr.mxu0 0.0
    %275 = vmatpush1.msra.mxu0 0.0
    %276 = vmatprep.subr.mxu0 0.0
    %277 = vmatpush1.msra.mxu0 0.0
    %278 = vmatprep.subr.mxu0 0.0
    %279 = vmatpush1.msra.mxu0 0.0
    %280 = vmatprep.subr.mxu0 0.0
    %281 = vmatpush1.msra.mxu0 0.0
    %282 = vmatprep.subr.mxu0 0.0
    %283 = vmatpush1.msra.mxu0 %v245
    %284 = vmatprep.subr.mxu0 0.0
    %285 = vmatpush1.msra.mxu0 %v244
    %286 = vmatprep.subr.mxu0 0.0
    %287 = vmatpush1.msra.mxu0 %v243
    %288 = vmatprep.subr.mxu0 0.0
    %289 = vmatpush1.msra.mxu0 %v242
    %290 = vmatprep.subr.mxu0 0.0
    %291 = vmatpush2.msra.mxu0 0.0
    %292 = vmatprep.subr.mxu0 0.0
    %293 = vmatpush2.msra.mxu0 0.0
    %294 = vmatprep.subr.mxu0 0.0
    %295 = vmatpush2.msra.mxu0 0.0
    %296 = vmatprep.subr.mxu0 0.0
    %297 = vmatpush2.msra.mxu0 0.0
    %298 = vmatprep.subr.mxu0 0.0
    %299 = vmatpush2.msra.mxu0 0.0
    %300 = vmatprep.subr.mxu0 0.0
    %301 = vmatpush2.msra.mxu0 0.0
    %302 = vmatprep.subr.mxu0 0.0
    %303 = vmatpush2.msra.mxu0 0.0
    %304 = vmatprep.subr.mxu0 0.0
    %305 = vmatpush2.msra.mxu0 0.0
    %306 = vmatprep.subr.mxu0 0.0
    %307 = vmatpush2.msra.mxu0 0.0
    %308 = vmatprep.subr.mxu0 0.0
    %309 = vmatpush2.msra.mxu0 0.0
    %310 = vmatprep.subr.mxu0 0.0
    %311 = vmatpush2.msra.mxu0 0.0
    %312 = vmatprep.subr.mxu0 0.0
    %313 = vmatpush2.msra.mxu0 0.0
    %314 = vmatprep.subr.mxu0 0.0
    %315 = vmatpush2.msra.mxu0 0.0
    %316 = vmatprep.subr.mxu0 0.0
    %317 = vmatpush2.msra.mxu0 0.0
    %318 = vmatprep.subr.mxu0 0.0
    %319 = vmatpush2.msra.mxu0 0.0
    %320 = vmatprep.subr.mxu0 0.0
    %321 = vmatpush2.msra.mxu0 0.0
    %322 = vmatprep.mubr.f32.mxu0 0.0
    %323 = vmatmul.mubr.f32.gmra.mxu0 %v256
    %v324 = vpop.f32.mrf.mxu0
    %v325 = vadd.f32 0.0, %v324
    %v326 = vpop.f32.mrf.mxu0
    %327 = vdwg.mxu0
    %v328 = vadd.f32 %v251, %v325
    %v329 = vmul.f32 %v328, 0.5
    %v330 = vtanh.pop %v329
    %v331 = vmul.f32 %v330, 0.5
    %v332 = vadd.f32 %v331, 0.5
    %v333 = vtanh.pop %v328
    %v334 = vmul.f32 %v332, 0.0
    %336 = vrot.lane.b32.xlu0 %v333, 64
    %v337 = vpop.permute.xlu0 %336
    %v339 = vmul.f32 %v332, %v337
    %341 = vrot.lane.b32.xlu0 %v339, 32
    %v342 = vpop.permute.xlu0 %341
    %v344 = vadd.f32 %v334, %v342
    %v345 = vtanh.pop %v344
    %347 = vrot.lane.b32.xlu0 %v345, 64
    %v348 = vpop.permute.xlu0 %347
    %v350 = vmul.f32 %v332, %v348
    %vm351 = vcmp.gt.s32.totalorder %v250, 0
    %v352 = vsel %vm351, 1, 0
    %v353 = vcvt.s32.f32 %v352
    %355 = vset.pattern.permute.xlu0 0
    %356 = vperm.xlu0 %355, %v353
    %v357 = vpop.permute.xlu0 %356
    %v359 = vmul.f32 %v350, %v357
    %361 = vrot.lane.b32.xlu0 %v359, 32
    %v362 = vpop.permute.xlu0 %361
    %364 = vst.msk [vmem:[#allocation3] sm:$0xff] %vm254, %v362
    %365 = vmatprep.subr.mxu0 0.0
    %366 = vmatpush1.msra.mxu0 0.0
    %367 = vmatprep.subr.mxu0 0.0
    %368 = vmatpush1.msra.mxu0 0.0
    %369 = vmatprep.subr.mxu0 0.0
    %370 = vmatpush1.msra.mxu0 0.0
    %371 = vmatprep.subr.mxu0 0.0
    %372 = vmatpush1.msra.mxu0 0.0
    %373 = vmatprep.subr.mxu0 0.0
    %374 = vmatpush1.msra.mxu0 0.0
    %375 = vmatprep.subr.mxu0 0.0
    %376 = vmatpush1.msra.mxu0 0.0
    %377 = vmatprep.subr.mxu0 0.0
    %378 = vmatpush1.msra.mxu0 0.0
    %379 = vmatprep.subr.mxu0 0.0
    %380 = vmatpush1.msra.mxu0 0.0
    %381 = vmatprep.subr.mxu0 0.0
    %382 = vmatpush1.msra.mxu0 0.0
    %383 = vmatprep.subr.mxu0 0.0
    %384 = vmatpush1.msra.mxu0 0.0
    %385 = vmatprep.subr.mxu0 0.0
    %386 = vmatpush1.msra.mxu0 0.0
    %387 = vmatprep.subr.mxu0 0.0
    %388 = vmatpush1.msra.mxu0 0.0
    %389 = vmatprep.subr.mxu0 0.0
    %390 = vmatpush1.msra.mxu0 %v249
    %391 = vmatprep.subr.mxu0 0.0
    %392 = vmatpush1.msra.mxu0 %v248
    %393 = vmatprep.subr.mxu0 0.0
    %394 = vmatpush1.msra.mxu0 %v247
    %395 = vmatprep.subr.mxu0 0.0
    %396 = vmatpush1.msra.mxu0 %v246
    %397 = vmatprep.subr.mxu0 0.0
    %398 = vmatpush2.msra.mxu0 0.0
    %399 = vmatprep.subr.mxu0 0.0
    %400 = vmatpush2.msra.mxu0 0.0
    %401 = vmatprep.subr.mxu0 0.0
    %402 = vmatpush2.msra.mxu0 0.0
    %403 = vmatprep.subr.mxu0 0.0
    %404 = vmatpush2.msra.mxu0 0.0
    %405 = vmatprep.subr.mxu0 0.0
    %406 = vmatpush2.msra.mxu0 0.0
    %407 = vmatprep.subr.mxu0 0.0
    %408 = vmatpush2.msra.mxu0 0.0
    %409 = vmatprep.subr.mxu0 0.0
    %410 = vmatpush2.msra.mxu0 0.0
    %411 = vmatprep.subr.mxu0 0.0
    %412 = vmatpush2.msra.mxu0 0.0
    %413 = vmatprep.subr.mxu0 0.0
    %414 = vmatpush2.msra.mxu0 0.0
    %415 = vmatprep.subr.mxu0 0.0
    %416 = vmatpush2.msra.mxu0 0.0
    %417 = vmatprep.subr.mxu0 0.0
    %418 = vmatpush2.msra.mxu0 0.0
    %419 = vmatprep.subr.mxu0 0.0
    %420 = vmatpush2.msra.mxu0 0.0
    %421 = vmatprep.subr.mxu0 0.0
    %422 = vmatpush2.msra.mxu0 0.0
    %423 = vmatprep.subr.mxu0 0.0
    %424 = vmatpush2.msra.mxu0 0.0
    %425 = vmatprep.subr.mxu0 0.0
    %426 = vmatpush2.msra.mxu0 0.0
    %427 = vmatprep.subr.mxu0 0.0
    %428 = vmatpush2.msra.mxu0 0.0
    %429 = vmatprep.mubr.f32.mxu0 0.0
    %430 = vmatmul.mubr.f32.gmra.mxu0 %v256
    %v431 = vpop.f32.mrf.mxu0
    %v432 = vadd.f32 0.0, %v431
    %v433 = vpop.f32.mrf.mxu0
    %434 = vdwg.mxu0
    %v435 = vadd.f32 %v253, %v432
    %v436 = vmul.f32 %v435, 0.5
    %v437 = vtanh.pop %v436
    %v438 = vmul.f32 %v437, 0.5
    %v439 = vadd.f32 %v438, 0.5
    %v440 = vtanh.pop %v435
    %v441 = vmul.f32 %v439, 0.0
    %443 = vrot.lane.b32.xlu0 %v440, 64
    %v444 = vpop.permute.xlu0 %443
    %v446 = vmul.f32 %v439, %v444
    %448 = vrot.lane.b32.xlu0 %v446, 32
    %v449 = vpop.permute.xlu0 %448
    %v451 = vadd.f32 %v441, %v449
    %v452 = vtanh.pop %v451
    %454 = vrot.lane.b32.xlu0 %v452, 64
    %v455 = vpop.permute.xlu0 %454
    %v457 = vmul.f32 %v439, %v455
    %vm458 = vcmp.gt.s32.totalorder %v250, 7
    %v459 = vsel %vm458, 1, 0
    %v460 = vcvt.s32.f32 %v459
    %462 = vset.pattern.permute.xlu0 0
    %463 = vperm.xlu0 %462, %v460
    %v464 = vpop.permute.xlu0 %463
    %v466 = vmul.f32 %v464, %v457
    %v467 = vadd.f32 %v466, 0.0
    %v468 = vmul.f32 %v464, %v451
    %v469 = vadd.f32 %v468, 0.0
    %471 = vrot.lane.b32.xlu0 %v467, 32
    %v472 = vpop.permute.xlu0 %471
    %s474 = scalar_lea.vmem [#allocation4], 56
    %475 = vst.msk [vmem:[%s474] sm:$0xff] %vm254, %v472
    %s476 = scalar_lea.vmem [#allocation2], 16
    %v477 = vld [vmem:[%s476] sm:$0xff]
    %s478 = scalar_lea.vmem [#allocation2], 96
    %v479 = vld [vmem:[%s478 + $0x8] sm:$0xff]
    %481 = vrot.lane.b32.xlu0 %v350, 32
    %v482 = vpop.permute.xlu0 %481
    %v483 = vsel %vm254, %v482, 0
    %485 = vmatprep.subr.mxu0 0.0
    %486 = vmatpush1.msra.mxu0 0.0
    %487 = vmatprep.subr.mxu0 0.0
    %488 = vmatpush1.msra.mxu0 0.0
    %489 = vmatprep.subr.mxu0 0.0
    %490 = vmatpush1.msra.mxu0 0.0
    %491 = vmatprep.subr.mxu0 0.0
    %492 = vmatpush1.msra.mxu0 0.0
    %493 = vmatprep.subr.mxu0 0.0
    %494 = vmatpush1.msra.mxu0 0.0
    %495 = vmatprep.subr.mxu0 0.0
    %496 = vmatpush1.msra.mxu0 0.0
    %497 = vmatprep.subr.mxu0 0.0
    %498 = vmatpush1.msra.mxu0 0.0
    %499 = vmatprep.subr.mxu0 0.0
    %500 = vmatpush1.msra.mxu0 0.0
    %501 = vmatprep.subr.mxu0 0.0
    %502 = vmatpush1.msra.mxu0 0.0
    %503 = vmatprep.subr.mxu0 0.0
    %504 = vmatpush1.msra.mxu0 0.0
    %505 = vmatprep.subr.mxu0 0.0
    %506 = vmatpush1.msra.mxu0 0.0
    %507 = vmatprep.subr.mxu0 0.0
    %508 = vmatpush1.msra.mxu0 0.0
    %509 = vmatprep.subr.mxu0 0.0
    %510 = vmatpush1.msra.mxu0 %v245
    %511 = vmatprep.subr.mxu0 0.0
    %512 = vmatpush1.msra.mxu0 %v244
    %513 = vmatprep.subr.mxu0 0.0
    %514 = vmatpush1.msra.mxu0 %v243
    %515 = vmatprep.subr.mxu0 0.0
    %516 = vmatpush1.msra.mxu0 %v242
    %517 = vmatprep.subr.mxu0 0.0
    %518 = vmatpush2.msra.mxu0 0.0
    %519 = vmatprep.subr.mxu0 0.0
    %520 = vmatpush2.msra.mxu0 0.0
    %521 = vmatprep.subr.mxu0 0.0
    %522 = vmatpush2.msra.mxu0 0.0
    %523 = vmatprep.subr.mxu0 0.0
    %524 = vmatpush2.msra.mxu0 0.0
    %525 = vmatprep.subr.mxu0 0.0
    %526 = vmatpush2.msra.mxu0 0.0
    %527 = vmatprep.subr.mxu0 0.0
    %528 = vmatpush2.msra.mxu0 0.0
    %529 = vmatprep.subr.mxu0 0.0
    %530 = vmatpush2.msra.mxu0 0.0
    %531 = vmatprep.subr.mxu0 0.0
    %532 = vmatpush2.msra.mxu0 0.0
    %533 = vmatprep.subr.mxu0 0.0
    %534 = vmatpush2.msra.mxu0 0.0
    %535 = vmatprep.subr.mxu0 0.0
    %536 = vmatpush2.msra.mxu0 0.0
    %537 = vmatprep.subr.mxu0 0.0
    %538 = vmatpush2.msra.mxu0 0.0
    %539 = vmatprep.subr.mxu0 0.0
    %540 = vmatpush2.msra.mxu0 0.0
    %541 = vmatprep.subr.mxu0 0.0
    %542 = vmatpush2.msra.mxu0 0.0
    %543 = vmatprep.subr.mxu0 0.0
    %544 = vmatpush2.msra.mxu0 0.0
    %545 = vmatprep.subr.mxu0 0.0
    %546 = vmatpush2.msra.mxu0 0.0
    %547 = vmatprep.subr.mxu0 0.0
    %548 = vmatpush2.msra.mxu0 0.0
    %549 = vmatprep.mubr.f32.mxu0 0.0
    %550 = vmatmul.mubr.f32.gmra.mxu0 %v483
    %v551 = vpop.f32.mrf.mxu0
    %v552 = vadd.f32 0.0, %v551
    %v553 = vpop.f32.mrf.mxu0
    %554 = vdwg.mxu0
    %v555 = vadd.f32 %v477, %v552
    %v556 = vmul.f32 %v555, 0.5
    %v557 = vtanh.pop %v556
    %v558 = vmul.f32 %v557, 0.5
    %v559 = vadd.f32 %v558, 0.5
    %v560 = vtanh.pop %v555
    %v561 = vmul.f32 %v559, %v344
    %563 = vrot.lane.b32.xlu0 %v560, 64
    %v564 = vpop.permute.xlu0 %563
    %v566 = vmul.f32 %v559, %v564
    %568 = vrot.lane.b32.xlu0 %v566, 32
    %v569 = vpop.permute.xlu0 %568
    %v571 = vadd.f32 %v561, %v569
    %v572 = vtanh.pop %v571
    %574 = vrot.lane.b32.xlu0 %v572, 64
    %v575 = vpop.permute.xlu0 %574
    %v577 = vmul.f32 %v559, %v575
    %vm578 = vcmp.gt.s32.totalorder %v250, 1
    %v579 = vsel %vm578, 1, 0
    %v580 = vcvt.s32.f32 %v579
    %582 = vset.pattern.permute.xlu0 0
    %583 = vperm.xlu0 %582, %v580
    %v584 = vpop.permute.xlu0 %583
    %v586 = vmul.f32 %v577, %v584
    %588 = vrot.lane.b32.xlu0 %v586, 32
    %v589 = vpop.permute.xlu0 %588
    %s591 = scalar_lea.vmem [#allocation3], 8
    %592 = vst.msk [vmem:[%s591] sm:$0xff] %vm254, %v589
    %v593 = vsel %vm254, %v472, 0
    %595 = vmatprep.subr.mxu0 0.0
    %596 = vmatpush1.msra.mxu0 0.0
    %597 = vmatprep.subr.mxu0 0.0
    %598 = vmatpush1.msra.mxu0 0.0
    %599 = vmatprep.subr.mxu0 0.0
    %600 = vmatpush1.msra.mxu0 0.0
    %601 = vmatprep.subr.mxu0 0.0
    %602 = vmatpush1.msra.mxu0 0.0
    %603 = vmatprep.subr.mxu0 0.0
    %604 = vmatpush1.msra.mxu0 0.0
    %605 = vmatprep.subr.mxu0 0.0
    %606 = vmatpush1.msra.mxu0 0.0
    %607 = vmatprep.subr.mxu0 0.0
    %608 = vmatpush1.msra.mxu0 0.0
    %609 = vmatprep.subr.mxu0 0.0
    %610 = vmatpush1.msra.mxu0 0.0
    %611 = vmatprep.subr.mxu0 0.0
    %612 = vmatpush1.msra.mxu0 0.0
    %613 = vmatprep.subr.mxu0 0.0
    %614 = vmatpush1.msra.mxu0 0.0
    %615 = vmatprep.subr.mxu0 0.0
    %616 = vmatpush1.msra.mxu0 0.0
    %617 = vmatprep.subr.mxu0 0.0
    %618 = vmatpush1.msra.mxu0 0.0
    %619 = vmatprep.subr.mxu0 0.0
    %620 = vmatpush1.msra.mxu0 %v249
    %621 = vmatprep.subr.mxu0 0.0
    %622 = vmatpush1.msra.mxu0 %v248
    %623 = vmatprep.subr.mxu0 0.0
    %624 = vmatpush1.msra.mxu0 %v247
    %625 = vmatprep.subr.mxu0 0.0
    %626 = vmatpush1.msra.mxu0 %v246
    %627 = vmatprep.subr.mxu0 0.0
    %628 = vmatpush2.msra.mxu0 0.0
    %629 = vmatprep.subr.mxu0 0.0
    %630 = vmatpush2.msra.mxu0 0.0
    %631 = vmatprep.subr.mxu0 0.0
    %632 = vmatpush2.msra.mxu0 0.0
    %633 = vmatprep.subr.mxu0 0.0
    %634 = vmatpush2.msra.mxu0 0.0
    %635 = vmatprep.subr.mxu0 0.0
    %636 = vmatpush2.msra.mxu0 0.0
    %637 = vmatprep.subr.mxu0 0.0
    %638 = vmatpush2.msra.mxu0 0.0
    %639 = vmatprep.subr.mxu0 0.0
    %640 = vmatpush2.msra.mxu0 0.0
    %641 = vmatprep.subr.mxu0 0.0
    %642 = vmatpush2.msra.mxu0 0.0
    %643 = vmatprep.subr.mxu0 0.0
    %644 = vmatpush2.msra.mxu0 0.0
    %645 = vmatprep.subr.mxu0 0.0
    %646 = vmatpush2.msra.mxu0 0.0
    %647 = vmatprep.subr.mxu0 0.0
    %648 = vmatpush2.msra.mxu0 0.0
    %649 = vmatprep.subr.mxu0 0.0
    %650 = vmatpush2.msra.mxu0 0.0
    %651 = vmatprep.subr.mxu0 0.0
    %652 = vmatpush2.msra.mxu0 0.0
    %653 = vmatprep.subr.mxu0 0.0
    %654 = vmatpush2.msra.mxu0 0.0
    %655 = vmatprep.subr.mxu0 0.0
    %656 = vmatpush2.msra.mxu0 0.0
    %657 = vmatprep.subr.mxu0 0.0
    %658 = vmatpush2.msra.mxu0 0.0
    %659 = vmatprep.mubr.f32.mxu0 0.0
    %660 = vmatmul.mubr.f32.gmra.mxu0 %v593
    %v661 = vpop.f32.mrf.mxu0
    %v662 = vadd.f32 0.0, %v661
    %v663 = vpop.f32.mrf.mxu0
    %664 = vdwg.mxu0
    %v665 = vadd.f32 %v479, %v662
    %v666 = vmul.f32 %v665, 0.5
    %v667 = vtanh.pop %v666
    %v668 = vmul.f32 %v667, 0.5
    %v669 = vadd.f32 %v668, 0.5
    %v670 = vtanh.pop %v665
    %v671 = vmul.f32 %v669, %v469
    %673 = vrot.lane.b32.xlu0 %v670, 64
    %v674 = vpop.permute.xlu0 %673
    %v676 = vmul.f32 %v669, %v674
    %678 = vrot.lane.b32.xlu0 %v676, 32
    %v679 = vpop.permute.xlu0 %678
    %v681 = vadd.f32 %v671, %v679
    %v682 = vtanh.pop %v681
    %684 = vrot.lane.b32.xlu0 %v682, 64
    %v685 = vpop.permute.xlu0 %684
    %v687 = vmul.f32 %v669, %v685
    %vm688 = vcmp.gt.s32.totalorder %v250, 6
    %v689 = vsel %vm688, 1, 0
    %v690 = vcvt.s32.f32 %v689
    %v691 = vsub.f32 %v687, %v467
    %693 = vset.pattern.permute.xlu0 0
    %694 = vperm.xlu0 %693, %v690
    %v695 = vpop.permute.xlu0 %694
    %v697 = vmul.f32 %v695, %v691
    %v698 = vadd.f32 %v467, %v697
    %v699 = vsub.f32 %v681, %v469
    %v700 = vmul.f32 %v695, %v699
    %v701 = vadd.f32 %v469, %v700
    %703 = vrot.lane.b32.xlu0 %v698, 32
    %v704 = vpop.permute.xlu0 %703
    %s706 = scalar_lea.vmem [#allocation4], 48
    %707 = vst.msk [vmem:[%s706] sm:$0xff] %vm254, %v704
    %s708 = scalar_lea.vmem [#allocation2], 32
    %v709 = vld [vmem:[%s708] sm:$0xff]
    %s710 = scalar_lea.vmem [#allocation2], 80
    %v711 = vld [vmem:[%s710 + $0x8] sm:$0xff]
    %713 = vrot.lane.b32.xlu0 %v577, 32
    %v714 = vpop.permute.xlu0 %713
    %v715 = vsel %vm254, %v714, 0
    %717 = vmatprep.subr.mxu0 0.0
    %718 = vmatpush1.msra.mxu0 0.0
    %719 = vmatprep.subr.mxu0 0.0
    %720 = vmatpush1.msra.mxu0 0.0
    %721 = vmatprep.subr.mxu0 0.0
    %722 = vmatpush1.msra.mxu0 0.0
    %723 = vmatprep.subr.mxu0 0.0
    %724 = vmatpush1.msra.mxu0 0.0
    %725 = vmatprep.subr.mxu0 0.0
    %726 = vmatpush1.msra.mxu0 0.0
    %727 = vmatprep.subr.mxu0 0.0
    %728 = vmatpush1.msra.mxu0 0.0
    %729 = vmatprep.subr.mxu0 0.0
    %730 = vmatpush1.msra.mxu0 0.0
    %731 = vmatprep.subr.mxu0 0.0
    %732 = vmatpush1.msra.mxu0 0.0
    %733 = vmatprep.subr.mxu0 0.0
    %734 = vmatpush1.msra.mxu0 0.0
    %735 = vmatprep.subr.mxu0 0.0
    %736 = vmatpush1.msra.mxu0 0.0
    %737 = vmatprep.subr.mxu0 0.0
    %738 = vmatpush1.msra.mxu0 0.0
    %739 = vmatprep.subr.mxu0 0.0
    %740 = vmatpush1.msra.mxu0 0.0
    %741 = vmatprep.subr.mxu0 0.0
    %742 = vmatpush1.msra.mxu0 %v245
    %743 = vmatprep.subr.mxu0 0.0
    %744 = vmatpush1.msra.mxu0 %v244
    %745 = vmatprep.subr.mxu0 0.0
    %746 = vmatpush1.msra.mxu0 %v243
    %747 = vmatprep.subr.mxu0 0.0
    %748 = vmatpush1.msra.mxu0 %v242
    %749 = vmatprep.subr.mxu0 0.0
    %750 = vmatpush2.msra.mxu0 0.0
    %751 = vmatprep.subr.mxu0 0.0
    %752 = vmatpush2.msra.mxu0 0.0
    %753 = vmatprep.subr.mxu0 0.0
    %754 = vmatpush2.msra.mxu0 0.0
    %755 = vmatprep.subr.mxu0 0.0
    %756 = vmatpush2.msra.mxu0 0.0
    %757 = vmatprep.subr.mxu0 0.0
    %758 = vmatpush2.msra.mxu0 0.0
    %759 = vmatprep.subr.mxu0 0.0
    %760 = vmatpush2.msra.mxu0 0.0
    %761 = vmatprep.subr.mxu0 0.0
    %762 = vmatpush2.msra.mxu0 0.0
    %763 = vmatprep.subr.mxu0 0.0
    %764 = vmatpush2.msra.mxu0 0.0
    %765 = vmatprep.subr.mxu0 0.0
    %766 = vmatpush2.msra.mxu0 0.0
    %767 = vmatprep.subr.mxu0 0.0
    %768 = vmatpush2.msra.mxu0 0.0
    %769 = vmatprep.subr.mxu0 0.0
    %770 = vmatpush2.msra.mxu0 0.0
    %771 = vmatprep.subr.mxu0 0.0
    %772 = vmatpush2.msra.mxu0 0.0
    %773 = vmatprep.subr.mxu0 0.0
    %774 = vmatpush2.msra.mxu0 0.0
    %775 = vmatprep.subr.mxu0 0.0
    %776 = vmatpush2.msra.mxu0 0.0
    %777 = vmatprep.subr.mxu0 0.0
    %778 = vmatpush2.msra.mxu0 0.0
    %779 = vmatprep.subr.mxu0 0.0
    %780 = vmatpush2.msra.mxu0 0.0
    %781 = vmatprep.mubr.f32.mxu0 0.0
    %782 = vmatmul.mubr.f32.gmra.mxu0 %v715
    %v783 = vpop.f32.mrf.mxu0
    %v784 = vadd.f32 0.0, %v783
    %v785 = vpop.f32.mrf.mxu0
    %786 = vdwg.mxu0
    %v787 = vadd.f32 %v709, %v784
    %v788 = vmul.f32 %v787, 0.5
    %v789 = vtanh.pop %v788
    %v790 = vmul.f32 %v789, 0.5
    %v791 = vadd.f32 %v790, 0.5
    %v792 = vtanh.pop %v787
    %v793 = vmul.f32 %v791, %v571
    %795 = vrot.lane.b32.xlu0 %v792, 64
    %v796 = vpop.permute.xlu0 %795
    %v798 = vmul.f32 %v791, %v796
    %800 = vrot.lane.b32.xlu0 %v798, 32
    %v801 = vpop.permute.xlu0 %800
    %v803 = vadd.f32 %v793, %v801
    %v804 = vtanh.pop %v803
    %806 = vrot.lane.b32.xlu0 %v804, 64
    %v807 = vpop.permute.xlu0 %806
    %v809 = vmul.f32 %v791, %v807
    %vm810 = vcmp.gt.s32.totalorder %v250, 2
    %v811 = vsel %vm810, 1, 0
    %v812 = vcvt.s32.f32 %v811
    %814 = vset.pattern.permute.xlu0 0
    %815 = vperm.xlu0 %814, %v812
    %v816 = vpop.permute.xlu0 %815
    %v818 = vmul.f32 %v809, %v816
    %820 = vrot.lane.b32.xlu0 %v818, 32
    %v821 = vpop.permute.xlu0 %820
    %s823 = scalar_lea.vmem [#allocation3], 16
    %824 = vst.msk [vmem:[%s823] sm:$0xff] %vm254, %v821
    %v825 = vsel %vm254, %v704, 0
    %827 = vmatprep.subr.mxu0 0.0
    %828 = vmatpush1.msra.mxu0 0.0
    %829 = vmatprep.subr.mxu0 0.0
    %830 = vmatpush1.msra.mxu0 0.0
    %831 = vmatprep.subr.mxu0 0.0
    %832 = vmatpush1.msra.mxu0 0.0
    %833 = vmatprep.subr.mxu0 0.0
    %834 = vmatpush1.msra.mxu0 0.0
    %835 = vmatprep.subr.mxu0 0.0
    %836 = vmatpush1.msra.mxu0 0.0
    %837 = vmatprep.subr.mxu0 0.0
    %838 = vmatpush1.msra.mxu0 0.0
    %839 = vmatprep.subr.mxu0 0.0
    %840 = vmatpush1.msra.mxu0 0.0
    %841 = vmatprep.subr.mxu0 0.0
    %842 = vmatpush1.msra.mxu0 0.0
    %843 = vmatprep.subr.mxu0 0.0
    %844 = vmatpush1.msra.mxu0 0.0
    %845 = vmatprep.subr.mxu0 0.0
    %846 = vmatpush1.msra.mxu0 0.0
    %847 = vmatprep.subr.mxu0 0.0
    %848 = vmatpush1.msra.mxu0 0.0
    %849 = vmatprep.subr.mxu0 0.0
    %850 = vmatpush1.msra.mxu0 0.0
    %851 = vmatprep.subr.mxu0 0.0
    %852 = vmatpush1.msra.mxu0 %v249
    %853 = vmatprep.subr.mxu0 0.0
    %854 = vmatpush1.msra.mxu0 %v248
    %855 = vmatprep.subr.mxu0 0.0
    %856 = vmatpush1.msra.mxu0 %v247
    %857 = vmatprep.subr.mxu0 0.0
    %858 = vmatpush1.msra.mxu0 %v246
    %859 = vmatprep.subr.mxu0 0.0
    %860 = vmatpush2.msra.mxu0 0.0
    %861 = vmatprep.subr.mxu0 0.0
    %862 = vmatpush2.msra.mxu0 0.0
    %863 = vmatprep.subr.mxu0 0.0
    %864 = vmatpush2.msra.mxu0 0.0
    %865 = vmatprep.subr.mxu0 0.0
    %866 = vmatpush2.msra.mxu0 0.0
    %867 = vmatprep.subr.mxu0 0.0
    %868 = vmatpush2.msra.mxu0 0.0
    %869 = vmatprep.subr.mxu0 0.0
    %870 = vmatpush2.msra.mxu0 0.0
    %871 = vmatprep.subr.mxu0 0.0
    %872 = vmatpush2.msra.mxu0 0.0
    %873 = vmatprep.subr.mxu0 0.0
    %874 = vmatpush2.msra.mxu0 0.0
    %875 = vmatprep.subr.mxu0 0.0
    %876 = vmatpush2.msra.mxu0 0.0
    %877 = vmatprep.subr.mxu0 0.0
    %878 = vmatpush2.msra.mxu0 0.0
    %879 = vmatprep.subr.mxu0 0.0
    %880 = vmatpush2.msra.mxu0 0.0
    %881 = vmatprep.subr.mxu0 0.0
    %882 = vmatpush2.msra.mxu0 0.0
    %883 = vmatprep.subr.mxu0 0.0
    %884 = vmatpush2.msra.mxu0 0.0
    %885 = vmatprep.subr.mxu0 0.0
    %886 = vmatpush2.msra.mxu0 0.0
    %887 = vmatprep.subr.mxu0 0.0
    %888 = vmatpush2.msra.mxu0 0.0
    %889 = vmatprep.subr.mxu0 0.0
    %890 = vmatpush2.msra.mxu0 0.0
    %891 = vmatprep.mubr.f32.mxu0 0.0
    %892 = vmatmul.mubr.f32.gmra.mxu0 %v825
    %v893 = vpop.f32.mrf.mxu0
    %v894 = vadd.f32 0.0, %v893
    %v895 = vpop.f32.mrf.mxu0
    %896 = vdwg.mxu0
    %v897 = vadd.f32 %v711, %v894
    %v898 = vmul.f32 %v897, 0.5
    %v899 = vtanh.pop %v898
    %v900 = vmul.f32 %v899, 0.5
    %v901 = vadd.f32 %v900, 0.5
    %v902 = vtanh.pop %v897
    %v903 = vmul.f32 %v901, %v701
    %905 = vrot.lane.b32.xlu0 %v902, 64
    %v906 = vpop.permute.xlu0 %905
    %v908 = vmul.f32 %v901, %v906
    %910 = vrot.lane.b32.xlu0 %v908, 32
    %v911 = vpop.permute.xlu0 %910
    %v913 = vadd.f32 %v903, %v911
    %v914 = vtanh.pop %v913
    %916 = vrot.lane.b32.xlu0 %v914, 64
    %v917 = vpop.permute.xlu0 %916
    %v919 = vmul.f32 %v901, %v917
    %vm920 = vcmp.gt.s32.totalorder %v250, 5
    %v921 = vsel %vm920, 1, 0
    %v922 = vcvt.s32.f32 %v921
    %v923 = vsub.f32 %v919, %v698
    %925 = vset.pattern.permute.xlu0 0
    %926 = vperm.xlu0 %925, %v922
    %v927 = vpop.permute.xlu0 %926
    %v929 = vmul.f32 %v927, %v923
    %v930 = vadd.f32 %v698, %v929
    %v931 = vsub.f32 %v913, %v701
    %v932 = vmul.f32 %v927, %v931
    %v933 = vadd.f32 %v701, %v932
    %935 = vrot.lane.b32.xlu0 %v930, 32
    %v936 = vpop.permute.xlu0 %935
    %s938 = scalar_lea.vmem [#allocation4], 40
    %939 = vst.msk [vmem:[%s938] sm:$0xff] %vm254, %v936
    %s940 = scalar_lea.vmem [#allocation2], 48
    %v941 = vld [vmem:[%s940] sm:$0xff]
    %s942 = scalar_lea.vmem [#allocation2], 64
    %v943 = vld [vmem:[%s942 + $0x8] sm:$0xff]
    %945 = vrot.lane.b32.xlu0 %v809, 32
    %v946 = vpop.permute.xlu0 %945
    %v947 = vsel %vm254, %v946, 0
    %949 = vmatprep.subr.mxu0 0.0
    %950 = vmatpush1.msra.mxu0 0.0
    %951 = vmatprep.subr.mxu0 0.0
    %952 = vmatpush1.msra.mxu0 0.0
    %953 = vmatprep.subr.mxu0 0.0
    %954 = vmatpush1.msra.mxu0 0.0
    %955 = vmatprep.subr.mxu0 0.0
    %956 = vmatpush1.msra.mxu0 0.0
    %957 = vmatprep.subr.mxu0 0.0
    %958 = vmatpush1.msra.mxu0 0.0
    %959 = vmatprep.subr.mxu0 0.0
    %960 = vmatpush1.msra.mxu0 0.0
    %961 = vmatprep.subr.mxu0 0.0
    %962 = vmatpush1.msra.mxu0 0.0
    %963 = vmatprep.subr.mxu0 0.0
    %964 = vmatpush1.msra.mxu0 0.0
    %965 = vmatprep.subr.mxu0 0.0
    %966 = vmatpush1.msra.mxu0 0.0
    %967 = vmatprep.subr.mxu0 0.0
    %968 = vmatpush1.msra.mxu0 0.0
    %969 = vmatprep.subr.mxu0 0.0
    %970 = vmatpush1.msra.mxu0 0.0
    %971 = vmatprep.subr.mxu0 0.0
    %972 = vmatpush1.msra.mxu0 0.0
    %973 = vmatprep.subr.mxu0 0.0
    %974 = vmatpush1.msra.mxu0 %v245
    %975 = vmatprep.subr.mxu0 0.0
    %976 = vmatpush1.msra.mxu0 %v244
    %977 = vmatprep.subr.mxu0 0.0
    %978 = vmatpush1.msra.mxu0 %v243
    %979 = vmatprep.subr.mxu0 0.0
    %980 = vmatpush1.msra.mxu0 %v242
    %981 = vmatprep.subr.mxu0 0.0
    %982 = vmatpush2.msra.mxu0 0.0
    %983 = vmatprep.subr.mxu0 0.0
    %984 = vmatpush2.msra.mxu0 0.0
    %985 = vmatprep.subr.mxu0 0.0
    %986 = vmatpush2.msra.mxu0 0.0
    %987 = vmatprep.subr.mxu0 0.0
    %988 = vmatpush2.msra.mxu0 0.0
    %989 = vmatprep.subr.mxu0 0.0
    %990 = vmatpush2.msra.mxu0 0.0
    %991 = vmatprep.subr.mxu0 0.0
    %992 = vmatpush2.msra.mxu0 0.0
    %993 = vmatprep.subr.mxu0 0.0
    %994 = vmatpush2.msra.mxu0 0.0
    %995 = vmatprep.subr.mxu0 0.0
    %996 = vmatpush2.msra.mxu0 0.0
    %997 = vmatprep.subr.mxu0 0.0
    %998 = vmatpush2.msra.mxu0 0.0
    %999 = vmatprep.subr.mxu0 0.0
    %1000 = vmatpush2.msra.mxu0 0.0
    %1001 = vmatprep.subr.mxu0 0.0
    %1002 = vmatpush2.msra.mxu0 0.0
    %1003 = vmatprep.subr.mxu0 0.0
    %1004 = vmatpush2.msra.mxu0 0.0
    %1005 = vmatprep.subr.mxu0 0.0
    %1006 = vmatpush2.msra.mxu0 0.0
    %1007 = vmatprep.subr.mxu0 0.0
    %1008 = vmatpush2.msra.mxu0 0.0
    %1009 = vmatprep.subr.mxu0 0.0
    %1010 = vmatpush2.msra.mxu0 0.0
    %1011 = vmatprep.subr.mxu0 0.0
    %1012 = vmatpush2.msra.mxu0 0.0
    %1013 = vmatprep.mubr.f32.mxu0 0.0
    %1014 = vmatmul.mubr.f32.gmra.mxu0 %v947
    %v1015 = vpop.f32.mrf.mxu0
    %v1016 = vadd.f32 0.0, %v1015
    %v1017 = vpop.f32.mrf.mxu0
    %1018 = vdwg.mxu0
    %v1019 = vadd.f32 %v941, %v1016
    %v1020 = vmul.f32 %v1019, 0.5
    %v1021 = vtanh.pop %v1020
    %v1022 = vmul.f32 %v1021, 0.5
    %v1023 = vadd.f32 %v1022, 0.5
    %v1024 = vtanh.pop %v1019
    %v1025 = vmul.f32 %v1023, %v803
    %1027 = vrot.lane.b32.xlu0 %v1024, 64
    %v1028 = vpop.permute.xlu0 %1027
    %v1030 = vmul.f32 %v1023, %v1028
    %1032 = vrot.lane.b32.xlu0 %v1030, 32
    %v1033 = vpop.permute.xlu0 %1032
    %v1035 = vadd.f32 %v1025, %v1033
    %v1036 = vtanh.pop %v1035
    %1038 = vrot.lane.b32.xlu0 %v1036, 64
    %v1039 = vpop.permute.xlu0 %1038
    %v1041 = vmul.f32 %v1023, %v1039
    %vm1042 = vcmp.gt.s32.totalorder %v250, 3
    %v1043 = vsel %vm1042, 1, 0
    %v1044 = vcvt.s32.f32 %v1043
    %1046 = vset.pattern.permute.xlu0 0
    %1047 = vperm.xlu0 %1046, %v1044
    %v1048 = vpop.permute.xlu0 %1047
    %v1050 = vmul.f32 %v1041, %v1048
    %1052 = vrot.lane.b32.xlu0 %v1050, 32
    %v1053 = vpop.permute.xlu0 %1052
    %s1055 = scalar_lea.vmem [#allocation3], 24
    %1056 = vst.msk [vmem:[%s1055] sm:$0xff] %vm254, %v1053
    %v1057 = vsel %vm254, %v936, 0
    %1059 = vmatprep.subr.mxu0 0.0
    %1060 = vmatpush1.msra.mxu0 0.0
    %1061 = vmatprep.subr.mxu0 0.0
    %1062 = vmatpush1.msra.mxu0 0.0
    %1063 = vmatprep.subr.mxu0 0.0
    %1064 = vmatpush1.msra.mxu0 0.0
    %1065 = vmatprep.subr.mxu0 0.0
    %1066 = vmatpush1.msra.mxu0 0.0
    %1067 = vmatprep.subr.mxu0 0.0
    %1068 = vmatpush1.msra.mxu0 0.0
    %1069 = vmatprep.subr.mxu0 0.0
    %1070 = vmatpush1.msra.mxu0 0.0
    %1071 = vmatprep.subr.mxu0 0.0
    %1072 = vmatpush1.msra.mxu0 0.0
    %1073 = vmatprep.subr.mxu0 0.0
    %1074 = vmatpush1.msra.mxu0 0.0
    %1075 = vmatprep.subr.mxu0 0.0
    %1076 = vmatpush1.msra.mxu0 0.0
    %1077 = vmatprep.subr.mxu0 0.0
    %1078 = vmatpush1.msra.mxu0 0.0
    %1079 = vmatprep.subr.mxu0 0.0
    %1080 = vmatpush1.msra.mxu0 0.0
    %1081 = vmatprep.subr.mxu0 0.0
    %1082 = vmatpush1.msra.mxu0 0.0
    %1083 = vmatprep.subr.mxu0 0.0
    %1084 = vmatpush1.msra.mxu0 %v249
    %1085 = vmatprep.subr.mxu0 0.0
    %1086 = vmatpush1.msra.mxu0 %v248
    %1087 = vmatprep.subr.mxu0 0.0
    %1088 = vmatpush1.msra.mxu0 %v247
    %1089 = vmatprep.subr.mxu0 0.0
    %1090 = vmatpush1.msra.mxu0 %v246
    %1091 = vmatprep.subr.mxu0 0.0
    %1092 = vmatpush2.msra.mxu0 0.0
    %1093 = vmatprep.subr.mxu0 0.0
    %1094 = vmatpush2.msra.mxu0 0.0
    %1095 = vmatprep.subr.mxu0 0.0
    %1096 = vmatpush2.msra.mxu0 0.0
    %1097 = vmatprep.subr.mxu0 0.0
    %1098 = vmatpush2.msra.mxu0 0.0
    %1099 = vmatprep.subr.mxu0 0.0
    %1100 = vmatpush2.msra.mxu0 0.0
    %1101 = vmatprep.subr.mxu0 0.0
    %1102 = vmatpush2.msra.mxu0 0.0
    %1103 = vmatprep.subr.mxu0 0.0
    %1104 = vmatpush2.msra.mxu0 0.0
    %1105 = vmatprep.subr.mxu0 0.0
    %1106 = vmatpush2.msra.mxu0 0.0
    %1107 = vmatprep.subr.mxu0 0.0
    %1108 = vmatpush2.msra.mxu0 0.0
    %1109 = vmatprep.subr.mxu0 0.0
    %1110 = vmatpush2.msra.mxu0 0.0
    %1111 = vmatprep.subr.mxu0 0.0
    %1112 = vmatpush2.msra.mxu0 0.0
    %1113 = vmatprep.subr.mxu0 0.0
    %1114 = vmatpush2.msra.mxu0 0.0
    %1115 = vmatprep.subr.mxu0 0.0
    %1116 = vmatpush2.msra.mxu0 0.0
    %1117 = vmatprep.subr.mxu0 0.0
    %1118 = vmatpush2.msra.mxu0 0.0
    %1119 = vmatprep.subr.mxu0 0.0
    %1120 = vmatpush2.msra.mxu0 0.0
    %1121 = vmatprep.subr.mxu0 0.0
    %1122 = vmatpush2.msra.mxu0 0.0
    %1123 = vmatprep.mubr.f32.mxu0 0.0
    %1124 = vmatmul.mubr.f32.gmra.mxu0 %v1057
    %v1125 = vpop.f32.mrf.mxu0
    %v1126 = vadd.f32 0.0, %v1125
    %v1127 = vpop.f32.mrf.mxu0
    %1128 = vdwg.mxu0
    %v1129 = vadd.f32 %v943, %v1126
    %v1130 = vmul.f32 %v1129, 0.5
    %v1131 = vtanh.pop %v1130
    %v1132 = vmul.f32 %v1131, 0.5
    %v1133 = vadd.f32 %v1132, 0.5
    %v1134 = vtanh.pop %v1129
    %v1135 = vmul.f32 %v1133, %v933
    %1137 = vrot.lane.b32.xlu0 %v1134, 64
    %v1138 = vpop.permute.xlu0 %1137
    %v1140 = vmul.f32 %v1133, %v1138
    %1142 = vrot.lane.b32.xlu0 %v1140, 32
    %v1143 = vpop.permute.xlu0 %1142
    %v1145 = vadd.f32 %v1135, %v1143
    %v1146 = vtanh.pop %v1145
    %1148 = vrot.lane.b32.xlu0 %v1146, 64
    %v1149 = vpop.permute.xlu0 %1148
    %v1151 = vmul.f32 %v1133, %v1149
    %vm1152 = vcmp.gt.s32.totalorder %v250, 4
    %v1153 = vsel %vm1152, 1, 0
    %v1154 = vcvt.s32.f32 %v1153
    %v1155 = vsub.f32 %v1151, %v930
    %1157 = vset.pattern.permute.xlu0 0
    %1158 = vperm.xlu0 %1157, %v1154
    %v1159 = vpop.permute.xlu0 %1158
    %v1161 = vmul.f32 %v1159, %v1155
    %v1162 = vadd.f32 %v930, %v1161
    %v1163 = vsub.f32 %v1145, %v933
    %v1164 = vmul.f32 %v1159, %v1163
    %v1165 = vadd.f32 %v933, %v1164
    %1167 = vrot.lane.b32.xlu0 %v1162, 32
    %v1168 = vpop.permute.xlu0 %1167
    %s1170 = scalar_lea.vmem [#allocation4], 32
    %1171 = vst.msk [vmem:[%s1170] sm:$0xff] %vm254, %v1168
    %v1172 = vld [vmem:[%s942] sm:$0xff]
    %v1173 = vld [vmem:[%s940 + $0x8] sm:$0xff]
    %1175 = vrot.lane.b32.xlu0 %v1041, 32
    %v1176 = vpop.permute.xlu0 %1175
    %v1177 = vsel %vm254, %v1176, 0
    %1179 = vmatprep.subr.mxu0 0.0
    %1180 = vmatpush1.msra.mxu0 0.0
    %1181 = vmatprep.subr.mxu0 0.0
    %1182 = vmatpush1.msra.mxu0 0.0
    %1183 = vmatprep.subr.mxu0 0.0
    %1184 = vmatpush1.msra.mxu0 0.0
    %1185 = vmatprep.subr.mxu0 0.0
    %1186 = vmatpush1.msra.mxu0 0.0
    %1187 = vmatprep.subr.mxu0 0.0
    %1188 = vmatpush1.msra.mxu0 0.0
    %1189 = vmatprep.subr.mxu0 0.0
    %1190 = vmatpush1.msra.mxu0 0.0
    %1191 = vmatprep.subr.mxu0 0.0
    %1192 = vmatpush1.msra.mxu0 0.0
    %1193 = vmatprep.subr.mxu0 0.0
    %1194 = vmatpush1.msra.mxu0 0.0
    %1195 = vmatprep.subr.mxu0 0.0
    %1196 = vmatpush1.msra.mxu0 0.0
    %1197 = vmatprep.subr.mxu0 0.0
    %1198 = vmatpush1.msra.mxu0 0.0
    %1199 = vmatprep.subr.mxu0 0.0
    %1200 = vmatpush1.msra.mxu0 0.0
    %1201 = vmatprep.subr.mxu0 0.0
    %1202 = vmatpush1.msra.mxu0 0.0
    %1203 = vmatprep.subr.mxu0 0.0
    %1204 = vmatpush1.msra.mxu0 %v245
    %1205 = vmatprep.subr.mxu0 0.0
    %1206 = vmatpush1.msra.mxu0 %v244
    %1207 = vmatprep.subr.mxu0 0.0
    %1208 = vmatpush1.msra.mxu0 %v243
    %1209 = vmatprep.subr.mxu0 0.0
    %1210 = vmatpush1.msra.mxu0 %v242
    %1211 = vmatprep.subr.mxu0 0.0
    %1212 = vmatpush2.msra.mxu0 0.0
    %1213 = vmatprep.subr.mxu0 0.0
    %1214 = vmatpush2.msra.mxu0 0.0
    %1215 = vmatprep.subr.mxu0 0.0
    %1216 = vmatpush2.msra.mxu0 0.0
    %1217 = vmatprep.subr.mxu0 0.0
    %1218 = vmatpush2.msra.mxu0 0.0
    %1219 = vmatprep.subr.mxu0 0.0
    %1220 = vmatpush2.msra.mxu0 0.0
    %1221 = vmatprep.subr.mxu0 0.0
    %1222 = vmatpush2.msra.mxu0 0.0
    %1223 = vmatprep.subr.mxu0 0.0
    %1224 = vmatpush2.msra.mxu0 0.0
    %1225 = vmatprep.subr.mxu0 0.0
    %1226 = vmatpush2.msra.mxu0 0.0
    %1227 = vmatprep.subr.mxu0 0.0
    %1228 = vmatpush2.msra.mxu0 0.0
    %1229 = vmatprep.subr.mxu0 0.0
    %1230 = vmatpush2.msra.mxu0 0.0
    %1231 = vmatprep.subr.mxu0 0.0
    %1232 = vmatpush2.msra.mxu0 0.0
    %1233 = vmatprep.subr.mxu0 0.0
    %1234 = vmatpush2.msra.mxu0 0.0
    %1235 = vmatprep.subr.mxu0 0.0
    %1236 = vmatpush2.msra.mxu0 0.0
    %1237 = vmatprep.subr.mxu0 0.0
    %1238 = vmatpush2.msra.mxu0 0.0
    %1239 = vmatprep.subr.mxu0 0.0
    %1240 = vmatpush2.msra.mxu0 0.0
    %1241 = vmatprep.subr.mxu0 0.0
    %1242 = vmatpush2.msra.mxu0 0.0
    %1243 = vmatprep.mubr.f32.mxu0 0.0
    %1244 = vmatmul.mubr.f32.gmra.mxu0 %v1177
    %v1245 = vpop.f32.mrf.mxu0
    %v1246 = vadd.f32 0.0, %v1245
    %v1247 = vpop.f32.mrf.mxu0
    %1248 = vdwg.mxu0
    %v1249 = vadd.f32 %v1172, %v1246
    %v1250 = vmul.f32 %v1249, 0.5
    %v1251 = vtanh.pop %v1250
    %v1252 = vmul.f32 %v1251, 0.5
    %v1253 = vadd.f32 %v1252, 0.5
    %v1254 = vtanh.pop %v1249
    %v1255 = vmul.f32 %v1253, %v1035
    %1257 = vrot.lane.b32.xlu0 %v1254, 64
    %v1258 = vpop.permute.xlu0 %1257
    %v1260 = vmul.f32 %v1253, %v1258
    %1262 = vrot.lane.b32.xlu0 %v1260, 32
    %v1263 = vpop.permute.xlu0 %1262
    %v1265 = vadd.f32 %v1255, %v1263
    %v1266 = vtanh.pop %v1265
    %1268 = vrot.lane.b32.xlu0 %v1266, 64
    %v1269 = vpop.permute.xlu0 %1268
    %v1271 = vmul.f32 %v1253, %v1269
    %v1272 = vmul.f32 %v1271, %v1159
    %1274 = vrot.lane.b32.xlu0 %v1272, 32
    %v1275 = vpop.permute.xlu0 %1274
    %s1277 = scalar_lea.vmem [#allocation3], 32
    %1278 = vst.msk [vmem:[%s1277] sm:$0xff] %vm254, %v1275
    %v1279 = vsel %vm254, %v1168, 0
    %1281 = vmatprep.subr.mxu0 0.0
    %1282 = vmatpush1.msra.mxu0 0.0
    %1283 = vmatprep.subr.mxu0 0.0
    %1284 = vmatpush1.msra.mxu0 0.0
    %1285 = vmatprep.subr.mxu0 0.0
    %1286 = vmatpush1.msra.mxu0 0.0
    %1287 = vmatprep.subr.mxu0 0.0
    %1288 = vmatpush1.msra.mxu0 0.0
    %1289 = vmatprep.subr.mxu0 0.0
    %1290 = vmatpush1.msra.mxu0 0.0
    %1291 = vmatprep.subr.mxu0 0.0
    %1292 = vmatpush1.msra.mxu0 0.0
    %1293 = vmatprep.subr.mxu0 0.0
    %1294 = vmatpush1.msra.mxu0 0.0
    %1295 = vmatprep.subr.mxu0 0.0
    %1296 = vmatpush1.msra.mxu0 0.0
    %1297 = vmatprep.subr.mxu0 0.0
    %1298 = vmatpush1.msra.mxu0 0.0
    %1299 = vmatprep.subr.mxu0 0.0
    %1300 = vmatpush1.msra.mxu0 0.0
    %1301 = vmatprep.subr.mxu0 0.0
    %1302 = vmatpush1.msra.mxu0 0.0
    %1303 = vmatprep.subr.mxu0 0.0
    %1304 = vmatpush1.msra.mxu0 0.0
    %1305 = vmatprep.subr.mxu0 0.0
    %1306 = vmatpush1.msra.mxu0 %v249
    %1307 = vmatprep.subr.mxu0 0.0
    %1308 = vmatpush1.msra.mxu0 %v248
    %1309 = vmatprep.subr.mxu0 0.0
    %1310 = vmatpush1.msra.mxu0 %v247
    %1311 = vmatprep.subr.mxu0 0.0
    %1312 = vmatpush1.msra.mxu0 %v246
    %1313 = vmatprep.subr.mxu0 0.0
    %1314 = vmatpush2.msra.mxu0 0.0
    %1315 = vmatprep.subr.mxu0 0.0
    %1316 = vmatpush2.msra.mxu0 0.0
    %1317 = vmatprep.subr.mxu0 0.0
    %1318 = vmatpush2.msra.mxu0 0.0
    %1319 = vmatprep.subr.mxu0 0.0
    %1320 = vmatpush2.msra.mxu0 0.0
    %1321 = vmatprep.subr.mxu0 0.0
    %1322 = vmatpush2.msra.mxu0 0.0
    %1323 = vmatprep.subr.mxu0 0.0
    %1324 = vmatpush2.msra.mxu0 0.0
    %1325 = vmatprep.subr.mxu0 0.0
    %1326 = vmatpush2.msra.mxu0 0.0
    %1327 = vmatprep.subr.mxu0 0.0
    %1328 = vmatpush2.msra.mxu0 0.0
    %1329 = vmatprep.subr.mxu0 0.0
    %1330 = vmatpush2.msra.mxu0 0.0
    %1331 = vmatprep.subr.mxu0 0.0
    %1332 = vmatpush2.msra.mxu0 0.0
    %1333 = vmatprep.subr.mxu0 0.0
    %1334 = vmatpush2.msra.mxu0 0.0
    %1335 = vmatprep.subr.mxu0 0.0
    %1336 = vmatpush2.msra.mxu0 0.0
    %1337 = vmatprep.subr.mxu0 0.0
    %1338 = vmatpush2.msra.mxu0 0.0
    %1339 = vmatprep.subr.mxu0 0.0
    %1340 = vmatpush2.msra.mxu0 0.0
    %1341 = vmatprep.subr.mxu0 0.0
    %1342 = vmatpush2.msra.mxu0 0.0
    %1343 = vmatprep.subr.mxu0 0.0
    %1344 = vmatpush2.msra.mxu0 0.0
    %1345 = vmatprep.mubr.f32.mxu0 0.0
    %1346 = vmatmul.mubr.f32.gmra.mxu0 %v1279
    %v1347 = vpop.f32.mrf.mxu0
    %v1348 = vadd.f32 0.0, %v1347
    %v1349 = vpop.f32.mrf.mxu0
    %1350 = vdwg.mxu0
    %v1351 = vadd.f32 %v1173, %v1348
    %v1352 = vmul.f32 %v1351, 0.5
    %v1353 = vtanh.pop %v1352
    %v1354 = vmul.f32 %v1353, 0.5
    %v1355 = vadd.f32 %v1354, 0.5
    %v1356 = vtanh.pop %v1351
    %v1357 = vmul.f32 %v1355, %v1165
    %1359 = vrot.lane.b32.xlu0 %v1356, 64
    %v1360 = vpop.permute.xlu0 %1359
    %v1362 = vmul.f32 %v1355, %v1360
    %1364 = vrot.lane.b32.xlu0 %v1362, 32
    %v1365 = vpop.permute.xlu0 %1364
    %v1367 = vadd.f32 %v1357, %v1365
    %v1368 = vtanh.pop %v1367
    %1370 = vrot.lane.b32.xlu0 %v1368, 64
    %v1371 = vpop.permute.xlu0 %1370
    %v1373 = vmul.f32 %v1355, %v1371
    %v1374 = vsub.f32 %v1373, %v1162
    %v1375 = vmul.f32 %v1048, %v1374
    %v1376 = vadd.f32 %v1162, %v1375
    %v1377 = vsub.f32 %v1367, %v1165
    %v1378 = vmul.f32 %v1048, %v1377
    %v1379 = vadd.f32 %v1165, %v1378
    %1381 = vrot.lane.b32.xlu0 %v1376, 32
    %v1382 = vpop.permute.xlu0 %1381
    %s1384 = scalar_lea.vmem [#allocation4], 24
    %1385 = vst.msk [vmem:[%s1384] sm:$0xff] %vm254, %v1382
    %v1386 = vld [vmem:[%s710] sm:$0xff]
    %v1387 = vld [vmem:[%s708 + $0x8] sm:$0xff]
    %1389 = vrot.lane.b32.xlu0 %v1271, 32
    %v1390 = vpop.permute.xlu0 %1389
    %v1391 = vsel %vm254, %v1390, 0
    %1393 = vmatprep.subr.mxu0 0.0
    %1394 = vmatpush1.msra.mxu0 0.0
    %1395 = vmatprep.subr.mxu0 0.0
    %1396 = vmatpush1.msra.mxu0 0.0
    %1397 = vmatprep.subr.mxu0 0.0
    %1398 = vmatpush1.msra.mxu0 0.0
    %1399 = vmatprep.subr.mxu0 0.0
    %1400 = vmatpush1.msra.mxu0 0.0
    %1401 = vmatprep.subr.mxu0 0.0
    %1402 = vmatpush1.msra.mxu0 0.0
    %1403 = vmatprep.subr.mxu0 0.0
    %1404 = vmatpush1.msra.mxu0 0.0
    %1405 = vmatprep.subr.mxu0 0.0
    %1406 = vmatpush1.msra.mxu0 0.0
    %1407 = vmatprep.subr.mxu0 0.0
    %1408 = vmatpush1.msra.mxu0 0.0
    %1409 = vmatprep.subr.mxu0 0.0
    %1410 = vmatpush1.msra.mxu0 0.0
    %1411 = vmatprep.subr.mxu0 0.0
    %1412 = vmatpush1.msra.mxu0 0.0
    %1413 = vmatprep.subr.mxu0 0.0
    %1414 = vmatpush1.msra.mxu0 0.0
    %1415 = vmatprep.subr.mxu0 0.0
    %1416 = vmatpush1.msra.mxu0 0.0
    %1417 = vmatprep.subr.mxu0 0.0
    %1418 = vmatpush1.msra.mxu0 %v245
    %1419 = vmatprep.subr.mxu0 0.0
    %1420 = vmatpush1.msra.mxu0 %v244
    %1421 = vmatprep.subr.mxu0 0.0
    %1422 = vmatpush1.msra.mxu0 %v243
    %1423 = vmatprep.subr.mxu0 0.0
    %1424 = vmatpush1.msra.mxu0 %v242
    %1425 = vmatprep.subr.mxu0 0.0
    %1426 = vmatpush2.msra.mxu0 0.0
    %1427 = vmatprep.subr.mxu0 0.0
    %1428 = vmatpush2.msra.mxu0 0.0
    %1429 = vmatprep.subr.mxu0 0.0
    %1430 = vmatpush2.msra.mxu0 0.0
    %1431 = vmatprep.subr.mxu0 0.0
    %1432 = vmatpush2.msra.mxu0 0.0
    %1433 = vmatprep.subr.mxu0 0.0
    %1434 = vmatpush2.msra.mxu0 0.0
    %1435 = vmatprep.subr.mxu0 0.0
    %1436 = vmatpush2.msra.mxu0 0.0
    %1437 = vmatprep.subr.mxu0 0.0
    %1438 = vmatpush2.msra.mxu0 0.0
    %1439 = vmatprep.subr.mxu0 0.0
    %1440 = vmatpush2.msra.mxu0 0.0
    %1441 = vmatprep.subr.mxu0 0.0
    %1442 = vmatpush2.msra.mxu0 0.0
    %1443 = vmatprep.subr.mxu0 0.0
    %1444 = vmatpush2.msra.mxu0 0.0
    %1445 = vmatprep.subr.mxu0 0.0
    %1446 = vmatpush2.msra.mxu0 0.0
    %1447 = vmatprep.subr.mxu0 0.0
    %1448 = vmatpush2.msra.mxu0 0.0
    %1449 = vmatprep.subr.mxu0 0.0
    %1450 = vmatpush2.msra.mxu0 0.0
    %1451 = vmatprep.subr.mxu0 0.0
    %1452 = vmatpush2.msra.mxu0 0.0
    %1453 = vmatprep.subr.mxu0 0.0
    %1454 = vmatpush2.msra.mxu0 0.0
    %1455 = vmatprep.subr.mxu0 0.0
    %1456 = vmatpush2.msra.mxu0 0.0
    %1457 = vmatprep.mubr.f32.mxu0 0.0
    %1458 = vmatmul.mubr.f32.gmra.mxu0 %v1391
    %v1459 = vpop.f32.mrf.mxu0
    %v1460 = vadd.f32 0.0, %v1459
    %v1461 = vpop.f32.mrf.mxu0
    %1462 = vdwg.mxu0
    %v1463 = vadd.f32 %v1386, %v1460
    %v1464 = vmul.f32 %v1463, 0.5
    %v1465 = vtanh.pop %v1464
    %v1466 = vmul.f32 %v1465, 0.5
    %v1467 = vadd.f32 %v1466, 0.5
    %v1468 = vtanh.pop %v1463
    %v1469 = vmul.f32 %v1467, %v1265
    %1471 = vrot.lane.b32.xlu0 %v1468, 64
    %v1472 = vpop.permute.xlu0 %1471
    %v1474 = vmul.f32 %v1467, %v1472
    %1476 = vrot.lane.b32.xlu0 %v1474, 32
    %v1477 = vpop.permute.xlu0 %1476
    %v1479 = vadd.f32 %v1469, %v1477
    %v1480 = vtanh.pop %v1479
    %1482 = vrot.lane.b32.xlu0 %v1480, 64
    %v1483 = vpop.permute.xlu0 %1482
    %v1485 = vmul.f32 %v1467, %v1483
    %v1486 = vmul.f32 %v1485, %v927
    %1488 = vrot.lane.b32.xlu0 %v1486, 32
    %v1489 = vpop.permute.xlu0 %1488
    %s1491 = scalar_lea.vmem [#allocation3], 40
    %1492 = vst.msk [vmem:[%s1491] sm:$0xff] %vm254, %v1489
    %v1493 = vsel %vm254, %v1382, 0
    %1495 = vmatprep.subr.mxu0 0.0
    %1496 = vmatpush1.msra.mxu0 0.0
    %1497 = vmatprep.subr.mxu0 0.0
    %1498 = vmatpush1.msra.mxu0 0.0
    %1499 = vmatprep.subr.mxu0 0.0
    %1500 = vmatpush1.msra.mxu0 0.0
    %1501 = vmatprep.subr.mxu0 0.0
    %1502 = vmatpush1.msra.mxu0 0.0
    %1503 = vmatprep.subr.mxu0 0.0
    %1504 = vmatpush1.msra.mxu0 0.0
    %1505 = vmatprep.subr.mxu0 0.0
    %1506 = vmatpush1.msra.mxu0 0.0
    %1507 = vmatprep.subr.mxu0 0.0
    %1508 = vmatpush1.msra.mxu0 0.0
    %1509 = vmatprep.subr.mxu0 0.0
    %1510 = vmatpush1.msra.mxu0 0.0
    %1511 = vmatprep.subr.mxu0 0.0
    %1512 = vmatpush1.msra.mxu0 0.0
    %1513 = vmatprep.subr.mxu0 0.0
    %1514 = vmatpush1.msra.mxu0 0.0
    %1515 = vmatprep.subr.mxu0 0.0
    %1516 = vmatpush1.msra.mxu0 0.0
    %1517 = vmatprep.subr.mxu0 0.0
    %1518 = vmatpush1.msra.mxu0 0.0
    %1519 = vmatprep.subr.mxu0 0.0
    %1520 = vmatpush1.msra.mxu0 %v249
    %1521 = vmatprep.subr.mxu0 0.0
    %1522 = vmatpush1.msra.mxu0 %v248
    %1523 = vmatprep.subr.mxu0 0.0
    %1524 = vmatpush1.msra.mxu0 %v247
    %1525 = vmatprep.subr.mxu0 0.0
    %1526 = vmatpush1.msra.mxu0 %v246
    %1527 = vmatprep.subr.mxu0 0.0
    %1528 = vmatpush2.msra.mxu0 0.0
    %1529 = vmatprep.subr.mxu0 0.0
    %1530 = vmatpush2.msra.mxu0 0.0
    %1531 = vmatprep.subr.mxu0 0.0
    %1532 = vmatpush2.msra.mxu0 0.0
    %1533 = vmatprep.subr.mxu0 0.0
    %1534 = vmatpush2.msra.mxu0 0.0
    %1535 = vmatprep.subr.mxu0 0.0
    %1536 = vmatpush2.msra.mxu0 0.0
    %1537 = vmatprep.subr.mxu0 0.0
    %1538 = vmatpush2.msra.mxu0 0.0
    %1539 = vmatprep.subr.mxu0 0.0
    %1540 = vmatpush2.msra.mxu0 0.0
    %1541 = vmatprep.subr.mxu0 0.0
    %1542 = vmatpush2.msra.mxu0 0.0
    %1543 = vmatprep.subr.mxu0 0.0
    %1544 = vmatpush2.msra.mxu0 0.0
    %1545 = vmatprep.subr.mxu0 0.0
    %1546 = vmatpush2.msra.mxu0 0.0
    %1547 = vmatprep.subr.mxu0 0.0
    %1548 = vmatpush2.msra.mxu0 0.0
    %1549 = vmatprep.subr.mxu0 0.0
    %1550 = vmatpush2.msra.mxu0 0.0
    %1551 = vmatprep.subr.mxu0 0.0
    %1552 = vmatpush2.msra.mxu0 0.0
    %1553 = vmatprep.subr.mxu0 0.0
    %1554 = vmatpush2.msra.mxu0 0.0
    %1555 = vmatprep.subr.mxu0 0.0
    %1556 = vmatpush2.msra.mxu0 0.0
    %1557 = vmatprep.subr.mxu0 0.0
    %1558 = vmatpush2.msra.mxu0 0.0
    %1559 = vmatprep.mubr.f32.mxu0 0.0
    %1560 = vmatmul.mubr.f32.gmra.mxu0 %v1493
    %v1561 = vpop.f32.mrf.mxu0
    %v1562 = vadd.f32 0.0, %v1561
    %v1563 = vpop.f32.mrf.mxu0
    %1564 = vdwg.mxu0
    %v1565 = vadd.f32 %v1387, %v1562
    %v1566 = vmul.f32 %v1565, 0.5
    %v1567 = vtanh.pop %v1566
    %v1568 = vmul.f32 %v1567, 0.5
    %v1569 = vadd.f32 %v1568, 0.5
    %v1570 = vtanh.pop %v1565
    %v1571 = vmul.f32 %v1569, %v1379
    %1573 = vrot.lane.b32.xlu0 %v1570, 64
    %v1574 = vpop.permute.xlu0 %1573
    %v1576 = vmul.f32 %v1569, %v1574
    %1578 = vrot.lane.b32.xlu0 %v1576, 32
    %v1579 = vpop.permute.xlu0 %1578
    %v1581 = vadd.f32 %v1571, %v1579
    %v1582 = vtanh.pop %v1581
    %1584 = vrot.lane.b32.xlu0 %v1582, 64
    %v1585 = vpop.permute.xlu0 %1584
    %v1587 = vmul.f32 %v1569, %v1585
    %v1588 = vsub.f32 %v1587, %v1376
    %v1589 = vmul.f32 %v816, %v1588
    %v1590 = vadd.f32 %v1376, %v1589
    %v1591 = vsub.f32 %v1581, %v1379
    %v1592 = vmul.f32 %v816, %v1591
    %v1593 = vadd.f32 %v1379, %v1592
    %1595 = vrot.lane.b32.xlu0 %v1590, 32
    %v1596 = vpop.permute.xlu0 %1595
    %s1598 = scalar_lea.vmem [#allocation4], 16
    %1599 = vst.msk [vmem:[%s1598] sm:$0xff] %vm254, %v1596
    %v1600 = vld [vmem:[%s478] sm:$0xff]
    %v1601 = vld [vmem:[%s476 + $0x8] sm:$0xff]
    %1603 = vrot.lane.b32.xlu0 %v1485, 32
    %v1604 = vpop.permute.xlu0 %1603
    %v1605 = vsel %vm254, %v1604, 0
    %1607 = vmatprep.subr.mxu0 0.0
    %1608 = vmatpush1.msra.mxu0 0.0
    %1609 = vmatprep.subr.mxu0 0.0
    %1610 = vmatpush1.msra.mxu0 0.0
    %1611 = vmatprep.subr.mxu0 0.0
    %1612 = vmatpush1.msra.mxu0 0.0
    %1613 = vmatprep.subr.mxu0 0.0
    %1614 = vmatpush1.msra.mxu0 0.0
    %1615 = vmatprep.subr.mxu0 0.0
    %1616 = vmatpush1.msra.mxu0 0.0
    %1617 = vmatprep.subr.mxu0 0.0
    %1618 = vmatpush1.msra.mxu0 0.0
    %1619 = vmatprep.subr.mxu0 0.0
    %1620 = vmatpush1.msra.mxu0 0.0
    %1621 = vmatprep.subr.mxu0 0.0
    %1622 = vmatpush1.msra.mxu0 0.0
    %1623 = vmatprep.subr.mxu0 0.0
    %1624 = vmatpush1.msra.mxu0 0.0
    %1625 = vmatprep.subr.mxu0 0.0
    %1626 = vmatpush1.msra.mxu0 0.0
    %1627 = vmatprep.subr.mxu0 0.0
    %1628 = vmatpush1.msra.mxu0 0.0
    %1629 = vmatprep.subr.mxu0 0.0
    %1630 = vmatpush1.msra.mxu0 0.0
    %1631 = vmatprep.subr.mxu0 0.0
    %1632 = vmatpush1.msra.mxu0 %v245
    %1633 = vmatprep.subr.mxu0 0.0
    %1634 = vmatpush1.msra.mxu0 %v244
    %1635 = vmatprep.subr.mxu0 0.0
    %1636 = vmatpush1.msra.mxu0 %v243
    %1637 = vmatprep.subr.mxu0 0.0
    %1638 = vmatpush1.msra.mxu0 %v242
    %1639 = vmatprep.subr.mxu0 0.0
    %1640 = vmatpush2.msra.mxu0 0.0
    %1641 = vmatprep.subr.mxu0 0.0
    %1642 = vmatpush2.msra.mxu0 0.0
    %1643 = vmatprep.subr.mxu0 0.0
    %1644 = vmatpush2.msra.mxu0 0.0
    %1645 = vmatprep.subr.mxu0 0.0
    %1646 = vmatpush2.msra.mxu0 0.0
    %1647 = vmatprep.subr.mxu0 0.0
    %1648 = vmatpush2.msra.mxu0 0.0
    %1649 = vmatprep.subr.mxu0 0.0
    %1650 = vmatpush2.msra.mxu0 0.0
    %1651 = vmatprep.subr.mxu0 0.0
    %1652 = vmatpush2.msra.mxu0 0.0
    %1653 = vmatprep.subr.mxu0 0.0
    %1654 = vmatpush2.msra.mxu0 0.0
    %1655 = vmatprep.subr.mxu0 0.0
    %1656 = vmatpush2.msra.mxu0 0.0
    %1657 = vmatprep.subr.mxu0 0.0
    %1658 = vmatpush2.msra.mxu0 0.0
    %1659 = vmatprep.subr.mxu0 0.0
    %1660 = vmatpush2.msra.mxu0 0.0
    %1661 = vmatprep.subr.mxu0 0.0
    %1662 = vmatpush2.msra.mxu0 0.0
    %1663 = vmatprep.subr.mxu0 0.0
    %1664 = vmatpush2.msra.mxu0 0.0
    %1665 = vmatprep.subr.mxu0 0.0
    %1666 = vmatpush2.msra.mxu0 0.0
    %1667 = vmatprep.subr.mxu0 0.0
    %1668 = vmatpush2.msra.mxu0 0.0
    %1669 = vmatprep.subr.mxu0 0.0
    %1670 = vmatpush2.msra.mxu0 0.0
    %1671 = vmatprep.mubr.f32.mxu0 0.0
    %1672 = vmatmul.mubr.f32.gmra.mxu0 %v1605
    %v1673 = vpop.f32.mrf.mxu0
    %v1674 = vadd.f32 0.0, %v1673
    %v1675 = vpop.f32.mrf.mxu0
    %1676 = vdwg.mxu0
    %v1677 = vadd.f32 %v1600, %v1674
    %v1678 = vmul.f32 %v1677, 0.5
    %v1679 = vtanh.pop %v1678
    %v1680 = vmul.f32 %v1679, 0.5
    %v1681 = vadd.f32 %v1680, 0.5
    %v1682 = vtanh.pop %v1677
    %v1683 = vmul.f32 %v1681, %v1479
    %1685 = vrot.lane.b32.xlu0 %v1682, 64
    %v1686 = vpop.permute.xlu0 %1685
    %v1688 = vmul.f32 %v1681, %v1686
    %1690 = vrot.lane.b32.xlu0 %v1688, 32
    %v1691 = vpop.permute.xlu0 %1690
    %v1693 = vadd.f32 %v1683, %v1691
    %v1694 = vtanh.pop %v1693
    %1696 = vrot.lane.b32.xlu0 %v1694, 64
    %v1697 = vpop.permute.xlu0 %1696
    %v1699 = vmul.f32 %v1681, %v1697
    %v1700 = vmul.f32 %v1699, %v695
    %1702 = vrot.lane.b32.xlu0 %v1700, 32
    %v1703 = vpop.permute.xlu0 %1702
    %s1705 = scalar_lea.vmem [#allocation3], 48
    %1706 = vst.msk [vmem:[%s1705] sm:$0xff] %vm254, %v1703
    %v1707 = vsel %vm254, %v1596, 0
    %1709 = vmatprep.subr.mxu0 0.0
    %1710 = vmatpush1.msra.mxu0 0.0
    %1711 = vmatprep.subr.mxu0 0.0
    %1712 = vmatpush1.msra.mxu0 0.0
    %1713 = vmatprep.subr.mxu0 0.0
    %1714 = vmatpush1.msra.mxu0 0.0
    %1715 = vmatprep.subr.mxu0 0.0
    %1716 = vmatpush1.msra.mxu0 0.0
    %1717 = vmatprep.subr.mxu0 0.0
    %1718 = vmatpush1.msra.mxu0 0.0
    %1719 = vmatprep.subr.mxu0 0.0
    %1720 = vmatpush1.msra.mxu0 0.0
    %1721 = vmatprep.subr.mxu0 0.0
    %1722 = vmatpush1.msra.mxu0 0.0
    %1723 = vmatprep.subr.mxu0 0.0
    %1724 = vmatpush1.msra.mxu0 0.0
    %1725 = vmatprep.subr.mxu0 0.0
    %1726 = vmatpush1.msra.mxu0 0.0
    %1727 = vmatprep.subr.mxu0 0.0
    %1728 = vmatpush1.msra.mxu0 0.0
    %1729 = vmatprep.subr.mxu0 0.0
    %1730 = vmatpush1.msra.mxu0 0.0
    %1731 = vmatprep.subr.mxu0 0.0
    %1732 = vmatpush1.msra.mxu0 0.0
    %1733 = vmatprep.subr.mxu0 0.0
    %1734 = vmatpush1.msra.mxu0 %v249
    %1735 = vmatprep.subr.mxu0 0.0
    %1736 = vmatpush1.msra.mxu0 %v248
    %1737 = vmatprep.subr.mxu0 0.0
    %1738 = vmatpush1.msra.mxu0 %v247
    %1739 = vmatprep.subr.mxu0 0.0
    %1740 = vmatpush1.msra.mxu0 %v246
    %1741 = vmatprep.subr.mxu0 0.0
    %1742 = vmatpush2.msra.mxu0 0.0
    %1743 = vmatprep.subr.mxu0 0.0
    %1744 = vmatpush2.msra.mxu0 0.0
    %1745 = vmatprep.subr.mxu0 0.0
    %1746 = vmatpush2.msra.mxu0 0.0
    %1747 = vmatprep.subr.mxu0 0.0
    %1748 = vmatpush2.msra.mxu0 0.0
    %1749 = vmatprep.subr.mxu0 0.0
    %1750 = vmatpush2.msra.mxu0 0.0
    %1751 = vmatprep.subr.mxu0 0.0
    %1752 = vmatpush2.msra.mxu0 0.0
    %1753 = vmatprep.subr.mxu0 0.0
    %1754 = vmatpush2.msra.mxu0 0.0
    %1755 = vmatprep.subr.mxu0 0.0
    %1756 = vmatpush2.msra.mxu0 0.0
    %1757 = vmatprep.subr.mxu0 0.0
    %1758 = vmatpush2.msra.mxu0 0.0
    %1759 = vmatprep.subr.mxu0 0.0
    %1760 = vmatpush2.msra.mxu0 0.0
    %1761 = vmatprep.subr.mxu0 0.0
    %1762 = vmatpush2.msra.mxu0 0.0
    %1763 = vmatprep.subr.mxu0 0.0
    %1764 = vmatpush2.msra.mxu0 0.0
    %1765 = vmatprep.subr.mxu0 0.0
    %1766 = vmatpush2.msra.mxu0 0.0
    %1767 = vmatprep.subr.mxu0 0.0
    %1768 = vmatpush2.msra.mxu0 0.0
    %1769 = vmatprep.subr.mxu0 0.0
    %1770 = vmatpush2.msra.mxu0 0.0
    %1771 = vmatprep.subr.mxu0 0.0
    %1772 = vmatpush2.msra.mxu0 0.0
    %1773 = vmatprep.mubr.f32.mxu0 0.0
    %1774 = vmatmul.mubr.f32.gmra.mxu0 %v1707
    %v1775 = vpop.f32.mrf.mxu0
    %v1776 = vadd.f32 0.0, %v1775
    %v1777 = vpop.f32.mrf.mxu0
    %1778 = vdwg.mxu0
    %v1779 = vadd.f32 %v1601, %v1776
    %v1780 = vmul.f32 %v1779, 0.5
    %v1781 = vtanh.pop %v1780
    %v1782 = vmul.f32 %v1781, 0.5
    %v1783 = vadd.f32 %v1782, 0.5
    %v1784 = vtanh.pop %v1779
    %v1785 = vmul.f32 %v1783, %v1593
    %1787 = vrot.lane.b32.xlu0 %v1784, 64
    %v1788 = vpop.permute.xlu0 %1787
    %v1790 = vmul.f32 %v1783, %v1788
    %1792 = vrot.lane.b32.xlu0 %v1790, 32
    %v1793 = vpop.permute.xlu0 %1792
    %v1795 = vadd.f32 %v1785, %v1793
    %v1796 = vtanh.pop %v1795
    %1798 = vrot.lane.b32.xlu0 %v1796, 64
    %v1799 = vpop.permute.xlu0 %1798
    %v1801 = vmul.f32 %v1783, %v1799
    %v1802 = vsub.f32 %v1801, %v1590
    %v1803 = vmul.f32 %v584, %v1802
    %v1804 = vadd.f32 %v1590, %v1803
    %v1805 = vsub.f32 %v1795, %v1593
    %v1806 = vmul.f32 %v584, %v1805
    %v1807 = vadd.f32 %v1593, %v1806
    %1809 = vrot.lane.b32.xlu0 %v1804, 32
    %v1810 = vpop.permute.xlu0 %1809
    %s1812 = scalar_lea.vmem [#allocation4], 8
    %1813 = vst.msk [vmem:[%s1812] sm:$0xff] %vm254, %v1810
    %v1814 = vld [vmem:[%s252] sm:$0xff]
    %v1815 = vld [vmem:[#allocation2 + $0x8] sm:$0xff]
    %1817 = vrot.lane.b32.xlu0 %v1699, 32
    %v1818 = vpop.permute.xlu0 %1817
    %v1819 = vsel %vm254, %v1818, 0
    %1821 = vmatprep.subr.mxu0 0.0
    %1822 = vmatpush1.msra.mxu0 0.0
    %1823 = vmatprep.subr.mxu0 0.0
    %1824 = vmatpush1.msra.mxu0 0.0
    %1825 = vmatprep.subr.mxu0 0.0
    %1826 = vmatpush1.msra.mxu0 0.0
    %1827 = vmatprep.subr.mxu0 0.0
    %1828 = vmatpush1.msra.mxu0 0.0
    %1829 = vmatprep.subr.mxu0 0.0
    %1830 = vmatpush1.msra.mxu0 0.0
    %1831 = vmatprep.subr.mxu0 0.0
    %1832 = vmatpush1.msra.mxu0 0.0
    %1833 = vmatprep.subr.mxu0 0.0
    %1834 = vmatpush1.msra.mxu0 0.0
    %1835 = vmatprep.subr.mxu0 0.0
    %1836 = vmatpush1.msra.mxu0 0.0
    %1837 = vmatprep.subr.mxu0 0.0
    %1838 = vmatpush1.msra.mxu0 0.0
    %1839 = vmatprep.subr.mxu0 0.0
    %1840 = vmatpush1.msra.mxu0 0.0
    %1841 = vmatprep.subr.mxu0 0.0
    %1842 = vmatpush1.msra.mxu0 0.0
    %1843 = vmatprep.subr.mxu0 0.0
    %1844 = vmatpush1.msra.mxu0 0.0
    %1845 = vmatprep.subr.mxu0 0.0
    %1846 = vmatpush1.msra.mxu0 %v245
    %1847 = vmatprep.subr.mxu0 0.0
    %1848 = vmatpush1.msra.mxu0 %v244
    %1849 = vmatprep.subr.mxu0 0.0
    %1850 = vmatpush1.msra.mxu0 %v243
    %1851 = vmatprep.subr.mxu0 0.0
    %1852 = vmatpush1.msra.mxu0 %v242
    %1853 = vmatprep.subr.mxu0 0.0
    %1854 = vmatpush2.msra.mxu0 0.0
    %1855 = vmatprep.subr.mxu0 0.0
    %1856 = vmatpush2.msra.mxu0 0.0
    %1857 = vmatprep.subr.mxu0 0.0
    %1858 = vmatpush2.msra.mxu0 0.0
    %1859 = vmatprep.subr.mxu0 0.0
    %1860 = vmatpush2.msra.mxu0 0.0
    %1861 = vmatprep.subr.mxu0 0.0
    %1862 = vmatpush2.msra.mxu0 0.0
    %1863 = vmatprep.subr.mxu0 0.0
    %1864 = vmatpush2.msra.mxu0 0.0
    %1865 = vmatprep.subr.mxu0 0.0
    %1866 = vmatpush2.msra.mxu0 0.0
    %1867 = vmatprep.subr.mxu0 0.0
    %1868 = vmatpush2.msra.mxu0 0.0
    %1869 = vmatprep.subr.mxu0 0.0
    %1870 = vmatpush2.msra.mxu0 0.0
    %1871 = vmatprep.subr.mxu0 0.0
    %1872 = vmatpush2.msra.mxu0 0.0
    %1873 = vmatprep.subr.mxu0 0.0
    %1874 = vmatpush2.msra.mxu0 0.0
    %1875 = vmatprep.subr.mxu0 0.0
    %1876 = vmatpush2.msra.mxu0 0.0
    %1877 = vmatprep.subr.mxu0 0.0
    %1878 = vmatpush2.msra.mxu0 0.0
    %1879 = vmatprep.subr.mxu0 0.0
    %1880 = vmatpush2.msra.mxu0 0.0
    %1881 = vmatprep.subr.mxu0 0.0
    %1882 = vmatpush2.msra.mxu0 0.0
    %1883 = vmatprep.subr.mxu0 0.0
    %1884 = vmatpush2.msra.mxu0 0.0
    %1885 = vmatprep.mubr.f32.mxu0 0.0
    %1886 = vmatmul.mubr.f32.gmra.mxu0 %v1819
    %v1887 = vpop.f32.mrf.mxu0
    %v1888 = vadd.f32 0.0, %v1887
    %v1889 = vpop.f32.mrf.mxu0
    %1890 = vdwg.mxu0
    %v1891 = vadd.f32 %v1814, %v1888
    %v1892 = vmul.f32 %v1891, 0.5
    %v1893 = vtanh.pop %v1892
    %v1894 = vmul.f32 %v1893, 0.5
    %v1895 = vadd.f32 %v1894, 0.5
    %v1896 = vtanh.pop %v1891
    %v1897 = vmul.f32 %v1895, %v1693
    %1899 = vrot.lane.b32.xlu0 %v1896, 64
    %v1900 = vpop.permute.xlu0 %1899
    %v1902 = vmul.f32 %v1895, %v1900
    %1904 = vrot.lane.b32.xlu0 %v1902, 32
    %v1905 = vpop.permute.xlu0 %1904
    %v1907 = vadd.f32 %v1897, %v1905
    %v1908 = vtanh.pop %v1907
    %1910 = vrot.lane.b32.xlu0 %v1908, 64
    %v1911 = vpop.permute.xlu0 %1910
    %v1913 = vmul.f32 %v1895, %v1911
    %v1914 = vmul.f32 %v1913, %v464
    %1916 = vrot.lane.b32.xlu0 %v1914, 32
    %v1917 = vpop.permute.xlu0 %1916
    %s1919 = scalar_lea.vmem [#allocation3], 56
    %1920 = vst.msk [vmem:[%s1919] sm:$0xff] %vm254, %v1917
    %v1921 = vsel %vm254, %v1810, 0
    %1923 = vmatprep.subr.mxu0 0.0
    %1924 = vmatpush1.msra.mxu0 0.0
    %1925 = vmatprep.subr.mxu0 0.0
    %1926 = vmatpush1.msra.mxu0 0.0
    %1927 = vmatprep.subr.mxu0 0.0
    %1928 = vmatpush1.msra.mxu0 0.0
    %1929 = vmatprep.subr.mxu0 0.0
    %1930 = vmatpush1.msra.mxu0 0.0
    %1931 = vmatprep.subr.mxu0 0.0
    %1932 = vmatpush1.msra.mxu0 0.0
    %1933 = vmatprep.subr.mxu0 0.0
    %1934 = vmatpush1.msra.mxu0 0.0
    %1935 = vmatprep.subr.mxu0 0.0
    %1936 = vmatpush1.msra.mxu0 0.0
    %1937 = vmatprep.subr.mxu0 0.0
    %1938 = vmatpush1.msra.mxu0 0.0
    %1939 = vmatprep.subr.mxu0 0.0
    %1940 = vmatpush1.msra.mxu0 0.0
    %1941 = vmatprep.subr.mxu0 0.0
    %1942 = vmatpush1.msra.mxu0 0.0
    %1943 = vmatprep.subr.mxu0 0.0
    %1944 = vmatpush1.msra.mxu0 0.0
    %1945 = vmatprep.subr.mxu0 0.0
    %1946 = vmatpush1.msra.mxu0 0.0
    %1947 = vmatprep.subr.mxu0 0.0
    %1948 = vmatpush1.msra.mxu0 %v249
    %1949 = vmatprep.subr.mxu0 0.0
    %1950 = vmatpush1.msra.mxu0 %v248
    %1951 = vmatprep.subr.mxu0 0.0
    %1952 = vmatpush1.msra.mxu0 %v247
    %1953 = vmatprep.subr.mxu0 0.0
    %1954 = vmatpush1.msra.mxu0 %v246
    %1955 = vmatprep.subr.mxu0 0.0
    %1956 = vmatpush2.msra.mxu0 0.0
    %1957 = vmatprep.subr.mxu0 0.0
    %1958 = vmatpush2.msra.mxu0 0.0
    %1959 = vmatprep.subr.mxu0 0.0
    %1960 = vmatpush2.msra.mxu0 0.0
    %1961 = vmatprep.subr.mxu0 0.0
    %1962 = vmatpush2.msra.mxu0 0.0
    %1963 = vmatprep.subr.mxu0 0.0
    %1964 = vmatpush2.msra.mxu0 0.0
    %1965 = vmatprep.subr.mxu0 0.0
    %1966 = vmatpush2.msra.mxu0 0.0
    %1967 = vmatprep.subr.mxu0 0.0
    %1968 = vmatpush2.msra.mxu0 0.0
    %1969 = vmatprep.subr.mxu0 0.0
    %1970 = vmatpush2.msra.mxu0 0.0
    %1971 = vmatprep.subr.mxu0 0.0
    %1972 = vmatpush2.msra.mxu0 0.0
    %1973 = vmatprep.subr.mxu0 0.0
    %1974 = vmatpush2.msra.mxu0 0.0
    %1975 = vmatprep.subr.mxu0 0.0
    %1976 = vmatpush2.msra.mxu0 0.0
    %1977 = vmatprep.subr.mxu0 0.0
    %1978 = vmatpush2.msra.mxu0 0.0
    %1979 = vmatprep.subr.mxu0 0.0
    %1980 = vmatpush2.msra.mxu0 0.0
    %1981 = vmatprep.subr.mxu0 0.0
    %1982 = vmatpush2.msra.mxu0 0.0
    %1983 = vmatprep.subr.mxu0 0.0
    %1984 = vmatpush2.msra.mxu0 0.0
    %1985 = vmatprep.subr.mxu0 0.0
    %1986 = vmatpush2.msra.mxu0 0.0
    %1987 = vmatprep.mubr.f32.mxu0 0.0
    %1988 = vmatmul.mubr.f32.gmra.mxu0 %v1921
    %v1989 = vpop.f32.mrf.mxu0
    %v1990 = vadd.f32 0.0, %v1989
    %v1991 = vpop.f32.mrf.mxu0
    %1992 = vdwg.mxu0
    %v1993 = vadd.f32 %v1815, %v1990
    %v1994 = vmul.f32 %v1993, 0.5
    %v1995 = vtanh.pop %v1994
    %v1996 = vmul.f32 %v1995, 0.5
    %v1997 = vadd.f32 %v1996, 0.5
    %v1998 = vtanh.pop %v1993
    %v1999 = vmul.f32 %v1997, %v1807
    %2001 = vrot.lane.b32.xlu0 %v1998, 64
    %v2002 = vpop.permute.xlu0 %2001
    %v2004 = vmul.f32 %v1997, %v2002
    %2006 = vrot.lane.b32.xlu0 %v2004, 32
    %v2007 = vpop.permute.xlu0 %2006
    %v2009 = vadd.f32 %v1999, %v2007
    %v2010 = vtanh.pop %v2009
    %2012 = vrot.lane.b32.xlu0 %v2010, 64
    %v2013 = vpop.permute.xlu0 %2012
    %v2015 = vmul.f32 %v1997, %v2013
    %v2016 = vsub.f32 %v2015, %v1804
    %v2017 = vmul.f32 %v357, %v2016
    %v2018 = vadd.f32 %v1804, %v2017
    %2020 = vrot.lane.b32.xlu0 %v2018, 32
    %v2021 = vpop.permute.xlu0 %2020
    %2023 = vst.msk [vmem:[#allocation4] sm:$0xff] %vm254, %v2021
    %v2024 = vld [vmem:[#allocation3] sm:$0xff]
    %v2025 = vld [vmem:[#allocation3 + $0x8] sm:$0xff]
    %v2026 = vld [vmem:[#allocation3 + $0x10] sm:$0xff]
    %v2027 = vld [vmem:[#allocation3 + $0x18] sm:$0xff]
    %v2028 = vld [vmem:[#allocation3 + $0x20] sm:$0xff]
    %v2029 = vld [vmem:[#allocation3 + $0x28] sm:$0xff]
    %v2030 = vld [vmem:[#allocation3 + $0x30] sm:$0xff]
    %v2031 = vld [vmem:[#allocation3 + $0x38] sm:$0xff]
    %v2032 = vld [vmem:[#allocation4] sm:$0xff]
    %v2033 = vld [vmem:[#allocation4 + $0x8] sm:$0xff]
    %v2034 = vld [vmem:[#allocation4 + $0x10] sm:$0xff]
    %v2035 = vld [vmem:[#allocation4 + $0x18] sm:$0xff]
    %v2036 = vld [vmem:[#allocation4 + $0x20] sm:$0xff]
    %v2037 = vld [vmem:[#allocation4 + $0x28] sm:$0xff]
    %v2038 = vld [vmem:[#allocation4 + $0x30] sm:$0xff]
    %v2039 = vld [vmem:[#allocation4 + $0x38] sm:$0xff]
    %v2040 = vadd.f32 %v2024, %v2032
    %v2041 = vadd.f32 %v2025, %v2033
    %v2042 = vadd.f32 %v2026, %v2034
    %v2043 = vadd.f32 %v2027, %v2035
    %v2044 = vadd.f32 %v2028, %v2036
    %v2045 = vadd.f32 %v2029, %v2037
    %v2046 = vadd.f32 %v2030, %v2038
    %v2047 = vadd.f32 %v2031, %v2039
    %v2048 = vcombine.low %v2040, %v2042
    %v2049 = vcombine.high %v2040, %v2042
    %v2051 = vunpack.c.l.s4 1983009808
    %v2052 = vunpack.c.0.s8 %v2051
    %v2053 = vlaneseq
    %v2054 = vshrl.u32 %v2053, 7
    %v2055 = vsub.s32 %v2052, %v2054
    %v2056 = vrot.slane %v2048, %v2055
    %v2058 = vunpack.c.l.s4 1983009808
    %v2059 = vunpack.c.0.s8 %v2058
    %v2060 = vlaneseq
    %v2061 = vshrl.u32 %v2060, 7
    %v2062 = vsub.s32 %v2059, %v2061
    %v2063 = vrot.slane %v2049, %v2062
    %v2064 = vcombine.low %v2041, %v2043
    %v2065 = vcombine.high %v2041, %v2043
    %v2067 = vunpack.c.l.s4 1983009808
    %v2068 = vunpack.c.0.s8 %v2067
    %v2069 = vlaneseq
    %v2070 = vshrl.u32 %v2069, 7
    %v2071 = vsub.s32 %v2068, %v2070
    %v2072 = vrot.slane %v2064, %v2071
    %v2074 = vunpack.c.l.s4 1983009808
    %v2075 = vunpack.c.0.s8 %v2074
    %v2076 = vlaneseq
    %v2077 = vshrl.u32 %v2076, 7
    %v2078 = vsub.s32 %v2075, %v2077
    %v2079 = vrot.slane %v2065, %v2078
    %v2080 = vcombine.low %v2044, %v2046
    %v2081 = vcombine.high %v2044, %v2046
    %v2083 = vunpack.c.l.s4 1983009808
    %v2084 = vunpack.c.0.s8 %v2083
    %v2085 = vlaneseq
    %v2086 = vshrl.u32 %v2085, 7
    %v2087 = vsub.s32 %v2084, %v2086
    %v2088 = vrot.slane %v2080, %v2087
    %v2090 = vunpack.c.l.s4 1983009808
    %v2091 = vunpack.c.0.s8 %v2090
    %v2092 = vlaneseq
    %v2093 = vshrl.u32 %v2092, 7
    %v2094 = vsub.s32 %v2091, %v2093
    %v2095 = vrot.slane %v2081, %v2094
    %v2096 = vcombine.low %v2045, %v2047
    %v2097 = vcombine.high %v2045, %v2047
    %v2099 = vunpack.c.l.s4 1983009808
    %v2100 = vunpack.c.0.s8 %v2099
    %v2101 = vlaneseq
    %v2102 = vshrl.u32 %v2101, 7
    %v2103 = vsub.s32 %v2100, %v2102
    %v2104 = vrot.slane %v2096, %v2103
    %v2106 = vunpack.c.l.s4 1983009808
    %v2107 = vunpack.c.0.s8 %v2106
    %v2108 = vlaneseq
    %v2109 = vshrl.u32 %v2108, 7
    %v2110 = vsub.s32 %v2107, %v2109
    %v2111 = vrot.slane %v2097, %v2110
    %v2112 = vcombine.low %v2056, %v2072
    %v2113 = vcombine.high %v2056, %v2072
    %v2115 = vunpack.c.l.s4 1934713408
    %v2116 = vunpack.c.0.s8 %v2115
    %v2117 = vlaneseq
    %v2118 = vshrl.u32 %v2117, 7
    %v2119 = vsub.s32 %v2116, %v2118
    %v2120 = vrot.slane %v2112, %v2119
    %v2122 = vunpack.c.l.s4 1934713408
    %v2123 = vunpack.c.0.s8 %v2122
    %v2124 = vlaneseq
    %v2125 = vshrl.u32 %v2124, 7
    %v2126 = vsub.s32 %v2123, %v2125
    %v2127 = vrot.slane %v2113, %v2126
    %v2128 = vcombine.low %v2063, %v2079
    %v2129 = vcombine.high %v2063, %v2079
    %v2131 = vunpack.c.l.s4 1934713408
    %v2132 = vunpack.c.0.s8 %v2131
    %v2133 = vlaneseq
    %v2134 = vshrl.u32 %v2133, 7
    %v2135 = vsub.s32 %v2132, %v2134
    %v2136 = vrot.slane %v2128, %v2135
    %v2138 = vunpack.c.l.s4 1934713408
    %v2139 = vunpack.c.0.s8 %v2138
    %v2140 = vlaneseq
    %v2141 = vshrl.u32 %v2140, 7
    %v2142 = vsub.s32 %v2139, %v2141
    %v2143 = vrot.slane %v2129, %v2142
    %v2144 = vcombine.low %v2088, %v2104
    %v2145 = vcombine.high %v2088, %v2104
    %v2147 = vunpack.c.l.s4 1934713408
    %v2148 = vunpack.c.0.s8 %v2147
    %v2149 = vlaneseq
    %v2150 = vshrl.u32 %v2149, 7
    %v2151 = vsub.s32 %v2148, %v2150
    %v2152 = vrot.slane %v2144, %v2151
    %v2154 = vunpack.c.l.s4 1934713408
    %v2155 = vunpack.c.0.s8 %v2154
    %v2156 = vlaneseq
    %v2157 = vshrl.u32 %v2156, 7
    %v2158 = vsub.s32 %v2155, %v2157
    %v2159 = vrot.slane %v2145, %v2158
    %v2160 = vcombine.low %v2095, %v2111
    %v2161 = vcombine.high %v2095, %v2111
    %v2163 = vunpack.c.l.s4 1934713408
    %v2164 = vunpack.c.0.s8 %v2163
    %v2165 = vlaneseq
    %v2166 = vshrl.u32 %v2165, 7
    %v2167 = vsub.s32 %v2164, %v2166
    %v2168 = vrot.slane %v2160, %v2167
    %v2170 = vunpack.c.l.s4 1934713408
    %v2171 = vunpack.c.0.s8 %v2170
    %v2172 = vlaneseq
    %v2173 = vshrl.u32 %v2172, 7
    %v2174 = vsub.s32 %v2171, %v2173
    %v2175 = vrot.slane %v2161, %v2174
    %v2176 = vcombine.low %v2120, %v2152
    %v2177 = vcombine.high %v2120, %v2152
    %v2178 = vcombine.low %v2127, %v2159
    %v2179 = vcombine.high %v2127, %v2159
    %v2180 = vcombine.low %v2136, %v2168
    %v2181 = vcombine.high %v2136, %v2168
    %v2182 = vcombine.low %v2143, %v2175
    %v2183 = vcombine.high %v2143, %v2175
    %v2184 = vpack.c.bf16 %v2176, %v2176
    %v2185 = vpack.c.bf16 %v2177, %v2177
    %v2186 = vpack.c.bf16 %v2178, %v2178
    %v2187 = vpack.c.bf16 %v2179, %v2179
    %v2188 = vpack.c.bf16 %v2180, %v2180
    %v2189 = vpack.c.bf16 %v2181, %v2181
    %v2190 = vpack.c.bf16 %v2182, %v2182
    %v2191 = vpack.c.bf16 %v2183, %v2183
    %v2192 = vld [vmem:[#allocation10] sm:$0xf]
    %v2193 = vld [vmem:[#allocation10 + $0x4] sm:$0xf]
    %v2194 = vld [vmem:[#allocation10 + $0x8] sm:$0xf]
    %v2195 = vld [vmem:[#allocation10 + $0xc] sm:$0xf]
    %v2204 = vunpack.c.l.b16 %v2184
    %v2205 = vunpack.c.l.b16 %v2185
    %v2206 = vunpack.c.l.b16 %v2186
    %v2207 = vunpack.c.l.b16 %v2187
    %v2208 = vunpack.c.l.b16 %v2188
    %v2209 = vunpack.c.l.b16 %v2189
    %v2210 = vunpack.c.l.b16 %v2190
    %v2211 = vunpack.c.l.b16 %v2191
    %v2212 = vpack.c.b16 %v2205, %v2204
    %v2213 = vpack.c.b16 %v2207, %v2206
    %v2214 = vpack.c.b16 %v2209, %v2208
    %v2215 = vpack.c.b16 %v2211, %v2210
    %v2220 = vunpack.c.l.b16 %v2192
    %v2221 = vunpack.c.l.b16 %v2193
    %v2222 = vunpack.c.l.b16 %v2194
    %v2223 = vunpack.c.l.b16 %v2195
    %v2224 = vpack.c.b16 %v2221, %v2220
    %v2225 = vpack.c.b16 %v2223, %v2222
    %v2229 = vsel %vm254, %v2212, 0
    %v2232 = vsel %vm254, %v2213, 0
    %v2235 = vsel %vm254, %v2214, 0
    %v2238 = vsel %vm254, %v2215, 0
    %2240 = vmatprep.subr.bf16.mxu0 0
    %2241 = vmatpush1.bf16.msra.mxu0 0
    %2242 = vmatprep.subr.bf16.mxu0 0
    %2243 = vmatpush1.bf16.msra.mxu0 0
    %2244 = vmatprep.subr.bf16.mxu0 0
    %2245 = vmatpush1.bf16.msra.mxu0 0
    %2246 = vmatprep.subr.bf16.mxu0 0
    %2247 = vmatpush1.bf16.msra.mxu0 0
    %2248 = vmatprep.subr.bf16.mxu0 0
    %2249 = vmatpush1.bf16.msra.mxu0 0
    %2250 = vmatprep.subr.bf16.mxu0 0
    %2251 = vmatpush1.bf16.msra.mxu0 0
    %2252 = vmatprep.subr.bf16.mxu0 0
    %2253 = vmatpush1.bf16.msra.mxu0 %v2225
    %2254 = vmatprep.subr.bf16.mxu0 0
    %2255 = vmatpush1.bf16.msra.mxu0 %v2224
    %2256 = vmatprep.subr.bf16.mxu0 0
    %2257 = vmatpush2.bf16.msra.mxu0 0
    %2258 = vmatprep.subr.bf16.mxu0 0
    %2259 = vmatpush2.bf16.msra.mxu0 0
    %2260 = vmatprep.subr.bf16.mxu0 0
    %2261 = vmatpush2.bf16.msra.mxu0 0
    %2262 = vmatprep.subr.bf16.mxu0 0
    %2263 = vmatpush2.bf16.msra.mxu0 0
    %2264 = vmatprep.subr.bf16.mxu0 0
    %2265 = vmatpush2.bf16.msra.mxu0 0
    %2266 = vmatprep.subr.bf16.mxu0 0
    %2267 = vmatpush2.bf16.msra.mxu0 0
    %2268 = vmatprep.subr.bf16.mxu0 0
    %2269 = vmatpush2.bf16.msra.mxu0 0
    %2270 = vmatprep.subr.bf16.mxu0 0
    %2271 = vmatpush2.bf16.msra.mxu0 0
    %2272 = vmatprep.mubr.bf16.mxu0 0
    %2273 = vmatmul.mubr.bf16.gmra.mxu0 %v2229
    %v2274 = vpop.f32.mrf.mxu0
    %v2275 = vadd.f32 0.0, %v2274
    %v2276 = vpop.f32.mrf.mxu0
    %v2277 = vpop.f32.mrf.mxu0
    %v2278 = vadd.f32 0.0, %v2277
    %v2279 = vpop.f32.mrf.mxu0
    %2280 = vmatprep.mubr.bf16.mxu0 0
    %2281 = vmatmul.mubr.bf16.gmra.mxu0 %v2232
    %v2282 = vpop.f32.mrf.mxu0
    %v2283 = vadd.f32 0.0, %v2282
    %v2284 = vpop.f32.mrf.mxu0
    %v2285 = vpop.f32.mrf.mxu0
    %v2286 = vadd.f32 0.0, %v2285
    %v2287 = vpop.f32.mrf.mxu0
    %2288 = vmatprep.mubr.bf16.mxu0 0
    %2289 = vmatmul.mubr.bf16.gmra.mxu0 %v2235
    %v2290 = vpop.f32.mrf.mxu0
    %v2291 = vadd.f32 0.0, %v2290
    %v2292 = vpop.f32.mrf.mxu0
    %v2293 = vpop.f32.mrf.mxu0
    %v2294 = vadd.f32 0.0, %v2293
    %v2295 = vpop.f32.mrf.mxu0
    %2296 = vmatprep.mubr.bf16.mxu0 0
    %2297 = vmatmul.mubr.bf16.gmra.mxu0 %v2238
    %v2298 = vpop.f32.mrf.mxu0
    %v2299 = vadd.f32 0.0, %v2298
    %v2300 = vpop.f32.mrf.mxu0
    %v2301 = vpop.f32.mrf.mxu0
    %v2302 = vadd.f32 0.0, %v2301
    %v2303 = vpop.f32.mrf.mxu0
    %2304 = vdwg.mxu0
    %v2305 = vpack.c.bf16 %v2275, %v2275
    %v2306 = vpack.c.bf16 %v2278, %v2278
    %v2307 = vpack.c.bf16 %v2283, %v2283
    %v2308 = vpack.c.bf16 %v2286, %v2286
    %v2309 = vpack.c.bf16 %v2291, %v2291
    %v2310 = vpack.c.bf16 %v2294, %v2294
    %v2311 = vpack.c.bf16 %v2299, %v2299
    %v2312 = vpack.c.bf16 %v2302, %v2302
    %v2313 = vlaneseq
    %v2314 = vand.u32 %v2313, 127
    %v2315 = vcombine.high %v250, %v250
    %v2317 = vunpack.c.l.s4 1966171168
    %v2318 = vunpack.c.0.s8 %v2317
    %v2319 = vlaneseq
    %v2320 = vshrl.u32 %v2319, 7
    %v2321 = vsub.s32 %v2318, %v2320
    %v2322 = vrot.slane %v250, %v2321
    %v2324 = vunpack.c.l.s4 1966171168
    %v2325 = vunpack.c.0.s8 %v2324
    %v2326 = vlaneseq
    %v2327 = vshrl.u32 %v2326, 7
    %v2328 = vsub.s32 %v2325, %v2327
    %v2329 = vrot.slane %v2315, %v2328
    %v2330 = vcombine.high %v2322, %v2322
    %v2331 = vcombine.high %v2329, %v2329
    %v2333 = vunpack.c.l.s4 1966171168
    %v2334 = vunpack.c.0.s8 %v2333
    %v2335 = vlaneseq
    %v2336 = vshrl.u32 %v2335, 7
    %v2337 = vsub.s32 %v2334, %v2336
    %v2338 = vrot.slane %v2322, %v2337
    %v2340 = vunpack.c.l.s4 1966171168
    %v2341 = vunpack.c.0.s8 %v2340
    %v2342 = vlaneseq
    %v2343 = vshrl.u32 %v2342, 7
    %v2344 = vsub.s32 %v2341, %v2343
    %v2345 = vrot.slane %v2329, %v2344
    %v2347 = vunpack.c.l.s4 1966171168
    %v2348 = vunpack.c.0.s8 %v2347
    %v2349 = vlaneseq
    %v2350 = vshrl.u32 %v2349, 7
    %v2351 = vsub.s32 %v2348, %v2350
    %v2352 = vrot.slane %v2330, %v2351
    %v2354 = vunpack.c.l.s4 1966171168
    %v2355 = vunpack.c.0.s8 %v2354
    %v2356 = vlaneseq
    %v2357 = vshrl.u32 %v2356, 7
    %v2358 = vsub.s32 %v2355, %v2357
    %v2359 = vrot.slane %v2331, %v2358
    %v2360 = vcombine.high %v2338, %v2338
    %v2361 = vcombine.high %v2345, %v2345
    %v2362 = vcombine.high %v2352, %v2352
    %v2363 = vcombine.high %v2359, %v2359
    %2364 = vset.pattern.permute.xlu0 0
    %2365 = vperm.xlu0 %2364, %v2338
    %v2366 = vpop.permute.xlu0 %2365
    %v2367 = vlaneseq
    %v2368 = vshrl.u32 %v2367, 7
    %v2369 = vsub.s32 0, %v2368
    %v2370 = vrot.slane %v2366, %v2369
    %2371 = vset.pattern.permute.xlu0 0
    %2372 = vperm.xlu0 %2371, %v2352
    %v2373 = vpop.permute.xlu0 %2372
    %v2374 = vlaneseq
    %v2375 = vshrl.u32 %v2374, 7
    %v2376 = vsub.s32 0, %v2375
    %v2377 = vrot.slane %v2373, %v2376
    %2378 = vset.pattern.permute.xlu0 0
    %2379 = vperm.xlu0 %2378, %v2360
    %v2380 = vpop.permute.xlu0 %2379
    %v2381 = vlaneseq
    %v2382 = vshrl.u32 %v2381, 7
    %v2383 = vsub.s32 0, %v2382
    %v2384 = vrot.slane %v2380, %v2383
    %2385 = vset.pattern.permute.xlu0 0
    %2386 = vperm.xlu0 %2385, %v2362
    %v2387 = vpop.permute.xlu0 %2386
    %v2388 = vlaneseq
    %v2389 = vshrl.u32 %v2388, 7
    %v2390 = vsub.s32 0, %v2389
    %v2391 = vrot.slane %v2387, %v2390
    %2392 = vset.pattern.permute.xlu0 0
    %2393 = vperm.xlu0 %2392, %v2345
    %v2394 = vpop.permute.xlu0 %2393
    %v2395 = vlaneseq
    %v2396 = vshrl.u32 %v2395, 7
    %v2397 = vsub.s32 0, %v2396
    %v2398 = vrot.slane %v2394, %v2397
    %2399 = vset.pattern.permute.xlu0 0
    %2400 = vperm.xlu0 %2399, %v2359
    %v2401 = vpop.permute.xlu0 %2400
    %v2402 = vlaneseq
    %v2403 = vshrl.u32 %v2402, 7
    %v2404 = vsub.s32 0, %v2403
    %v2405 = vrot.slane %v2401, %v2404
    %2406 = vset.pattern.permute.xlu0 0
    %2407 = vperm.xlu0 %2406, %v2361
    %v2408 = vpop.permute.xlu0 %2407
    %v2409 = vlaneseq
    %v2410 = vshrl.u32 %v2409, 7
    %v2411 = vsub.s32 0, %v2410
    %v2412 = vrot.slane %v2408, %v2411
    %2413 = vset.pattern.permute.xlu0 0
    %2414 = vperm.xlu0 %2413, %v2363
    %v2415 = vpop.permute.xlu0 %2414
    %v2416 = vlaneseq
    %v2417 = vshrl.u32 %v2416, 7
    %v2418 = vsub.s32 0, %v2417
    %v2419 = vrot.slane %v2415, %v2418
    %vm2420 = vcmp.lt.s32.totalorder %v2314, %v2370
    %vm2421 = vcmp.lt.s32.totalorder %v2314, %v2377
    %vm2422 = vcmp.lt.s32.totalorder %v2314, %v2384
    %vm2423 = vcmp.lt.s32.totalorder %v2314, %v2391
    %vm2424 = vcmp.lt.s32.totalorder %v2314, %v2398
    %vm2425 = vcmp.lt.s32.totalorder %v2314, %v2405
    %vm2426 = vcmp.lt.s32.totalorder %v2314, %v2412
    %vm2427 = vcmp.lt.s32.totalorder %v2314, %v2419
    %v2428 = vsel %vm2420, 0.0, -1e+09
    %v2429 = vsel %vm2421, 0.0, -1e+09
    %v2430 = vsel %vm2422, 0.0, -1e+09
    %v2431 = vsel %vm2423, 0.0, -1e+09
    %v2432 = vsel %vm2424, 0.0, -1e+09
    %v2433 = vsel %vm2425, 0.0, -1e+09
    %v2434 = vsel %vm2426, 0.0, -1e+09
    %v2435 = vsel %vm2427, 0.0, -1e+09
    %2437 = vrot.lane.b32.xlu0 %v2305, 96
    %v2438 = vpop.permute.xlu0 %2437
    %v2440 = vsel %vm254, %v2305, 0
    %v2443 = vsel %vm254, %v2438, 0
    %2445 = vmatprep.subr.bf16.mxu0 0
    %2446 = vmatpush1.bf16.xpose.msra.mxu0 0
    %2447 = vmatprep.subr.bf16.mxu0 0
    %2448 = vmatpush1.bf16.xpose.msra.mxu0 0
    %2449 = vmatprep.subr.bf16.mxu0 0
    %2450 = vmatpush1.bf16.xpose.msra.mxu0 0
    %2451 = vmatprep.subr.bf16.mxu0 0
    %2452 = vmatpush1.bf16.xpose.msra.mxu0 0
    %2453 = vmatprep.subr.bf16.mxu0 0
    %2454 = vmatpush1.bf16.xpose.msra.mxu0 0
    %2455 = vmatprep.subr.bf16.mxu0 0
    %2456 = vmatpush1.bf16.xpose.msra.mxu0 0
    %2457 = vmatprep.subr.bf16.mxu0 0
    %2458 = vmatpush1.bf16.xpose.msra.mxu0 0
    %2459 = vmatprep.subr.bf16.mxu0 0
    %2460 = vmatpush1.bf16.xpose.msra.mxu0 %v2443
    %2461 = vmatprep.subr.bf16.mxu0 0
    %2462 = vmatpush2.bf16.xpose.msra.mxu0 0
    %2463 = vmatprep.subr.bf16.mxu0 0
    %2464 = vmatpush2.bf16.xpose.msra.mxu0 0
    %2465 = vmatprep.subr.bf16.mxu0 0
    %2466 = vmatpush2.bf16.xpose.msra.mxu0 0
    %2467 = vmatprep.subr.bf16.mxu0 0
    %2468 = vmatpush2.bf16.xpose.msra.mxu0 0
    %2469 = vmatprep.subr.bf16.mxu0 0
    %2470 = vmatpush2.bf16.xpose.msra.mxu0 0
    %2471 = vmatprep.subr.bf16.mxu0 0
    %2472 = vmatpush2.bf16.xpose.msra.mxu0 0
    %2473 = vmatprep.subr.bf16.mxu0 0
    %2474 = vmatpush2.bf16.xpose.msra.mxu0 0
    %2475 = vmatprep.subr.bf16.mxu0 0
    %2476 = vmatpush2.bf16.xpose.msra.mxu0 0
    %2477 = vmatprep.mubr.bf16.mxu0 0
    %2478 = vmatmul.mubr.bf16.gmra.mxu0 %v2440
    %v2479 = vpop.f32.mrf.mxu0
    %v2480 = vadd.f32 %v2428, %v2479
    %v2481 = vpop.f32.mrf.mxu0
    %v2482 = vpop.f32.mrf.mxu0
    %v2483 = vpop.f32.mrf.mxu0
    %2484 = vdwg.mxu0
    %2486 = vrot.lane.b32.xlu0 %v2306, 96
    %v2487 = vpop.permute.xlu0 %2486
    %v2489 = vsel %vm254, %v2306, 0
    %v2492 = vsel %vm254, %v2487, 0
    %2494 = vmatprep.subr.bf16.mxu0 0
    %2495 = vmatpush1.bf16.xpose.msra.mxu0 0
    %2496 = vmatprep.subr.bf16.mxu0 0
    %2497 = vmatpush1.bf16.xpose.msra.mxu0 0
    %2498 = vmatprep.subr.bf16.mxu0 0
    %2499 = vmatpush1.bf16.xpose.msra.mxu0 0
    %2500 = vmatprep.subr.bf16.mxu0 0
    %2501 = vmatpush1.bf16.xpose.msra.mxu0 0
    %2502 = vmatprep.subr.bf16.mxu0 0
    %2503 = vmatpush1.bf16.xpose.msra.mxu0 0
    %2504 = vmatprep.subr.bf16.mxu0 0
    %2505 = vmatpush1.bf16.xpose.msra.mxu0 0
    %2506 = vmatprep.subr.bf16.mxu0 0
    %2507 = vmatpush1.bf16.xpose.msra.mxu0 0
    %2508 = vmatprep.subr.bf16.mxu0 0
    %2509 = vmatpush1.bf16.xpose.msra.mxu0 %v2492
    %2510 = vmatprep.subr.bf16.mxu0 0
    %2511 = vmatpush2.bf16.xpose.msra.mxu0 0
    %2512 = vmatprep.subr.bf16.mxu0 0
    %2513 = vmatpush2.bf16.xpose.msra.mxu0 0
    %2514 = vmatprep.subr.bf16.mxu0 0
    %2515 = vmatpush2.bf16.xpose.msra.mxu0 0
    %2516 = vmatprep.subr.bf16.mxu0 0
    %2517 = vmatpush2.bf16.xpose.msra.mxu0 0
    %2518 = vmatprep.subr.bf16.mxu0 0
    %2519 = vmatpush2.bf16.xpose.msra.mxu0 0
    %2520 = vmatprep.subr.bf16.mxu0 0
    %2521 = vmatpush2.bf16.xpose.msra.mxu0 0
    %2522 = vmatprep.subr.bf16.mxu0 0
    %2523 = vmatpush2.bf16.xpose.msra.mxu0 0
    %2524 = vmatprep.subr.bf16.mxu0 0
    %2525 = vmatpush2.bf16.xpose.msra.mxu0 0
    %2526 = vmatprep.mubr.bf16.mxu0 0
    %2527 = vmatmul.mubr.bf16.gmra.mxu0 %v2489
    %v2528 = vpop.f32.mrf.mxu0
    %v2529 = vadd.f32 %v2429, %v2528
    %v2530 = vpop.f32.mrf.mxu0
    %v2531 = vpop.f32.mrf.mxu0
    %v2532 = vpop.f32.mrf.mxu0
    %2533 = vdwg.mxu0
    %2535 = vrot.lane.b32.xlu0 %v2307, 96
    %v2536 = vpop.permute.xlu0 %2535
    %v2538 = vsel %vm254, %v2307, 0
    %v2541 = vsel %vm254, %v2536, 0
    %2543 = vmatprep.subr.bf16.mxu0 0
    %2544 = vmatpush1.bf16.xpose.msra.mxu0 0
    %2545 = vmatprep.subr.bf16.mxu0 0
    %2546 = vmatpush1.bf16.xpose.msra.mxu0 0
    %2547 = vmatprep.subr.bf16.mxu0 0
    %2548 = vmatpush1.bf16.xpose.msra.mxu0 0
    %2549 = vmatprep.subr.bf16.mxu0 0
    %2550 = vmatpush1.bf16.xpose.msra.mxu0 0
    %2551 = vmatprep.subr.bf16.mxu0 0
    %2552 = vmatpush1.bf16.xpose.msra.mxu0 0
    %2553 = vmatprep.subr.bf16.mxu0 0
    %2554 = vmatpush1.bf16.xpose.msra.mxu0 0
    %2555 = vmatprep.subr.bf16.mxu0 0
    %2556 = vmatpush1.bf16.xpose.msra.mxu0 0
    %2557 = vmatprep.subr.bf16.mxu0 0
    %2558 = vmatpush1.bf16.xpose.msra.mxu0 %v2541
    %2559 = vmatprep.subr.bf16.mxu0 0
    %2560 = vmatpush2.bf16.xpose.msra.mxu0 0
    %2561 = vmatprep.subr.bf16.mxu0 0
    %2562 = vmatpush2.bf16.xpose.msra.mxu0 0
    %2563 = vmatprep.subr.bf16.mxu0 0
    %2564 = vmatpush2.bf16.xpose.msra.mxu0 0
    %2565 = vmatprep.subr.bf16.mxu0 0
    %2566 = vmatpush2.bf16.xpose.msra.mxu0 0
    %2567 = vmatprep.subr.bf16.mxu0 0
    %2568 = vmatpush2.bf16.xpose.msra.mxu0 0
    %2569 = vmatprep.subr.bf16.mxu0 0
    %2570 = vmatpush2.bf16.xpose.msra.mxu0 0
    %2571 = vmatprep.subr.bf16.mxu0 0
    %2572 = vmatpush2.bf16.xpose.msra.mxu0 0
    %2573 = vmatprep.subr.bf16.mxu0 0
    %2574 = vmatpush2.bf16.xpose.msra.mxu0 0
    %2575 = vmatprep.mubr.bf16.mxu0 0
    %2576 = vmatmul.mubr.bf16.gmra.mxu0 %v2538
    %v2577 = vpop.f32.mrf.mxu0
    %v2578 = vadd.f32 %v2430, %v2577
    %v2579 = vpop.f32.mrf.mxu0
    %v2580 = vpop.f32.mrf.mxu0
    %v2581 = vpop.f32.mrf.mxu0
    %2582 = vdwg.mxu0
    %2584 = vrot.lane.b32.xlu0 %v2308, 96
    %v2585 = vpop.permute.xlu0 %2584
    %v2587 = vsel %vm254, %v2308, 0
    %v2590 = vsel %vm254, %v2585, 0
    %2592 = vmatprep.subr.bf16.mxu0 0
    %2593 = vmatpush1.bf16.xpose.msra.mxu0 0
    %2594 = vmatprep.subr.bf16.mxu0 0
    %2595 = vmatpush1.bf16.xpose.msra.mxu0 0
    %2596 = vmatprep.subr.bf16.mxu0 0
    %2597 = vmatpush1.bf16.xpose.msra.mxu0 0
    %2598 = vmatprep.subr.bf16.mxu0 0
    %2599 = vmatpush1.bf16.xpose.msra.mxu0 0
    %2600 = vmatprep.subr.bf16.mxu0 0
    %2601 = vmatpush1.bf16.xpose.msra.mxu0 0
    %2602 = vmatprep.subr.bf16.mxu0 0
    %2603 = vmatpush1.bf16.xpose.msra.mxu0 0
    %2604 = vmatprep.subr.bf16.mxu0 0
    %2605 = vmatpush1.bf16.xpose.msra.mxu0 0
    %2606 = vmatprep.subr.bf16.mxu0 0
    %2607 = vmatpush1.bf16.xpose.msra.mxu0 %v2590
    %2608 = vmatprep.subr.bf16.mxu0 0
    %2609 = vmatpush2.bf16.xpose.msra.mxu0 0
    %2610 = vmatprep.subr.bf16.mxu0 0
    %2611 = vmatpush2.bf16.xpose.msra.mxu0 0
    %2612 = vmatprep.subr.bf16.mxu0 0
    %2613 = vmatpush2.bf16.xpose.msra.mxu0 0
    %2614 = vmatprep.subr.bf16.mxu0 0
    %2615 = vmatpush2.bf16.xpose.msra.mxu0 0
    %2616 = vmatprep.subr.bf16.mxu0 0
    %2617 = vmatpush2.bf16.xpose.msra.mxu0 0
    %2618 = vmatprep.subr.bf16.mxu0 0
    %2619 = vmatpush2.bf16.xpose.msra.mxu0 0
    %2620 = vmatprep.subr.bf16.mxu0 0
    %2621 = vmatpush2.bf16.xpose.msra.mxu0 0
    %2622 = vmatprep.subr.bf16.mxu0 0
    %2623 = vmatpush2.bf16.xpose.msra.mxu0 0
    %2624 = vmatprep.mubr.bf16.mxu0 0
    %2625 = vmatmul.mubr.bf16.gmra.mxu0 %v2587
    %v2626 = vpop.f32.mrf.mxu0
    %v2627 = vadd.f32 %v2431, %v2626
    %v2628 = vpop.f32.mrf.mxu0
    %v2629 = vpop.f32.mrf.mxu0
    %v2630 = vpop.f32.mrf.mxu0
    %2631 = vdwg.mxu0
    %2633 = vrot.lane.b32.xlu0 %v2309, 96
    %v2634 = vpop.permute.xlu0 %2633
    %v2636 = vsel %vm254, %v2309, 0
    %v2639 = vsel %vm254, %v2634, 0
    %2641 = vmatprep.subr.bf16.mxu0 0
    %2642 = vmatpush1.bf16.xpose.msra.mxu0 0
    %2643 = vmatprep.subr.bf16.mxu0 0
    %2644 = vmatpush1.bf16.xpose.msra.mxu0 0
    %2645 = vmatprep.subr.bf16.mxu0 0
    %2646 = vmatpush1.bf16.xpose.msra.mxu0 0
    %2647 = vmatprep.subr.bf16.mxu0 0
    %2648 = vmatpush1.bf16.xpose.msra.mxu0 0
    %2649 = vmatprep.subr.bf16.mxu0 0
    %2650 = vmatpush1.bf16.xpose.msra.mxu0 0
    %2651 = vmatprep.subr.bf16.mxu0 0
    %2652 = vmatpush1.bf16.xpose.msra.mxu0 0
    %2653 = vmatprep.subr.bf16.mxu0 0
    %2654 = vmatpush1.bf16.xpose.msra.mxu0 0
    %2655 = vmatprep.subr.bf16.mxu0 0
    %2656 = vmatpush1.bf16.xpose.msra.mxu0 %v2639
    %2657 = vmatprep.subr.bf16.mxu0 0
    %2658 = vmatpush2.bf16.xpose.msra.mxu0 0
    %2659 = vmatprep.subr.bf16.mxu0 0
    %2660 = vmatpush2.bf16.xpose.msra.mxu0 0
    %2661 = vmatprep.subr.bf16.mxu0 0
    %2662 = vmatpush2.bf16.xpose.msra.mxu0 0
    %2663 = vmatprep.subr.bf16.mxu0 0
    %2664 = vmatpush2.bf16.xpose.msra.mxu0 0
    %2665 = vmatprep.subr.bf16.mxu0 0
    %2666 = vmatpush2.bf16.xpose.msra.mxu0 0
    %2667 = vmatprep.subr.bf16.mxu0 0
    %2668 = vmatpush2.bf16.xpose.msra.mxu0 0
    %2669 = vmatprep.subr.bf16.mxu0 0
    %2670 = vmatpush2.bf16.xpose.msra.mxu0 0
    %2671 = vmatprep.subr.bf16.mxu0 0
    %2672 = vmatpush2.bf16.xpose.msra.mxu0 0
    %2673 = vmatprep.mubr.bf16.mxu0 0
    %2674 = vmatmul.mubr.bf16.gmra.mxu0 %v2636
    %v2675 = vpop.f32.mrf.mxu0
    %v2676 = vadd.f32 %v2432, %v2675
    %v2677 = vpop.f32.mrf.mxu0
    %v2678 = vpop.f32.mrf.mxu0
    %v2679 = vpop.f32.mrf.mxu0
    %2680 = vdwg.mxu0
    %2682 = vrot.lane.b32.xlu0 %v2310, 96
    %v2683 = vpop.permute.xlu0 %2682
    %v2685 = vsel %vm254, %v2310, 0
    %v2688 = vsel %vm254, %v2683, 0
    %2690 = vmatprep.subr.bf16.mxu0 0
    %2691 = vmatpush1.bf16.xpose.msra.mxu0 0
    %2692 = vmatprep.subr.bf16.mxu0 0
    %2693 = vmatpush1.bf16.xpose.msra.mxu0 0
    %2694 = vmatprep.subr.bf16.mxu0 0
    %2695 = vmatpush1.bf16.xpose.msra.mxu0 0
    %2696 = vmatprep.subr.bf16.mxu0 0
    %2697 = vmatpush1.bf16.xpose.msra.mxu0 0
    %2698 = vmatprep.subr.bf16.mxu0 0
    %2699 = vmatpush1.bf16.xpose.msra.mxu0 0
    %2700 = vmatprep.subr.bf16.mxu0 0
    %2701 = vmatpush1.bf16.xpose.msra.mxu0 0
    %2702 = vmatprep.subr.bf16.mxu0 0
    %2703 = vmatpush1.bf16.xpose.msra.mxu0 0
    %2704 = vmatprep.subr.bf16.mxu0 0
    %2705 = vmatpush1.bf16.xpose.msra.mxu0 %v2688
    %2706 = vmatprep.subr.bf16.mxu0 0
    %2707 = vmatpush2.bf16.xpose.msra.mxu0 0
    %2708 = vmatprep.subr.bf16.mxu0 0
    %2709 = vmatpush2.bf16.xpose.msra.mxu0 0
    %2710 = vmatprep.subr.bf16.mxu0 0
    %2711 = vmatpush2.bf16.xpose.msra.mxu0 0
    %2712 = vmatprep.subr.bf16.mxu0 0
    %2713 = vmatpush2.bf16.xpose.msra.mxu0 0
    %2714 = vmatprep.subr.bf16.mxu0 0
    %2715 = vmatpush2.bf16.xpose.msra.mxu0 0
    %2716 = vmatprep.subr.bf16.mxu0 0
    %2717 = vmatpush2.bf16.xpose.msra.mxu0 0
    %2718 = vmatprep.subr.bf16.mxu0 0
    %2719 = vmatpush2.bf16.xpose.msra.mxu0 0
    %2720 = vmatprep.subr.bf16.mxu0 0
    %2721 = vmatpush2.bf16.xpose.msra.mxu0 0
    %2722 = vmatprep.mubr.bf16.mxu0 0
    %2723 = vmatmul.mubr.bf16.gmra.mxu0 %v2685
    %v2724 = vpop.f32.mrf.mxu0
    %v2725 = vadd.f32 %v2433, %v2724
    %v2726 = vpop.f32.mrf.mxu0
    %v2727 = vpop.f32.mrf.mxu0
    %v2728 = vpop.f32.mrf.mxu0
    %2729 = vdwg.mxu0
    %2731 = vrot.lane.b32.xlu0 %v2311, 96
    %v2732 = vpop.permute.xlu0 %2731
    %v2734 = vsel %vm254, %v2311, 0
    %v2737 = vsel %vm254, %v2732, 0
    %2739 = vmatprep.subr.bf16.mxu0 0
    %2740 = vmatpush1.bf16.xpose.msra.mxu0 0
    %2741 = vmatprep.subr.bf16.mxu0 0
    %2742 = vmatpush1.bf16.xpose.msra.mxu0 0
    %2743 = vmatprep.subr.bf16.mxu0 0
    %2744 = vmatpush1.bf16.xpose.msra.mxu0 0
    %2745 = vmatprep.subr.bf16.mxu0 0
    %2746 = vmatpush1.bf16.xpose.msra.mxu0 0
    %2747 = vmatprep.subr.bf16.mxu0 0
    %2748 = vmatpush1.bf16.xpose.msra.mxu0 0
    %2749 = vmatprep.subr.bf16.mxu0 0
    %2750 = vmatpush1.bf16.xpose.msra.mxu0 0
    %2751 = vmatprep.subr.bf16.mxu0 0
    %2752 = vmatpush1.bf16.xpose.msra.mxu0 0
    %2753 = vmatprep.subr.bf16.mxu0 0
    %2754 = vmatpush1.bf16.xpose.msra.mxu0 %v2737
    %2755 = vmatprep.subr.bf16.mxu0 0
    %2756 = vmatpush2.bf16.xpose.msra.mxu0 0
    %2757 = vmatprep.subr.bf16.mxu0 0
    %2758 = vmatpush2.bf16.xpose.msra.mxu0 0
    %2759 = vmatprep.subr.bf16.mxu0 0
    %2760 = vmatpush2.bf16.xpose.msra.mxu0 0
    %2761 = vmatprep.subr.bf16.mxu0 0
    %2762 = vmatpush2.bf16.xpose.msra.mxu0 0
    %2763 = vmatprep.subr.bf16.mxu0 0
    %2764 = vmatpush2.bf16.xpose.msra.mxu0 0
    %2765 = vmatprep.subr.bf16.mxu0 0
    %2766 = vmatpush2.bf16.xpose.msra.mxu0 0
    %2767 = vmatprep.subr.bf16.mxu0 0
    %2768 = vmatpush2.bf16.xpose.msra.mxu0 0
    %2769 = vmatprep.subr.bf16.mxu0 0
    %2770 = vmatpush2.bf16.xpose.msra.mxu0 0
    %2771 = vmatprep.mubr.bf16.mxu0 0
    %2772 = vmatmul.mubr.bf16.gmra.mxu0 %v2734
    %v2773 = vpop.f32.mrf.mxu0
    %v2774 = vadd.f32 %v2434, %v2773
    %v2775 = vpop.f32.mrf.mxu0
    %v2776 = vpop.f32.mrf.mxu0
    %v2777 = vpop.f32.mrf.mxu0
    %2778 = vdwg.mxu0
    %2780 = vrot.lane.b32.xlu0 %v2312, 96
    %v2781 = vpop.permute.xlu0 %2780
    %v2783 = vsel %vm254, %v2312, 0
    %v2786 = vsel %vm254, %v2781, 0
    %2788 = vmatprep.subr.bf16.mxu0 0
    %2789 = vmatpush1.bf16.xpose.msra.mxu0 0
    %2790 = vmatprep.subr.bf16.mxu0 0
    %2791 = vmatpush1.bf16.xpose.msra.mxu0 0
    %2792 = vmatprep.subr.bf16.mxu0 0
    %2793 = vmatpush1.bf16.xpose.msra.mxu0 0
    %2794 = vmatprep.subr.bf16.mxu0 0
    %2795 = vmatpush1.bf16.xpose.msra.mxu0 0
    %2796 = vmatprep.subr.bf16.mxu0 0
    %2797 = vmatpush1.bf16.xpose.msra.mxu0 0
    %2798 = vmatprep.subr.bf16.mxu0 0
    %2799 = vmatpush1.bf16.xpose.msra.mxu0 0
    %2800 = vmatprep.subr.bf16.mxu0 0
    %2801 = vmatpush1.bf16.xpose.msra.mxu0 0
    %2802 = vmatprep.subr.bf16.mxu0 0
    %2803 = vmatpush1.bf16.xpose.msra.mxu0 %v2786
    %2804 = vmatprep.subr.bf16.mxu0 0
    %2805 = vmatpush2.bf16.xpose.msra.mxu0 0
    %2806 = vmatprep.subr.bf16.mxu0 0
    %2807 = vmatpush2.bf16.xpose.msra.mxu0 0
    %2808 = vmatprep.subr.bf16.mxu0 0
    %2809 = vmatpush2.bf16.xpose.msra.mxu0 0
    %2810 = vmatprep.subr.bf16.mxu0 0
    %2811 = vmatpush2.bf16.xpose.msra.mxu0 0
    %2812 = vmatprep.subr.bf16.mxu0 0
    %2813 = vmatpush2.bf16.xpose.msra.mxu0 0
    %2814 = vmatprep.subr.bf16.mxu0 0
    %2815 = vmatpush2.bf16.xpose.msra.mxu0 0
    %2816 = vmatprep.subr.bf16.mxu0 0
    %2817 = vmatpush2.bf16.xpose.msra.mxu0 0
    %2818 = vmatprep.subr.bf16.mxu0 0
    %2819 = vmatpush2.bf16.xpose.msra.mxu0 0
    %2820 = vmatprep.mubr.bf16.mxu0 0
    %2821 = vmatmul.mubr.bf16.gmra.mxu0 %v2783
    %v2822 = vpop.f32.mrf.mxu0
    %v2823 = vadd.f32 %v2435, %v2822
    %v2824 = vpop.f32.mrf.mxu0
    %v2825 = vpop.f32.mrf.mxu0
    %v2826 = vpop.f32.mrf.mxu0
    %2827 = vdwg.mxu0
    %vm2828 = vcmask 64512
    %v2829 = vsel %vm2828, %v2480, -inf
    %2830 = vmax.xlane.f32.xlu0 %v2829
    %v2831 = vpop.xlane.xlu0 %2830
    %v2832 = vsel %vm2828, %v2529, -inf
    %2833 = vmax.xlane.f32.xlu0 %v2832
    %v2834 = vpop.xlane.xlu0 %2833
    %v2835 = vsel %vm2828, %v2578, -inf
    %2836 = vmax.xlane.f32.xlu0 %v2835
    %v2837 = vpop.xlane.xlu0 %2836
    %v2838 = vsel %vm2828, %v2627, -inf
    %2839 = vmax.xlane.f32.xlu0 %v2838
    %v2840 = vpop.xlane.xlu0 %2839
    %v2841 = vsel %vm2828, %v2676, -inf
    %2842 = vmax.xlane.f32.xlu0 %v2841
    %v2843 = vpop.xlane.xlu0 %2842
    %v2844 = vsel %vm2828, %v2725, -inf
    %2845 = vmax.xlane.f32.xlu0 %v2844
    %v2846 = vpop.xlane.xlu0 %2845
    %v2847 = vsel %vm2828, %v2774, -inf
    %2848 = vmax.xlane.f32.xlu0 %v2847
    %v2849 = vpop.xlane.xlu0 %2848
    %v2850 = vsel %vm2828, %v2823, -inf
    %2851 = vmax.xlane.f32.xlu0 %v2850
    %v2852 = vpop.xlane.xlu0 %2851
    %v2853 = vsub.f32 %v2480, %v2831
    %v2854 = vsub.f32 %v2529, %v2834
    %v2855 = vsub.f32 %v2578, %v2837
    %v2856 = vsub.f32 %v2627, %v2840
    %v2857 = vsub.f32 %v2676, %v2843
    %v2858 = vsub.f32 %v2725, %v2846
    %v2859 = vsub.f32 %v2774, %v2849
    %v2860 = vsub.f32 %v2823, %v2852
    %v2861 = vmul.f32 %v2853, 1.442695
    %v2862 = vpow.pop %v2861
    %v2863 = vmul.f32 %v2854, 1.442695
    %v2864 = vpow.pop %v2863
    %v2865 = vmul.f32 %v2855, 1.442695
    %v2866 = vpow.pop %v2865
    %v2867 = vmul.f32 %v2856, 1.442695
    %v2868 = vpow.pop %v2867
    %v2869 = vmul.f32 %v2857, 1.442695
    %v2870 = vpow.pop %v2869
    %v2871 = vmul.f32 %v2858, 1.442695
    %v2872 = vpow.pop %v2871
    %v2873 = vmul.f32 %v2859, 1.442695
    %v2874 = vpow.pop %v2873
    %v2875 = vmul.f32 %v2860, 1.442695
    %v2876 = vpow.pop %v2875
    %v2877 = vsel %vm2828, %v2862, 0.0
    %2878 = vadd.xlane.f32.xlu0 %v2877
    %v2879 = vpop.xlane.xlu0 %2878
    %v2880 = vsel %vm2828, %v2864, 0.0
    %2881 = vadd.xlane.f32.xlu0 %v2880
    %v2882 = vpop.xlane.xlu0 %2881
    %v2883 = vsel %vm2828, %v2866, 0.0
    %2884 = vadd.xlane.f32.xlu0 %v2883
    %v2885 = vpop.xlane.xlu0 %2884
    %v2886 = vsel %vm2828, %v2868, 0.0
    %2887 = vadd.xlane.f32.xlu0 %v2886
    %v2888 = vpop.xlane.xlu0 %2887
    %v2889 = vsel %vm2828, %v2870, 0.0
    %2890 = vadd.xlane.f32.xlu0 %v2889
    %v2891 = vpop.xlane.xlu0 %2890
    %v2892 = vsel %vm2828, %v2872, 0.0
    %2893 = vadd.xlane.f32.xlu0 %v2892
    %v2894 = vpop.xlane.xlu0 %2893
    %v2895 = vsel %vm2828, %v2874, 0.0
    %2896 = vadd.xlane.f32.xlu0 %v2895
    %v2897 = vpop.xlane.xlu0 %2896
    %v2898 = vsel %vm2828, %v2876, 0.0
    %2899 = vadd.xlane.f32.xlu0 %v2898
    %v2900 = vpop.xlane.xlu0 %2899
    %v2901 = vrcp.pop %v2879
    %v2902 = vrcp.pop %v2882
    %v2903 = vrcp.pop %v2885
    %v2904 = vrcp.pop %v2888
    %v2905 = vrcp.pop %v2891
    %v2906 = vrcp.pop %v2894
    %v2907 = vrcp.pop %v2897
    %v2908 = vrcp.pop %v2900
    %v2909 = vmul.f32 %v2862, %v2901
    %v2910 = vmul.f32 %v2864, %v2902
    %v2911 = vmul.f32 %v2866, %v2903
    %v2912 = vmul.f32 %v2868, %v2904
    %v2913 = vmul.f32 %v2870, %v2905
    %v2914 = vmul.f32 %v2872, %v2906
    %v2915 = vmul.f32 %v2874, %v2907
    %v2916 = vmul.f32 %v2876, %v2908
    %v2917 = vsel %vm2828, %v2909, 0.0
    %v2918 = vrot.slane %v2917, 4
    %v2919 = vadd.f32 %v2917, %v2918
    %v2920 = vrot.slane %v2919, 2
    %v2921 = vadd.f32 %v2919, %v2920
    %v2922 = vrot.slane %v2921, 1
    %v2923 = vadd.f32 %v2921, %v2922
    %v2924 = vsel %vm2828, %v2910, 0.0
    %v2925 = vrot.slane %v2924, 4
    %v2926 = vadd.f32 %v2924, %v2925
    %v2927 = vrot.slane %v2926, 2
    %v2928 = vadd.f32 %v2926, %v2927
    %v2929 = vrot.slane %v2928, 1
    %v2930 = vadd.f32 %v2928, %v2929
    %v2931 = vsel %vm2828, %v2911, 0.0
    %v2932 = vrot.slane %v2931, 4
    %v2933 = vadd.f32 %v2931, %v2932
    %v2934 = vrot.slane %v2933, 2
    %v2935 = vadd.f32 %v2933, %v2934
    %v2936 = vrot.slane %v2935, 1
    %v2937 = vadd.f32 %v2935, %v2936
    %v2938 = vsel %vm2828, %v2912, 0.0
    %v2939 = vrot.slane %v2938, 4
    %v2940 = vadd.f32 %v2938, %v2939
    %v2941 = vrot.slane %v2940, 2
    %v2942 = vadd.f32 %v2940, %v2941
    %v2943 = vrot.slane %v2942, 1
    %v2944 = vadd.f32 %v2942, %v2943
    %v2945 = vsel %vm2828, %v2913, 0.0
    %v2946 = vrot.slane %v2945, 4
    %v2947 = vadd.f32 %v2945, %v2946
    %v2948 = vrot.slane %v2947, 2
    %v2949 = vadd.f32 %v2947, %v2948
    %v2950 = vrot.slane %v2949, 1
    %v2951 = vadd.f32 %v2949, %v2950
    %v2952 = vsel %vm2828, %v2914, 0.0
    %v2953 = vrot.slane %v2952, 4
    %v2954 = vadd.f32 %v2952, %v2953
    %v2955 = vrot.slane %v2954, 2
    %v2956 = vadd.f32 %v2954, %v2955
    %v2957 = vrot.slane %v2956, 1
    %v2958 = vadd.f32 %v2956, %v2957
    %v2959 = vsel %vm2828, %v2915, 0.0
    %v2960 = vrot.slane %v2959, 4
    %v2961 = vadd.f32 %v2959, %v2960
    %v2962 = vrot.slane %v2961, 2
    %v2963 = vadd.f32 %v2961, %v2962
    %v2964 = vrot.slane %v2963, 1
    %v2965 = vadd.f32 %v2963, %v2964
    %v2966 = vsel %vm2828, %v2916, 0.0
    %v2967 = vrot.slane %v2966, 4
    %v2968 = vadd.f32 %v2966, %v2967
    %v2969 = vrot.slane %v2968, 2
    %v2970 = vadd.f32 %v2968, %v2969
    %v2971 = vrot.slane %v2970, 1
    %v2972 = vadd.f32 %v2970, %v2971
    %v2973 = vpack.c.bf16 %v2923, %v2923
    %v2974 = vpack.c.bf16 %v2930, %v2930
    %v2975 = vpack.c.bf16 %v2937, %v2937
    %v2976 = vpack.c.bf16 %v2944, %v2944
    %v2977 = vpack.c.bf16 %v2951, %v2951
    %v2978 = vpack.c.bf16 %v2958, %v2958
    %v2979 = vpack.c.bf16 %v2965, %v2965
    %v2980 = vpack.c.bf16 %v2972, %v2972
    %2981 = vrot.lane.b32.xlu0 %v2305, 64
    %v2982 = vpop.permute.xlu0 %2981
    %v2984 = vsel %vm2828, %v2973, 0
    %vm2986 = vcmask 1043456
    %v2988 = vsel %vm2986, %v2982, 0
    %2990 = vmatprep.subr.bf16.mxu0 0
    %2991 = vmatpush1.bf16.msra.mxu0 0
    %2992 = vmatprep.subr.bf16.mxu0 0
    %2993 = vmatpush1.bf16.msra.mxu0 0
    %2994 = vmatprep.subr.bf16.mxu0 0
    %2995 = vmatpush1.bf16.msra.mxu0 0
    %2996 = vmatprep.subr.bf16.mxu0 0
    %2997 = vmatpush1.bf16.msra.mxu0 0
    %2998 = vmatprep.subr.bf16.mxu0 0
    %2999 = vmatpush1.bf16.msra.mxu0 0
    %3000 = vmatprep.subr.bf16.mxu0 0
    %3001 = vmatpush1.bf16.msra.mxu0 0
    %3002 = vmatprep.subr.bf16.mxu0 0
    %3003 = vmatpush1.bf16.msra.mxu0 0
    %3004 = vmatprep.subr.bf16.mxu0 0
    %3005 = vmatpush1.bf16.msra.mxu0 %v2988
    %3006 = vmatprep.subr.bf16.mxu0 0
    %3007 = vmatpush2.bf16.msra.mxu0 0
    %3008 = vmatprep.subr.bf16.mxu0 0
    %3009 = vmatpush2.bf16.msra.mxu0 0
    %3010 = vmatprep.subr.bf16.mxu0 0
    %3011 = vmatpush2.bf16.msra.mxu0 0
    %3012 = vmatprep.subr.bf16.mxu0 0
    %3013 = vmatpush2.bf16.msra.mxu0 0
    %3014 = vmatprep.subr.bf16.mxu0 0
    %3015 = vmatpush2.bf16.msra.mxu0 0
    %3016 = vmatprep.subr.bf16.mxu0 0
    %3017 = vmatpush2.bf16.msra.mxu0 0
    %3018 = vmatprep.subr.bf16.mxu0 0
    %3019 = vmatpush2.bf16.msra.mxu0 0
    %3020 = vmatprep.subr.bf16.mxu0 0
    %3021 = vmatpush2.bf16.msra.mxu0 0
    %3022 = vmatprep.mubr.bf16.mxu0 0
    %3023 = vmatmul.mubr.bf16.gmra.mxu0 %v2984
    %v3024 = vpop.f32.mrf.mxu0
    %v3025 = vadd.f32 0.0, %v3024
    %v3026 = vpop.f32.mrf.mxu0
    %v3027 = vpop.f32.mrf.mxu0
    %v3028 = vpop.f32.mrf.mxu0
    %3029 = vdwg.mxu0
    %3030 = vrot.lane.b32.xlu0 %v2306, 64
    %v3031 = vpop.permute.xlu0 %3030
    %v3033 = vsel %vm2828, %v2974, 0
    %v3036 = vsel %vm2986, %v3031, 0
    %3038 = vmatprep.subr.bf16.mxu0 0
    %3039 = vmatpush1.bf16.msra.mxu0 0
    %3040 = vmatprep.subr.bf16.mxu0 0
    %3041 = vmatpush1.bf16.msra.mxu0 0
    %3042 = vmatprep.subr.bf16.mxu0 0
    %3043 = vmatpush1.bf16.msra.mxu0 0
    %3044 = vmatprep.subr.bf16.mxu0 0
    %3045 = vmatpush1.bf16.msra.mxu0 0
    %3046 = vmatprep.subr.bf16.mxu0 0
    %3047 = vmatpush1.bf16.msra.mxu0 0
    %3048 = vmatprep.subr.bf16.mxu0 0
    %3049 = vmatpush1.bf16.msra.mxu0 0
    %3050 = vmatprep.subr.bf16.mxu0 0
    %3051 = vmatpush1.bf16.msra.mxu0 0
    %3052 = vmatprep.subr.bf16.mxu0 0
    %3053 = vmatpush1.bf16.msra.mxu0 %v3036
    %3054 = vmatprep.subr.bf16.mxu0 0
    %3055 = vmatpush2.bf16.msra.mxu0 0
    %3056 = vmatprep.subr.bf16.mxu0 0
    %3057 = vmatpush2.bf16.msra.mxu0 0
    %3058 = vmatprep.subr.bf16.mxu0 0
    %3059 = vmatpush2.bf16.msra.mxu0 0
    %3060 = vmatprep.subr.bf16.mxu0 0
    %3061 = vmatpush2.bf16.msra.mxu0 0
    %3062 = vmatprep.subr.bf16.mxu0 0
    %3063 = vmatpush2.bf16.msra.mxu0 0
    %3064 = vmatprep.subr.bf16.mxu0 0
    %3065 = vmatpush2.bf16.msra.mxu0 0
    %3066 = vmatprep.subr.bf16.mxu0 0
    %3067 = vmatpush2.bf16.msra.mxu0 0
    %3068 = vmatprep.subr.bf16.mxu0 0
    %3069 = vmatpush2.bf16.msra.mxu0 0
    %3070 = vmatprep.mubr.bf16.mxu0 0
    %3071 = vmatmul.mubr.bf16.gmra.mxu0 %v3033
    %v3072 = vpop.f32.mrf.mxu0
    %v3073 = vadd.f32 0.0, %v3072
    %v3074 = vpop.f32.mrf.mxu0
    %v3075 = vpop.f32.mrf.mxu0
    %v3076 = vpop.f32.mrf.mxu0
    %3077 = vdwg.mxu0
    %3078 = vrot.lane.b32.xlu0 %v2307, 64
    %v3079 = vpop.permute.xlu0 %3078
    %v3081 = vsel %vm2828, %v2975, 0
    %v3084 = vsel %vm2986, %v3079, 0
    %3086 = vmatprep.subr.bf16.mxu0 0
    %3087 = vmatpush1.bf16.msra.mxu0 0
    %3088 = vmatprep.subr.bf16.mxu0 0
    %3089 = vmatpush1.bf16.msra.mxu0 0
    %3090 = vmatprep.subr.bf16.mxu0 0
    %3091 = vmatpush1.bf16.msra.mxu0 0
    %3092 = vmatprep.subr.bf16.mxu0 0
    %3093 = vmatpush1.bf16.msra.mxu0 0
    %3094 = vmatprep.subr.bf16.mxu0 0
    %3095 = vmatpush1.bf16.msra.mxu0 0
    %3096 = vmatprep.subr.bf16.mxu0 0
    %3097 = vmatpush1.bf16.msra.mxu0 0
    %3098 = vmatprep.subr.bf16.mxu0 0
    %3099 = vmatpush1.bf16.msra.mxu0 0
    %3100 = vmatprep.subr.bf16.mxu0 0
    %3101 = vmatpush1.bf16.msra.mxu0 %v3084
    %3102 = vmatprep.subr.bf16.mxu0 0
    %3103 = vmatpush2.bf16.msra.mxu0 0
    %3104 = vmatprep.subr.bf16.mxu0 0
    %3105 = vmatpush2.bf16.msra.mxu0 0
    %3106 = vmatprep.subr.bf16.mxu0 0
    %3107 = vmatpush2.bf16.msra.mxu0 0
    %3108 = vmatprep.subr.bf16.mxu0 0
    %3109 = vmatpush2.bf16.msra.mxu0 0
    %3110 = vmatprep.subr.bf16.mxu0 0
    %3111 = vmatpush2.bf16.msra.mxu0 0
    %3112 = vmatprep.subr.bf16.mxu0 0
    %3113 = vmatpush2.bf16.msra.mxu0 0
    %3114 = vmatprep.subr.bf16.mxu0 0
    %3115 = vmatpush2.bf16.msra.mxu0 0
    %3116 = vmatprep.subr.bf16.mxu0 0
    %3117 = vmatpush2.bf16.msra.mxu0 0
    %3118 = vmatprep.mubr.bf16.mxu0 0
    %3119 = vmatmul.mubr.bf16.gmra.mxu0 %v3081
    %v3120 = vpop.f32.mrf.mxu0
    %v3121 = vadd.f32 0.0, %v3120
    %v3122 = vpop.f32.mrf.mxu0
    %v3123 = vpop.f32.mrf.mxu0
    %v3124 = vpop.f32.mrf.mxu0
    %3125 = vdwg.mxu0
    %3126 = vrot.lane.b32.xlu0 %v2308, 64
    %v3127 = vpop.permute.xlu0 %3126
    %v3129 = vsel %vm2828, %v2976, 0
    %v3132 = vsel %vm2986, %v3127, 0
    %3134 = vmatprep.subr.bf16.mxu0 0
    %3135 = vmatpush1.bf16.msra.mxu0 0
    %3136 = vmatprep.subr.bf16.mxu0 0
    %3137 = vmatpush1.bf16.msra.mxu0 0
    %3138 = vmatprep.subr.bf16.mxu0 0
    %3139 = vmatpush1.bf16.msra.mxu0 0
    %3140 = vmatprep.subr.bf16.mxu0 0
    %3141 = vmatpush1.bf16.msra.mxu0 0
    %3142 = vmatprep.subr.bf16.mxu0 0
    %3143 = vmatpush1.bf16.msra.mxu0 0
    %3144 = vmatprep.subr.bf16.mxu0 0
    %3145 = vmatpush1.bf16.msra.mxu0 0
    %3146 = vmatprep.subr.bf16.mxu0 0
    %3147 = vmatpush1.bf16.msra.mxu0 0
    %3148 = vmatprep.subr.bf16.mxu0 0
    %3149 = vmatpush1.bf16.msra.mxu0 %v3132
    %3150 = vmatprep.subr.bf16.mxu0 0
    %3151 = vmatpush2.bf16.msra.mxu0 0
    %3152 = vmatprep.subr.bf16.mxu0 0
    %3153 = vmatpush2.bf16.msra.mxu0 0
    %3154 = vmatprep.subr.bf16.mxu0 0
    %3155 = vmatpush2.bf16.msra.mxu0 0
    %3156 = vmatprep.subr.bf16.mxu0 0
    %3157 = vmatpush2.bf16.msra.mxu0 0
    %3158 = vmatprep.subr.bf16.mxu0 0
    %3159 = vmatpush2.bf16.msra.mxu0 0
    %3160 = vmatprep.subr.bf16.mxu0 0
    %3161 = vmatpush2.bf16.msra.mxu0 0
    %3162 = vmatprep.subr.bf16.mxu0 0
    %3163 = vmatpush2.bf16.msra.mxu0 0
    %3164 = vmatprep.subr.bf16.mxu0 0
    %3165 = vmatpush2.bf16.msra.mxu0 0
    %3166 = vmatprep.mubr.bf16.mxu0 0
    %3167 = vmatmul.mubr.bf16.gmra.mxu0 %v3129
    %v3168 = vpop.f32.mrf.mxu0
    %v3169 = vadd.f32 0.0, %v3168
    %v3170 = vpop.f32.mrf.mxu0
    %v3171 = vpop.f32.mrf.mxu0
    %v3172 = vpop.f32.mrf.mxu0
    %3173 = vdwg.mxu0
    %3174 = vrot.lane.b32.xlu0 %v2309, 64
    %v3175 = vpop.permute.xlu0 %3174
    %v3177 = vsel %vm2828, %v2977, 0
    %v3180 = vsel %vm2986, %v3175, 0
    %3182 = vmatprep.subr.bf16.mxu0 0
    %3183 = vmatpush1.bf16.msra.mxu0 0
    %3184 = vmatprep.subr.bf16.mxu0 0
    %3185 = vmatpush1.bf16.msra.mxu0 0
    %3186 = vmatprep.subr.bf16.mxu0 0
    %3187 = vmatpush1.bf16.msra.mxu0 0
    %3188 = vmatprep.subr.bf16.mxu0 0
    %3189 = vmatpush1.bf16.msra.mxu0 0
    %3190 = vmatprep.subr.bf16.mxu0 0
    %3191 = vmatpush1.bf16.msra.mxu0 0
    %3192 = vmatprep.subr.bf16.mxu0 0
    %3193 = vmatpush1.bf16.msra.mxu0 0
    %3194 = vmatprep.subr.bf16.mxu0 0
    %3195 = vmatpush1.bf16.msra.mxu0 0
    %3196 = vmatprep.subr.bf16.mxu0 0
    %3197 = vmatpush1.bf16.msra.mxu0 %v3180
    %3198 = vmatprep.subr.bf16.mxu0 0
    %3199 = vmatpush2.bf16.msra.mxu0 0
    %3200 = vmatprep.subr.bf16.mxu0 0
    %3201 = vmatpush2.bf16.msra.mxu0 0
    %3202 = vmatprep.subr.bf16.mxu0 0
    %3203 = vmatpush2.bf16.msra.mxu0 0
    %3204 = vmatprep.subr.bf16.mxu0 0
    %3205 = vmatpush2.bf16.msra.mxu0 0
    %3206 = vmatprep.subr.bf16.mxu0 0
    %3207 = vmatpush2.bf16.msra.mxu0 0
    %3208 = vmatprep.subr.bf16.mxu0 0
    %3209 = vmatpush2.bf16.msra.mxu0 0
    %3210 = vmatprep.subr.bf16.mxu0 0
    %3211 = vmatpush2.bf16.msra.mxu0 0
    %3212 = vmatprep.subr.bf16.mxu0 0
    %3213 = vmatpush2.bf16.msra.mxu0 0
    %3214 = vmatprep.mubr.bf16.mxu0 0
    %3215 = vmatmul.mubr.bf16.gmra.mxu0 %v3177
    %v3216 = vpop.f32.mrf.mxu0
    %v3217 = vadd.f32 0.0, %v3216
    %v3218 = vpop.f32.mrf.mxu0
    %v3219 = vpop.f32.mrf.mxu0
    %v3220 = vpop.f32.mrf.mxu0
    %3221 = vdwg.mxu0
    %3222 = vrot.lane.b32.xlu0 %v2310, 64
    %v3223 = vpop.permute.xlu0 %3222
    %v3225 = vsel %vm2828, %v2978, 0
    %v3228 = vsel %vm2986, %v3223, 0
    %3230 = vmatprep.subr.bf16.mxu0 0
    %3231 = vmatpush1.bf16.msra.mxu0 0
    %3232 = vmatprep.subr.bf16.mxu0 0
    %3233 = vmatpush1.bf16.msra.mxu0 0
    %3234 = vmatprep.subr.bf16.mxu0 0
    %3235 = vmatpush1.bf16.msra.mxu0 0
    %3236 = vmatprep.subr.bf16.mxu0 0
    %3237 = vmatpush1.bf16.msra.mxu0 0
    %3238 = vmatprep.subr.bf16.mxu0 0
    %3239 = vmatpush1.bf16.msra.mxu0 0
    %3240 = vmatprep.subr.bf16.mxu0 0
    %3241 = vmatpush1.bf16.msra.mxu0 0
    %3242 = vmatprep.subr.bf16.mxu0 0
    %3243 = vmatpush1.bf16.msra.mxu0 0
    %3244 = vmatprep.subr.bf16.mxu0 0
    %3245 = vmatpush1.bf16.msra.mxu0 %v3228
    %3246 = vmatprep.subr.bf16.mxu0 0
    %3247 = vmatpush2.bf16.msra.mxu0 0
    %3248 = vmatprep.subr.bf16.mxu0 0
    %3249 = vmatpush2.bf16.msra.mxu0 0
    %3250 = vmatprep.subr.bf16.mxu0 0
    %3251 = vmatpush2.bf16.msra.mxu0 0
    %3252 = vmatprep.subr.bf16.mxu0 0
    %3253 = vmatpush2.bf16.msra.mxu0 0
    %3254 = vmatprep.subr.bf16.mxu0 0
    %3255 = vmatpush2.bf16.msra.mxu0 0
    %3256 = vmatprep.subr.bf16.mxu0 0
    %3257 = vmatpush2.bf16.msra.mxu0 0
    %3258 = vmatprep.subr.bf16.mxu0 0
    %3259 = vmatpush2.bf16.msra.mxu0 0
    %3260 = vmatprep.subr.bf16.mxu0 0
    %3261 = vmatpush2.bf16.msra.mxu0 0
    %3262 = vmatprep.mubr.bf16.mxu0 0
    %3263 = vmatmul.mubr.bf16.gmra.mxu0 %v3225
    %v3264 = vpop.f32.mrf.mxu0
    %v3265 = vadd.f32 0.0, %v3264
    %v3266 = vpop.f32.mrf.mxu0
    %v3267 = vpop.f32.mrf.mxu0
    %v3268 = vpop.f32.mrf.mxu0
    %3269 = vdwg.mxu0
    %3270 = vrot.lane.b32.xlu0 %v2311, 64
    %v3271 = vpop.permute.xlu0 %3270
    %v3273 = vsel %vm2828, %v2979, 0
    %v3276 = vsel %vm2986, %v3271, 0
    %3278 = vmatprep.subr.bf16.mxu0 0
    %3279 = vmatpush1.bf16.msra.mxu0 0
    %3280 = vmatprep.subr.bf16.mxu0 0
    %3281 = vmatpush1.bf16.msra.mxu0 0
    %3282 = vmatprep.subr.bf16.mxu0 0
    %3283 = vmatpush1.bf16.msra.mxu0 0
    %3284 = vmatprep.subr.bf16.mxu0 0
    %3285 = vmatpush1.bf16.msra.mxu0 0
    %3286 = vmatprep.subr.bf16.mxu0 0
    %3287 = vmatpush1.bf16.msra.mxu0 0
    %3288 = vmatprep.subr.bf16.mxu0 0
    %3289 = vmatpush1.bf16.msra.mxu0 0
    %3290 = vmatprep.subr.bf16.mxu0 0
    %3291 = vmatpush1.bf16.msra.mxu0 0
    %3292 = vmatprep.subr.bf16.mxu0 0
    %3293 = vmatpush1.bf16.msra.mxu0 %v3276
    %3294 = vmatprep.subr.bf16.mxu0 0
    %3295 = vmatpush2.bf16.msra.mxu0 0
    %3296 = vmatprep.subr.bf16.mxu0 0
    %3297 = vmatpush2.bf16.msra.mxu0 0
    %3298 = vmatprep.subr.bf16.mxu0 0
    %3299 = vmatpush2.bf16.msra.mxu0 0
    %3300 = vmatprep.subr.bf16.mxu0 0
    %3301 = vmatpush2.bf16.msra.mxu0 0
    %3302 = vmatprep.subr.bf16.mxu0 0
    %3303 = vmatpush2.bf16.msra.mxu0 0
    %3304 = vmatprep.subr.bf16.mxu0 0
    %3305 = vmatpush2.bf16.msra.mxu0 0
    %3306 = vmatprep.subr.bf16.mxu0 0
    %3307 = vmatpush2.bf16.msra.mxu0 0
    %3308 = vmatprep.subr.bf16.mxu0 0
    %3309 = vmatpush2.bf16.msra.mxu0 0
    %3310 = vmatprep.mubr.bf16.mxu0 0
    %3311 = vmatmul.mubr.bf16.gmra.mxu0 %v3273
    %v3312 = vpop.f32.mrf.mxu0
    %v3313 = vadd.f32 0.0, %v3312
    %v3314 = vpop.f32.mrf.mxu0
    %v3315 = vpop.f32.mrf.mxu0
    %v3316 = vpop.f32.mrf.mxu0
    %3317 = vdwg.mxu0
    %3318 = vrot.lane.b32.xlu0 %v2312, 64
    %v3319 = vpop.permute.xlu0 %3318
    %v3321 = vsel %vm2828, %v2980, 0
    %v3324 = vsel %vm2986, %v3319, 0
    %3326 = vmatprep.subr.bf16.mxu0 0
    %3327 = vmatpush1.bf16.msra.mxu0 0
    %3328 = vmatprep.subr.bf16.mxu0 0
    %3329 = vmatpush1.bf16.msra.mxu0 0
    %3330 = vmatprep.subr.bf16.mxu0 0
    %3331 = vmatpush1.bf16.msra.mxu0 0
    %3332 = vmatprep.subr.bf16.mxu0 0
    %3333 = vmatpush1.bf16.msra.mxu0 0
    %3334 = vmatprep.subr.bf16.mxu0 0
    %3335 = vmatpush1.bf16.msra.mxu0 0
    %3336 = vmatprep.subr.bf16.mxu0 0
    %3337 = vmatpush1.bf16.msra.mxu0 0
    %3338 = vmatprep.subr.bf16.mxu0 0
    %3339 = vmatpush1.bf16.msra.mxu0 0
    %3340 = vmatprep.subr.bf16.mxu0 0
    %3341 = vmatpush1.bf16.msra.mxu0 %v3324
    %3342 = vmatprep.subr.bf16.mxu0 0
    %3343 = vmatpush2.bf16.msra.mxu0 0
    %3344 = vmatprep.subr.bf16.mxu0 0
    %3345 = vmatpush2.bf16.msra.mxu0 0
    %3346 = vmatprep.subr.bf16.mxu0 0
    %3347 = vmatpush2.bf16.msra.mxu0 0
    %3348 = vmatprep.subr.bf16.mxu0 0
    %3349 = vmatpush2.bf16.msra.mxu0 0
    %3350 = vmatprep.subr.bf16.mxu0 0
    %3351 = vmatpush2.bf16.msra.mxu0 0
    %3352 = vmatprep.subr.bf16.mxu0 0
    %3353 = vmatpush2.bf16.msra.mxu0 0
    %3354 = vmatprep.subr.bf16.mxu0 0
    %3355 = vmatpush2.bf16.msra.mxu0 0
    %3356 = vmatprep.subr.bf16.mxu0 0
    %3357 = vmatpush2.bf16.msra.mxu0 0
    %3358 = vmatprep.mubr.bf16.mxu0 0
    %3359 = vmatmul.mubr.bf16.gmra.mxu0 %v3321
    %v3360 = vpop.f32.mrf.mxu0
    %v3361 = vadd.f32 0.0, %v3360
    %v3362 = vpop.f32.mrf.mxu0
    %v3363 = vpop.f32.mrf.mxu0
    %v3364 = vpop.f32.mrf.mxu0
    %3365 = vdwg.mxu0
    %v3366 = vpack.c.bf16 %v3025, %v3025
    %v3367 = vpack.c.bf16 %v3073, %v3073
    %v3368 = vpack.c.bf16 %v3121, %v3121
    %v3369 = vpack.c.bf16 %v3169, %v3169
    %v3370 = vpack.c.bf16 %v3217, %v3217
    %v3371 = vpack.c.bf16 %v3265, %v3265
    %v3372 = vpack.c.bf16 %v3313, %v3313
    %v3373 = vpack.c.bf16 %v3361, %v3361
    %v3374 = vld [vmem:[%s7] sm:$0xf]
    %v3375 = vld [vmem:[%s7 + $0x4] sm:$0xf]
    %v3376 = vld [vmem:[%s7 + $0x8] sm:$0xf]
    %v3377 = vld [vmem:[%s7 + $0xc] sm:$0xf]
    %v3378 = vld [vmem:[%s8] sm:$0x1]
    %v3380 = vlaneseq
    %v3381 = vshrl.u32 %v3380, 7
    %v3382 = vsub.s32 0, %v3381
    %v3383 = vrot.slane %v3378, %v3382
    %v3393 = vunpack.c.l.b16 %v3366
    %v3394 = vunpack.c.l.b16 %v3367
    %v3395 = vunpack.c.l.b16 %v3368
    %v3396 = vunpack.c.l.b16 %v3369
    %v3397 = vunpack.c.l.b16 %v3370
    %v3398 = vunpack.c.l.b16 %v3371
    %v3399 = vunpack.c.l.b16 %v3372
    %v3400 = vunpack.c.l.b16 %v3373
    %v3401 = vrot.slane %v3394, 7
    %vm3402 = vcmask 1041409
    %v3403 = vsel %vm3402, %v3401, %v3393
    %v3404 = vrot.slane %v3395, 6
    %vm3405 = vcmask 1042434
    %v3406 = vsel %vm3405, %v3404, %v3403
    %v3407 = vrot.slane %v3396, 5
    %vm3408 = vcmask 1043459
    %v3409 = vsel %vm3408, %v3407, %v3406
    %v3410 = vrot.slane %v3397, 4
    %vm3411 = vcmask 1044484
    %v3412 = vsel %vm3411, %v3410, %v3409
    %v3413 = vrot.slane %v3398, 3
    %vm3414 = vcmask 1045509
    %v3415 = vsel %vm3414, %v3413, %v3412
    %v3416 = vrot.slane %v3399, 2
    %vm3417 = vcmask 1046534
    %v3418 = vsel %vm3417, %v3416, %v3415
    %v3419 = vrot.slane %v3400, 1
    %vm3420 = vcmask 1047559
    %v3421 = vsel %vm3420, %v3419, %v3418
    %v3422 = vpack.c.b16 %v3421, %v3421
    %v3427 = vunpack.c.l.b16 %v3374
    %v3428 = vunpack.c.l.b16 %v3375
    %v3429 = vunpack.c.l.b16 %v3376
    %v3430 = vunpack.c.l.b16 %v3377
    %v3431 = vpack.c.b16 %v3428, %v3427
    %v3432 = vpack.c.b16 %v3430, %v3429
    %v3436 = vsel %vm254, %v3422, 0
    %3438 = vmatprep.subr.bf16.mxu0 0
    %3439 = vmatpush1.bf16.msra.mxu0 0
    %3440 = vmatprep.subr.bf16.mxu0 0
    %3441 = vmatpush1.bf16.msra.mxu0 0
    %3442 = vmatprep.subr.bf16.mxu0 0
    %3443 = vmatpush1.bf16.msra.mxu0 0
    %3444 = vmatprep.subr.bf16.mxu0 0
    %3445 = vmatpush1.bf16.msra.mxu0 0
    %3446 = vmatprep.subr.bf16.mxu0 0
    %3447 = vmatpush1.bf16.msra.mxu0 0
    %3448 = vmatprep.subr.bf16.mxu0 0
    %3449 = vmatpush1.bf16.msra.mxu0 0
    %3450 = vmatprep.subr.bf16.mxu0 0
    %3451 = vmatpush1.bf16.msra.mxu0 %v3432
    %3452 = vmatprep.subr.bf16.mxu0 0
    %3453 = vmatpush1.bf16.msra.mxu0 %v3431
    %3454 = vmatprep.subr.bf16.mxu0 0
    %3455 = vmatpush2.bf16.msra.mxu0 0
    %3456 = vmatprep.subr.bf16.mxu0 0
    %3457 = vmatpush2.bf16.msra.mxu0 0
    %3458 = vmatprep.subr.bf16.mxu0 0
    %3459 = vmatpush2.bf16.msra.mxu0 0
    %3460 = vmatprep.subr.bf16.mxu0 0
    %3461 = vmatpush2.bf16.msra.mxu0 0
    %3462 = vmatprep.subr.bf16.mxu0 0
    %3463 = vmatpush2.bf16.msra.mxu0 0
    %3464 = vmatprep.subr.bf16.mxu0 0
    %3465 = vmatpush2.bf16.msra.mxu0 0
    %3466 = vmatprep.subr.bf16.mxu0 0
    %3467 = vmatpush2.bf16.msra.mxu0 0
    %3468 = vmatprep.subr.bf16.mxu0 0
    %3469 = vmatpush2.bf16.msra.mxu0 0
    %3470 = vmatprep.mubr.bf16.mxu0 0
    %3471 = vmatmul.mubr.bf16.gmra.mxu0 %v3436
    %v3472 = vpop.f32.mrf.mxu0
    %v3473 = vadd.f32 %v3383, %v3472
    %v3474 = vpop.f32.mrf.mxu0
    %v3475 = vpop.f32.mrf.mxu0
    %v3476 = vpop.f32.mrf.mxu0
    %3477 = vdwg.mxu0
    %vm3478 = vcmask 31744
    %3479 = vst.msk [vmem:[%s9] sm:$0xff] %vm3478, %v3473
    // Predicated region
    $region54: #{tpu_custom_call.1} parent=1 // pred_check
      _
    $region55: #{tpu_custom_call.1} parent=1 // pred_check_branch
      %3481 = sbr.rel (0) target = $region57
    $region56: #{tpu_custom_call.1} parent=1 // pred_region
      _
    $region57: #{tpu_custom_call.1} parent=1 // pred_fallthru
      _
    // Predicated region
    $region58: #{tpu_custom_call.1} parent=1 // pred_check
      _
    $region59: #{tpu_custom_call.1} parent=1 // pred_check_branch
      %3483 = sbr.rel (0) target = $region61
    $region60: #{tpu_custom_call.1} parent=1 // pred_region
      _
    $region61: #{tpu_custom_call.1} parent=1 // pred_fallthru
      _
    %3484 = vsyncpa [#allocation6], 1
    %3485 = vsyncpa [#allocation8], 1
    %3486 = vsyncpa [#allocation11], 1

</llo_original>
